<compile_context>
chip_gen: v6e
topology: v6e:2x2x1
jax: 0.10.0
libtpu: 0.0.40
codegen_flags: <defaults>
</compile_context>

<pallas_src>
from functools import partial

import numpy as np
import jax
import jax.numpy as jnp
from jax.experimental import pallas as pl
from jax.experimental.pallas import tpu as pltpu

_EPS = float(jnp.finfo(jnp.float32).eps)  # torch.finfo().eps for default float32


def _round_up(x, m):
    return ((x + m - 1) // m) * m


# ----------------------------- Pallas kernel ------------------------------- #

def _exact_dot3(x_f32, w_bf16):
    """Exact-to-f32 `x @ w` for a 0/1-valued bf16 matrix `w`.

    x is split exactly into 3 bf16 chunks (x == c0 + c1 + c2 to f32 precision)
    and three DEFAULT-precision bf16 MXU passes are accumulated in f32.  Since
    the weight operand has no low-order chunks this matches precision=HIGHEST
    (bf16_6x) results at half the MXU passes (3 vs 6).
    """
    f32 = jnp.float32
    c0 = x_f32.astype(jnp.bfloat16)
    r1 = x_f32 - c0.astype(f32)
    c1 = r1.astype(jnp.bfloat16)
    c2 = (r1 - c1.astype(f32)).astype(jnp.bfloat16)
    out = jnp.dot(c0, w_bf16, preferred_element_type=f32)
    out = out + jnp.dot(c1, w_bf16, preferred_element_type=f32)
    out = out + jnp.dot(c2, w_bf16, preferred_element_type=f32)
    return out


def _normsoap_grad_kernel(p_ref, q_ref, e_ref, r_ref, f_ref, p_out_ref, q_out_ref):
    """Batched normalization + Jacobian projection for tb atoms.

    p_ref:  [tb, D]      descriptor rows (D on lanes), f32
    q_ref:  [tb, D*M]    flattened Jacobian rows, lane-dense (d slow, m fast), f32
    e_ref:  [D, D*M]     E[d, d'*M+m] = delta(d, d')   (expand p along m), bf16 0/1
    r_ref:  [D*M, M]     R[d*M+m', m] = delta(m', m)   (reduce over d),    bf16 0/1
    f_ref:  [M, D*M]     F[m', d*M+m] = delta(m', m)   (re-expand proj),   bf16 0/1
    """
    p = p_ref[...]                                        # [tb, D]
    q = q_ref[...]                                        # [tb, DM]
    E = e_ref[...]
    R = r_ref[...]
    F = f_ref[...]

    # Per-atom norm: lane-axis reduce (D on lanes).
    normsq = jnp.sum(p * p, axis=1, keepdims=True)        # [tb, 1]
    norm = jnp.sqrt(normsq)
    safe = norm > 0.0                                     # [tb, 1]
    denom = jnp.where(safe, norm + jnp.float32(_EPS), jnp.float32(1.0))
    inv = 1.0 / denom                                     # [tb, 1]

    pn = p * inv                                          # [tb, D]
    qn = q * inv                                          # [tb, DM]

    # All three "selection" dots run on the MXU with exact 3-pass bf16 splits.
    # pn_exp[b, d*M+m] = pn[b, d]
    pn_exp = _exact_dot3(pn, E)                           # [tb, DM]
    # s[b, m] = sum_d pn[b, d] * qn[b, d*M+m]
    s = _exact_dot3(pn_exp * qn, R)                       # [tb, M]
    # s_exp[b, d*M+m] = s[b, m]
    s_exp = _exact_dot3(s, F)                             # [tb, DM]

    q_proj = qn - pn_exp * s_exp                          # rank-1 update per atom

    p_out_ref[...] = jnp.where(safe, pn, p)
    q_out_ref[...] = jnp.where(safe, q_proj, q)


# ------------------------------ JAX wrappers ------------------------------- #

@partial(jax.jit, static_argnames=("block_atoms",))
def _normalized_soap_grad_batched(p, q, *, block_atoms=256):
    """p: [B, D] f32, q: [B, D, N, 3] f32  ->  (p_norm, q_proj), same shapes."""
    B, D = p.shape
    _, _, N, three = q.shape
    M = N * three
    DM = D * M

    qf = q.reshape(B, DM)                 # row-major contiguous => free bitcast

    # Block size: <= block_atoms, a multiple of 8 (layout rule), and small
    # enough that the grid has >= 2 steps whenever B allows it (keeps both v7x
    # TensorCores busy via the "parallel" grid axis).  The final block may be
    # partial; Pallas clips its DMAs, so no padding of q is needed.
    if B <= 8:
        tb = B
    else:
        tb = min(block_atoms, _round_up(-(-B // 2), 8))
    grid = (pl.cdiv(B, tb),)

    # Constant 0/1 selection matrices.  bf16 is exact for 0/1 and halves their
    # footprint; constant index maps keep them resident in VMEM across steps.
    eye_d = np.eye(D, dtype=np.float32)
    eye_m = np.eye(M, dtype=np.float32)
    E = jnp.asarray(np.repeat(eye_d, M, axis=1), dtype=jnp.bfloat16)   # [D, DM]
    R = jnp.asarray(np.tile(eye_m, (D, 1)), dtype=jnp.bfloat16)        # [DM, M]
    F = jnp.asarray(np.tile(eye_m, (1, D)), dtype=jnp.bfloat16)        # [M, DM]

    # Double-buffered q in/out blocks + kernel intermediates; scale the scoped
    # VMEM limit with the block size but stay well under v7x's 64 MiB physical.
    vmem_limit = int(max(32 << 20, min(96 << 20, 12 * tb * DM * 4)))

    p_out, q_out = pl.pallas_call(
        _normsoap_grad_kernel,
        out_shape=(jax.ShapeDtypeStruct((B, D), jnp.float32),
                   jax.ShapeDtypeStruct((B, DM), jnp.float32)),
        grid=grid,
        in_specs=[
            pl.BlockSpec((tb, D), lambda i: (i, 0)),
            pl.BlockSpec((tb, DM), lambda i: (i, 0)),
            pl.BlockSpec((D, DM), lambda i: (0, 0)),
            pl.BlockSpec((DM, M), lambda i: (0, 0)),
            pl.BlockSpec((M, DM), lambda i: (0, 0)),
        ],
        out_specs=(
            pl.BlockSpec((tb, D), lambda i: (i, 0)),
            pl.BlockSpec((tb, DM), lambda i: (i, 0)),
        ),
        # NOTE: no input_output_aliases -- without caller-side donation the
        # must-alias would force XLA to copy q (an extra full HBM pass over the
        # dominant operand).  Re-enable {0: 0, 1: 1} if the caller donates q.
        compiler_params=pltpu.CompilerParams(
            dimension_semantics=("parallel",),
            vmem_limit_bytes=vmem_limit,
        ),
    )(p, qf, E, R, F)

    return p_out, q_out.reshape(B, D, N, three)   # free bitcast (no slice copy)


@jax.jit
def _normalize_p_only(p):
    """grad=False path in plain JAX (per perf review: launch overhead >> work)."""
    norm = jnp.sqrt(jnp.sum(p * p, axis=-1, keepdims=True))
    safe = norm > 0.0
    return jnp.where(safe, p / (norm + _EPS), p)


def normalized_soap(p, q=None, *, grad=True, block_atoms=256):
    """Mirror of NormalizedSoap.forward given the inner soap's output (p[, q]).

    Accepts a single atom (p: [D], q: [D, N, 3]) or a batch of atoms
    (p: [B, D], q: [B, D, N, 3]); the per-atom math matches the torch module.
    """
    # TODO(synk): the inner SOAP descriptor sub-module is not specified in the
    # provided code; its outputs (p, q) are taken here as the kernel inputs.
    p = jnp.asarray(p, jnp.float32)
    unbatched = p.ndim == 1
    if unbatched:
        p = p[None]

    if not grad:
        out = _normalize_p_only(p)
        return out[0] if unbatched else out

    assert q is not None
    q = jnp.asarray(q, jnp.float32)
    if unbatched:
        q = q[None]

    p_out, q_out = _normalized_soap_grad_batched(p, q, block_atoms=block_atoms)
    if unbatched:
        return p_out[0], q_out[0]
    return p_out, q_out


# ------------------------------- reference --------------------------------- #

def _reference_single(p, q):
    """Pure-JAX per-atom reference replicating the PyTorch forward (grad=True)."""
    norm = jnp.sqrt(jnp.sum(p * p))

    def normed(_):
        n = norm + _EPS
        pn = p / n
        qn = q / n
        s = jnp.sum(pn[:, None, None] * qn, axis=0)        # [N, 3]
        return pn, qn - pn[:, None, None] * s

    def passthrough(_):
        return p, q

    return jax.lax.cond(norm > 0.0, normed, passthrough, None)


# ---------------------------------- main ----------------------------------- #

if __name__ == "__main__":
    # NormalizedSoap has no parameters of its own; synthesize the inner soap's
    # outputs deterministically.  B=200 exercises the megacore split (two grid
    # steps) and a partial final block with no q padding/copies.
    B, D, N = 200, 64, 8
    key = jax.random.PRNGKey(0)
    kp, kq = jax.random.split(key)
    p = jax.random.normal(kp, (B, D), dtype=jnp.float32)
    q = jax.random.normal(kq, (B, D, N, 3), dtype=jnp.float32)
    # Include one zero-norm atom to exercise the passthrough branch.
    p = p.at[3].set(0.0)

    # Batched grad=True path (Pallas kernel, grid of atom blocks).
    p_out, q_out = normalized_soap(p, q, grad=True)
    jax.block_until_ready((p_out, q_out))

    # Single-atom call (original per-atom module semantics).
    p1, q1 = normalized_soap(p[0], q[0], grad=True)
    jax.block_until_ready((p1, q1))

    # grad=False path (plain JAX per perf review).
    p_only = normalized_soap(p, grad=False)
    jax.block_until_ready(p_only)

    # Check against the pure-JAX reference.
    p_ref, q_ref = jax.vmap(_reference_single)(p, q)
    assert p_out.shape == (B, D) and q_out.shape == (B, D, N, 3)
    assert jnp.allclose(p_out, p_ref, atol=1e-5, rtol=1e-5)
    assert jnp.allclose(q_out, q_ref, atol=1e-5, rtol=1e-5)
    assert jnp.allclose(p1, p_ref[0], atol=1e-5, rtol=1e-5)
    assert jnp.allclose(q1, q_ref[0], atol=1e-5, rtol=1e-5)
    assert jnp.allclose(p_only, p_ref, atol=1e-5, rtol=1e-5)

    print("KERNEL_OK")
</pallas_src>

<mosaic_0001>
module attributes {stable_mosaic.version = 11 : i64} {
  func.func @_normsoap_grad_kernel(%arg0: i32, %arg1: memref<104x64xf32, #tpu.memory_space<vmem>>, %arg2: memref<104x1536xf32, #tpu.memory_space<vmem>>, %arg3: memref<64x1536xbf16, #tpu.memory_space<vmem>>, %arg4: memref<1536x24xbf16, #tpu.memory_space<vmem>>, %arg5: memref<24x1536xbf16, #tpu.memory_space<vmem>>, %arg6: memref<104x64xf32, #tpu.memory_space<vmem>>, %arg7: memref<104x1536xf32, #tpu.memory_space<vmem>>) attributes {dimension_semantics = [#tpu.dimension_semantics<parallel>], iteration_bounds = array<i64: 2>, scalar_prefetch = 0 : i64, scratch_operands = 0 : i64, tpu.core_type = #tpu.core_type<tc>, window_params = [{transform_indices = @transform_0, window_bounds = array<i64: 104, 64>}, {transform_indices = @transform_1, window_bounds = array<i64: 104, 1536>}, {pipeline_mode = #tpu.pipeline_mode<synchronous>, transform_indices = @transform_2, window_bounds = array<i64: 64, 1536>}, {pipeline_mode = #tpu.pipeline_mode<synchronous>, transform_indices = @transform_3, window_bounds = array<i64: 1536, 24>}, {pipeline_mode = #tpu.pipeline_mode<synchronous>, transform_indices = @transform_4, window_bounds = array<i64: 24, 1536>}, {transform_indices = @transform_5, window_bounds = array<i64: 104, 64>}, {transform_indices = @transform_6, window_bounds = array<i64: 104, 1536>}]} {
    %c0 = arith.constant 0 : index
    %c0_0 = arith.constant 0 : index
    %0 = vector.load %arg1[%c0, %c0_0] : memref<104x64xf32, #tpu.memory_space<vmem>>, vector<104x64xf32>
    %c0_1 = arith.constant 0 : index
    %c0_2 = arith.constant 0 : index
    %1 = vector.load %arg2[%c0_1, %c0_2] : memref<104x1536xf32, #tpu.memory_space<vmem>>, vector<104x1536xf32>
    %c0_3 = arith.constant 0 : index
    %c0_4 = arith.constant 0 : index
    %2 = vector.load %arg3[%c0_3, %c0_4] : memref<64x1536xbf16, #tpu.memory_space<vmem>>, vector<64x1536xbf16>
    %c0_5 = arith.constant 0 : index
    %c0_6 = arith.constant 0 : index
    %3 = vector.load %arg4[%c0_5, %c0_6] : memref<1536x24xbf16, #tpu.memory_space<vmem>>, vector<1536x24xbf16>
    %c0_7 = arith.constant 0 : index
    %c0_8 = arith.constant 0 : index
    %4 = vector.load %arg5[%c0_7, %c0_8] : memref<24x1536xbf16, #tpu.memory_space<vmem>>, vector<24x1536xbf16>
    %5 = arith.mulf %0, %0 : vector<104x64xf32>
    %cst = arith.constant dense<0.000000e+00> : vector<104xf32>
    %6 = vector.multi_reduction <add>, %5, %cst [1] : vector<104x64xf32> to vector<104xf32>
    %7 = vector.shape_cast %6 : vector<104xf32> to vector<104x1xf32>
    %8 = math.sqrt %7 : vector<104x1xf32>
    %cst_9 = arith.constant 0.000000e+00 : f32
    %9 = vector.broadcast %cst_9 : f32 to vector<104x1xf32>
    %10 = arith.cmpf ogt, %8, %9 : vector<104x1xf32>
    %cst_10 = arith.constant 1.1920929E-7 : f32
    %11 = vector.broadcast %cst_10 : f32 to vector<104x1xf32>
    %12 = arith.addf %8, %11 : vector<104x1xf32>
    %cst_11 = arith.constant 1.000000e+00 : f32
    %13 = vector.broadcast %cst_11 : f32 to vector<104x1xf32>
    %14 = arith.select %10, %12, %13 : vector<104x1xi1>, vector<104x1xf32>
    %cst_12 = arith.constant 1.000000e+00 : f32
    %15 = vector.broadcast %cst_12 : f32 to vector<104x1xf32>
    %16 = arith.divf %15, %14 : vector<104x1xf32>
    %17 = vector.broadcast %16 : vector<104x1xf32> to vector<104x64xf32>
    %18 = arith.mulf %0, %17 : vector<104x64xf32>
    %19 = vector.broadcast %16 : vector<104x1xf32> to vector<104x1536xf32>
    %20 = arith.mulf %1, %19 : vector<104x1536xf32>
    %21 = arith.truncf %18 : vector<104x64xf32> to vector<104x64xbf16>
    %22 = arith.extf %21 : vector<104x64xbf16> to vector<104x64xf32>
    %23 = arith.subf %18, %22 : vector<104x64xf32>
    %24 = arith.truncf %23 : vector<104x64xf32> to vector<104x64xbf16>
    %25 = arith.extf %24 : vector<104x64xbf16> to vector<104x64xf32>
    %26 = arith.subf %23, %25 : vector<104x64xf32>
    %27 = arith.truncf %26 : vector<104x64xf32> to vector<104x64xbf16>
    %cst_13 = arith.constant dense<0.000000e+00> : vector<104x1536xf32>
    %28 = tpu.matmul %21, %2, %cst_13 {dimension_numbers = #tpu.dot_dimension_numbers<[1], [0], [0], [1], [0, 0, 1, 1], [], []>} : vector<104x64xbf16>, vector<64x1536xbf16>, vector<104x1536xf32> -> vector<104x1536xf32>
    %cst_14 = arith.constant dense<0.000000e+00> : vector<104x1536xf32>
    %29 = tpu.matmul %24, %2, %cst_14 {dimension_numbers = #tpu.dot_dimension_numbers<[1], [0], [0], [1], [0, 0, 1, 1], [], []>} : vector<104x64xbf16>, vector<64x1536xbf16>, vector<104x1536xf32> -> vector<104x1536xf32>
    %30 = arith.addf %28, %29 : vector<104x1536xf32>
    %cst_15 = arith.constant dense<0.000000e+00> : vector<104x1536xf32>
    %31 = tpu.matmul %27, %2, %cst_15 {dimension_numbers = #tpu.dot_dimension_numbers<[1], [0], [0], [1], [0, 0, 1, 1], [], []>} : vector<104x64xbf16>, vector<64x1536xbf16>, vector<104x1536xf32> -> vector<104x1536xf32>
    %32 = arith.addf %30, %31 : vector<104x1536xf32>
    %33 = arith.mulf %32, %20 : vector<104x1536xf32>
    %34 = arith.truncf %33 : vector<104x1536xf32> to vector<104x1536xbf16>
    %35 = arith.extf %34 : vector<104x1536xbf16> to vector<104x1536xf32>
    %36 = arith.subf %33, %35 : vector<104x1536xf32>
    %37 = arith.truncf %36 : vector<104x1536xf32> to vector<104x1536xbf16>
    %38 = arith.extf %37 : vector<104x1536xbf16> to vector<104x1536xf32>
    %39 = arith.subf %36, %38 : vector<104x1536xf32>
    %40 = arith.truncf %39 : vector<104x1536xf32> to vector<104x1536xbf16>
    %cst_16 = arith.constant dense<0.000000e+00> : vector<104x24xf32>
    %41 = tpu.matmul %34, %3, %cst_16 {dimension_numbers = #tpu.dot_dimension_numbers<[1], [0], [0], [1], [0, 0, 1, 1], [], []>} : vector<104x1536xbf16>, vector<1536x24xbf16>, vector<104x24xf32> -> vector<104x24xf32>
    %cst_17 = arith.constant dense<0.000000e+00> : vector<104x24xf32>
    %42 = tpu.matmul %37, %3, %cst_17 {dimension_numbers = #tpu.dot_dimension_numbers<[1], [0], [0], [1], [0, 0, 1, 1], [], []>} : vector<104x1536xbf16>, vector<1536x24xbf16>, vector<104x24xf32> -> vector<104x24xf32>
    %43 = arith.addf %41, %42 : vector<104x24xf32>
    %cst_18 = arith.constant dense<0.000000e+00> : vector<104x24xf32>
    %44 = tpu.matmul %40, %3, %cst_18 {dimension_numbers = #tpu.dot_dimension_numbers<[1], [0], [0], [1], [0, 0, 1, 1], [], []>} : vector<104x1536xbf16>, vector<1536x24xbf16>, vector<104x24xf32> -> vector<104x24xf32>
    %45 = arith.addf %43, %44 : vector<104x24xf32>
    %46 = arith.truncf %45 : vector<104x24xf32> to vector<104x24xbf16>
    %47 = arith.extf %46 : vector<104x24xbf16> to vector<104x24xf32>
    %48 = arith.subf %45, %47 : vector<104x24xf32>
    %49 = arith.truncf %48 : vector<104x24xf32> to vector<104x24xbf16>
    %50 = arith.extf %49 : vector<104x24xbf16> to vector<104x24xf32>
    %51 = arith.subf %48, %50 : vector<104x24xf32>
    %52 = arith.truncf %51 : vector<104x24xf32> to vector<104x24xbf16>
    %cst_19 = arith.constant dense<0.000000e+00> : vector<104x1536xf32>
    %53 = tpu.matmul %46, %4, %cst_19 {dimension_numbers = #tpu.dot_dimension_numbers<[1], [0], [0], [1], [0, 0, 1, 1], [], []>} : vector<104x24xbf16>, vector<24x1536xbf16>, vector<104x1536xf32> -> vector<104x1536xf32>
    %cst_20 = arith.constant dense<0.000000e+00> : vector<104x1536xf32>
    %54 = tpu.matmul %49, %4, %cst_20 {dimension_numbers = #tpu.dot_dimension_numbers<[1], [0], [0], [1], [0, 0, 1, 1], [], []>} : vector<104x24xbf16>, vector<24x1536xbf16>, vector<104x1536xf32> -> vector<104x1536xf32>
    %55 = arith.addf %53, %54 : vector<104x1536xf32>
    %cst_21 = arith.constant dense<0.000000e+00> : vector<104x1536xf32>
    %56 = tpu.matmul %52, %4, %cst_21 {dimension_numbers = #tpu.dot_dimension_numbers<[1], [0], [0], [1], [0, 0, 1, 1], [], []>} : vector<104x24xbf16>, vector<24x1536xbf16>, vector<104x1536xf32> -> vector<104x1536xf32>
    %57 = arith.addf %55, %56 : vector<104x1536xf32>
    %58 = arith.mulf %32, %57 : vector<104x1536xf32>
    %59 = arith.subf %20, %58 : vector<104x1536xf32>
    %60 = vector.shape_cast %10 : vector<104x1xi1> to vector<104x1xi1>
    %61 = vector.broadcast %60 : vector<104x1xi1> to vector<104x64xi1>
    %62 = arith.select %61, %18, %0 : vector<104x64xi1>, vector<104x64xf32>
    %c0_22 = arith.constant 0 : index
    %c0_23 = arith.constant 0 : index
    %63 = vector.load %arg6[%c0_22, %c0_23] : memref<104x64xf32, #tpu.memory_space<vmem>>, vector<104x64xf32>
    tpu.vector_store %arg6[%c0_22, %c0_23], %62 {strides = array<i32>} : memref<104x64xf32, #tpu.memory_space<vmem>>, vector<104x64xf32>,
    %64 = vector.shape_cast %10 : vector<104x1xi1> to vector<104x1xi1>
    %65 = vector.broadcast %64 : vector<104x1xi1> to vector<104x1536xi1>
    %66 = arith.select %65, %59, %1 : vector<104x1536xi1>, vector<104x1536xf32>
    %c0_24 = arith.constant 0 : index
    %c0_25 = arith.constant 0 : index
    %67 = vector.load %arg7[%c0_24, %c0_25] : memref<104x1536xf32, #tpu.memory_space<vmem>>, vector<104x1536xf32>
    tpu.vector_store %arg7[%c0_24, %c0_25], %66 {strides = array<i32>} : memref<104x1536xf32, #tpu.memory_space<vmem>>, vector<104x1536xf32>,
    return
  }
  func.func @transform_0(%arg0: i32) -> (i32, i32) {
    %c0_i32 = arith.constant 0 : i32
    %c0_i32_0 = arith.constant 0 : i32
    return %arg0, %c0_i32 : i32, i32
  }
  func.func @transform_1(%arg0: i32) -> (i32, i32) {
    %c0_i32 = arith.constant 0 : i32
    %c0_i32_0 = arith.constant 0 : i32
    return %arg0, %c0_i32 : i32, i32
  }
  func.func @transform_2(%arg0: i32) -> (i32, i32) {
    %c0_i32 = arith.constant 0 : i32
    %c0_i32_0 = arith.constant 0 : i32
    %c0_i32_1 = arith.constant 0 : i32
    return %c0_i32, %c0_i32_0 : i32, i32
  }
  func.func @transform_3(%arg0: i32) -> (i32, i32) {
    %c0_i32 = arith.constant 0 : i32
    %c0_i32_0 = arith.constant 0 : i32
    %c0_i32_1 = arith.constant 0 : i32
    return %c0_i32, %c0_i32_0 : i32, i32
  }
  func.func @transform_4(%arg0: i32) -> (i32, i32) {
    %c0_i32 = arith.constant 0 : i32
    %c0_i32_0 = arith.constant 0 : i32
    %c0_i32_1 = arith.constant 0 : i32
    return %c0_i32, %c0_i32_0 : i32, i32
  }
  func.func @transform_5(%arg0: i32) -> (i32, i32) {
    %c0_i32 = arith.constant 0 : i32
    %c0_i32_0 = arith.constant 0 : i32
    return %arg0, %c0_i32 : i32, i32
  }
  func.func @transform_6(%arg0: i32) -> (i32, i32) {
    %c0_i32 = arith.constant 0 : i32
    %c0_i32_0 = arith.constant 0 : i32
    return %arg0, %c0_i32 : i32, i32
  }
}

</mosaic_0001>

<llo_original>
// kernel: _normalized_soap_grad_batched.1
$region0: #{_normalized_soap_grad_batched.1}
  #allocation0 [shape = 'u32[]', space=smem, size = 0x4, offset = 0x4, fixed_abs, tag = 'smem constant byte address 0x4 - core index']
  #allocation1 [shape = 'u32[144,128]{1,0:T(1,128)}', space=vmem, size = 0x12000, scoped, tag = 'internal scratch']
  %s0 = inlined_call_operand.vmem [shape: f32[200,64], index: 0, kind: input, shape index: {}]
  %s1 = inlined_call_operand.vmem [shape: f32[200,1536], index: 1, kind: input, shape index: {}]
  %s2 = inlined_call_operand.vmem [shape: bf16[64,1536], index: 2, kind: input, shape index: {}]
  %s3 = inlined_call_operand.vmem [shape: bf16[1536,24], index: 3, kind: input, shape index: {}]
  %s4 = inlined_call_operand.vmem [shape: bf16[24,1536], index: 4, kind: input, shape index: {}]
  %s5 = inlined_call_operand.vmem [shape: f32[200,64], index: 5, kind: output, shape index: {0}]
  %s6 = inlined_call_operand.vmem [shape: f32[200,1536], index: 6, kind: output, shape index: {1}]
  %7 = xla_tuple %s5, %s6
  %s8 = sld [smem:[#allocation0]]
  $region135: #{_normalized_soap_grad_batched.1} parent=0
    _
  %s10 = ssub.s32 1, %s8
  %s11 = scalar_select 0, %s10, %s8
  $region1: #{_normalized_soap_grad_batched.1} parent=0
    #allocation2 [shape = 'u8[106496]{0}', space=vmem, size = 0x1a000, scoped, tag = 'output window, operand 0']
    #allocation3 [shape = 'u8[1277952]{0}', space=vmem, size = 0x138000, scoped, tag = 'output window, operand 1']
    loop: start=0, step=1, limit=4
    $region2: #{_normalized_soap_grad_batched.1} parent=1 // loop_pre_header
      _
    $region3: #{_normalized_soap_grad_batched.1} parent=1 // loop_header
      %s13 = sphi 0, %s17
      %p14 = scmp.ge.s32.totalorder %s13, 4
      %s23 = sphi 0, %s25
      %s26 = sphi 0, %s23
      %s27 = sphi 0, %s26
      %s43 = sphi 0, %s27
      %s49 = sphi 0, %s51
      %s52 = sphi 0, %s49
      %s53 = sphi 0, %s52
      %s69 = sphi 0, %s53
      %s73 = sphi 0, %s73
      %s75 = sphi 0, %s73
      %s76 = sphi 0, %s75
      %s90 = sphi 0, %s76
      %s94 = sphi 0, %s94
      %s96 = sphi 0, %s94
      %s97 = sphi 0, %s96
      %s111 = sphi 0, %s97
      %s115 = sphi 0, %s115
      %s117 = sphi 0, %s115
      %s118 = sphi 0, %s117
      %s132 = sphi 0, %s118
      %s138 = sphi 0, %s140
      %s141 = sphi 0, %s138
      %s142 = sphi 0, %s141
      %s158 = sphi 0, %s142
      %s164 = sphi 0, %s166
      %s167 = sphi 0, %s164
      %s168 = sphi 0, %s167
      %s184 = sphi 0, %s168
    $region4: #{_normalized_soap_grad_batched.1} parent=1 // loop_header_branch
      %16 = sbr.rel (%p14) target = $region8
    $region5: #{_normalized_soap_grad_batched.1} parent=1 // loop_body
      %s18 = ssub.s32 %s13, 1
      %s19 = ssub.s32 %s13, 2
      %s20 = sadd.s32 %s13, 1
      %s21 = ssub.s32 %s13, %s20
      %p22 = scmp.eq.s32.totalorder %s21, 0
      %s24 = sadd.s32 %s23, 1
      %s25 = scalar_select %p22, %s23, %s24
      %p28 = pneg %p22
      %p29 = scmp.eq.s32.totalorder %s13, 1
      %p30 = por %p28, %p29
      %p31 = scmp.ne.s32.totalorder %s23, %s26
      %p32 = scmp.eq.s32.totalorder %s13, 0
      %p33 = por %p31, %p32
      %p34 = scmp.ne.s32.totalorder %s23, %s26
      %p35 = scmp.eq.s32.totalorder %s18, 1
      %p36 = por %p34, %p35
      %p37 = scmp.ne.s32.totalorder %s26, %s27
      %p38 = scmp.eq.s32.totalorder %s18, 0
      %p39 = por %p37, %p38
      %p40 = scmp.ne.s32.totalorder %s26, %s27
      %p41 = scmp.eq.s32.totalorder %s19, 1
      %p42 = por %p40, %p41
      %p44 = scmp.ne.s32.totalorder %s27, %s43
      %p45 = scmp.eq.s32.totalorder %s19, 0
      %p46 = por %p44, %p45
      %s47 = ssub.s32 %s13, %s20
      %p48 = scmp.eq.s32.totalorder %s47, 0
      %s50 = sadd.s32 %s49, 1
      %s51 = scalar_select %p48, %s49, %s50
      %p54 = pneg %p48
      %p55 = scmp.eq.s32.totalorder %s13, 1
      %p56 = por %p54, %p55
      %p57 = scmp.ne.s32.totalorder %s49, %s52
      %p58 = scmp.eq.s32.totalorder %s13, 0
      %p59 = por %p57, %p58
      %p60 = scmp.ne.s32.totalorder %s49, %s52
      %p61 = scmp.eq.s32.totalorder %s18, 1
      %p62 = por %p60, %p61
      %p63 = scmp.ne.s32.totalorder %s52, %s53
      %p64 = scmp.eq.s32.totalorder %s18, 0
      %p65 = por %p63, %p64
      %p66 = scmp.ne.s32.totalorder %s52, %s53
      %p67 = scmp.eq.s32.totalorder %s19, 1
      %p68 = por %p66, %p67
      %p70 = scmp.ne.s32.totalorder %s53, %s69
      %p71 = scmp.eq.s32.totalorder %s19, 0
      %p72 = por %p70, %p71
      %s74 = sadd.s32 %s73, 1
      %p77 = scmp.eq.s32.totalorder %s13, 1
      %p78 = scmp.ne.s32.totalorder %s73, %s75
      %p79 = scmp.eq.s32.totalorder %s13, 0
      %p80 = por %p78, %p79
      %p81 = scmp.ne.s32.totalorder %s73, %s75
      %p82 = scmp.eq.s32.totalorder %s18, 1
      %p83 = por %p81, %p82
      %p84 = scmp.ne.s32.totalorder %s75, %s76
      %p85 = scmp.eq.s32.totalorder %s18, 0
      %p86 = por %p84, %p85
      %p87 = scmp.ne.s32.totalorder %s75, %s76
      %p88 = scmp.eq.s32.totalorder %s19, 1
      %p89 = por %p87, %p88
      %p91 = scmp.ne.s32.totalorder %s76, %s90
      %p92 = scmp.eq.s32.totalorder %s19, 0
      %p93 = por %p91, %p92
      %s95 = sadd.s32 %s94, 1
      %p98 = scmp.eq.s32.totalorder %s13, 1
      %p99 = scmp.ne.s32.totalorder %s94, %s96
      %p100 = scmp.eq.s32.totalorder %s13, 0
      %p101 = por %p99, %p100
      %p102 = scmp.ne.s32.totalorder %s94, %s96
      %p103 = scmp.eq.s32.totalorder %s18, 1
      %p104 = por %p102, %p103
      %p105 = scmp.ne.s32.totalorder %s96, %s97
      %p106 = scmp.eq.s32.totalorder %s18, 0
      %p107 = por %p105, %p106
      %p108 = scmp.ne.s32.totalorder %s96, %s97
      %p109 = scmp.eq.s32.totalorder %s19, 1
      %p110 = por %p108, %p109
      %p112 = scmp.ne.s32.totalorder %s97, %s111
      %p113 = scmp.eq.s32.totalorder %s19, 0
      %p114 = por %p112, %p113
      %s116 = sadd.s32 %s115, 1
      %p119 = scmp.eq.s32.totalorder %s13, 1
      %p120 = scmp.ne.s32.totalorder %s115, %s117
      %p121 = scmp.eq.s32.totalorder %s13, 0
      %p122 = por %p120, %p121
      %p123 = scmp.ne.s32.totalorder %s115, %s117
      %p124 = scmp.eq.s32.totalorder %s18, 1
      %p125 = por %p123, %p124
      %p126 = scmp.ne.s32.totalorder %s117, %s118
      %p127 = scmp.eq.s32.totalorder %s18, 0
      %p128 = por %p126, %p127
      %p129 = scmp.ne.s32.totalorder %s117, %s118
      %p130 = scmp.eq.s32.totalorder %s19, 1
      %p131 = por %p129, %p130
      %p133 = scmp.ne.s32.totalorder %s118, %s132
      %p134 = scmp.eq.s32.totalorder %s19, 0
      %p135 = por %p133, %p134
      %s136 = ssub.s32 %s13, %s20
      %p137 = scmp.eq.s32.totalorder %s136, 0
      %s139 = sadd.s32 %s138, 1
      %s140 = scalar_select %p137, %s138, %s139
      %p143 = pneg %p137
      %p144 = scmp.eq.s32.totalorder %s13, 1
      %p145 = por %p143, %p144
      %p146 = scmp.ne.s32.totalorder %s138, %s141
      %p147 = scmp.eq.s32.totalorder %s13, 0
      %p148 = por %p146, %p147
      %p149 = scmp.ne.s32.totalorder %s138, %s141
      %p150 = scmp.eq.s32.totalorder %s18, 1
      %p151 = por %p149, %p150
      %p152 = scmp.ne.s32.totalorder %s141, %s142
      %p153 = scmp.eq.s32.totalorder %s18, 0
      %p154 = por %p152, %p153
      %p155 = scmp.ne.s32.totalorder %s141, %s142
      %p156 = scmp.eq.s32.totalorder %s19, 1
      %p157 = por %p155, %p156
      %p159 = scmp.ne.s32.totalorder %s142, %s158
      %p160 = scmp.eq.s32.totalorder %s19, 0
      %p161 = por %p159, %p160
      %s162 = ssub.s32 %s13, %s20
      %p163 = scmp.eq.s32.totalorder %s162, 0
      %s165 = sadd.s32 %s164, 1
      %s166 = scalar_select %p163, %s164, %s165
      %p169 = pneg %p163
      %p170 = scmp.eq.s32.totalorder %s13, 1
      %p171 = por %p169, %p170
      %p172 = scmp.ne.s32.totalorder %s164, %s167
      %p173 = scmp.eq.s32.totalorder %s13, 0
      %p174 = por %p172, %p173
      %p175 = scmp.ne.s32.totalorder %s164, %s167
      %p176 = scmp.eq.s32.totalorder %s18, 1
      %p177 = por %p175, %p176
      %p178 = scmp.ne.s32.totalorder %s167, %s168
      %p179 = scmp.eq.s32.totalorder %s18, 0
      %p180 = por %p178, %p179
      %p181 = scmp.ne.s32.totalorder %s167, %s168
      %p182 = scmp.eq.s32.totalorder %s19, 1
      %p183 = por %p181, %p182
      %p185 = scmp.ne.s32.totalorder %s168, %s184
      %p186 = scmp.eq.s32.totalorder %s19, 0
      %p187 = por %p185, %p186
      %p188 = scmp.le.s32.totalorder 1, %s13
      %p189 = scmp.lt.s32.totalorder %s13, 3
      %p190 = pnand %p188, %p189
      %p191 = pneg %p190
      // Predicated region
      $region9: #{_normalized_soap_grad_batched.1} parent=5 // pred_check
        _
      $region10: #{_normalized_soap_grad_batched.1} parent=5 // pred_check_branch
        %193 = sbr.rel (%p190) target = $region12
      $region11: #{_normalized_soap_grad_batched.1} parent=5 // pred_region
        %s194 = ssub.s32 %s13, 1
        // Predicated region
        $region13: #{_normalized_soap_grad_batched.1} parent=11 // pred_check
          %p195 = pneg %p86
        $region14: #{_normalized_soap_grad_batched.1} parent=11 // pred_check_branch
          %197 = sbr.rel (%p195) target = $region16
        $region15: #{_normalized_soap_grad_batched.1} parent=11 // pred_region
          _
        $region16: #{_normalized_soap_grad_batched.1} parent=11 // pred_fallthru
          _
        // Predicated region
        $region17: #{_normalized_soap_grad_batched.1} parent=11 // pred_check
          %p198 = pneg %p107
        $region18: #{_normalized_soap_grad_batched.1} parent=11 // pred_check_branch
          %200 = sbr.rel (%p198) target = $region20
        $region19: #{_normalized_soap_grad_batched.1} parent=11 // pred_region
          _
        $region20: #{_normalized_soap_grad_batched.1} parent=11 // pred_fallthru
          _
        // Predicated region
        $region21: #{_normalized_soap_grad_batched.1} parent=11 // pred_check
          %p201 = pneg %p128
        $region22: #{_normalized_soap_grad_batched.1} parent=11 // pred_check_branch
          %203 = sbr.rel (%p201) target = $region24
        $region23: #{_normalized_soap_grad_batched.1} parent=11 // pred_region
          _
        $region24: #{_normalized_soap_grad_batched.1} parent=11 // pred_fallthru
          _
      $region12: #{_normalized_soap_grad_batched.1} parent=5 // pred_fallthru
        _
      %p204 = scmp.lt.s32.totalorder %s13, 2
      // Predicated region
      $region25: #{_normalized_soap_grad_batched.1} parent=5 // pred_check
        %p205 = pneg %p204
      $region26: #{_normalized_soap_grad_batched.1} parent=5 // pred_check_branch
        %207 = sbr.rel (%p205) target = $region28
      $region27: #{_normalized_soap_grad_batched.1} parent=5 // pred_region
        // Predicated region
        $region29: #{_normalized_soap_grad_batched.1} parent=27 // pred_check
          %p208 = pneg %p33
        $region30: #{_normalized_soap_grad_batched.1} parent=27 // pred_check_branch
          %210 = sbr.rel (%p208) target = $region32
        $region31: #{_normalized_soap_grad_batched.1} parent=27 // pred_region
          %s211 = smul.u32 13, %s13
          %s212 = ssub.s32 25, %s211
          %p213 = scmp.lt.s32.totalorder %s212, 13
          %s214 = scalar_select %p213, %s212, 13
          %s215 = smul.u32 128, %s214
          %p216 = scmp.lt.s32.totalorder %s211, 24
          %s217 = scalar_select %p216, %s211, 24
          %s218 = smul.addr %s217, 8
          %s219 = scalar_lea.vmem %s0, %s218
          %s220 = smul.u32 13, %s13
          %s221 = ssub.s32 25, %s220
          %p222 = scmp.lt.s32.totalorder %s221, 13
          %s223 = scalar_select %p222, %s221, 13
          %s224 = smul.u32 128, %s223
        $region32: #{_normalized_soap_grad_batched.1} parent=27 // pred_fallthru
          _
        // Predicated region
        $region33: #{_normalized_soap_grad_batched.1} parent=27 // pred_check
          %p225 = pneg %p59
        $region34: #{_normalized_soap_grad_batched.1} parent=27 // pred_check_branch
          %227 = sbr.rel (%p225) target = $region36
        $region35: #{_normalized_soap_grad_batched.1} parent=27 // pred_region
          %s228 = smul.u32 13, %s13
          %s229 = ssub.s32 25, %s228
          %p230 = scmp.lt.s32.totalorder %s229, 13
          %s231 = scalar_select %p230, %s229, 13
          %s232 = smul.u32 128, %s231
          %s233 = smul.u32 %s232, 12
          %p234 = scmp.lt.s32.totalorder %s228, 24
          %s235 = scalar_select %p234, %s228, 24
          %s236 = smul.addr %s235, 12
          %s237 = smul.addr %s236, 8
          %s238 = scalar_lea.vmem %s1, %s237
          %s239 = smul.u32 13, %s13
          %s240 = ssub.s32 25, %s239
          %p241 = scmp.lt.s32.totalorder %s240, 13
          %s242 = scalar_select %p241, %s240, 13
          %s243 = smul.u32 128, %s242
          %s244 = smul.u32 %s243, 12
        $region36: #{_normalized_soap_grad_batched.1} parent=27 // pred_fallthru
          _
      $region28: #{_normalized_soap_grad_batched.1} parent=5 // pred_fallthru
        _
      %p245 = scmp.le.s32.totalorder 1, %s13
      %p246 = scmp.lt.s32.totalorder %s13, 3
      %p247 = pnand %p245, %p246
      %p248 = pneg %p247
      // Predicated region
      $region37: #{_normalized_soap_grad_batched.1} parent=5 // pred_check
        _
      $region38: #{_normalized_soap_grad_batched.1} parent=5 // pred_check_branch
        %250 = sbr.rel (%p247) target = $region40
      $region39: #{_normalized_soap_grad_batched.1} parent=5 // pred_region
        %s251 = ssub.s32 %s13, 1
        %s252 = smul.u32 13, %s18
        %s253 = ssub.s32 25, %s252
        %p254 = scmp.lt.s32.totalorder %s253, 13
        %s255 = scalar_select %p254, %s253, 13
        %s256 = smul.u32 128, %s255
        %p257 = scmp.lt.s32.totalorder %s252, 24
        %s258 = scalar_select %p257, %s252, 24
        %s259 = smul.addr %s258, 8
        %s260 = scalar_lea.vmem %s0, %s259
        %p261 = pneg %p39
        %p262 = pneg %p36
        %s263 = smul.u32 13, %s18
        %s264 = ssub.s32 25, %s263
        %p265 = scmp.lt.s32.totalorder %s264, 13
        %s266 = scalar_select %p265, %s264, 13
        %s267 = smul.u32 128, %s266
        %s268 = smul.u32 %s267, 12
        %p269 = scmp.lt.s32.totalorder %s263, 24
        %s270 = scalar_select %p269, %s263, 24
        %s271 = smul.addr %s270, 12
        %s272 = smul.addr %s271, 8
        %s273 = scalar_lea.vmem %s1, %s272
        %p274 = pneg %p65
        %p275 = pneg %p62
        %p276 = pneg %p86
        %p277 = pneg %p83
        %p278 = pneg %p107
        %p279 = pneg %p104
        %p280 = pneg %p128
        %p281 = pneg %p125
        %p282 = pneg %p154
        %p283 = pneg %p151
        %s284 = sand.u32 %s141, 1
        %s285 = sand.u32 %s141, 1
        %s286 = smul.addr %s285, 104
        %s287 = scalar_lea.vmem [#allocation2], %s286
        %p288 = pneg %p180
        %p289 = pneg %p177
        %s290 = sand.u32 %s167, 1
        %s291 = sand.u32 %s167, 1
        %s292 = smul.addr %s291, 1248
        %s293 = scalar_lea.vmem [#allocation3], %s292
        %s294 = smul.u32 13, %s18
        %s295 = ssub.s32 25, %s294
        %p296 = scmp.lt.s32.totalorder %s295, 13
        %s297 = scalar_select %p296, %s295, 13
        %s298 = smul.u32 128, %s297
        %p299 = scmp.lt.s32.totalorder %s294, 24
        %s300 = scalar_select %p299, %s294, 24
        %s301 = smul.addr %s300, 8
        %s302 = scalar_lea.vmem %s0, %s301
        %s303 = smul.u32 13, %s18
        %s304 = ssub.s32 25, %s303
        %p305 = scmp.lt.s32.totalorder %s304, 13
        %s306 = scalar_select %p305, %s304, 13
        %s307 = smul.u32 128, %s306
        %s308 = smul.u32 13, %s18
        %s309 = ssub.s32 25, %s308
        %p310 = scmp.lt.s32.totalorder %s309, 13
        %s311 = scalar_select %p310, %s309, 13
        %s312 = smul.u32 128, %s311
        %s313 = smul.u32 %s312, 12
        %p314 = scmp.lt.s32.totalorder %s308, 24
        %s315 = scalar_select %p314, %s308, 24
        %s316 = smul.addr %s315, 12
        %s317 = smul.addr %s316, 8
        %s318 = scalar_lea.vmem %s1, %s317
        %s319 = smul.u32 13, %s18
        %s320 = ssub.s32 25, %s319
        %p321 = scmp.lt.s32.totalorder %s320, 13
        %s322 = scalar_select %p321, %s320, 13
        %s323 = smul.u32 128, %s322
        %s324 = smul.u32 %s323, 12
        %s325 = smul.u32 13, %s18
        %s326 = ssub.s32 25, %s325
        %p327 = scmp.lt.s32.totalorder %s326, 13
        %s328 = scalar_select %p327, %s326, 13
        %s329 = smul.u32 128, %s328
        %s330 = smul.u32 13, %s18
        %s331 = ssub.s32 25, %s330
        %p332 = scmp.lt.s32.totalorder %s331, 13
        %s333 = scalar_select %p332, %s331, 13
        %s334 = smul.u32 128, %s333
        %s335 = smul.u32 %s334, 12
        %v337 = vld [vmem:[%s302] sm:$0xff]
        %v338 = vld [vmem:[%s302 + $0x8] sm:$0xff]
        %v339 = vld [vmem:[%s302 + $0x10] sm:$0xff]
        %v340 = vld [vmem:[%s302 + $0x18] sm:$0xff]
        %v341 = vld [vmem:[%s302 + $0x20] sm:$0xff]
        %v342 = vld [vmem:[%s302 + $0x28] sm:$0xff]
        %v343 = vld [vmem:[%s302 + $0x30] sm:$0xff]
        %v344 = vld [vmem:[%s302 + $0x38] sm:$0xff]
        %v345 = vld [vmem:[%s302 + $0x40] sm:$0xff]
        %v346 = vld [vmem:[%s302 + $0x48] sm:$0xff]
        %v347 = vld [vmem:[%s302 + $0x50] sm:$0xff]
        %v348 = vld [vmem:[%s302 + $0x58] sm:$0xff]
        %v349 = vld [vmem:[%s302 + $0x60] sm:$0xff]
        %v350 = vld [vmem:[%s318] sm:$0xff]
        %v351 = vld [vmem:[%s318 + $0x8] sm:$0xff]
        %v352 = vld [vmem:[%s318 + $0x10] sm:$0xff]
        %v353 = vld [vmem:[%s318 + $0x18] sm:$0xff]
        %v354 = vld [vmem:[%s318 + $0x20] sm:$0xff]
        %v355 = vld [vmem:[%s318 + $0x28] sm:$0xff]
        %v356 = vld [vmem:[%s318 + $0x30] sm:$0xff]
        %v357 = vld [vmem:[%s318 + $0x38] sm:$0xff]
        %v358 = vld [vmem:[%s318 + $0x40] sm:$0xff]
        %v359 = vld [vmem:[%s318 + $0x48] sm:$0xff]
        %v360 = vld [vmem:[%s318 + $0x50] sm:$0xff]
        %v361 = vld [vmem:[%s318 + $0x58] sm:$0xff]
        %v362 = vld [vmem:[%s318 + $0x60] sm:$0xff]
        %v363 = vld [vmem:[%s318 + $0x68] sm:$0xff]
        %v364 = vld [vmem:[%s318 + $0x70] sm:$0xff]
        %v365 = vld [vmem:[%s318 + $0x78] sm:$0xff]
        %v366 = vld [vmem:[%s318 + $0x80] sm:$0xff]
        %v367 = vld [vmem:[%s318 + $0x88] sm:$0xff]
        %v368 = vld [vmem:[%s318 + $0x90] sm:$0xff]
        %v369 = vld [vmem:[%s318 + $0x98] sm:$0xff]
        %v370 = vld [vmem:[%s318 + $0xa0] sm:$0xff]
        %v371 = vld [vmem:[%s318 + $0xa8] sm:$0xff]
        %v372 = vld [vmem:[%s318 + $0xb0] sm:$0xff]
        %v373 = vld [vmem:[%s318 + $0xb8] sm:$0xff]
        %v374 = vld [vmem:[%s318 + $0xc0] sm:$0xff]
        %v375 = vld [vmem:[%s318 + $0xc8] sm:$0xff]
        %v376 = vld [vmem:[%s318 + $0xd0] sm:$0xff]
        %v377 = vld [vmem:[%s318 + $0xd8] sm:$0xff]
        %v378 = vld [vmem:[%s318 + $0xe0] sm:$0xff]
        %v379 = vld [vmem:[%s318 + $0xe8] sm:$0xff]
        %v380 = vld [vmem:[%s318 + $0xf0] sm:$0xff]
        %v381 = vld [vmem:[%s318 + $0xf8] sm:$0xff]
        %v382 = vld [vmem:[%s318 + $0x100] sm:$0xff]
        %v383 = vld [vmem:[%s318 + $0x108] sm:$0xff]
        %v384 = vld [vmem:[%s318 + $0x110] sm:$0xff]
        %v385 = vld [vmem:[%s318 + $0x118] sm:$0xff]
        %v386 = vld [vmem:[%s318 + $0x120] sm:$0xff]
        %v387 = vld [vmem:[%s318 + $0x128] sm:$0xff]
        %v388 = vld [vmem:[%s318 + $0x130] sm:$0xff]
        %v389 = vld [vmem:[%s318 + $0x138] sm:$0xff]
        %v390 = vld [vmem:[%s318 + $0x140] sm:$0xff]
        %v391 = vld [vmem:[%s318 + $0x148] sm:$0xff]
        %v392 = vld [vmem:[%s318 + $0x150] sm:$0xff]
        %v393 = vld [vmem:[%s318 + $0x158] sm:$0xff]
        %v394 = vld [vmem:[%s318 + $0x160] sm:$0xff]
        %v395 = vld [vmem:[%s318 + $0x168] sm:$0xff]
        %v396 = vld [vmem:[%s318 + $0x170] sm:$0xff]
        %v397 = vld [vmem:[%s318 + $0x178] sm:$0xff]
        %v398 = vld [vmem:[%s318 + $0x180] sm:$0xff]
        %v399 = vld [vmem:[%s318 + $0x188] sm:$0xff]
        %v400 = vld [vmem:[%s318 + $0x190] sm:$0xff]
        %v401 = vld [vmem:[%s318 + $0x198] sm:$0xff]
        %v402 = vld [vmem:[%s318 + $0x1a0] sm:$0xff]
        %v403 = vld [vmem:[%s318 + $0x1a8] sm:$0xff]
        %v404 = vld [vmem:[%s318 + $0x1b0] sm:$0xff]
        %v405 = vld [vmem:[%s318 + $0x1b8] sm:$0xff]
        %v406 = vld [vmem:[%s318 + $0x1c0] sm:$0xff]
        %v407 = vld [vmem:[%s318 + $0x1c8] sm:$0xff]
        %v408 = vld [vmem:[%s318 + $0x1d0] sm:$0xff]
        %v409 = vld [vmem:[%s318 + $0x1d8] sm:$0xff]
        %v410 = vld [vmem:[%s318 + $0x1e0] sm:$0xff]
        %v411 = vld [vmem:[%s318 + $0x1e8] sm:$0xff]
        %v412 = vld [vmem:[%s318 + $0x1f0] sm:$0xff]
        %v413 = vld [vmem:[%s318 + $0x1f8] sm:$0xff]
        %v414 = vld [vmem:[%s318 + $0x200] sm:$0xff]
        %v415 = vld [vmem:[%s318 + $0x208] sm:$0xff]
        %v416 = vld [vmem:[%s318 + $0x210] sm:$0xff]
        %v417 = vld [vmem:[%s318 + $0x218] sm:$0xff]
        %v418 = vld [vmem:[%s318 + $0x220] sm:$0xff]
        %v419 = vld [vmem:[%s318 + $0x228] sm:$0xff]
        %v420 = vld [vmem:[%s318 + $0x230] sm:$0xff]
        %v421 = vld [vmem:[%s318 + $0x238] sm:$0xff]
        %v422 = vld [vmem:[%s318 + $0x240] sm:$0xff]
        %v423 = vld [vmem:[%s318 + $0x248] sm:$0xff]
        %v424 = vld [vmem:[%s318 + $0x250] sm:$0xff]
        %v425 = vld [vmem:[%s318 + $0x258] sm:$0xff]
        %v426 = vld [vmem:[%s318 + $0x260] sm:$0xff]
        %v427 = vld [vmem:[%s318 + $0x268] sm:$0xff]
        %v428 = vld [vmem:[%s318 + $0x270] sm:$0xff]
        %v429 = vld [vmem:[%s318 + $0x278] sm:$0xff]
        %v430 = vld [vmem:[%s318 + $0x280] sm:$0xff]
        %v431 = vld [vmem:[%s318 + $0x288] sm:$0xff]
        %v432 = vld [vmem:[%s318 + $0x290] sm:$0xff]
        %v433 = vld [vmem:[%s318 + $0x298] sm:$0xff]
        %v434 = vld [vmem:[%s318 + $0x2a0] sm:$0xff]
        %v435 = vld [vmem:[%s318 + $0x2a8] sm:$0xff]
        %v436 = vld [vmem:[%s318 + $0x2b0] sm:$0xff]
        %v437 = vld [vmem:[%s318 + $0x2b8] sm:$0xff]
        %v438 = vld [vmem:[%s318 + $0x2c0] sm:$0xff]
        %v439 = vld [vmem:[%s318 + $0x2c8] sm:$0xff]
        %v440 = vld [vmem:[%s318 + $0x2d0] sm:$0xff]
        %v441 = vld [vmem:[%s318 + $0x2d8] sm:$0xff]
        %v442 = vld [vmem:[%s318 + $0x2e0] sm:$0xff]
        %v443 = vld [vmem:[%s318 + $0x2e8] sm:$0xff]
        %v444 = vld [vmem:[%s318 + $0x2f0] sm:$0xff]
        %v445 = vld [vmem:[%s318 + $0x2f8] sm:$0xff]
        %v446 = vld [vmem:[%s318 + $0x300] sm:$0xff]
        %v447 = vld [vmem:[%s318 + $0x308] sm:$0xff]
        %v448 = vld [vmem:[%s318 + $0x310] sm:$0xff]
        %v449 = vld [vmem:[%s318 + $0x318] sm:$0xff]
        %v450 = vld [vmem:[%s318 + $0x320] sm:$0xff]
        %v451 = vld [vmem:[%s318 + $0x328] sm:$0xff]
        %v452 = vld [vmem:[%s318 + $0x330] sm:$0xff]
        %v453 = vld [vmem:[%s318 + $0x338] sm:$0xff]
        %v454 = vld [vmem:[%s318 + $0x340] sm:$0xff]
        %v455 = vld [vmem:[%s318 + $0x348] sm:$0xff]
        %v456 = vld [vmem:[%s318 + $0x350] sm:$0xff]
        %v457 = vld [vmem:[%s318 + $0x358] sm:$0xff]
        %v458 = vld [vmem:[%s318 + $0x360] sm:$0xff]
        %v459 = vld [vmem:[%s318 + $0x368] sm:$0xff]
        %v460 = vld [vmem:[%s318 + $0x370] sm:$0xff]
        %v461 = vld [vmem:[%s318 + $0x378] sm:$0xff]
        %v462 = vld [vmem:[%s318 + $0x380] sm:$0xff]
        %v463 = vld [vmem:[%s318 + $0x388] sm:$0xff]
        %v464 = vld [vmem:[%s318 + $0x390] sm:$0xff]
        %v465 = vld [vmem:[%s318 + $0x398] sm:$0xff]
        %v466 = vld [vmem:[%s318 + $0x3a0] sm:$0xff]
        %v467 = vld [vmem:[%s318 + $0x3a8] sm:$0xff]
        %v468 = vld [vmem:[%s318 + $0x3b0] sm:$0xff]
        %v469 = vld [vmem:[%s318 + $0x3b8] sm:$0xff]
        %v470 = vld [vmem:[%s318 + $0x3c0] sm:$0xff]
        %v471 = vld [vmem:[%s318 + $0x3c8] sm:$0xff]
        %v472 = vld [vmem:[%s318 + $0x3d0] sm:$0xff]
        %v473 = vld [vmem:[%s318 + $0x3d8] sm:$0xff]
        %v474 = vld [vmem:[%s318 + $0x3e0] sm:$0xff]
        %v475 = vld [vmem:[%s318 + $0x3e8] sm:$0xff]
        %v476 = vld [vmem:[%s318 + $0x3f0] sm:$0xff]
        %v477 = vld [vmem:[%s318 + $0x3f8] sm:$0xff]
        %v478 = vld [vmem:[%s318 + $0x400] sm:$0xff]
        %v479 = vld [vmem:[%s318 + $0x408] sm:$0xff]
        %v480 = vld [vmem:[%s318 + $0x410] sm:$0xff]
        %v481 = vld [vmem:[%s318 + $0x418] sm:$0xff]
        %v482 = vld [vmem:[%s318 + $0x420] sm:$0xff]
        %v483 = vld [vmem:[%s318 + $0x428] sm:$0xff]
        %v484 = vld [vmem:[%s318 + $0x430] sm:$0xff]
        %v485 = vld [vmem:[%s318 + $0x438] sm:$0xff]
        %v486 = vld [vmem:[%s318 + $0x440] sm:$0xff]
        %v487 = vld [vmem:[%s318 + $0x448] sm:$0xff]
        %v488 = vld [vmem:[%s318 + $0x450] sm:$0xff]
        %v489 = vld [vmem:[%s318 + $0x458] sm:$0xff]
        %v490 = vld [vmem:[%s318 + $0x460] sm:$0xff]
        %v491 = vld [vmem:[%s318 + $0x468] sm:$0xff]
        %v492 = vld [vmem:[%s318 + $0x470] sm:$0xff]
        %v493 = vld [vmem:[%s318 + $0x478] sm:$0xff]
        %v494 = vld [vmem:[%s318 + $0x480] sm:$0xff]
        %v495 = vld [vmem:[%s318 + $0x488] sm:$0xff]
        %v496 = vld [vmem:[%s318 + $0x490] sm:$0xff]
        %v497 = vld [vmem:[%s318 + $0x498] sm:$0xff]
        %v498 = vld [vmem:[%s318 + $0x4a0] sm:$0xff]
        %v499 = vld [vmem:[%s318 + $0x4a8] sm:$0xff]
        %v500 = vld [vmem:[%s318 + $0x4b0] sm:$0xff]
        %v501 = vld [vmem:[%s318 + $0x4b8] sm:$0xff]
        %v502 = vld [vmem:[%s318 + $0x4c0] sm:$0xff]
        %v503 = vld [vmem:[%s318 + $0x4c8] sm:$0xff]
        %v504 = vld [vmem:[%s318 + $0x4d0] sm:$0xff]
        %v505 = vld [vmem:[%s318 + $0x4d8] sm:$0xff]
        %v506 = vld [vmem:[%s2] sm:$0xff]
        %v507 = vld [vmem:[%s2 + $0x8] sm:$0xff]
        %v508 = vld [vmem:[%s2 + $0x10] sm:$0xff]
        %v509 = vld [vmem:[%s2 + $0x18] sm:$0xff]
        %v510 = vld [vmem:[%s2 + $0x20] sm:$0xff]
        %v511 = vld [vmem:[%s2 + $0x28] sm:$0xff]
        %v512 = vld [vmem:[%s2 + $0x30] sm:$0xff]
        %v513 = vld [vmem:[%s2 + $0x38] sm:$0xff]
        %v514 = vld [vmem:[%s2 + $0x40] sm:$0xff]
        %v515 = vld [vmem:[%s2 + $0x48] sm:$0xff]
        %v516 = vld [vmem:[%s2 + $0x50] sm:$0xff]
        %v517 = vld [vmem:[%s2 + $0x58] sm:$0xff]
        %v518 = vld [vmem:[%s2 + $0x60] sm:$0xff]
        %v519 = vld [vmem:[%s2 + $0x68] sm:$0xff]
        %v520 = vld [vmem:[%s2 + $0x70] sm:$0xff]
        %v521 = vld [vmem:[%s2 + $0x78] sm:$0xff]
        %v522 = vld [vmem:[%s2 + $0x80] sm:$0xff]
        %v523 = vld [vmem:[%s2 + $0x88] sm:$0xff]
        %v524 = vld [vmem:[%s2 + $0x90] sm:$0xff]
        %v525 = vld [vmem:[%s2 + $0x98] sm:$0xff]
        %v526 = vld [vmem:[%s2 + $0xa0] sm:$0xff]
        %v527 = vld [vmem:[%s2 + $0xa8] sm:$0xff]
        %v528 = vld [vmem:[%s2 + $0xb0] sm:$0xff]
        %v529 = vld [vmem:[%s2 + $0xb8] sm:$0xff]
        %v530 = vld [vmem:[%s2 + $0xc0] sm:$0xff]
        %v531 = vld [vmem:[%s2 + $0xc8] sm:$0xff]
        %v532 = vld [vmem:[%s2 + $0xd0] sm:$0xff]
        %v533 = vld [vmem:[%s2 + $0xd8] sm:$0xff]
        %v534 = vld [vmem:[%s2 + $0xe0] sm:$0xff]
        %v535 = vld [vmem:[%s2 + $0xe8] sm:$0xff]
        %v536 = vld [vmem:[%s2 + $0xf0] sm:$0xff]
        %v537 = vld [vmem:[%s2 + $0xf8] sm:$0xff]
        %v538 = vld [vmem:[%s2 + $0x100] sm:$0xff]
        %v539 = vld [vmem:[%s2 + $0x108] sm:$0xff]
        %v540 = vld [vmem:[%s2 + $0x110] sm:$0xff]
        %v541 = vld [vmem:[%s2 + $0x118] sm:$0xff]
        %v542 = vld [vmem:[%s2 + $0x120] sm:$0xff]
        %v543 = vld [vmem:[%s2 + $0x128] sm:$0xff]
        %v544 = vld [vmem:[%s2 + $0x130] sm:$0xff]
        %v545 = vld [vmem:[%s2 + $0x138] sm:$0xff]
        %v546 = vld [vmem:[%s2 + $0x140] sm:$0xff]
        %v547 = vld [vmem:[%s2 + $0x148] sm:$0xff]
        %v548 = vld [vmem:[%s2 + $0x150] sm:$0xff]
        %v549 = vld [vmem:[%s2 + $0x158] sm:$0xff]
        %v550 = vld [vmem:[%s2 + $0x160] sm:$0xff]
        %v551 = vld [vmem:[%s2 + $0x168] sm:$0xff]
        %v552 = vld [vmem:[%s2 + $0x170] sm:$0xff]
        %v553 = vld [vmem:[%s2 + $0x178] sm:$0xff]
        %v554 = vld [vmem:[%s3] sm:$0xf]
        %v555 = vld [vmem:[%s3 + $0x4] sm:$0xf]
        %v556 = vld [vmem:[%s3 + $0x8] sm:$0xf]
        %v557 = vld [vmem:[%s3 + $0xc] sm:$0xf]
        %v558 = vld [vmem:[%s3 + $0x10] sm:$0xf]
        %v559 = vld [vmem:[%s3 + $0x14] sm:$0xf]
        %v560 = vld [vmem:[%s3 + $0x18] sm:$0xf]
        %v561 = vld [vmem:[%s3 + $0x1c] sm:$0xf]
        %v562 = vld [vmem:[%s3 + $0x20] sm:$0xf]
        %v563 = vld [vmem:[%s3 + $0x24] sm:$0xf]
        %v564 = vld [vmem:[%s3 + $0x28] sm:$0xf]
        %v565 = vld [vmem:[%s3 + $0x2c] sm:$0xf]
        %v566 = vld [vmem:[%s3 + $0x30] sm:$0xf]
        %v567 = vld [vmem:[%s3 + $0x34] sm:$0xf]
        %v568 = vld [vmem:[%s3 + $0x38] sm:$0xf]
        %v569 = vld [vmem:[%s3 + $0x3c] sm:$0xf]
        %v570 = vld [vmem:[%s3 + $0x40] sm:$0xf]
        %v571 = vld [vmem:[%s3 + $0x44] sm:$0xf]
        %v572 = vld [vmem:[%s3 + $0x48] sm:$0xf]
        %v573 = vld [vmem:[%s3 + $0x4c] sm:$0xf]
        %v574 = vld [vmem:[%s3 + $0x50] sm:$0xf]
        %v575 = vld [vmem:[%s3 + $0x54] sm:$0xf]
        %v576 = vld [vmem:[%s3 + $0x58] sm:$0xf]
        %v577 = vld [vmem:[%s3 + $0x5c] sm:$0xf]
        %v578 = vld [vmem:[%s3 + $0x60] sm:$0xf]
        %v579 = vld [vmem:[%s3 + $0x64] sm:$0xf]
        %v580 = vld [vmem:[%s3 + $0x68] sm:$0xf]
        %v581 = vld [vmem:[%s3 + $0x6c] sm:$0xf]
        %v582 = vld [vmem:[%s3 + $0x70] sm:$0xf]
        %v583 = vld [vmem:[%s3 + $0x74] sm:$0xf]
        %v584 = vld [vmem:[%s3 + $0x78] sm:$0xf]
        %v585 = vld [vmem:[%s3 + $0x7c] sm:$0xf]
        %v586 = vld [vmem:[%s3 + $0x80] sm:$0xf]
        %v587 = vld [vmem:[%s3 + $0x84] sm:$0xf]
        %v588 = vld [vmem:[%s3 + $0x88] sm:$0xf]
        %v589 = vld [vmem:[%s3 + $0x8c] sm:$0xf]
        %v590 = vld [vmem:[%s3 + $0x90] sm:$0xf]
        %v591 = vld [vmem:[%s3 + $0x94] sm:$0xf]
        %v592 = vld [vmem:[%s3 + $0x98] sm:$0xf]
        %v593 = vld [vmem:[%s3 + $0x9c] sm:$0xf]
        %v594 = vld [vmem:[%s3 + $0xa0] sm:$0xf]
        %v595 = vld [vmem:[%s3 + $0xa4] sm:$0xf]
        %v596 = vld [vmem:[%s3 + $0xa8] sm:$0xf]
        %v597 = vld [vmem:[%s3 + $0xac] sm:$0xf]
        %v598 = vld [vmem:[%s3 + $0xb0] sm:$0xf]
        %v599 = vld [vmem:[%s3 + $0xb4] sm:$0xf]
        %v600 = vld [vmem:[%s3 + $0xb8] sm:$0xf]
        %v601 = vld [vmem:[%s3 + $0xbc] sm:$0xf]
        %v602 = vld [vmem:[%s3 + $0xc0] sm:$0xf]
        %v603 = vld [vmem:[%s3 + $0xc4] sm:$0xf]
        %v604 = vld [vmem:[%s3 + $0xc8] sm:$0xf]
        %v605 = vld [vmem:[%s3 + $0xcc] sm:$0xf]
        %v606 = vld [vmem:[%s3 + $0xd0] sm:$0xf]
        %v607 = vld [vmem:[%s3 + $0xd4] sm:$0xf]
        %v608 = vld [vmem:[%s3 + $0xd8] sm:$0xf]
        %v609 = vld [vmem:[%s3 + $0xdc] sm:$0xf]
        %v610 = vld [vmem:[%s3 + $0xe0] sm:$0xf]
        %v611 = vld [vmem:[%s3 + $0xe4] sm:$0xf]
        %v612 = vld [vmem:[%s3 + $0xe8] sm:$0xf]
        %v613 = vld [vmem:[%s3 + $0xec] sm:$0xf]
        %v614 = vld [vmem:[%s3 + $0xf0] sm:$0xf]
        %v615 = vld [vmem:[%s3 + $0xf4] sm:$0xf]
        %v616 = vld [vmem:[%s3 + $0xf8] sm:$0xf]
        %v617 = vld [vmem:[%s3 + $0xfc] sm:$0xf]
        %v618 = vld [vmem:[%s3 + $0x100] sm:$0xf]
        %v619 = vld [vmem:[%s3 + $0x104] sm:$0xf]
        %v620 = vld [vmem:[%s3 + $0x108] sm:$0xf]
        %v621 = vld [vmem:[%s3 + $0x10c] sm:$0xf]
        %v622 = vld [vmem:[%s3 + $0x110] sm:$0xf]
        %v623 = vld [vmem:[%s3 + $0x114] sm:$0xf]
        %v624 = vld [vmem:[%s3 + $0x118] sm:$0xf]
        %v625 = vld [vmem:[%s3 + $0x11c] sm:$0xf]
        %v626 = vld [vmem:[%s3 + $0x120] sm:$0xf]
        %v627 = vld [vmem:[%s3 + $0x124] sm:$0xf]
        %v628 = vld [vmem:[%s3 + $0x128] sm:$0xf]
        %v629 = vld [vmem:[%s3 + $0x12c] sm:$0xf]
        %v630 = vld [vmem:[%s3 + $0x130] sm:$0xf]
        %v631 = vld [vmem:[%s3 + $0x134] sm:$0xf]
        %v632 = vld [vmem:[%s3 + $0x138] sm:$0xf]
        %v633 = vld [vmem:[%s3 + $0x13c] sm:$0xf]
        %v634 = vld [vmem:[%s3 + $0x140] sm:$0xf]
        %v635 = vld [vmem:[%s3 + $0x144] sm:$0xf]
        %v636 = vld [vmem:[%s3 + $0x148] sm:$0xf]
        %v637 = vld [vmem:[%s3 + $0x14c] sm:$0xf]
        %v638 = vld [vmem:[%s3 + $0x150] sm:$0xf]
        %v639 = vld [vmem:[%s3 + $0x154] sm:$0xf]
        %v640 = vld [vmem:[%s3 + $0x158] sm:$0xf]
        %v641 = vld [vmem:[%s3 + $0x15c] sm:$0xf]
        %v642 = vld [vmem:[%s3 + $0x160] sm:$0xf]
        %v643 = vld [vmem:[%s3 + $0x164] sm:$0xf]
        %v644 = vld [vmem:[%s3 + $0x168] sm:$0xf]
        %v645 = vld [vmem:[%s3 + $0x16c] sm:$0xf]
        %v646 = vld [vmem:[%s3 + $0x170] sm:$0xf]
        %v647 = vld [vmem:[%s3 + $0x174] sm:$0xf]
        %v648 = vld [vmem:[%s3 + $0x178] sm:$0xf]
        %v649 = vld [vmem:[%s3 + $0x17c] sm:$0xf]
        %v650 = vld [vmem:[%s3 + $0x180] sm:$0xf]
        %v651 = vld [vmem:[%s3 + $0x184] sm:$0xf]
        %v652 = vld [vmem:[%s3 + $0x188] sm:$0xf]
        %v653 = vld [vmem:[%s3 + $0x18c] sm:$0xf]
        %v654 = vld [vmem:[%s3 + $0x190] sm:$0xf]
        %v655 = vld [vmem:[%s3 + $0x194] sm:$0xf]
        %v656 = vld [vmem:[%s3 + $0x198] sm:$0xf]
        %v657 = vld [vmem:[%s3 + $0x19c] sm:$0xf]
        %v658 = vld [vmem:[%s3 + $0x1a0] sm:$0xf]
        %v659 = vld [vmem:[%s3 + $0x1a4] sm:$0xf]
        %v660 = vld [vmem:[%s3 + $0x1a8] sm:$0xf]
        %v661 = vld [vmem:[%s3 + $0x1ac] sm:$0xf]
        %v662 = vld [vmem:[%s3 + $0x1b0] sm:$0xf]
        %v663 = vld [vmem:[%s3 + $0x1b4] sm:$0xf]
        %v664 = vld [vmem:[%s3 + $0x1b8] sm:$0xf]
        %v665 = vld [vmem:[%s3 + $0x1bc] sm:$0xf]
        %v666 = vld [vmem:[%s3 + $0x1c0] sm:$0xf]
        %v667 = vld [vmem:[%s3 + $0x1c4] sm:$0xf]
        %v668 = vld [vmem:[%s3 + $0x1c8] sm:$0xf]
        %v669 = vld [vmem:[%s3 + $0x1cc] sm:$0xf]
        %v670 = vld [vmem:[%s3 + $0x1d0] sm:$0xf]
        %v671 = vld [vmem:[%s3 + $0x1d4] sm:$0xf]
        %v672 = vld [vmem:[%s3 + $0x1d8] sm:$0xf]
        %v673 = vld [vmem:[%s3 + $0x1dc] sm:$0xf]
        %v674 = vld [vmem:[%s3 + $0x1e0] sm:$0xf]
        %v675 = vld [vmem:[%s3 + $0x1e4] sm:$0xf]
        %v676 = vld [vmem:[%s3 + $0x1e8] sm:$0xf]
        %v677 = vld [vmem:[%s3 + $0x1ec] sm:$0xf]
        %v678 = vld [vmem:[%s3 + $0x1f0] sm:$0xf]
        %v679 = vld [vmem:[%s3 + $0x1f4] sm:$0xf]
        %v680 = vld [vmem:[%s3 + $0x1f8] sm:$0xf]
        %v681 = vld [vmem:[%s3 + $0x1fc] sm:$0xf]
        %v682 = vld [vmem:[%s3 + $0x200] sm:$0xf]
        %v683 = vld [vmem:[%s3 + $0x204] sm:$0xf]
        %v684 = vld [vmem:[%s3 + $0x208] sm:$0xf]
        %v685 = vld [vmem:[%s3 + $0x20c] sm:$0xf]
        %v686 = vld [vmem:[%s3 + $0x210] sm:$0xf]
        %v687 = vld [vmem:[%s3 + $0x214] sm:$0xf]
        %v688 = vld [vmem:[%s3 + $0x218] sm:$0xf]
        %v689 = vld [vmem:[%s3 + $0x21c] sm:$0xf]
        %v690 = vld [vmem:[%s3 + $0x220] sm:$0xf]
        %v691 = vld [vmem:[%s3 + $0x224] sm:$0xf]
        %v692 = vld [vmem:[%s3 + $0x228] sm:$0xf]
        %v693 = vld [vmem:[%s3 + $0x22c] sm:$0xf]
        %v694 = vld [vmem:[%s3 + $0x230] sm:$0xf]
        %v695 = vld [vmem:[%s3 + $0x234] sm:$0xf]
        %v696 = vld [vmem:[%s3 + $0x238] sm:$0xf]
        %v697 = vld [vmem:[%s3 + $0x23c] sm:$0xf]
        %v698 = vld [vmem:[%s3 + $0x240] sm:$0xf]
        %v699 = vld [vmem:[%s3 + $0x244] sm:$0xf]
        %v700 = vld [vmem:[%s3 + $0x248] sm:$0xf]
        %v701 = vld [vmem:[%s3 + $0x24c] sm:$0xf]
        %v702 = vld [vmem:[%s3 + $0x250] sm:$0xf]
        %v703 = vld [vmem:[%s3 + $0x254] sm:$0xf]
        %v704 = vld [vmem:[%s3 + $0x258] sm:$0xf]
        %v705 = vld [vmem:[%s3 + $0x25c] sm:$0xf]
        %v706 = vld [vmem:[%s3 + $0x260] sm:$0xf]
        %v707 = vld [vmem:[%s3 + $0x264] sm:$0xf]
        %v708 = vld [vmem:[%s3 + $0x268] sm:$0xf]
        %v709 = vld [vmem:[%s3 + $0x26c] sm:$0xf]
        %v710 = vld [vmem:[%s3 + $0x270] sm:$0xf]
        %v711 = vld [vmem:[%s3 + $0x274] sm:$0xf]
        %v712 = vld [vmem:[%s3 + $0x278] sm:$0xf]
        %v713 = vld [vmem:[%s3 + $0x27c] sm:$0xf]
        %v714 = vld [vmem:[%s3 + $0x280] sm:$0xf]
        %v715 = vld [vmem:[%s3 + $0x284] sm:$0xf]
        %v716 = vld [vmem:[%s3 + $0x288] sm:$0xf]
        %v717 = vld [vmem:[%s3 + $0x28c] sm:$0xf]
        %v718 = vld [vmem:[%s3 + $0x290] sm:$0xf]
        %v719 = vld [vmem:[%s3 + $0x294] sm:$0xf]
        %v720 = vld [vmem:[%s3 + $0x298] sm:$0xf]
        %v721 = vld [vmem:[%s3 + $0x29c] sm:$0xf]
        %v722 = vld [vmem:[%s3 + $0x2a0] sm:$0xf]
        %v723 = vld [vmem:[%s3 + $0x2a4] sm:$0xf]
        %v724 = vld [vmem:[%s3 + $0x2a8] sm:$0xf]
        %v725 = vld [vmem:[%s3 + $0x2ac] sm:$0xf]
        %v726 = vld [vmem:[%s3 + $0x2b0] sm:$0xf]
        %v727 = vld [vmem:[%s3 + $0x2b4] sm:$0xf]
        %v728 = vld [vmem:[%s3 + $0x2b8] sm:$0xf]
        %v729 = vld [vmem:[%s3 + $0x2bc] sm:$0xf]
        %v730 = vld [vmem:[%s3 + $0x2c0] sm:$0xf]
        %v731 = vld [vmem:[%s3 + $0x2c4] sm:$0xf]
        %v732 = vld [vmem:[%s3 + $0x2c8] sm:$0xf]
        %v733 = vld [vmem:[%s3 + $0x2cc] sm:$0xf]
        %v734 = vld [vmem:[%s3 + $0x2d0] sm:$0xf]
        %v735 = vld [vmem:[%s3 + $0x2d4] sm:$0xf]
        %v736 = vld [vmem:[%s3 + $0x2d8] sm:$0xf]
        %v737 = vld [vmem:[%s3 + $0x2dc] sm:$0xf]
        %v738 = vld [vmem:[%s3 + $0x2e0] sm:$0xf]
        %v739 = vld [vmem:[%s3 + $0x2e4] sm:$0xf]
        %v740 = vld [vmem:[%s3 + $0x2e8] sm:$0xf]
        %v741 = vld [vmem:[%s3 + $0x2ec] sm:$0xf]
        %v742 = vld [vmem:[%s3 + $0x2f0] sm:$0xf]
        %v743 = vld [vmem:[%s3 + $0x2f4] sm:$0xf]
        %v744 = vld [vmem:[%s3 + $0x2f8] sm:$0xf]
        %v745 = vld [vmem:[%s3 + $0x2fc] sm:$0xf]
        %v746 = vld [vmem:[%s4] sm:$0xff]
        %v747 = vld [vmem:[%s4 + $0x8] sm:$0xff]
        %v748 = vld [vmem:[%s4 + $0x10] sm:$0xff]
        %v749 = vld [vmem:[%s4 + $0x18] sm:$0xff]
        %v750 = vld [vmem:[%s4 + $0x20] sm:$0xff]
        %v751 = vld [vmem:[%s4 + $0x28] sm:$0xff]
        %v752 = vld [vmem:[%s4 + $0x30] sm:$0xff]
        %v753 = vld [vmem:[%s4 + $0x38] sm:$0xff]
        %v754 = vld [vmem:[%s4 + $0x40] sm:$0xff]
        %v755 = vld [vmem:[%s4 + $0x48] sm:$0xff]
        %v756 = vld [vmem:[%s4 + $0x50] sm:$0xff]
        %v757 = vld [vmem:[%s4 + $0x58] sm:$0xff]
        %v758 = vld [vmem:[%s4 + $0x60] sm:$0xff]
        %v759 = vld [vmem:[%s4 + $0x68] sm:$0xff]
        %v760 = vld [vmem:[%s4 + $0x70] sm:$0xff]
        %v761 = vld [vmem:[%s4 + $0x78] sm:$0xff]
        %v762 = vld [vmem:[%s4 + $0x80] sm:$0xff]
        %v763 = vld [vmem:[%s4 + $0x88] sm:$0xff]
        %v764 = vmul.f32 %v337, %v337
        %v765 = vmul.f32 %v338, %v338
        %v766 = vmul.f32 %v339, %v339
        %v767 = vmul.f32 %v340, %v340
        %v768 = vmul.f32 %v341, %v341
        %v769 = vmul.f32 %v342, %v342
        %v770 = vmul.f32 %v343, %v343
        %v771 = vmul.f32 %v344, %v344
        %v772 = vmul.f32 %v345, %v345
        %v773 = vmul.f32 %v346, %v346
        %v774 = vmul.f32 %v347, %v347
        %v775 = vmul.f32 %v348, %v348
        %v776 = vmul.f32 %v349, %v349
        %vm777 = vcmask 523264
        %v778 = vsel %vm777, %v764, 0.0
        %779 = vadd.xlane.f32.xlu0 %v778
        %v780 = vpop.xlane.xlu0 %779
        %v781 = vsel %vm777, %v765, 0.0
        %782 = vadd.xlane.f32.xlu0 %v781
        %v783 = vpop.xlane.xlu0 %782
        %v784 = vsel %vm777, %v766, 0.0
        %785 = vadd.xlane.f32.xlu0 %v784
        %v786 = vpop.xlane.xlu0 %785
        %v787 = vsel %vm777, %v767, 0.0
        %788 = vadd.xlane.f32.xlu0 %v787
        %v789 = vpop.xlane.xlu0 %788
        %v790 = vsel %vm777, %v768, 0.0
        %791 = vadd.xlane.f32.xlu0 %v790
        %v792 = vpop.xlane.xlu0 %791
        %v793 = vsel %vm777, %v769, 0.0
        %794 = vadd.xlane.f32.xlu0 %v793
        %v795 = vpop.xlane.xlu0 %794
        %v796 = vsel %vm777, %v770, 0.0
        %797 = vadd.xlane.f32.xlu0 %v796
        %v798 = vpop.xlane.xlu0 %797
        %v799 = vsel %vm777, %v771, 0.0
        %800 = vadd.xlane.f32.xlu0 %v799
        %v801 = vpop.xlane.xlu0 %800
        %v802 = vsel %vm777, %v772, 0.0
        %803 = vadd.xlane.f32.xlu0 %v802
        %v804 = vpop.xlane.xlu0 %803
        %v805 = vsel %vm777, %v773, 0.0
        %806 = vadd.xlane.f32.xlu0 %v805
        %v807 = vpop.xlane.xlu0 %806
        %v808 = vsel %vm777, %v774, 0.0
        %809 = vadd.xlane.f32.xlu0 %v808
        %v810 = vpop.xlane.xlu0 %809
        %v811 = vsel %vm777, %v775, 0.0
        %812 = vadd.xlane.f32.xlu0 %v811
        %v813 = vpop.xlane.xlu0 %812
        %v814 = vsel %vm777, %v776, 0.0
        %815 = vadd.xlane.f32.xlu0 %v814
        %v816 = vpop.xlane.xlu0 %815
        %v817 = vrsqrt.pop %v780
        %v818 = vmul.f32 %v780, %v817
        %vm819 = vcmp.eq.f32.partialorder %v780, inf
        %v820 = vsel %vm819, %v780, %v818
        %vm821 = vcmp.eq.f32.partialorder %v780, 0.0
        %v822 = vand.u32 %v780, 2147483648
        %v823 = vsel %vm821, %v822, %v820
        %v824 = vrsqrt.pop %v783
        %v825 = vmul.f32 %v783, %v824
        %vm826 = vcmp.eq.f32.partialorder %v783, inf
        %v827 = vsel %vm826, %v783, %v825
        %vm828 = vcmp.eq.f32.partialorder %v783, 0.0
        %v829 = vand.u32 %v783, 2147483648
        %v830 = vsel %vm828, %v829, %v827
        %v831 = vrsqrt.pop %v786
        %v832 = vmul.f32 %v786, %v831
        %vm833 = vcmp.eq.f32.partialorder %v786, inf
        %v834 = vsel %vm833, %v786, %v832
        %vm835 = vcmp.eq.f32.partialorder %v786, 0.0
        %v836 = vand.u32 %v786, 2147483648
        %v837 = vsel %vm835, %v836, %v834
        %v838 = vrsqrt.pop %v789
        %v839 = vmul.f32 %v789, %v838
        %vm840 = vcmp.eq.f32.partialorder %v789, inf
        %v841 = vsel %vm840, %v789, %v839
        %vm842 = vcmp.eq.f32.partialorder %v789, 0.0
        %v843 = vand.u32 %v789, 2147483648
        %v844 = vsel %vm842, %v843, %v841
        %v845 = vrsqrt.pop %v792
        %v846 = vmul.f32 %v792, %v845
        %vm847 = vcmp.eq.f32.partialorder %v792, inf
        %v848 = vsel %vm847, %v792, %v846
        %vm849 = vcmp.eq.f32.partialorder %v792, 0.0
        %v850 = vand.u32 %v792, 2147483648
        %v851 = vsel %vm849, %v850, %v848
        %v852 = vrsqrt.pop %v795
        %v853 = vmul.f32 %v795, %v852
        %vm854 = vcmp.eq.f32.partialorder %v795, inf
        %v855 = vsel %vm854, %v795, %v853
        %vm856 = vcmp.eq.f32.partialorder %v795, 0.0
        %v857 = vand.u32 %v795, 2147483648
        %v858 = vsel %vm856, %v857, %v855
        %v859 = vrsqrt.pop %v798
        %v860 = vmul.f32 %v798, %v859
        %vm861 = vcmp.eq.f32.partialorder %v798, inf
        %v862 = vsel %vm861, %v798, %v860
        %vm863 = vcmp.eq.f32.partialorder %v798, 0.0
        %v864 = vand.u32 %v798, 2147483648
        %v865 = vsel %vm863, %v864, %v862
        %v866 = vrsqrt.pop %v801
        %v867 = vmul.f32 %v801, %v866
        %vm868 = vcmp.eq.f32.partialorder %v801, inf
        %v869 = vsel %vm868, %v801, %v867
        %vm870 = vcmp.eq.f32.partialorder %v801, 0.0
        %v871 = vand.u32 %v801, 2147483648
        %v872 = vsel %vm870, %v871, %v869
        %v873 = vrsqrt.pop %v804
        %v874 = vmul.f32 %v804, %v873
        %vm875 = vcmp.eq.f32.partialorder %v804, inf
        %v876 = vsel %vm875, %v804, %v874
        %vm877 = vcmp.eq.f32.partialorder %v804, 0.0
        %v878 = vand.u32 %v804, 2147483648
        %v879 = vsel %vm877, %v878, %v876
        %v880 = vrsqrt.pop %v807
        %v881 = vmul.f32 %v807, %v880
        %vm882 = vcmp.eq.f32.partialorder %v807, inf
        %v883 = vsel %vm882, %v807, %v881
        %vm884 = vcmp.eq.f32.partialorder %v807, 0.0
        %v885 = vand.u32 %v807, 2147483648
        %v886 = vsel %vm884, %v885, %v883
        %v887 = vrsqrt.pop %v810
        %v888 = vmul.f32 %v810, %v887
        %vm889 = vcmp.eq.f32.partialorder %v810, inf
        %v890 = vsel %vm889, %v810, %v888
        %vm891 = vcmp.eq.f32.partialorder %v810, 0.0
        %v892 = vand.u32 %v810, 2147483648
        %v893 = vsel %vm891, %v892, %v890
        %v894 = vrsqrt.pop %v813
        %v895 = vmul.f32 %v813, %v894
        %vm896 = vcmp.eq.f32.partialorder %v813, inf
        %v897 = vsel %vm896, %v813, %v895
        %vm898 = vcmp.eq.f32.partialorder %v813, 0.0
        %v899 = vand.u32 %v813, 2147483648
        %v900 = vsel %vm898, %v899, %v897
        %v901 = vrsqrt.pop %v816
        %v902 = vmul.f32 %v816, %v901
        %vm903 = vcmp.eq.f32.partialorder %v816, inf
        %v904 = vsel %vm903, %v816, %v902
        %vm905 = vcmp.eq.f32.partialorder %v816, 0.0
        %v906 = vand.u32 %v816, 2147483648
        %v907 = vsel %vm905, %v906, %v904
        %vm908 = vcmp.gt.f32.partialorder %v823, 0.0
        %vm909 = vcmp.gt.f32.partialorder %v830, 0.0
        %vm910 = vcmp.gt.f32.partialorder %v837, 0.0
        %vm911 = vcmp.gt.f32.partialorder %v844, 0.0
        %vm912 = vcmp.gt.f32.partialorder %v851, 0.0
        %vm913 = vcmp.gt.f32.partialorder %v858, 0.0
        %vm914 = vcmp.gt.f32.partialorder %v865, 0.0
        %vm915 = vcmp.gt.f32.partialorder %v872, 0.0
        %vm916 = vcmp.gt.f32.partialorder %v879, 0.0
        %vm917 = vcmp.gt.f32.partialorder %v886, 0.0
        %vm918 = vcmp.gt.f32.partialorder %v893, 0.0
        %vm919 = vcmp.gt.f32.partialorder %v900, 0.0
        %vm920 = vcmp.gt.f32.partialorder %v907, 0.0
        %v921 = vadd.f32 %v823, 1.1920929e-07
        %v922 = vadd.f32 %v830, 1.1920929e-07
        %v923 = vadd.f32 %v837, 1.1920929e-07
        %v924 = vadd.f32 %v844, 1.1920929e-07
        %v925 = vadd.f32 %v851, 1.1920929e-07
        %v926 = vadd.f32 %v858, 1.1920929e-07
        %v927 = vadd.f32 %v865, 1.1920929e-07
        %v928 = vadd.f32 %v872, 1.1920929e-07
        %v929 = vadd.f32 %v879, 1.1920929e-07
        %v930 = vadd.f32 %v886, 1.1920929e-07
        %v931 = vadd.f32 %v893, 1.1920929e-07
        %v932 = vadd.f32 %v900, 1.1920929e-07
        %v933 = vadd.f32 %v907, 1.1920929e-07
        %v934 = vsel %vm908, %v921, 1.0
        %v935 = vsel %vm909, %v922, 1.0
        %v936 = vsel %vm910, %v923, 1.0
        %v937 = vsel %vm911, %v924, 1.0
        %v938 = vsel %vm912, %v925, 1.0
        %v939 = vsel %vm913, %v926, 1.0
        %v940 = vsel %vm914, %v927, 1.0
        %v941 = vsel %vm915, %v928, 1.0
        %v942 = vsel %vm916, %v929, 1.0
        %v943 = vsel %vm917, %v930, 1.0
        %v944 = vsel %vm918, %v931, 1.0
        %v945 = vsel %vm919, %v932, 1.0
        %v946 = vsel %vm920, %v933, 1.0
        %v947 = vrcp.pop %v934
        %v948 = vmul.f32 1.0, %v947
        %v949 = vrcp.pop %v935
        %v950 = vmul.f32 1.0, %v949
        %v951 = vrcp.pop %v936
        %v952 = vmul.f32 1.0, %v951
        %v953 = vrcp.pop %v937
        %v954 = vmul.f32 1.0, %v953
        %v955 = vrcp.pop %v938
        %v956 = vmul.f32 1.0, %v955
        %v957 = vrcp.pop %v939
        %v958 = vmul.f32 1.0, %v957
        %v959 = vrcp.pop %v940
        %v960 = vmul.f32 1.0, %v959
        %v961 = vrcp.pop %v941
        %v962 = vmul.f32 1.0, %v961
        %v963 = vrcp.pop %v942
        %v964 = vmul.f32 1.0, %v963
        %v965 = vrcp.pop %v943
        %v966 = vmul.f32 1.0, %v965
        %v967 = vrcp.pop %v944
        %v968 = vmul.f32 1.0, %v967
        %v969 = vrcp.pop %v945
        %v970 = vmul.f32 1.0, %v969
        %v971 = vrcp.pop %v946
        %v972 = vmul.f32 1.0, %v971
        %v973 = vmul.f32 %v337, %v948
        %v974 = vmul.f32 %v338, %v950
        %v975 = vmul.f32 %v339, %v952
        %v976 = vmul.f32 %v340, %v954
        %v977 = vmul.f32 %v341, %v956
        %v978 = vmul.f32 %v342, %v958
        %v979 = vmul.f32 %v343, %v960
        %v980 = vmul.f32 %v344, %v962
        %v981 = vmul.f32 %v345, %v964
        %v982 = vmul.f32 %v346, %v966
        %v983 = vmul.f32 %v347, %v968
        %v984 = vmul.f32 %v348, %v970
        %v985 = vmul.f32 %v349, %v972
        %v986 = vmul.f32 %v350, %v948
        %v987 = vmul.f32 %v351, %v948
        %v988 = vmul.f32 %v352, %v948
        %v989 = vmul.f32 %v353, %v948
        %v990 = vmul.f32 %v354, %v948
        %v991 = vmul.f32 %v355, %v948
        %v992 = vmul.f32 %v356, %v948
        %v993 = vmul.f32 %v357, %v948
        %v994 = vmul.f32 %v358, %v948
        %v995 = vmul.f32 %v359, %v948
        %v996 = vmul.f32 %v360, %v948
        %v997 = vmul.f32 %v361, %v948
        %v998 = vmul.f32 %v362, %v950
        %v999 = vmul.f32 %v363, %v950
        %v1000 = vmul.f32 %v364, %v950
        %v1001 = vmul.f32 %v365, %v950
        %v1002 = vmul.f32 %v366, %v950
        %v1003 = vmul.f32 %v367, %v950
        %v1004 = vmul.f32 %v368, %v950
        %v1005 = vmul.f32 %v369, %v950
        %v1006 = vmul.f32 %v370, %v950
        %v1007 = vmul.f32 %v371, %v950
        %v1008 = vmul.f32 %v372, %v950
        %v1009 = vmul.f32 %v373, %v950
        %v1010 = vmul.f32 %v374, %v952
        %v1011 = vmul.f32 %v375, %v952
        %v1012 = vmul.f32 %v376, %v952
        %v1013 = vmul.f32 %v377, %v952
        %v1014 = vmul.f32 %v378, %v952
        %v1015 = vmul.f32 %v379, %v952
        %v1016 = vmul.f32 %v380, %v952
        %v1017 = vmul.f32 %v381, %v952
        %v1018 = vmul.f32 %v382, %v952
        %v1019 = vmul.f32 %v383, %v952
        %v1020 = vmul.f32 %v384, %v952
        %v1021 = vmul.f32 %v385, %v952
        %v1022 = vmul.f32 %v386, %v954
        %v1023 = vmul.f32 %v387, %v954
        %v1024 = vmul.f32 %v388, %v954
        %v1025 = vmul.f32 %v389, %v954
        %v1026 = vmul.f32 %v390, %v954
        %v1027 = vmul.f32 %v391, %v954
        %v1028 = vmul.f32 %v392, %v954
        %v1029 = vmul.f32 %v393, %v954
        %v1030 = vmul.f32 %v394, %v954
        %v1031 = vmul.f32 %v395, %v954
        %v1032 = vmul.f32 %v396, %v954
        %v1033 = vmul.f32 %v397, %v954
        %v1034 = vmul.f32 %v398, %v956
        %v1035 = vmul.f32 %v399, %v956
        %v1036 = vmul.f32 %v400, %v956
        %v1037 = vmul.f32 %v401, %v956
        %v1038 = vmul.f32 %v402, %v956
        %v1039 = vmul.f32 %v403, %v956
        %v1040 = vmul.f32 %v404, %v956
        %v1041 = vmul.f32 %v405, %v956
        %v1042 = vmul.f32 %v406, %v956
        %v1043 = vmul.f32 %v407, %v956
        %v1044 = vmul.f32 %v408, %v956
        %v1045 = vmul.f32 %v409, %v956
        %v1046 = vmul.f32 %v410, %v958
        %v1047 = vmul.f32 %v411, %v958
        %v1048 = vmul.f32 %v412, %v958
        %v1049 = vmul.f32 %v413, %v958
        %v1050 = vmul.f32 %v414, %v958
        %v1051 = vmul.f32 %v415, %v958
        %v1052 = vmul.f32 %v416, %v958
        %v1053 = vmul.f32 %v417, %v958
        %v1054 = vmul.f32 %v418, %v958
        %v1055 = vmul.f32 %v419, %v958
        %v1056 = vmul.f32 %v420, %v958
        %v1057 = vmul.f32 %v421, %v958
        %v1058 = vmul.f32 %v422, %v960
        %v1059 = vmul.f32 %v423, %v960
        %v1060 = vmul.f32 %v424, %v960
        %v1061 = vmul.f32 %v425, %v960
        %v1062 = vmul.f32 %v426, %v960
        %v1063 = vmul.f32 %v427, %v960
        %v1064 = vmul.f32 %v428, %v960
        %v1065 = vmul.f32 %v429, %v960
        %v1066 = vmul.f32 %v430, %v960
        %v1067 = vmul.f32 %v431, %v960
        %v1068 = vmul.f32 %v432, %v960
        %v1069 = vmul.f32 %v433, %v960
        %v1070 = vmul.f32 %v434, %v962
        %v1071 = vmul.f32 %v435, %v962
        %v1072 = vmul.f32 %v436, %v962
        %v1073 = vmul.f32 %v437, %v962
        %v1074 = vmul.f32 %v438, %v962
        %v1075 = vmul.f32 %v439, %v962
        %v1076 = vmul.f32 %v440, %v962
        %v1077 = vmul.f32 %v441, %v962
        %v1078 = vmul.f32 %v442, %v962
        %v1079 = vmul.f32 %v443, %v962
        %v1080 = vmul.f32 %v444, %v962
        %v1081 = vmul.f32 %v445, %v962
        %v1082 = vmul.f32 %v446, %v964
        %v1083 = vmul.f32 %v447, %v964
        %v1084 = vmul.f32 %v448, %v964
        %v1085 = vmul.f32 %v449, %v964
        %v1086 = vmul.f32 %v450, %v964
        %v1087 = vmul.f32 %v451, %v964
        %v1088 = vmul.f32 %v452, %v964
        %v1089 = vmul.f32 %v453, %v964
        %v1090 = vmul.f32 %v454, %v964
        %v1091 = vmul.f32 %v455, %v964
        %v1092 = vmul.f32 %v456, %v964
        %v1093 = vmul.f32 %v457, %v964
        %v1094 = vmul.f32 %v458, %v966
        %v1095 = vmul.f32 %v459, %v966
        %v1096 = vmul.f32 %v460, %v966
        %v1097 = vmul.f32 %v461, %v966
        %v1098 = vmul.f32 %v462, %v966
        %v1099 = vmul.f32 %v463, %v966
        %v1100 = vmul.f32 %v464, %v966
        %v1101 = vmul.f32 %v465, %v966
        %v1102 = vmul.f32 %v466, %v966
        %v1103 = vmul.f32 %v467, %v966
        %v1104 = vmul.f32 %v468, %v966
        %v1105 = vmul.f32 %v469, %v966
        %v1106 = vmul.f32 %v470, %v968
        %v1107 = vmul.f32 %v471, %v968
        %v1108 = vmul.f32 %v472, %v968
        %v1109 = vmul.f32 %v473, %v968
        %v1110 = vmul.f32 %v474, %v968
        %v1111 = vmul.f32 %v475, %v968
        %v1112 = vmul.f32 %v476, %v968
        %v1113 = vmul.f32 %v477, %v968
        %v1114 = vmul.f32 %v478, %v968
        %v1115 = vmul.f32 %v479, %v968
        %v1116 = vmul.f32 %v480, %v968
        %v1117 = vmul.f32 %v481, %v968
        %v1118 = vmul.f32 %v482, %v970
        %v1119 = vmul.f32 %v483, %v970
        %v1120 = vmul.f32 %v484, %v970
        %v1121 = vmul.f32 %v485, %v970
        %v1122 = vmul.f32 %v486, %v970
        %v1123 = vmul.f32 %v487, %v970
        %v1124 = vmul.f32 %v488, %v970
        %v1125 = vmul.f32 %v489, %v970
        %v1126 = vmul.f32 %v490, %v970
        %v1127 = vmul.f32 %v491, %v970
        %v1128 = vmul.f32 %v492, %v970
        %v1129 = vmul.f32 %v493, %v970
        %v1130 = vmul.f32 %v494, %v972
        %v1131 = vmul.f32 %v495, %v972
        %v1132 = vmul.f32 %v496, %v972
        %v1133 = vmul.f32 %v497, %v972
        %v1134 = vmul.f32 %v498, %v972
        %v1135 = vmul.f32 %v499, %v972
        %v1136 = vmul.f32 %v500, %v972
        %v1137 = vmul.f32 %v501, %v972
        %v1138 = vmul.f32 %v502, %v972
        %v1139 = vmul.f32 %v503, %v972
        %v1140 = vmul.f32 %v504, %v972
        %v1141 = vmul.f32 %v505, %v972
        %v1142 = vpack.c.bf16 %v974, %v973
        %v1143 = vpack.c.bf16 %v976, %v975
        %v1144 = vpack.c.bf16 %v978, %v977
        %v1145 = vpack.c.bf16 %v980, %v979
        %v1146 = vpack.c.bf16 %v982, %v981
        %v1147 = vpack.c.bf16 %v984, %v983
        %v1148 = vpack.c.bf16 %v985, %v985
        %v1149 = vunpack.c.l.bf16 %v1142
        %v1150 = vunpack.c.h.bf16 %v1142
        %v1151 = vunpack.c.l.bf16 %v1143
        %v1152 = vunpack.c.h.bf16 %v1143
        %v1153 = vunpack.c.l.bf16 %v1144
        %v1154 = vunpack.c.h.bf16 %v1144
        %v1155 = vunpack.c.l.bf16 %v1145
        %v1156 = vunpack.c.h.bf16 %v1145
        %v1157 = vunpack.c.l.bf16 %v1146
        %v1158 = vunpack.c.h.bf16 %v1146
        %v1159 = vunpack.c.l.bf16 %v1147
        %v1160 = vunpack.c.h.bf16 %v1147
        %v1161 = vunpack.c.l.bf16 %v1148
        %v1162 = vsub.f32 %v973, %v1149
        %v1163 = vsub.f32 %v974, %v1150
        %v1164 = vsub.f32 %v975, %v1151
        %v1165 = vsub.f32 %v976, %v1152
        %v1166 = vsub.f32 %v977, %v1153
        %v1167 = vsub.f32 %v978, %v1154
        %v1168 = vsub.f32 %v979, %v1155
        %v1169 = vsub.f32 %v980, %v1156
        %v1170 = vsub.f32 %v981, %v1157
        %v1171 = vsub.f32 %v982, %v1158
        %v1172 = vsub.f32 %v983, %v1159
        %v1173 = vsub.f32 %v984, %v1160
        %v1174 = vsub.f32 %v985, %v1161
        %v1175 = vpack.c.bf16 %v1163, %v1162
        %v1176 = vpack.c.bf16 %v1165, %v1164
        %v1177 = vpack.c.bf16 %v1167, %v1166
        %v1178 = vpack.c.bf16 %v1169, %v1168
        %v1179 = vpack.c.bf16 %v1171, %v1170
        %v1180 = vpack.c.bf16 %v1173, %v1172
        %v1181 = vpack.c.bf16 %v1174, %v1174
        %v1182 = vunpack.c.l.bf16 %v1175
        %v1183 = vunpack.c.h.bf16 %v1175
        %v1184 = vunpack.c.l.bf16 %v1176
        %v1185 = vunpack.c.h.bf16 %v1176
        %v1186 = vunpack.c.l.bf16 %v1177
        %v1187 = vunpack.c.h.bf16 %v1177
        %v1188 = vunpack.c.l.bf16 %v1178
        %v1189 = vunpack.c.h.bf16 %v1178
        %v1190 = vunpack.c.l.bf16 %v1179
        %v1191 = vunpack.c.h.bf16 %v1179
        %v1192 = vunpack.c.l.bf16 %v1180
        %v1193 = vunpack.c.h.bf16 %v1180
        %v1194 = vunpack.c.l.bf16 %v1181
        %v1195 = vsub.f32 %v1162, %v1182
        %v1196 = vsub.f32 %v1163, %v1183
        %v1197 = vsub.f32 %v1164, %v1184
        %v1198 = vsub.f32 %v1165, %v1185
        %v1199 = vsub.f32 %v1166, %v1186
        %v1200 = vsub.f32 %v1167, %v1187
        %v1201 = vsub.f32 %v1168, %v1188
        %v1202 = vsub.f32 %v1169, %v1189
        %v1203 = vsub.f32 %v1170, %v1190
        %v1204 = vsub.f32 %v1171, %v1191
        %v1205 = vsub.f32 %v1172, %v1192
        %v1206 = vsub.f32 %v1173, %v1193
        %v1207 = vsub.f32 %v1174, %v1194
        %v1208 = vpack.c.bf16 %v1196, %v1195
        %v1209 = vpack.c.bf16 %v1198, %v1197
        %v1210 = vpack.c.bf16 %v1200, %v1199
        %v1211 = vpack.c.bf16 %v1202, %v1201
        %v1212 = vpack.c.bf16 %v1204, %v1203
        %v1213 = vpack.c.bf16 %v1206, %v1205
        %v1214 = vpack.c.bf16 %v1207, %v1207
        %v1263 = vunpack.c.l.b16 %v506
        %v1264 = vunpack.c.h.b16 %v506
        %v1265 = vunpack.c.l.b16 %v507
        %v1266 = vunpack.c.h.b16 %v507
        %v1267 = vunpack.c.l.b16 %v508
        %v1268 = vunpack.c.h.b16 %v508
        %v1269 = vunpack.c.l.b16 %v509
        %v1270 = vunpack.c.h.b16 %v509
        %v1271 = vunpack.c.l.b16 %v510
        %v1272 = vunpack.c.h.b16 %v510
        %v1273 = vunpack.c.l.b16 %v511
        %v1274 = vunpack.c.h.b16 %v511
        %v1275 = vunpack.c.l.b16 %v512
        %v1276 = vunpack.c.h.b16 %v512
        %v1277 = vunpack.c.l.b16 %v513
        %v1278 = vunpack.c.h.b16 %v513
        %v1279 = vunpack.c.l.b16 %v514
        %v1280 = vunpack.c.h.b16 %v514
        %v1281 = vunpack.c.l.b16 %v515
        %v1282 = vunpack.c.h.b16 %v515
        %v1283 = vunpack.c.l.b16 %v516
        %v1284 = vunpack.c.h.b16 %v516
        %v1285 = vunpack.c.l.b16 %v517
        %v1286 = vunpack.c.h.b16 %v517
        %v1287 = vunpack.c.l.b16 %v518
        %v1288 = vunpack.c.h.b16 %v518
        %v1289 = vunpack.c.l.b16 %v519
        %v1290 = vunpack.c.h.b16 %v519
        %v1291 = vunpack.c.l.b16 %v520
        %v1292 = vunpack.c.h.b16 %v520
        %v1293 = vunpack.c.l.b16 %v521
        %v1294 = vunpack.c.h.b16 %v521
        %v1295 = vunpack.c.l.b16 %v522
        %v1296 = vunpack.c.h.b16 %v522
        %v1297 = vunpack.c.l.b16 %v523
        %v1298 = vunpack.c.h.b16 %v523
        %v1299 = vunpack.c.l.b16 %v524
        %v1300 = vunpack.c.h.b16 %v524
        %v1301 = vunpack.c.l.b16 %v525
        %v1302 = vunpack.c.h.b16 %v525
        %v1303 = vunpack.c.l.b16 %v526
        %v1304 = vunpack.c.h.b16 %v526
        %v1305 = vunpack.c.l.b16 %v527
        %v1306 = vunpack.c.h.b16 %v527
        %v1307 = vunpack.c.l.b16 %v528
        %v1308 = vunpack.c.h.b16 %v528
        %v1309 = vunpack.c.l.b16 %v529
        %v1310 = vunpack.c.h.b16 %v529
        %v1311 = vunpack.c.l.b16 %v530
        %v1312 = vunpack.c.h.b16 %v530
        %v1313 = vunpack.c.l.b16 %v531
        %v1314 = vunpack.c.h.b16 %v531
        %v1315 = vunpack.c.l.b16 %v532
        %v1316 = vunpack.c.h.b16 %v532
        %v1317 = vunpack.c.l.b16 %v533
        %v1318 = vunpack.c.h.b16 %v533
        %v1319 = vunpack.c.l.b16 %v534
        %v1320 = vunpack.c.h.b16 %v534
        %v1321 = vunpack.c.l.b16 %v535
        %v1322 = vunpack.c.h.b16 %v535
        %v1323 = vunpack.c.l.b16 %v536
        %v1324 = vunpack.c.h.b16 %v536
        %v1325 = vunpack.c.l.b16 %v537
        %v1326 = vunpack.c.h.b16 %v537
        %v1327 = vunpack.c.l.b16 %v538
        %v1328 = vunpack.c.h.b16 %v538
        %v1329 = vunpack.c.l.b16 %v539
        %v1330 = vunpack.c.h.b16 %v539
        %v1331 = vunpack.c.l.b16 %v540
        %v1332 = vunpack.c.h.b16 %v540
        %v1333 = vunpack.c.l.b16 %v541
        %v1334 = vunpack.c.h.b16 %v541
        %v1335 = vunpack.c.l.b16 %v542
        %v1336 = vunpack.c.h.b16 %v542
        %v1337 = vunpack.c.l.b16 %v543
        %v1338 = vunpack.c.h.b16 %v543
        %v1339 = vunpack.c.l.b16 %v544
        %v1340 = vunpack.c.h.b16 %v544
        %v1341 = vunpack.c.l.b16 %v545
        %v1342 = vunpack.c.h.b16 %v545
        %v1343 = vunpack.c.l.b16 %v546
        %v1344 = vunpack.c.h.b16 %v546
        %v1345 = vunpack.c.l.b16 %v547
        %v1346 = vunpack.c.h.b16 %v547
        %v1347 = vunpack.c.l.b16 %v548
        %v1348 = vunpack.c.h.b16 %v548
        %v1349 = vunpack.c.l.b16 %v549
        %v1350 = vunpack.c.h.b16 %v549
        %v1351 = vunpack.c.l.b16 %v550
        %v1352 = vunpack.c.h.b16 %v550
        %v1353 = vunpack.c.l.b16 %v551
        %v1354 = vunpack.c.h.b16 %v551
        %v1355 = vunpack.c.l.b16 %v552
        %v1356 = vunpack.c.h.b16 %v552
        %v1357 = vunpack.c.l.b16 %v553
        %v1358 = vunpack.c.h.b16 %v553
        %v1359 = vpack.c.b16 %v1275, %v1263
        %v1360 = vpack.c.b16 %v1276, %v1264
        %v1361 = vpack.c.b16 %v1277, %v1265
        %v1362 = vpack.c.b16 %v1278, %v1266
        %v1363 = vpack.c.b16 %v1279, %v1267
        %v1364 = vpack.c.b16 %v1280, %v1268
        %v1365 = vpack.c.b16 %v1281, %v1269
        %v1366 = vpack.c.b16 %v1282, %v1270
        %v1367 = vpack.c.b16 %v1283, %v1271
        %v1368 = vpack.c.b16 %v1284, %v1272
        %v1369 = vpack.c.b16 %v1285, %v1273
        %v1370 = vpack.c.b16 %v1286, %v1274
        %v1371 = vpack.c.b16 %v1299, %v1287
        %v1372 = vpack.c.b16 %v1300, %v1288
        %v1373 = vpack.c.b16 %v1301, %v1289
        %v1374 = vpack.c.b16 %v1302, %v1290
        %v1375 = vpack.c.b16 %v1303, %v1291
        %v1376 = vpack.c.b16 %v1304, %v1292
        %v1377 = vpack.c.b16 %v1305, %v1293
        %v1378 = vpack.c.b16 %v1306, %v1294
        %v1379 = vpack.c.b16 %v1307, %v1295
        %v1380 = vpack.c.b16 %v1308, %v1296
        %v1381 = vpack.c.b16 %v1309, %v1297
        %v1382 = vpack.c.b16 %v1310, %v1298
        %v1383 = vpack.c.b16 %v1323, %v1311
        %v1384 = vpack.c.b16 %v1324, %v1312
        %v1385 = vpack.c.b16 %v1325, %v1313
        %v1386 = vpack.c.b16 %v1326, %v1314
        %v1387 = vpack.c.b16 %v1327, %v1315
        %v1388 = vpack.c.b16 %v1328, %v1316
        %v1389 = vpack.c.b16 %v1329, %v1317
        %v1390 = vpack.c.b16 %v1330, %v1318
        %v1391 = vpack.c.b16 %v1331, %v1319
        %v1392 = vpack.c.b16 %v1332, %v1320
        %v1393 = vpack.c.b16 %v1333, %v1321
        %v1394 = vpack.c.b16 %v1334, %v1322
        %v1395 = vpack.c.b16 %v1347, %v1335
        %v1396 = vpack.c.b16 %v1348, %v1336
        %v1397 = vpack.c.b16 %v1349, %v1337
        %v1398 = vpack.c.b16 %v1350, %v1338
        %v1399 = vpack.c.b16 %v1351, %v1339
        %v1400 = vpack.c.b16 %v1352, %v1340
        %v1401 = vpack.c.b16 %v1353, %v1341
        %v1402 = vpack.c.b16 %v1354, %v1342
        %v1403 = vpack.c.b16 %v1355, %v1343
        %v1404 = vpack.c.b16 %v1356, %v1344
        %v1405 = vpack.c.b16 %v1357, %v1345
        %v1406 = vpack.c.b16 %v1358, %v1346
        %v1456 = vsel %vm777, %v1175, 0
        %v1459 = vsel %vm777, %v1176, 0
        %v1462 = vsel %vm777, %v1177, 0
        %v1465 = vsel %vm777, %v1178, 0
        %v1468 = vsel %vm777, %v1179, 0
        %v1471 = vsel %vm777, %v1180, 0
        %v1474 = vsel %vm777, %v1181, 0
        %1476 = vmatprep.subr.bf16.mxu0 0
        %1477 = vmatpush1.bf16.msra.mxu0 0
        %1478 = vmatprep.subr.bf16.mxu0 0
        %1479 = vmatpush1.bf16.msra.mxu0 0
        %1480 = vmatprep.subr.bf16.mxu0 0
        %1481 = vmatpush1.bf16.msra.mxu0 0
        %1482 = vmatprep.subr.bf16.mxu0 0
        %1483 = vmatpush1.bf16.msra.mxu0 0
        %1484 = vmatprep.subr.bf16.mxu0 %v1396
        %1485 = vmatpush1.bf16.msra.mxu0 %v1395
        %1486 = vmatprep.subr.bf16.mxu0 %v1384
        %1487 = vmatpush1.bf16.msra.mxu0 %v1383
        %1488 = vmatprep.subr.bf16.mxu0 %v1372
        %1489 = vmatpush1.bf16.msra.mxu0 %v1371
        %1490 = vmatprep.subr.bf16.mxu0 %v1360
        %1491 = vmatpush1.bf16.msra.mxu0 %v1359
        %1492 = vmatprep.subr.bf16.mxu0 0
        %1493 = vmatpush2.bf16.msra.mxu0 0
        %1494 = vmatprep.subr.bf16.mxu0 0
        %1495 = vmatpush2.bf16.msra.mxu0 0
        %1496 = vmatprep.subr.bf16.mxu0 0
        %1497 = vmatpush2.bf16.msra.mxu0 0
        %1498 = vmatprep.subr.bf16.mxu0 0
        %1499 = vmatpush2.bf16.msra.mxu0 0
        %1500 = vmatprep.subr.bf16.mxu0 0
        %1501 = vmatpush2.bf16.msra.mxu0 0
        %1502 = vmatprep.subr.bf16.mxu0 0
        %1503 = vmatpush2.bf16.msra.mxu0 0
        %1504 = vmatprep.subr.bf16.mxu0 0
        %1505 = vmatpush2.bf16.msra.mxu0 0
        %1506 = vmatprep.subr.bf16.mxu0 0
        %1507 = vmatpush2.bf16.msra.mxu0 0
        %1508 = vmatprep.mubr.bf16.mxu0 0
        %1509 = vmatmul.mubr.bf16.gmra.mxu0 %v1456
        %v1510 = vpop.f32.mrf.mxu0
        %v1511 = vadd.f32 0.0, %v1510
        %v1512 = vpop.f32.mrf.mxu0
        %v1513 = vadd.f32 0.0, %v1512
        %v1514 = vpop.f32.mrf.mxu0
        %v1515 = vadd.f32 0.0, %v1514
        %v1516 = vpop.f32.mrf.mxu0
        %v1517 = vadd.f32 0.0, %v1516
        %1518 = vmatprep.mubr.bf16.mxu0 0
        %1519 = vmatmul.mubr.bf16.gmra.mxu0 %v1459
        %v1520 = vpop.f32.mrf.mxu0
        %v1521 = vadd.f32 0.0, %v1520
        %v1522 = vpop.f32.mrf.mxu0
        %v1523 = vadd.f32 0.0, %v1522
        %v1524 = vpop.f32.mrf.mxu0
        %v1525 = vadd.f32 0.0, %v1524
        %v1526 = vpop.f32.mrf.mxu0
        %v1527 = vadd.f32 0.0, %v1526
        %1528 = vmatprep.mubr.bf16.mxu0 0
        %1529 = vmatmul.mubr.bf16.gmra.mxu0 %v1462
        %v1530 = vpop.f32.mrf.mxu0
        %v1531 = vadd.f32 0.0, %v1530
        %v1532 = vpop.f32.mrf.mxu0
        %v1533 = vadd.f32 0.0, %v1532
        %v1534 = vpop.f32.mrf.mxu0
        %v1535 = vadd.f32 0.0, %v1534
        %v1536 = vpop.f32.mrf.mxu0
        %v1537 = vadd.f32 0.0, %v1536
        %1538 = vmatprep.mubr.bf16.mxu0 0
        %1539 = vmatmul.mubr.bf16.gmra.mxu0 %v1465
        %v1540 = vpop.f32.mrf.mxu0
        %v1541 = vadd.f32 0.0, %v1540
        %v1542 = vpop.f32.mrf.mxu0
        %v1543 = vadd.f32 0.0, %v1542
        %v1544 = vpop.f32.mrf.mxu0
        %v1545 = vadd.f32 0.0, %v1544
        %v1546 = vpop.f32.mrf.mxu0
        %v1547 = vadd.f32 0.0, %v1546
        %1548 = vmatprep.mubr.bf16.mxu0 0
        %1549 = vmatmul.mubr.bf16.gmra.mxu0 %v1468
        %v1550 = vpop.f32.mrf.mxu0
        %v1551 = vadd.f32 0.0, %v1550
        %v1552 = vpop.f32.mrf.mxu0
        %v1553 = vadd.f32 0.0, %v1552
        %v1554 = vpop.f32.mrf.mxu0
        %v1555 = vadd.f32 0.0, %v1554
        %v1556 = vpop.f32.mrf.mxu0
        %v1557 = vadd.f32 0.0, %v1556
        %1558 = vmatprep.mubr.bf16.mxu0 0
        %1559 = vmatmul.mubr.bf16.gmra.mxu0 %v1471
        %v1560 = vpop.f32.mrf.mxu0
        %v1561 = vadd.f32 0.0, %v1560
        %v1562 = vpop.f32.mrf.mxu0
        %v1563 = vadd.f32 0.0, %v1562
        %v1564 = vpop.f32.mrf.mxu0
        %v1565 = vadd.f32 0.0, %v1564
        %v1566 = vpop.f32.mrf.mxu0
        %v1567 = vadd.f32 0.0, %v1566
        %1568 = vmatprep.mubr.bf16.mxu0 0
        %1569 = vmatmul.mubr.bf16.gmra.mxu0 %v1474
        %v1570 = vpop.f32.mrf.mxu0
        %v1571 = vadd.f32 0.0, %v1570
        %v1572 = vpop.f32.mrf.mxu0
        %v1573 = vadd.f32 0.0, %v1572
        %v1574 = vpop.f32.mrf.mxu0
        %v1575 = vpop.f32.mrf.mxu0
        %1576 = vdwg.mxu0
        %1577 = vmatprep.subr.bf16.mxu0 0
        %1578 = vmatpush1.bf16.msra.mxu0 0
        %1579 = vmatprep.subr.bf16.mxu0 0
        %1580 = vmatpush1.bf16.msra.mxu0 0
        %1581 = vmatprep.subr.bf16.mxu0 0
        %1582 = vmatpush1.bf16.msra.mxu0 0
        %1583 = vmatprep.subr.bf16.mxu0 0
        %1584 = vmatpush1.bf16.msra.mxu0 0
        %1585 = vmatprep.subr.bf16.mxu0 %v1398
        %1586 = vmatpush1.bf16.msra.mxu0 %v1397
        %1587 = vmatprep.subr.bf16.mxu0 %v1386
        %1588 = vmatpush1.bf16.msra.mxu0 %v1385
        %1589 = vmatprep.subr.bf16.mxu0 %v1374
        %1590 = vmatpush1.bf16.msra.mxu0 %v1373
        %1591 = vmatprep.subr.bf16.mxu0 %v1362
        %1592 = vmatpush1.bf16.msra.mxu0 %v1361
        %1593 = vmatprep.subr.bf16.mxu0 0
        %1594 = vmatpush2.bf16.msra.mxu0 0
        %1595 = vmatprep.subr.bf16.mxu0 0
        %1596 = vmatpush2.bf16.msra.mxu0 0
        %1597 = vmatprep.subr.bf16.mxu0 0
        %1598 = vmatpush2.bf16.msra.mxu0 0
        %1599 = vmatprep.subr.bf16.mxu0 0
        %1600 = vmatpush2.bf16.msra.mxu0 0
        %1601 = vmatprep.subr.bf16.mxu0 0
        %1602 = vmatpush2.bf16.msra.mxu0 0
        %1603 = vmatprep.subr.bf16.mxu0 0
        %1604 = vmatpush2.bf16.msra.mxu0 0
        %1605 = vmatprep.subr.bf16.mxu0 0
        %1606 = vmatpush2.bf16.msra.mxu0 0
        %1607 = vmatprep.subr.bf16.mxu0 0
        %1608 = vmatpush2.bf16.msra.mxu0 0
        %1609 = vmatprep.mubr.bf16.mxu0 0
        %1610 = vmatmul.mubr.bf16.gmra.mxu0 %v1456
        %v1611 = vpop.f32.mrf.mxu0
        %v1612 = vadd.f32 0.0, %v1611
        %v1613 = vpop.f32.mrf.mxu0
        %v1614 = vadd.f32 0.0, %v1613
        %v1615 = vpop.f32.mrf.mxu0
        %v1616 = vadd.f32 0.0, %v1615
        %v1617 = vpop.f32.mrf.mxu0
        %v1618 = vadd.f32 0.0, %v1617
        %1619 = vmatprep.mubr.bf16.mxu0 0
        %1620 = vmatmul.mubr.bf16.gmra.mxu0 %v1459
        %v1621 = vpop.f32.mrf.mxu0
        %v1622 = vadd.f32 0.0, %v1621
        %v1623 = vpop.f32.mrf.mxu0
        %v1624 = vadd.f32 0.0, %v1623
        %v1625 = vpop.f32.mrf.mxu0
        %v1626 = vadd.f32 0.0, %v1625
        %v1627 = vpop.f32.mrf.mxu0
        %v1628 = vadd.f32 0.0, %v1627
        %1629 = vmatprep.mubr.bf16.mxu0 0
        %1630 = vmatmul.mubr.bf16.gmra.mxu0 %v1462
        %v1631 = vpop.f32.mrf.mxu0
        %v1632 = vadd.f32 0.0, %v1631
        %v1633 = vpop.f32.mrf.mxu0
        %v1634 = vadd.f32 0.0, %v1633
        %v1635 = vpop.f32.mrf.mxu0
        %v1636 = vadd.f32 0.0, %v1635
        %v1637 = vpop.f32.mrf.mxu0
        %v1638 = vadd.f32 0.0, %v1637
        %1639 = vmatprep.mubr.bf16.mxu0 0
        %1640 = vmatmul.mubr.bf16.gmra.mxu0 %v1465
        %v1641 = vpop.f32.mrf.mxu0
        %v1642 = vadd.f32 0.0, %v1641
        %v1643 = vpop.f32.mrf.mxu0
        %v1644 = vadd.f32 0.0, %v1643
        %v1645 = vpop.f32.mrf.mxu0
        %v1646 = vadd.f32 0.0, %v1645
        %v1647 = vpop.f32.mrf.mxu0
        %v1648 = vadd.f32 0.0, %v1647
        %1649 = vmatprep.mubr.bf16.mxu0 0
        %1650 = vmatmul.mubr.bf16.gmra.mxu0 %v1468
        %v1651 = vpop.f32.mrf.mxu0
        %v1652 = vadd.f32 0.0, %v1651
        %v1653 = vpop.f32.mrf.mxu0
        %v1654 = vadd.f32 0.0, %v1653
        %v1655 = vpop.f32.mrf.mxu0
        %v1656 = vadd.f32 0.0, %v1655
        %v1657 = vpop.f32.mrf.mxu0
        %v1658 = vadd.f32 0.0, %v1657
        %1659 = vmatprep.mubr.bf16.mxu0 0
        %1660 = vmatmul.mubr.bf16.gmra.mxu0 %v1471
        %v1661 = vpop.f32.mrf.mxu0
        %v1662 = vadd.f32 0.0, %v1661
        %v1663 = vpop.f32.mrf.mxu0
        %v1664 = vadd.f32 0.0, %v1663
        %v1665 = vpop.f32.mrf.mxu0
        %v1666 = vadd.f32 0.0, %v1665
        %v1667 = vpop.f32.mrf.mxu0
        %v1668 = vadd.f32 0.0, %v1667
        %1669 = vmatprep.mubr.bf16.mxu0 0
        %1670 = vmatmul.mubr.bf16.gmra.mxu0 %v1474
        %v1671 = vpop.f32.mrf.mxu0
        %v1672 = vadd.f32 0.0, %v1671
        %v1673 = vpop.f32.mrf.mxu0
        %v1674 = vadd.f32 0.0, %v1673
        %v1675 = vpop.f32.mrf.mxu0
        %v1676 = vpop.f32.mrf.mxu0
        %1677 = vdwg.mxu0
        %1678 = vmatprep.subr.bf16.mxu0 0
        %1679 = vmatpush1.bf16.msra.mxu0 0
        %1680 = vmatprep.subr.bf16.mxu0 0
        %1681 = vmatpush1.bf16.msra.mxu0 0
        %1682 = vmatprep.subr.bf16.mxu0 0
        %1683 = vmatpush1.bf16.msra.mxu0 0
        %1684 = vmatprep.subr.bf16.mxu0 0
        %1685 = vmatpush1.bf16.msra.mxu0 0
        %1686 = vmatprep.subr.bf16.mxu0 %v1400
        %1687 = vmatpush1.bf16.msra.mxu0 %v1399
        %1688 = vmatprep.subr.bf16.mxu0 %v1388
        %1689 = vmatpush1.bf16.msra.mxu0 %v1387
        %1690 = vmatprep.subr.bf16.mxu0 %v1376
        %1691 = vmatpush1.bf16.msra.mxu0 %v1375
        %1692 = vmatprep.subr.bf16.mxu0 %v1364
        %1693 = vmatpush1.bf16.msra.mxu0 %v1363
        %1694 = vmatprep.subr.bf16.mxu0 0
        %1695 = vmatpush2.bf16.msra.mxu0 0
        %1696 = vmatprep.subr.bf16.mxu0 0
        %1697 = vmatpush2.bf16.msra.mxu0 0
        %1698 = vmatprep.subr.bf16.mxu0 0
        %1699 = vmatpush2.bf16.msra.mxu0 0
        %1700 = vmatprep.subr.bf16.mxu0 0
        %1701 = vmatpush2.bf16.msra.mxu0 0
        %1702 = vmatprep.subr.bf16.mxu0 0
        %1703 = vmatpush2.bf16.msra.mxu0 0
        %1704 = vmatprep.subr.bf16.mxu0 0
        %1705 = vmatpush2.bf16.msra.mxu0 0
        %1706 = vmatprep.subr.bf16.mxu0 0
        %1707 = vmatpush2.bf16.msra.mxu0 0
        %1708 = vmatprep.subr.bf16.mxu0 0
        %1709 = vmatpush2.bf16.msra.mxu0 0
        %1710 = vmatprep.mubr.bf16.mxu0 0
        %1711 = vmatmul.mubr.bf16.gmra.mxu0 %v1456
        %v1712 = vpop.f32.mrf.mxu0
        %v1713 = vadd.f32 0.0, %v1712
        %v1714 = vpop.f32.mrf.mxu0
        %v1715 = vadd.f32 0.0, %v1714
        %v1716 = vpop.f32.mrf.mxu0
        %v1717 = vadd.f32 0.0, %v1716
        %v1718 = vpop.f32.mrf.mxu0
        %v1719 = vadd.f32 0.0, %v1718
        %1720 = vmatprep.mubr.bf16.mxu0 0
        %1721 = vmatmul.mubr.bf16.gmra.mxu0 %v1459
        %v1722 = vpop.f32.mrf.mxu0
        %v1723 = vadd.f32 0.0, %v1722
        %v1724 = vpop.f32.mrf.mxu0
        %v1725 = vadd.f32 0.0, %v1724
        %v1726 = vpop.f32.mrf.mxu0
        %v1727 = vadd.f32 0.0, %v1726
        %v1728 = vpop.f32.mrf.mxu0
        %v1729 = vadd.f32 0.0, %v1728
        %1730 = vmatprep.mubr.bf16.mxu0 0
        %1731 = vmatmul.mubr.bf16.gmra.mxu0 %v1462
        %v1732 = vpop.f32.mrf.mxu0
        %v1733 = vadd.f32 0.0, %v1732
        %v1734 = vpop.f32.mrf.mxu0
        %v1735 = vadd.f32 0.0, %v1734
        %v1736 = vpop.f32.mrf.mxu0
        %v1737 = vadd.f32 0.0, %v1736
        %v1738 = vpop.f32.mrf.mxu0
        %v1739 = vadd.f32 0.0, %v1738
        %1740 = vmatprep.mubr.bf16.mxu0 0
        %1741 = vmatmul.mubr.bf16.gmra.mxu0 %v1465
        %v1742 = vpop.f32.mrf.mxu0
        %v1743 = vadd.f32 0.0, %v1742
        %v1744 = vpop.f32.mrf.mxu0
        %v1745 = vadd.f32 0.0, %v1744
        %v1746 = vpop.f32.mrf.mxu0
        %v1747 = vadd.f32 0.0, %v1746
        %v1748 = vpop.f32.mrf.mxu0
        %v1749 = vadd.f32 0.0, %v1748
        %1750 = vmatprep.mubr.bf16.mxu0 0
        %1751 = vmatmul.mubr.bf16.gmra.mxu0 %v1468
        %v1752 = vpop.f32.mrf.mxu0
        %v1753 = vadd.f32 0.0, %v1752
        %v1754 = vpop.f32.mrf.mxu0
        %v1755 = vadd.f32 0.0, %v1754
        %v1756 = vpop.f32.mrf.mxu0
        %v1757 = vadd.f32 0.0, %v1756
        %v1758 = vpop.f32.mrf.mxu0
        %v1759 = vadd.f32 0.0, %v1758
        %1760 = vmatprep.mubr.bf16.mxu0 0
        %1761 = vmatmul.mubr.bf16.gmra.mxu0 %v1471
        %v1762 = vpop.f32.mrf.mxu0
        %v1763 = vadd.f32 0.0, %v1762
        %v1764 = vpop.f32.mrf.mxu0
        %v1765 = vadd.f32 0.0, %v1764
        %v1766 = vpop.f32.mrf.mxu0
        %v1767 = vadd.f32 0.0, %v1766
        %v1768 = vpop.f32.mrf.mxu0
        %v1769 = vadd.f32 0.0, %v1768
        %1770 = vmatprep.mubr.bf16.mxu0 0
        %1771 = vmatmul.mubr.bf16.gmra.mxu0 %v1474
        %v1772 = vpop.f32.mrf.mxu0
        %v1773 = vadd.f32 0.0, %v1772
        %v1774 = vpop.f32.mrf.mxu0
        %v1775 = vadd.f32 0.0, %v1774
        %v1776 = vpop.f32.mrf.mxu0
        %v1777 = vpop.f32.mrf.mxu0
        %1778 = vdwg.mxu0
        %1779 = vmatprep.subr.bf16.mxu0 0
        %1780 = vmatpush1.bf16.msra.mxu0 0
        %1781 = vmatprep.subr.bf16.mxu0 0
        %1782 = vmatpush1.bf16.msra.mxu0 0
        %1783 = vmatprep.subr.bf16.mxu0 0
        %1784 = vmatpush1.bf16.msra.mxu0 0
        %1785 = vmatprep.subr.bf16.mxu0 0
        %1786 = vmatpush1.bf16.msra.mxu0 0
        %1787 = vmatprep.subr.bf16.mxu0 %v1402
        %1788 = vmatpush1.bf16.msra.mxu0 %v1401
        %1789 = vmatprep.subr.bf16.mxu0 %v1390
        %1790 = vmatpush1.bf16.msra.mxu0 %v1389
        %1791 = vmatprep.subr.bf16.mxu0 %v1378
        %1792 = vmatpush1.bf16.msra.mxu0 %v1377
        %1793 = vmatprep.subr.bf16.mxu0 %v1366
        %1794 = vmatpush1.bf16.msra.mxu0 %v1365
        %1795 = vmatprep.subr.bf16.mxu0 0
        %1796 = vmatpush2.bf16.msra.mxu0 0
        %1797 = vmatprep.subr.bf16.mxu0 0
        %1798 = vmatpush2.bf16.msra.mxu0 0
        %1799 = vmatprep.subr.bf16.mxu0 0
        %1800 = vmatpush2.bf16.msra.mxu0 0
        %1801 = vmatprep.subr.bf16.mxu0 0
        %1802 = vmatpush2.bf16.msra.mxu0 0
        %1803 = vmatprep.subr.bf16.mxu0 0
        %1804 = vmatpush2.bf16.msra.mxu0 0
        %1805 = vmatprep.subr.bf16.mxu0 0
        %1806 = vmatpush2.bf16.msra.mxu0 0
        %1807 = vmatprep.subr.bf16.mxu0 0
        %1808 = vmatpush2.bf16.msra.mxu0 0
        %1809 = vmatprep.subr.bf16.mxu0 0
        %1810 = vmatpush2.bf16.msra.mxu0 0
        %1811 = vmatprep.mubr.bf16.mxu0 0
        %1812 = vmatmul.mubr.bf16.gmra.mxu0 %v1456
        %v1813 = vpop.f32.mrf.mxu0
        %v1814 = vadd.f32 0.0, %v1813
        %v1815 = vpop.f32.mrf.mxu0
        %v1816 = vadd.f32 0.0, %v1815
        %v1817 = vpop.f32.mrf.mxu0
        %v1818 = vadd.f32 0.0, %v1817
        %v1819 = vpop.f32.mrf.mxu0
        %v1820 = vadd.f32 0.0, %v1819
        %1821 = vmatprep.mubr.bf16.mxu0 0
        %1822 = vmatmul.mubr.bf16.gmra.mxu0 %v1459
        %v1823 = vpop.f32.mrf.mxu0
        %v1824 = vadd.f32 0.0, %v1823
        %v1825 = vpop.f32.mrf.mxu0
        %v1826 = vadd.f32 0.0, %v1825
        %v1827 = vpop.f32.mrf.mxu0
        %v1828 = vadd.f32 0.0, %v1827
        %v1829 = vpop.f32.mrf.mxu0
        %v1830 = vadd.f32 0.0, %v1829
        %1831 = vmatprep.mubr.bf16.mxu0 0
        %1832 = vmatmul.mubr.bf16.gmra.mxu0 %v1462
        %v1833 = vpop.f32.mrf.mxu0
        %v1834 = vadd.f32 0.0, %v1833
        %v1835 = vpop.f32.mrf.mxu0
        %v1836 = vadd.f32 0.0, %v1835
        %v1837 = vpop.f32.mrf.mxu0
        %v1838 = vadd.f32 0.0, %v1837
        %v1839 = vpop.f32.mrf.mxu0
        %v1840 = vadd.f32 0.0, %v1839
        %1841 = vmatprep.mubr.bf16.mxu0 0
        %1842 = vmatmul.mubr.bf16.gmra.mxu0 %v1465
        %v1843 = vpop.f32.mrf.mxu0
        %v1844 = vadd.f32 0.0, %v1843
        %v1845 = vpop.f32.mrf.mxu0
        %v1846 = vadd.f32 0.0, %v1845
        %v1847 = vpop.f32.mrf.mxu0
        %v1848 = vadd.f32 0.0, %v1847
        %v1849 = vpop.f32.mrf.mxu0
        %v1850 = vadd.f32 0.0, %v1849
        %1851 = vmatprep.mubr.bf16.mxu0 0
        %1852 = vmatmul.mubr.bf16.gmra.mxu0 %v1468
        %v1853 = vpop.f32.mrf.mxu0
        %v1854 = vadd.f32 0.0, %v1853
        %v1855 = vpop.f32.mrf.mxu0
        %v1856 = vadd.f32 0.0, %v1855
        %v1857 = vpop.f32.mrf.mxu0
        %v1858 = vadd.f32 0.0, %v1857
        %v1859 = vpop.f32.mrf.mxu0
        %v1860 = vadd.f32 0.0, %v1859
        %1861 = vmatprep.mubr.bf16.mxu0 0
        %1862 = vmatmul.mubr.bf16.gmra.mxu0 %v1471
        %v1863 = vpop.f32.mrf.mxu0
        %v1864 = vadd.f32 0.0, %v1863
        %v1865 = vpop.f32.mrf.mxu0
        %v1866 = vadd.f32 0.0, %v1865
        %v1867 = vpop.f32.mrf.mxu0
        %v1868 = vadd.f32 0.0, %v1867
        %v1869 = vpop.f32.mrf.mxu0
        %v1870 = vadd.f32 0.0, %v1869
        %1871 = vmatprep.mubr.bf16.mxu0 0
        %1872 = vmatmul.mubr.bf16.gmra.mxu0 %v1474
        %v1873 = vpop.f32.mrf.mxu0
        %v1874 = vadd.f32 0.0, %v1873
        %v1875 = vpop.f32.mrf.mxu0
        %v1876 = vadd.f32 0.0, %v1875
        %v1877 = vpop.f32.mrf.mxu0
        %v1878 = vpop.f32.mrf.mxu0
        %1879 = vdwg.mxu0
        %1880 = vmatprep.subr.bf16.mxu0 0
        %1881 = vmatpush1.bf16.msra.mxu0 0
        %1882 = vmatprep.subr.bf16.mxu0 0
        %1883 = vmatpush1.bf16.msra.mxu0 0
        %1884 = vmatprep.subr.bf16.mxu0 0
        %1885 = vmatpush1.bf16.msra.mxu0 0
        %1886 = vmatprep.subr.bf16.mxu0 0
        %1887 = vmatpush1.bf16.msra.mxu0 0
        %1888 = vmatprep.subr.bf16.mxu0 %v1404
        %1889 = vmatpush1.bf16.msra.mxu0 %v1403
        %1890 = vmatprep.subr.bf16.mxu0 %v1392
        %1891 = vmatpush1.bf16.msra.mxu0 %v1391
        %1892 = vmatprep.subr.bf16.mxu0 %v1380
        %1893 = vmatpush1.bf16.msra.mxu0 %v1379
        %1894 = vmatprep.subr.bf16.mxu0 %v1368
        %1895 = vmatpush1.bf16.msra.mxu0 %v1367
        %1896 = vmatprep.subr.bf16.mxu0 0
        %1897 = vmatpush2.bf16.msra.mxu0 0
        %1898 = vmatprep.subr.bf16.mxu0 0
        %1899 = vmatpush2.bf16.msra.mxu0 0
        %1900 = vmatprep.subr.bf16.mxu0 0
        %1901 = vmatpush2.bf16.msra.mxu0 0
        %1902 = vmatprep.subr.bf16.mxu0 0
        %1903 = vmatpush2.bf16.msra.mxu0 0
        %1904 = vmatprep.subr.bf16.mxu0 0
        %1905 = vmatpush2.bf16.msra.mxu0 0
        %1906 = vmatprep.subr.bf16.mxu0 0
        %1907 = vmatpush2.bf16.msra.mxu0 0
        %1908 = vmatprep.subr.bf16.mxu0 0
        %1909 = vmatpush2.bf16.msra.mxu0 0
        %1910 = vmatprep.subr.bf16.mxu0 0
        %1911 = vmatpush2.bf16.msra.mxu0 0
        %1912 = vmatprep.mubr.bf16.mxu0 0
        %1913 = vmatmul.mubr.bf16.gmra.mxu0 %v1456
        %v1914 = vpop.f32.mrf.mxu0
        %v1915 = vadd.f32 0.0, %v1914
        %v1916 = vpop.f32.mrf.mxu0
        %v1917 = vadd.f32 0.0, %v1916
        %v1918 = vpop.f32.mrf.mxu0
        %v1919 = vadd.f32 0.0, %v1918
        %v1920 = vpop.f32.mrf.mxu0
        %v1921 = vadd.f32 0.0, %v1920
        %1922 = vmatprep.mubr.bf16.mxu0 0
        %1923 = vmatmul.mubr.bf16.gmra.mxu0 %v1459
        %v1924 = vpop.f32.mrf.mxu0
        %v1925 = vadd.f32 0.0, %v1924
        %v1926 = vpop.f32.mrf.mxu0
        %v1927 = vadd.f32 0.0, %v1926
        %v1928 = vpop.f32.mrf.mxu0
        %v1929 = vadd.f32 0.0, %v1928
        %v1930 = vpop.f32.mrf.mxu0
        %v1931 = vadd.f32 0.0, %v1930
        %1932 = vmatprep.mubr.bf16.mxu0 0
        %1933 = vmatmul.mubr.bf16.gmra.mxu0 %v1462
        %v1934 = vpop.f32.mrf.mxu0
        %v1935 = vadd.f32 0.0, %v1934
        %v1936 = vpop.f32.mrf.mxu0
        %v1937 = vadd.f32 0.0, %v1936
        %v1938 = vpop.f32.mrf.mxu0
        %v1939 = vadd.f32 0.0, %v1938
        %v1940 = vpop.f32.mrf.mxu0
        %v1941 = vadd.f32 0.0, %v1940
        %1942 = vmatprep.mubr.bf16.mxu0 0
        %1943 = vmatmul.mubr.bf16.gmra.mxu0 %v1465
        %v1944 = vpop.f32.mrf.mxu0
        %v1945 = vadd.f32 0.0, %v1944
        %v1946 = vpop.f32.mrf.mxu0
        %v1947 = vadd.f32 0.0, %v1946
        %v1948 = vpop.f32.mrf.mxu0
        %v1949 = vadd.f32 0.0, %v1948
        %v1950 = vpop.f32.mrf.mxu0
        %v1951 = vadd.f32 0.0, %v1950
        %1952 = vmatprep.mubr.bf16.mxu0 0
        %1953 = vmatmul.mubr.bf16.gmra.mxu0 %v1468
        %v1954 = vpop.f32.mrf.mxu0
        %v1955 = vadd.f32 0.0, %v1954
        %v1956 = vpop.f32.mrf.mxu0
        %v1957 = vadd.f32 0.0, %v1956
        %v1958 = vpop.f32.mrf.mxu0
        %v1959 = vadd.f32 0.0, %v1958
        %v1960 = vpop.f32.mrf.mxu0
        %v1961 = vadd.f32 0.0, %v1960
        %1962 = vmatprep.mubr.bf16.mxu0 0
        %1963 = vmatmul.mubr.bf16.gmra.mxu0 %v1471
        %v1964 = vpop.f32.mrf.mxu0
        %v1965 = vadd.f32 0.0, %v1964
        %v1966 = vpop.f32.mrf.mxu0
        %v1967 = vadd.f32 0.0, %v1966
        %v1968 = vpop.f32.mrf.mxu0
        %v1969 = vadd.f32 0.0, %v1968
        %v1970 = vpop.f32.mrf.mxu0
        %v1971 = vadd.f32 0.0, %v1970
        %1972 = vmatprep.mubr.bf16.mxu0 0
        %1973 = vmatmul.mubr.bf16.gmra.mxu0 %v1474
        %v1974 = vpop.f32.mrf.mxu0
        %v1975 = vadd.f32 0.0, %v1974
        %v1976 = vpop.f32.mrf.mxu0
        %v1977 = vadd.f32 0.0, %v1976
        %v1978 = vpop.f32.mrf.mxu0
        %v1979 = vpop.f32.mrf.mxu0
        %1980 = vdwg.mxu0
        %1981 = vmatprep.subr.bf16.mxu0 0
        %1982 = vmatpush1.bf16.msra.mxu0 0
        %1983 = vmatprep.subr.bf16.mxu0 0
        %1984 = vmatpush1.bf16.msra.mxu0 0
        %1985 = vmatprep.subr.bf16.mxu0 0
        %1986 = vmatpush1.bf16.msra.mxu0 0
        %1987 = vmatprep.subr.bf16.mxu0 0
        %1988 = vmatpush1.bf16.msra.mxu0 0
        %1989 = vmatprep.subr.bf16.mxu0 %v1406
        %1990 = vmatpush1.bf16.msra.mxu0 %v1405
        %1991 = vmatprep.subr.bf16.mxu0 %v1394
        %1992 = vmatpush1.bf16.msra.mxu0 %v1393
        %1993 = vmatprep.subr.bf16.mxu0 %v1382
        %1994 = vmatpush1.bf16.msra.mxu0 %v1381
        %1995 = vmatprep.subr.bf16.mxu0 %v1370
        %1996 = vmatpush1.bf16.msra.mxu0 %v1369
        %1997 = vmatprep.subr.bf16.mxu0 0
        %1998 = vmatpush2.bf16.msra.mxu0 0
        %1999 = vmatprep.subr.bf16.mxu0 0
        %2000 = vmatpush2.bf16.msra.mxu0 0
        %2001 = vmatprep.subr.bf16.mxu0 0
        %2002 = vmatpush2.bf16.msra.mxu0 0
        %2003 = vmatprep.subr.bf16.mxu0 0
        %2004 = vmatpush2.bf16.msra.mxu0 0
        %2005 = vmatprep.subr.bf16.mxu0 0
        %2006 = vmatpush2.bf16.msra.mxu0 0
        %2007 = vmatprep.subr.bf16.mxu0 0
        %2008 = vmatpush2.bf16.msra.mxu0 0
        %2009 = vmatprep.subr.bf16.mxu0 0
        %2010 = vmatpush2.bf16.msra.mxu0 0
        %2011 = vmatprep.subr.bf16.mxu0 0
        %2012 = vmatpush2.bf16.msra.mxu0 0
        %2013 = vmatprep.mubr.bf16.mxu0 0
        %2014 = vmatmul.mubr.bf16.gmra.mxu0 %v1456
        %v2015 = vpop.f32.mrf.mxu0
        %v2016 = vadd.f32 0.0, %v2015
        %v2017 = vpop.f32.mrf.mxu0
        %v2018 = vadd.f32 0.0, %v2017
        %v2019 = vpop.f32.mrf.mxu0
        %v2020 = vadd.f32 0.0, %v2019
        %v2021 = vpop.f32.mrf.mxu0
        %v2022 = vadd.f32 0.0, %v2021
        %2023 = vmatprep.mubr.bf16.mxu0 0
        %2024 = vmatmul.mubr.bf16.gmra.mxu0 %v1459
        %v2025 = vpop.f32.mrf.mxu0
        %v2026 = vadd.f32 0.0, %v2025
        %v2027 = vpop.f32.mrf.mxu0
        %v2028 = vadd.f32 0.0, %v2027
        %v2029 = vpop.f32.mrf.mxu0
        %v2030 = vadd.f32 0.0, %v2029
        %v2031 = vpop.f32.mrf.mxu0
        %v2032 = vadd.f32 0.0, %v2031
        %2033 = vmatprep.mubr.bf16.mxu0 0
        %2034 = vmatmul.mubr.bf16.gmra.mxu0 %v1462
        %v2035 = vpop.f32.mrf.mxu0
        %v2036 = vadd.f32 0.0, %v2035
        %v2037 = vpop.f32.mrf.mxu0
        %v2038 = vadd.f32 0.0, %v2037
        %v2039 = vpop.f32.mrf.mxu0
        %v2040 = vadd.f32 0.0, %v2039
        %v2041 = vpop.f32.mrf.mxu0
        %v2042 = vadd.f32 0.0, %v2041
        %2043 = vmatprep.mubr.bf16.mxu0 0
        %2044 = vmatmul.mubr.bf16.gmra.mxu0 %v1465
        %v2045 = vpop.f32.mrf.mxu0
        %v2046 = vadd.f32 0.0, %v2045
        %v2047 = vpop.f32.mrf.mxu0
        %v2048 = vadd.f32 0.0, %v2047
        %v2049 = vpop.f32.mrf.mxu0
        %v2050 = vadd.f32 0.0, %v2049
        %v2051 = vpop.f32.mrf.mxu0
        %v2052 = vadd.f32 0.0, %v2051
        %2053 = vmatprep.mubr.bf16.mxu0 0
        %2054 = vmatmul.mubr.bf16.gmra.mxu0 %v1468
        %v2055 = vpop.f32.mrf.mxu0
        %v2056 = vadd.f32 0.0, %v2055
        %v2057 = vpop.f32.mrf.mxu0
        %v2058 = vadd.f32 0.0, %v2057
        %v2059 = vpop.f32.mrf.mxu0
        %v2060 = vadd.f32 0.0, %v2059
        %v2061 = vpop.f32.mrf.mxu0
        %v2062 = vadd.f32 0.0, %v2061
        %2063 = vmatprep.mubr.bf16.mxu0 0
        %2064 = vmatmul.mubr.bf16.gmra.mxu0 %v1471
        %v2065 = vpop.f32.mrf.mxu0
        %v2066 = vadd.f32 0.0, %v2065
        %v2067 = vpop.f32.mrf.mxu0
        %v2068 = vadd.f32 0.0, %v2067
        %v2069 = vpop.f32.mrf.mxu0
        %v2070 = vadd.f32 0.0, %v2069
        %v2071 = vpop.f32.mrf.mxu0
        %v2072 = vadd.f32 0.0, %v2071
        %2073 = vmatprep.mubr.bf16.mxu0 0
        %2074 = vmatmul.mubr.bf16.gmra.mxu0 %v1474
        %v2075 = vpop.f32.mrf.mxu0
        %v2076 = vadd.f32 0.0, %v2075
        %v2077 = vpop.f32.mrf.mxu0
        %v2078 = vadd.f32 0.0, %v2077
        %v2079 = vpop.f32.mrf.mxu0
        %v2080 = vpop.f32.mrf.mxu0
        %2081 = vdwg.mxu0
        %v2083 = vsel %vm777, %v1142, 0
        %v2086 = vsel %vm777, %v1143, 0
        %v2089 = vsel %vm777, %v1144, 0
        %v2092 = vsel %vm777, %v1145, 0
        %v2095 = vsel %vm777, %v1146, 0
        %v2098 = vsel %vm777, %v1147, 0
        %v2101 = vsel %vm777, %v1148, 0
        %2103 = vmatprep.subr.bf16.mxu0 0
        %2104 = vmatpush1.bf16.msra.mxu0 0
        %2105 = vmatprep.subr.bf16.mxu0 0
        %2106 = vmatpush1.bf16.msra.mxu0 0
        %2107 = vmatprep.subr.bf16.mxu0 0
        %2108 = vmatpush1.bf16.msra.mxu0 0
        %2109 = vmatprep.subr.bf16.mxu0 0
        %2110 = vmatpush1.bf16.msra.mxu0 0
        %2111 = vmatprep.subr.bf16.mxu0 %v1396
        %2112 = vmatpush1.bf16.msra.mxu0 %v1395
        %2113 = vmatprep.subr.bf16.mxu0 %v1384
        %2114 = vmatpush1.bf16.msra.mxu0 %v1383
        %2115 = vmatprep.subr.bf16.mxu0 %v1372
        %2116 = vmatpush1.bf16.msra.mxu0 %v1371
        %2117 = vmatprep.subr.bf16.mxu0 %v1360
        %2118 = vmatpush1.bf16.msra.mxu0 %v1359
        %2119 = vmatprep.subr.bf16.mxu0 0
        %2120 = vmatpush2.bf16.msra.mxu0 0
        %2121 = vmatprep.subr.bf16.mxu0 0
        %2122 = vmatpush2.bf16.msra.mxu0 0
        %2123 = vmatprep.subr.bf16.mxu0 0
        %2124 = vmatpush2.bf16.msra.mxu0 0
        %2125 = vmatprep.subr.bf16.mxu0 0
        %2126 = vmatpush2.bf16.msra.mxu0 0
        %2127 = vmatprep.subr.bf16.mxu0 0
        %2128 = vmatpush2.bf16.msra.mxu0 0
        %2129 = vmatprep.subr.bf16.mxu0 0
        %2130 = vmatpush2.bf16.msra.mxu0 0
        %2131 = vmatprep.subr.bf16.mxu0 0
        %2132 = vmatpush2.bf16.msra.mxu0 0
        %2133 = vmatprep.subr.bf16.mxu0 0
        %2134 = vmatpush2.bf16.msra.mxu0 0
        %2135 = vmatprep.mubr.bf16.mxu0 0
        %2136 = vmatmul.mubr.bf16.gmra.mxu0 %v2083
        %v2137 = vpop.f32.mrf.mxu0
        %v2138 = vadd.f32 %v1511, %v2137
        %v2139 = vpop.f32.mrf.mxu0
        %v2140 = vadd.f32 %v1513, %v2139
        %v2141 = vpop.f32.mrf.mxu0
        %v2142 = vadd.f32 %v1515, %v2141
        %v2143 = vpop.f32.mrf.mxu0
        %v2144 = vadd.f32 %v1517, %v2143
        %2145 = vmatprep.mubr.bf16.mxu0 0
        %2146 = vmatmul.mubr.bf16.gmra.mxu0 %v2086
        %v2147 = vpop.f32.mrf.mxu0
        %v2148 = vadd.f32 %v1521, %v2147
        %v2149 = vpop.f32.mrf.mxu0
        %v2150 = vadd.f32 %v1523, %v2149
        %v2151 = vpop.f32.mrf.mxu0
        %v2152 = vadd.f32 %v1525, %v2151
        %v2153 = vpop.f32.mrf.mxu0
        %v2154 = vadd.f32 %v1527, %v2153
        %2155 = vmatprep.mubr.bf16.mxu0 0
        %2156 = vmatmul.mubr.bf16.gmra.mxu0 %v2089
        %v2157 = vpop.f32.mrf.mxu0
        %v2158 = vadd.f32 %v1531, %v2157
        %v2159 = vpop.f32.mrf.mxu0
        %v2160 = vadd.f32 %v1533, %v2159
        %v2161 = vpop.f32.mrf.mxu0
        %v2162 = vadd.f32 %v1535, %v2161
        %v2163 = vpop.f32.mrf.mxu0
        %v2164 = vadd.f32 %v1537, %v2163
        %2165 = vmatprep.mubr.bf16.mxu0 0
        %2166 = vmatmul.mubr.bf16.gmra.mxu0 %v2092
        %v2167 = vpop.f32.mrf.mxu0
        %v2168 = vadd.f32 %v1541, %v2167
        %v2169 = vpop.f32.mrf.mxu0
        %v2170 = vadd.f32 %v1543, %v2169
        %v2171 = vpop.f32.mrf.mxu0
        %v2172 = vadd.f32 %v1545, %v2171
        %v2173 = vpop.f32.mrf.mxu0
        %v2174 = vadd.f32 %v1547, %v2173
        %2175 = vmatprep.mubr.bf16.mxu0 0
        %2176 = vmatmul.mubr.bf16.gmra.mxu0 %v2095
        %v2177 = vpop.f32.mrf.mxu0
        %v2178 = vadd.f32 %v1551, %v2177
        %v2179 = vpop.f32.mrf.mxu0
        %v2180 = vadd.f32 %v1553, %v2179
        %v2181 = vpop.f32.mrf.mxu0
        %v2182 = vadd.f32 %v1555, %v2181
        %v2183 = vpop.f32.mrf.mxu0
        %v2184 = vadd.f32 %v1557, %v2183
        %2185 = vmatprep.mubr.bf16.mxu0 0
        %2186 = vmatmul.mubr.bf16.gmra.mxu0 %v2098
        %v2187 = vpop.f32.mrf.mxu0
        %v2188 = vadd.f32 %v1561, %v2187
        %v2189 = vpop.f32.mrf.mxu0
        %v2190 = vadd.f32 %v1563, %v2189
        %v2191 = vpop.f32.mrf.mxu0
        %v2192 = vadd.f32 %v1565, %v2191
        %v2193 = vpop.f32.mrf.mxu0
        %v2194 = vadd.f32 %v1567, %v2193
        %2195 = vmatprep.mubr.bf16.mxu0 0
        %2196 = vmatmul.mubr.bf16.gmra.mxu0 %v2101
        %v2197 = vpop.f32.mrf.mxu0
        %v2198 = vadd.f32 %v1571, %v2197
        %v2199 = vpop.f32.mrf.mxu0
        %v2200 = vadd.f32 %v1573, %v2199
        %v2201 = vpop.f32.mrf.mxu0
        %v2202 = vpop.f32.mrf.mxu0
        %2203 = vdwg.mxu0
        %2204 = vmatprep.subr.bf16.mxu0 0
        %2205 = vmatpush1.bf16.msra.mxu0 0
        %2206 = vmatprep.subr.bf16.mxu0 0
        %2207 = vmatpush1.bf16.msra.mxu0 0
        %2208 = vmatprep.subr.bf16.mxu0 0
        %2209 = vmatpush1.bf16.msra.mxu0 0
        %2210 = vmatprep.subr.bf16.mxu0 0
        %2211 = vmatpush1.bf16.msra.mxu0 0
        %2212 = vmatprep.subr.bf16.mxu0 %v1398
        %2213 = vmatpush1.bf16.msra.mxu0 %v1397
        %2214 = vmatprep.subr.bf16.mxu0 %v1386
        %2215 = vmatpush1.bf16.msra.mxu0 %v1385
        %2216 = vmatprep.subr.bf16.mxu0 %v1374
        %2217 = vmatpush1.bf16.msra.mxu0 %v1373
        %2218 = vmatprep.subr.bf16.mxu0 %v1362
        %2219 = vmatpush1.bf16.msra.mxu0 %v1361
        %2220 = vmatprep.subr.bf16.mxu0 0
        %2221 = vmatpush2.bf16.msra.mxu0 0
        %2222 = vmatprep.subr.bf16.mxu0 0
        %2223 = vmatpush2.bf16.msra.mxu0 0
        %2224 = vmatprep.subr.bf16.mxu0 0
        %2225 = vmatpush2.bf16.msra.mxu0 0
        %2226 = vmatprep.subr.bf16.mxu0 0
        %2227 = vmatpush2.bf16.msra.mxu0 0
        %2228 = vmatprep.subr.bf16.mxu0 0
        %2229 = vmatpush2.bf16.msra.mxu0 0
        %2230 = vmatprep.subr.bf16.mxu0 0
        %2231 = vmatpush2.bf16.msra.mxu0 0
        %2232 = vmatprep.subr.bf16.mxu0 0
        %2233 = vmatpush2.bf16.msra.mxu0 0
        %2234 = vmatprep.subr.bf16.mxu0 0
        %2235 = vmatpush2.bf16.msra.mxu0 0
        %2236 = vmatprep.mubr.bf16.mxu0 0
        %2237 = vmatmul.mubr.bf16.gmra.mxu0 %v2083
        %v2238 = vpop.f32.mrf.mxu0
        %v2239 = vadd.f32 %v1612, %v2238
        %v2240 = vpop.f32.mrf.mxu0
        %v2241 = vadd.f32 %v1614, %v2240
        %v2242 = vpop.f32.mrf.mxu0
        %v2243 = vadd.f32 %v1616, %v2242
        %v2244 = vpop.f32.mrf.mxu0
        %v2245 = vadd.f32 %v1618, %v2244
        %2246 = vmatprep.mubr.bf16.mxu0 0
        %2247 = vmatmul.mubr.bf16.gmra.mxu0 %v2086
        %v2248 = vpop.f32.mrf.mxu0
        %v2249 = vadd.f32 %v1622, %v2248
        %v2250 = vpop.f32.mrf.mxu0
        %v2251 = vadd.f32 %v1624, %v2250
        %v2252 = vpop.f32.mrf.mxu0
        %v2253 = vadd.f32 %v1626, %v2252
        %v2254 = vpop.f32.mrf.mxu0
        %v2255 = vadd.f32 %v1628, %v2254
        %2256 = vmatprep.mubr.bf16.mxu0 0
        %2257 = vmatmul.mubr.bf16.gmra.mxu0 %v2089
        %v2258 = vpop.f32.mrf.mxu0
        %v2259 = vadd.f32 %v1632, %v2258
        %v2260 = vpop.f32.mrf.mxu0
        %v2261 = vadd.f32 %v1634, %v2260
        %v2262 = vpop.f32.mrf.mxu0
        %v2263 = vadd.f32 %v1636, %v2262
        %v2264 = vpop.f32.mrf.mxu0
        %v2265 = vadd.f32 %v1638, %v2264
        %2266 = vmatprep.mubr.bf16.mxu0 0
        %2267 = vmatmul.mubr.bf16.gmra.mxu0 %v2092
        %v2268 = vpop.f32.mrf.mxu0
        %v2269 = vadd.f32 %v1642, %v2268
        %v2270 = vpop.f32.mrf.mxu0
        %v2271 = vadd.f32 %v1644, %v2270
        %v2272 = vpop.f32.mrf.mxu0
        %v2273 = vadd.f32 %v1646, %v2272
        %v2274 = vpop.f32.mrf.mxu0
        %v2275 = vadd.f32 %v1648, %v2274
        %2276 = vmatprep.mubr.bf16.mxu0 0
        %2277 = vmatmul.mubr.bf16.gmra.mxu0 %v2095
        %v2278 = vpop.f32.mrf.mxu0
        %v2279 = vadd.f32 %v1652, %v2278
        %v2280 = vpop.f32.mrf.mxu0
        %v2281 = vadd.f32 %v1654, %v2280
        %v2282 = vpop.f32.mrf.mxu0
        %v2283 = vadd.f32 %v1656, %v2282
        %v2284 = vpop.f32.mrf.mxu0
        %v2285 = vadd.f32 %v1658, %v2284
        %2286 = vmatprep.mubr.bf16.mxu0 0
        %2287 = vmatmul.mubr.bf16.gmra.mxu0 %v2098
        %v2288 = vpop.f32.mrf.mxu0
        %v2289 = vadd.f32 %v1662, %v2288
        %v2290 = vpop.f32.mrf.mxu0
        %v2291 = vadd.f32 %v1664, %v2290
        %v2292 = vpop.f32.mrf.mxu0
        %v2293 = vadd.f32 %v1666, %v2292
        %v2294 = vpop.f32.mrf.mxu0
        %v2295 = vadd.f32 %v1668, %v2294
        %2296 = vmatprep.mubr.bf16.mxu0 0
        %2297 = vmatmul.mubr.bf16.gmra.mxu0 %v2101
        %v2298 = vpop.f32.mrf.mxu0
        %v2299 = vadd.f32 %v1672, %v2298
        %v2300 = vpop.f32.mrf.mxu0
        %v2301 = vadd.f32 %v1674, %v2300
        %v2302 = vpop.f32.mrf.mxu0
        %v2303 = vpop.f32.mrf.mxu0
        %2304 = vdwg.mxu0
        %2305 = vmatprep.subr.bf16.mxu0 0
        %2306 = vmatpush1.bf16.msra.mxu0 0
        %2307 = vmatprep.subr.bf16.mxu0 0
        %2308 = vmatpush1.bf16.msra.mxu0 0
        %2309 = vmatprep.subr.bf16.mxu0 0
        %2310 = vmatpush1.bf16.msra.mxu0 0
        %2311 = vmatprep.subr.bf16.mxu0 0
        %2312 = vmatpush1.bf16.msra.mxu0 0
        %2313 = vmatprep.subr.bf16.mxu0 %v1400
        %2314 = vmatpush1.bf16.msra.mxu0 %v1399
        %2315 = vmatprep.subr.bf16.mxu0 %v1388
        %2316 = vmatpush1.bf16.msra.mxu0 %v1387
        %2317 = vmatprep.subr.bf16.mxu0 %v1376
        %2318 = vmatpush1.bf16.msra.mxu0 %v1375
        %2319 = vmatprep.subr.bf16.mxu0 %v1364
        %2320 = vmatpush1.bf16.msra.mxu0 %v1363
        %2321 = vmatprep.subr.bf16.mxu0 0
        %2322 = vmatpush2.bf16.msra.mxu0 0
        %2323 = vmatprep.subr.bf16.mxu0 0
        %2324 = vmatpush2.bf16.msra.mxu0 0
        %2325 = vmatprep.subr.bf16.mxu0 0
        %2326 = vmatpush2.bf16.msra.mxu0 0
        %2327 = vmatprep.subr.bf16.mxu0 0
        %2328 = vmatpush2.bf16.msra.mxu0 0
        %2329 = vmatprep.subr.bf16.mxu0 0
        %2330 = vmatpush2.bf16.msra.mxu0 0
        %2331 = vmatprep.subr.bf16.mxu0 0
        %2332 = vmatpush2.bf16.msra.mxu0 0
        %2333 = vmatprep.subr.bf16.mxu0 0
        %2334 = vmatpush2.bf16.msra.mxu0 0
        %2335 = vmatprep.subr.bf16.mxu0 0
        %2336 = vmatpush2.bf16.msra.mxu0 0
        %2337 = vmatprep.mubr.bf16.mxu0 0
        %2338 = vmatmul.mubr.bf16.gmra.mxu0 %v2083
        %v2339 = vpop.f32.mrf.mxu0
        %v2340 = vadd.f32 %v1713, %v2339
        %v2341 = vpop.f32.mrf.mxu0
        %v2342 = vadd.f32 %v1715, %v2341
        %v2343 = vpop.f32.mrf.mxu0
        %v2344 = vadd.f32 %v1717, %v2343
        %v2345 = vpop.f32.mrf.mxu0
        %v2346 = vadd.f32 %v1719, %v2345
        %2347 = vmatprep.mubr.bf16.mxu0 0
        %2348 = vmatmul.mubr.bf16.gmra.mxu0 %v2086
        %v2349 = vpop.f32.mrf.mxu0
        %v2350 = vadd.f32 %v1723, %v2349
        %v2351 = vpop.f32.mrf.mxu0
        %v2352 = vadd.f32 %v1725, %v2351
        %v2353 = vpop.f32.mrf.mxu0
        %v2354 = vadd.f32 %v1727, %v2353
        %v2355 = vpop.f32.mrf.mxu0
        %v2356 = vadd.f32 %v1729, %v2355
        %2357 = vmatprep.mubr.bf16.mxu0 0
        %2358 = vmatmul.mubr.bf16.gmra.mxu0 %v2089
        %v2359 = vpop.f32.mrf.mxu0
        %v2360 = vadd.f32 %v1733, %v2359
        %v2361 = vpop.f32.mrf.mxu0
        %v2362 = vadd.f32 %v1735, %v2361
        %v2363 = vpop.f32.mrf.mxu0
        %v2364 = vadd.f32 %v1737, %v2363
        %v2365 = vpop.f32.mrf.mxu0
        %v2366 = vadd.f32 %v1739, %v2365
        %2367 = vmatprep.mubr.bf16.mxu0 0
        %2368 = vmatmul.mubr.bf16.gmra.mxu0 %v2092
        %v2369 = vpop.f32.mrf.mxu0
        %v2370 = vadd.f32 %v1743, %v2369
        %v2371 = vpop.f32.mrf.mxu0
        %v2372 = vadd.f32 %v1745, %v2371
        %v2373 = vpop.f32.mrf.mxu0
        %v2374 = vadd.f32 %v1747, %v2373
        %v2375 = vpop.f32.mrf.mxu0
        %v2376 = vadd.f32 %v1749, %v2375
        %2377 = vmatprep.mubr.bf16.mxu0 0
        %2378 = vmatmul.mubr.bf16.gmra.mxu0 %v2095
        %v2379 = vpop.f32.mrf.mxu0
        %v2380 = vadd.f32 %v1753, %v2379
        %v2381 = vpop.f32.mrf.mxu0
        %v2382 = vadd.f32 %v1755, %v2381
        %v2383 = vpop.f32.mrf.mxu0
        %v2384 = vadd.f32 %v1757, %v2383
        %v2385 = vpop.f32.mrf.mxu0
        %v2386 = vadd.f32 %v1759, %v2385
        %2387 = vmatprep.mubr.bf16.mxu0 0
        %2388 = vmatmul.mubr.bf16.gmra.mxu0 %v2098
        %v2389 = vpop.f32.mrf.mxu0
        %v2390 = vadd.f32 %v1763, %v2389
        %v2391 = vpop.f32.mrf.mxu0
        %v2392 = vadd.f32 %v1765, %v2391
        %v2393 = vpop.f32.mrf.mxu0
        %v2394 = vadd.f32 %v1767, %v2393
        %v2395 = vpop.f32.mrf.mxu0
        %v2396 = vadd.f32 %v1769, %v2395
        %2397 = vmatprep.mubr.bf16.mxu0 0
        %2398 = vmatmul.mubr.bf16.gmra.mxu0 %v2101
        %v2399 = vpop.f32.mrf.mxu0
        %v2400 = vadd.f32 %v1773, %v2399
        %v2401 = vpop.f32.mrf.mxu0
        %v2402 = vadd.f32 %v1775, %v2401
        %v2403 = vpop.f32.mrf.mxu0
        %v2404 = vpop.f32.mrf.mxu0
        %2405 = vdwg.mxu0
        %2406 = vmatprep.subr.bf16.mxu0 0
        %2407 = vmatpush1.bf16.msra.mxu0 0
        %2408 = vmatprep.subr.bf16.mxu0 0
        %2409 = vmatpush1.bf16.msra.mxu0 0
        %2410 = vmatprep.subr.bf16.mxu0 0
        %2411 = vmatpush1.bf16.msra.mxu0 0
        %2412 = vmatprep.subr.bf16.mxu0 0
        %2413 = vmatpush1.bf16.msra.mxu0 0
        %2414 = vmatprep.subr.bf16.mxu0 %v1402
        %2415 = vmatpush1.bf16.msra.mxu0 %v1401
        %2416 = vmatprep.subr.bf16.mxu0 %v1390
        %2417 = vmatpush1.bf16.msra.mxu0 %v1389
        %2418 = vmatprep.subr.bf16.mxu0 %v1378
        %2419 = vmatpush1.bf16.msra.mxu0 %v1377
        %2420 = vmatprep.subr.bf16.mxu0 %v1366
        %2421 = vmatpush1.bf16.msra.mxu0 %v1365
        %2422 = vmatprep.subr.bf16.mxu0 0
        %2423 = vmatpush2.bf16.msra.mxu0 0
        %2424 = vmatprep.subr.bf16.mxu0 0
        %2425 = vmatpush2.bf16.msra.mxu0 0
        %2426 = vmatprep.subr.bf16.mxu0 0
        %2427 = vmatpush2.bf16.msra.mxu0 0
        %2428 = vmatprep.subr.bf16.mxu0 0
        %2429 = vmatpush2.bf16.msra.mxu0 0
        %2430 = vmatprep.subr.bf16.mxu0 0
        %2431 = vmatpush2.bf16.msra.mxu0 0
        %2432 = vmatprep.subr.bf16.mxu0 0
        %2433 = vmatpush2.bf16.msra.mxu0 0
        %2434 = vmatprep.subr.bf16.mxu0 0
        %2435 = vmatpush2.bf16.msra.mxu0 0
        %2436 = vmatprep.subr.bf16.mxu0 0
        %2437 = vmatpush2.bf16.msra.mxu0 0
        %2438 = vmatprep.mubr.bf16.mxu0 0
        %2439 = vmatmul.mubr.bf16.gmra.mxu0 %v2083
        %v2440 = vpop.f32.mrf.mxu0
        %v2441 = vadd.f32 %v1814, %v2440
        %v2442 = vpop.f32.mrf.mxu0
        %v2443 = vadd.f32 %v1816, %v2442
        %v2444 = vpop.f32.mrf.mxu0
        %v2445 = vadd.f32 %v1818, %v2444
        %v2446 = vpop.f32.mrf.mxu0
        %v2447 = vadd.f32 %v1820, %v2446
        %2448 = vmatprep.mubr.bf16.mxu0 0
        %2449 = vmatmul.mubr.bf16.gmra.mxu0 %v2086
        %v2450 = vpop.f32.mrf.mxu0
        %v2451 = vadd.f32 %v1824, %v2450
        %v2452 = vpop.f32.mrf.mxu0
        %v2453 = vadd.f32 %v1826, %v2452
        %v2454 = vpop.f32.mrf.mxu0
        %v2455 = vadd.f32 %v1828, %v2454
        %v2456 = vpop.f32.mrf.mxu0
        %v2457 = vadd.f32 %v1830, %v2456
        %2458 = vmatprep.mubr.bf16.mxu0 0
        %2459 = vmatmul.mubr.bf16.gmra.mxu0 %v2089
        %v2460 = vpop.f32.mrf.mxu0
        %v2461 = vadd.f32 %v1834, %v2460
        %v2462 = vpop.f32.mrf.mxu0
        %v2463 = vadd.f32 %v1836, %v2462
        %v2464 = vpop.f32.mrf.mxu0
        %v2465 = vadd.f32 %v1838, %v2464
        %v2466 = vpop.f32.mrf.mxu0
        %v2467 = vadd.f32 %v1840, %v2466
        %2468 = vmatprep.mubr.bf16.mxu0 0
        %2469 = vmatmul.mubr.bf16.gmra.mxu0 %v2092
        %v2470 = vpop.f32.mrf.mxu0
        %v2471 = vadd.f32 %v1844, %v2470
        %v2472 = vpop.f32.mrf.mxu0
        %v2473 = vadd.f32 %v1846, %v2472
        %v2474 = vpop.f32.mrf.mxu0
        %v2475 = vadd.f32 %v1848, %v2474
        %v2476 = vpop.f32.mrf.mxu0
        %v2477 = vadd.f32 %v1850, %v2476
        %2478 = vmatprep.mubr.bf16.mxu0 0
        %2479 = vmatmul.mubr.bf16.gmra.mxu0 %v2095
        %v2480 = vpop.f32.mrf.mxu0
        %v2481 = vadd.f32 %v1854, %v2480
        %v2482 = vpop.f32.mrf.mxu0
        %v2483 = vadd.f32 %v1856, %v2482
        %v2484 = vpop.f32.mrf.mxu0
        %v2485 = vadd.f32 %v1858, %v2484
        %v2486 = vpop.f32.mrf.mxu0
        %v2487 = vadd.f32 %v1860, %v2486
        %2488 = vmatprep.mubr.bf16.mxu0 0
        %2489 = vmatmul.mubr.bf16.gmra.mxu0 %v2098
        %v2490 = vpop.f32.mrf.mxu0
        %v2491 = vadd.f32 %v1864, %v2490
        %v2492 = vpop.f32.mrf.mxu0
        %v2493 = vadd.f32 %v1866, %v2492
        %v2494 = vpop.f32.mrf.mxu0
        %v2495 = vadd.f32 %v1868, %v2494
        %v2496 = vpop.f32.mrf.mxu0
        %v2497 = vadd.f32 %v1870, %v2496
        %2498 = vmatprep.mubr.bf16.mxu0 0
        %2499 = vmatmul.mubr.bf16.gmra.mxu0 %v2101
        %v2500 = vpop.f32.mrf.mxu0
        %v2501 = vadd.f32 %v1874, %v2500
        %v2502 = vpop.f32.mrf.mxu0
        %v2503 = vadd.f32 %v1876, %v2502
        %v2504 = vpop.f32.mrf.mxu0
        %v2505 = vpop.f32.mrf.mxu0
        %2506 = vdwg.mxu0
        %2507 = vmatprep.subr.bf16.mxu0 0
        %2508 = vmatpush1.bf16.msra.mxu0 0
        %2509 = vmatprep.subr.bf16.mxu0 0
        %2510 = vmatpush1.bf16.msra.mxu0 0
        %2511 = vmatprep.subr.bf16.mxu0 0
        %2512 = vmatpush1.bf16.msra.mxu0 0
        %2513 = vmatprep.subr.bf16.mxu0 0
        %2514 = vmatpush1.bf16.msra.mxu0 0
        %2515 = vmatprep.subr.bf16.mxu0 %v1404
        %2516 = vmatpush1.bf16.msra.mxu0 %v1403
        %2517 = vmatprep.subr.bf16.mxu0 %v1392
        %2518 = vmatpush1.bf16.msra.mxu0 %v1391
        %2519 = vmatprep.subr.bf16.mxu0 %v1380
        %2520 = vmatpush1.bf16.msra.mxu0 %v1379
        %2521 = vmatprep.subr.bf16.mxu0 %v1368
        %2522 = vmatpush1.bf16.msra.mxu0 %v1367
        %2523 = vmatprep.subr.bf16.mxu0 0
        %2524 = vmatpush2.bf16.msra.mxu0 0
        %2525 = vmatprep.subr.bf16.mxu0 0
        %2526 = vmatpush2.bf16.msra.mxu0 0
        %2527 = vmatprep.subr.bf16.mxu0 0
        %2528 = vmatpush2.bf16.msra.mxu0 0
        %2529 = vmatprep.subr.bf16.mxu0 0
        %2530 = vmatpush2.bf16.msra.mxu0 0
        %2531 = vmatprep.subr.bf16.mxu0 0
        %2532 = vmatpush2.bf16.msra.mxu0 0
        %2533 = vmatprep.subr.bf16.mxu0 0
        %2534 = vmatpush2.bf16.msra.mxu0 0
        %2535 = vmatprep.subr.bf16.mxu0 0
        %2536 = vmatpush2.bf16.msra.mxu0 0
        %2537 = vmatprep.subr.bf16.mxu0 0
        %2538 = vmatpush2.bf16.msra.mxu0 0
        %2539 = vmatprep.mubr.bf16.mxu0 0
        %2540 = vmatmul.mubr.bf16.gmra.mxu0 %v2083
        %v2541 = vpop.f32.mrf.mxu0
        %v2542 = vadd.f32 %v1915, %v2541
        %v2543 = vpop.f32.mrf.mxu0
        %v2544 = vadd.f32 %v1917, %v2543
        %v2545 = vpop.f32.mrf.mxu0
        %v2546 = vadd.f32 %v1919, %v2545
        %v2547 = vpop.f32.mrf.mxu0
        %v2548 = vadd.f32 %v1921, %v2547
        %2549 = vmatprep.mubr.bf16.mxu0 0
        %2550 = vmatmul.mubr.bf16.gmra.mxu0 %v2086
        %v2551 = vpop.f32.mrf.mxu0
        %v2552 = vadd.f32 %v1925, %v2551
        %v2553 = vpop.f32.mrf.mxu0
        %v2554 = vadd.f32 %v1927, %v2553
        %v2555 = vpop.f32.mrf.mxu0
        %v2556 = vadd.f32 %v1929, %v2555
        %v2557 = vpop.f32.mrf.mxu0
        %v2558 = vadd.f32 %v1931, %v2557
        %2559 = vmatprep.mubr.bf16.mxu0 0
        %2560 = vmatmul.mubr.bf16.gmra.mxu0 %v2089
        %v2561 = vpop.f32.mrf.mxu0
        %v2562 = vadd.f32 %v1935, %v2561
        %v2563 = vpop.f32.mrf.mxu0
        %v2564 = vadd.f32 %v1937, %v2563
        %v2565 = vpop.f32.mrf.mxu0
        %v2566 = vadd.f32 %v1939, %v2565
        %v2567 = vpop.f32.mrf.mxu0
        %v2568 = vadd.f32 %v1941, %v2567
        %2569 = vmatprep.mubr.bf16.mxu0 0
        %2570 = vmatmul.mubr.bf16.gmra.mxu0 %v2092
        %v2571 = vpop.f32.mrf.mxu0
        %v2572 = vadd.f32 %v1945, %v2571
        %v2573 = vpop.f32.mrf.mxu0
        %v2574 = vadd.f32 %v1947, %v2573
        %v2575 = vpop.f32.mrf.mxu0
        %v2576 = vadd.f32 %v1949, %v2575
        %v2577 = vpop.f32.mrf.mxu0
        %v2578 = vadd.f32 %v1951, %v2577
        %2579 = vmatprep.mubr.bf16.mxu0 0
        %2580 = vmatmul.mubr.bf16.gmra.mxu0 %v2095
        %v2581 = vpop.f32.mrf.mxu0
        %v2582 = vadd.f32 %v1955, %v2581
        %v2583 = vpop.f32.mrf.mxu0
        %v2584 = vadd.f32 %v1957, %v2583
        %v2585 = vpop.f32.mrf.mxu0
        %v2586 = vadd.f32 %v1959, %v2585
        %v2587 = vpop.f32.mrf.mxu0
        %v2588 = vadd.f32 %v1961, %v2587
        %2589 = vmatprep.mubr.bf16.mxu0 0
        %2590 = vmatmul.mubr.bf16.gmra.mxu0 %v2098
        %v2591 = vpop.f32.mrf.mxu0
        %v2592 = vadd.f32 %v1965, %v2591
        %v2593 = vpop.f32.mrf.mxu0
        %v2594 = vadd.f32 %v1967, %v2593
        %v2595 = vpop.f32.mrf.mxu0
        %v2596 = vadd.f32 %v1969, %v2595
        %v2597 = vpop.f32.mrf.mxu0
        %v2598 = vadd.f32 %v1971, %v2597
        %2599 = vmatprep.mubr.bf16.mxu0 0
        %2600 = vmatmul.mubr.bf16.gmra.mxu0 %v2101
        %v2601 = vpop.f32.mrf.mxu0
        %v2602 = vadd.f32 %v1975, %v2601
        %v2603 = vpop.f32.mrf.mxu0
        %v2604 = vadd.f32 %v1977, %v2603
        %v2605 = vpop.f32.mrf.mxu0
        %v2606 = vpop.f32.mrf.mxu0
        %2607 = vdwg.mxu0
        %2608 = vmatprep.subr.bf16.mxu0 0
        %2609 = vmatpush1.bf16.msra.mxu0 0
        %2610 = vmatprep.subr.bf16.mxu0 0
        %2611 = vmatpush1.bf16.msra.mxu0 0
        %2612 = vmatprep.subr.bf16.mxu0 0
        %2613 = vmatpush1.bf16.msra.mxu0 0
        %2614 = vmatprep.subr.bf16.mxu0 0
        %2615 = vmatpush1.bf16.msra.mxu0 0
        %2616 = vmatprep.subr.bf16.mxu0 %v1406
        %2617 = vmatpush1.bf16.msra.mxu0 %v1405
        %2618 = vmatprep.subr.bf16.mxu0 %v1394
        %2619 = vmatpush1.bf16.msra.mxu0 %v1393
        %2620 = vmatprep.subr.bf16.mxu0 %v1382
        %2621 = vmatpush1.bf16.msra.mxu0 %v1381
        %2622 = vmatprep.subr.bf16.mxu0 %v1370
        %2623 = vmatpush1.bf16.msra.mxu0 %v1369
        %2624 = vmatprep.subr.bf16.mxu0 0
        %2625 = vmatpush2.bf16.msra.mxu0 0
        %2626 = vmatprep.subr.bf16.mxu0 0
        %2627 = vmatpush2.bf16.msra.mxu0 0
        %2628 = vmatprep.subr.bf16.mxu0 0
        %2629 = vmatpush2.bf16.msra.mxu0 0
        %2630 = vmatprep.subr.bf16.mxu0 0
        %2631 = vmatpush2.bf16.msra.mxu0 0
        %2632 = vmatprep.subr.bf16.mxu0 0
        %2633 = vmatpush2.bf16.msra.mxu0 0
        %2634 = vmatprep.subr.bf16.mxu0 0
        %2635 = vmatpush2.bf16.msra.mxu0 0
        %2636 = vmatprep.subr.bf16.mxu0 0
        %2637 = vmatpush2.bf16.msra.mxu0 0
        %2638 = vmatprep.subr.bf16.mxu0 0
        %2639 = vmatpush2.bf16.msra.mxu0 0
        %2640 = vmatprep.mubr.bf16.mxu0 0
        %2641 = vmatmul.mubr.bf16.gmra.mxu0 %v2083
        %v2642 = vpop.f32.mrf.mxu0
        %v2643 = vadd.f32 %v2016, %v2642
        %v2644 = vpop.f32.mrf.mxu0
        %v2645 = vadd.f32 %v2018, %v2644
        %v2646 = vpop.f32.mrf.mxu0
        %v2647 = vadd.f32 %v2020, %v2646
        %v2648 = vpop.f32.mrf.mxu0
        %v2649 = vadd.f32 %v2022, %v2648
        %2650 = vmatprep.mubr.bf16.mxu0 0
        %2651 = vmatmul.mubr.bf16.gmra.mxu0 %v2086
        %v2652 = vpop.f32.mrf.mxu0
        %v2653 = vadd.f32 %v2026, %v2652
        %v2654 = vpop.f32.mrf.mxu0
        %v2655 = vadd.f32 %v2028, %v2654
        %v2656 = vpop.f32.mrf.mxu0
        %v2657 = vadd.f32 %v2030, %v2656
        %v2658 = vpop.f32.mrf.mxu0
        %v2659 = vadd.f32 %v2032, %v2658
        %2660 = vmatprep.mubr.bf16.mxu0 0
        %2661 = vmatmul.mubr.bf16.gmra.mxu0 %v2089
        %v2662 = vpop.f32.mrf.mxu0
        %v2663 = vadd.f32 %v2036, %v2662
        %v2664 = vpop.f32.mrf.mxu0
        %v2665 = vadd.f32 %v2038, %v2664
        %v2666 = vpop.f32.mrf.mxu0
        %v2667 = vadd.f32 %v2040, %v2666
        %v2668 = vpop.f32.mrf.mxu0
        %v2669 = vadd.f32 %v2042, %v2668
        %2670 = vmatprep.mubr.bf16.mxu0 0
        %2671 = vmatmul.mubr.bf16.gmra.mxu0 %v2092
        %v2672 = vpop.f32.mrf.mxu0
        %v2673 = vadd.f32 %v2046, %v2672
        %v2674 = vpop.f32.mrf.mxu0
        %v2675 = vadd.f32 %v2048, %v2674
        %v2676 = vpop.f32.mrf.mxu0
        %v2677 = vadd.f32 %v2050, %v2676
        %v2678 = vpop.f32.mrf.mxu0
        %v2679 = vadd.f32 %v2052, %v2678
        %2680 = vmatprep.mubr.bf16.mxu0 0
        %2681 = vmatmul.mubr.bf16.gmra.mxu0 %v2095
        %v2682 = vpop.f32.mrf.mxu0
        %v2683 = vadd.f32 %v2056, %v2682
        %v2684 = vpop.f32.mrf.mxu0
        %v2685 = vadd.f32 %v2058, %v2684
        %v2686 = vpop.f32.mrf.mxu0
        %v2687 = vadd.f32 %v2060, %v2686
        %v2688 = vpop.f32.mrf.mxu0
        %v2689 = vadd.f32 %v2062, %v2688
        %2690 = vmatprep.mubr.bf16.mxu0 0
        %2691 = vmatmul.mubr.bf16.gmra.mxu0 %v2098
        %v2692 = vpop.f32.mrf.mxu0
        %v2693 = vadd.f32 %v2066, %v2692
        %v2694 = vpop.f32.mrf.mxu0
        %v2695 = vadd.f32 %v2068, %v2694
        %v2696 = vpop.f32.mrf.mxu0
        %v2697 = vadd.f32 %v2070, %v2696
        %v2698 = vpop.f32.mrf.mxu0
        %v2699 = vadd.f32 %v2072, %v2698
        %2700 = vmatprep.mubr.bf16.mxu0 0
        %2701 = vmatmul.mubr.bf16.gmra.mxu0 %v2101
        %v2702 = vpop.f32.mrf.mxu0
        %v2703 = vadd.f32 %v2076, %v2702
        %v2704 = vpop.f32.mrf.mxu0
        %v2705 = vadd.f32 %v2078, %v2704
        %v2706 = vpop.f32.mrf.mxu0
        %v2707 = vpop.f32.mrf.mxu0
        %2708 = vdwg.mxu0
        %v2710 = vsel %vm777, %v1208, 0
        %v2713 = vsel %vm777, %v1209, 0
        %v2716 = vsel %vm777, %v1210, 0
        %v2719 = vsel %vm777, %v1211, 0
        %v2722 = vsel %vm777, %v1212, 0
        %v2725 = vsel %vm777, %v1213, 0
        %v2728 = vsel %vm777, %v1214, 0
        %2730 = vmatprep.subr.bf16.mxu0 0
        %2731 = vmatpush1.bf16.msra.mxu0 0
        %2732 = vmatprep.subr.bf16.mxu0 0
        %2733 = vmatpush1.bf16.msra.mxu0 0
        %2734 = vmatprep.subr.bf16.mxu0 0
        %2735 = vmatpush1.bf16.msra.mxu0 0
        %2736 = vmatprep.subr.bf16.mxu0 0
        %2737 = vmatpush1.bf16.msra.mxu0 0
        %2738 = vmatprep.subr.bf16.mxu0 %v1396
        %2739 = vmatpush1.bf16.msra.mxu0 %v1395
        %2740 = vmatprep.subr.bf16.mxu0 %v1384
        %2741 = vmatpush1.bf16.msra.mxu0 %v1383
        %2742 = vmatprep.subr.bf16.mxu0 %v1372
        %2743 = vmatpush1.bf16.msra.mxu0 %v1371
        %2744 = vmatprep.subr.bf16.mxu0 %v1360
        %2745 = vmatpush1.bf16.msra.mxu0 %v1359
        %2746 = vmatprep.subr.bf16.mxu0 0
        %2747 = vmatpush2.bf16.msra.mxu0 0
        %2748 = vmatprep.subr.bf16.mxu0 0
        %2749 = vmatpush2.bf16.msra.mxu0 0
        %2750 = vmatprep.subr.bf16.mxu0 0
        %2751 = vmatpush2.bf16.msra.mxu0 0
        %2752 = vmatprep.subr.bf16.mxu0 0
        %2753 = vmatpush2.bf16.msra.mxu0 0
        %2754 = vmatprep.subr.bf16.mxu0 0
        %2755 = vmatpush2.bf16.msra.mxu0 0
        %2756 = vmatprep.subr.bf16.mxu0 0
        %2757 = vmatpush2.bf16.msra.mxu0 0
        %2758 = vmatprep.subr.bf16.mxu0 0
        %2759 = vmatpush2.bf16.msra.mxu0 0
        %2760 = vmatprep.subr.bf16.mxu0 0
        %2761 = vmatpush2.bf16.msra.mxu0 0
        %2762 = vmatprep.mubr.bf16.mxu0 0
        %2763 = vmatmul.mubr.bf16.gmra.mxu0 %v2710
        %v2764 = vpop.f32.mrf.mxu0
        %v2765 = vadd.f32 0.0, %v2764
        %v2766 = vpop.f32.mrf.mxu0
        %v2767 = vadd.f32 0.0, %v2766
        %v2768 = vpop.f32.mrf.mxu0
        %v2769 = vadd.f32 0.0, %v2768
        %v2770 = vpop.f32.mrf.mxu0
        %v2771 = vadd.f32 0.0, %v2770
        %2772 = vmatprep.mubr.bf16.mxu0 0
        %2773 = vmatmul.mubr.bf16.gmra.mxu0 %v2713
        %v2774 = vpop.f32.mrf.mxu0
        %v2775 = vadd.f32 0.0, %v2774
        %v2776 = vpop.f32.mrf.mxu0
        %v2777 = vadd.f32 0.0, %v2776
        %v2778 = vpop.f32.mrf.mxu0
        %v2779 = vadd.f32 0.0, %v2778
        %v2780 = vpop.f32.mrf.mxu0
        %v2781 = vadd.f32 0.0, %v2780
        %2782 = vmatprep.mubr.bf16.mxu0 0
        %2783 = vmatmul.mubr.bf16.gmra.mxu0 %v2716
        %v2784 = vpop.f32.mrf.mxu0
        %v2785 = vadd.f32 0.0, %v2784
        %v2786 = vpop.f32.mrf.mxu0
        %v2787 = vadd.f32 0.0, %v2786
        %v2788 = vpop.f32.mrf.mxu0
        %v2789 = vadd.f32 0.0, %v2788
        %v2790 = vpop.f32.mrf.mxu0
        %v2791 = vadd.f32 0.0, %v2790
        %2792 = vmatprep.mubr.bf16.mxu0 0
        %2793 = vmatmul.mubr.bf16.gmra.mxu0 %v2719
        %v2794 = vpop.f32.mrf.mxu0
        %v2795 = vadd.f32 0.0, %v2794
        %v2796 = vpop.f32.mrf.mxu0
        %v2797 = vadd.f32 0.0, %v2796
        %v2798 = vpop.f32.mrf.mxu0
        %v2799 = vadd.f32 0.0, %v2798
        %v2800 = vpop.f32.mrf.mxu0
        %v2801 = vadd.f32 0.0, %v2800
        %2802 = vmatprep.mubr.bf16.mxu0 0
        %2803 = vmatmul.mubr.bf16.gmra.mxu0 %v2722
        %v2804 = vpop.f32.mrf.mxu0
        %v2805 = vadd.f32 0.0, %v2804
        %v2806 = vpop.f32.mrf.mxu0
        %v2807 = vadd.f32 0.0, %v2806
        %v2808 = vpop.f32.mrf.mxu0
        %v2809 = vadd.f32 0.0, %v2808
        %v2810 = vpop.f32.mrf.mxu0
        %v2811 = vadd.f32 0.0, %v2810
        %2812 = vmatprep.mubr.bf16.mxu0 0
        %2813 = vmatmul.mubr.bf16.gmra.mxu0 %v2725
        %v2814 = vpop.f32.mrf.mxu0
        %v2815 = vadd.f32 0.0, %v2814
        %v2816 = vpop.f32.mrf.mxu0
        %v2817 = vadd.f32 0.0, %v2816
        %v2818 = vpop.f32.mrf.mxu0
        %v2819 = vadd.f32 0.0, %v2818
        %v2820 = vpop.f32.mrf.mxu0
        %v2821 = vadd.f32 0.0, %v2820
        %2822 = vmatprep.mubr.bf16.mxu0 0
        %2823 = vmatmul.mubr.bf16.gmra.mxu0 %v2728
        %v2824 = vpop.f32.mrf.mxu0
        %v2825 = vadd.f32 0.0, %v2824
        %v2826 = vpop.f32.mrf.mxu0
        %v2827 = vadd.f32 0.0, %v2826
        %v2828 = vpop.f32.mrf.mxu0
        %v2829 = vpop.f32.mrf.mxu0
        %2830 = vdwg.mxu0
        %2831 = vmatprep.subr.bf16.mxu0 0
        %2832 = vmatpush1.bf16.msra.mxu0 0
        %2833 = vmatprep.subr.bf16.mxu0 0
        %2834 = vmatpush1.bf16.msra.mxu0 0
        %2835 = vmatprep.subr.bf16.mxu0 0
        %2836 = vmatpush1.bf16.msra.mxu0 0
        %2837 = vmatprep.subr.bf16.mxu0 0
        %2838 = vmatpush1.bf16.msra.mxu0 0
        %2839 = vmatprep.subr.bf16.mxu0 %v1398
        %2840 = vmatpush1.bf16.msra.mxu0 %v1397
        %2841 = vmatprep.subr.bf16.mxu0 %v1386
        %2842 = vmatpush1.bf16.msra.mxu0 %v1385
        %2843 = vmatprep.subr.bf16.mxu0 %v1374
        %2844 = vmatpush1.bf16.msra.mxu0 %v1373
        %2845 = vmatprep.subr.bf16.mxu0 %v1362
        %2846 = vmatpush1.bf16.msra.mxu0 %v1361
        %2847 = vmatprep.subr.bf16.mxu0 0
        %2848 = vmatpush2.bf16.msra.mxu0 0
        %2849 = vmatprep.subr.bf16.mxu0 0
        %2850 = vmatpush2.bf16.msra.mxu0 0
        %2851 = vmatprep.subr.bf16.mxu0 0
        %2852 = vmatpush2.bf16.msra.mxu0 0
        %2853 = vmatprep.subr.bf16.mxu0 0
        %2854 = vmatpush2.bf16.msra.mxu0 0
        %2855 = vmatprep.subr.bf16.mxu0 0
        %2856 = vmatpush2.bf16.msra.mxu0 0
        %2857 = vmatprep.subr.bf16.mxu0 0
        %2858 = vmatpush2.bf16.msra.mxu0 0
        %2859 = vmatprep.subr.bf16.mxu0 0
        %2860 = vmatpush2.bf16.msra.mxu0 0
        %2861 = vmatprep.subr.bf16.mxu0 0
        %2862 = vmatpush2.bf16.msra.mxu0 0
        %2863 = vmatprep.mubr.bf16.mxu0 0
        %2864 = vmatmul.mubr.bf16.gmra.mxu0 %v2710
        %v2865 = vpop.f32.mrf.mxu0
        %v2866 = vadd.f32 0.0, %v2865
        %v2867 = vpop.f32.mrf.mxu0
        %v2868 = vadd.f32 0.0, %v2867
        %v2869 = vpop.f32.mrf.mxu0
        %v2870 = vadd.f32 0.0, %v2869
        %v2871 = vpop.f32.mrf.mxu0
        %v2872 = vadd.f32 0.0, %v2871
        %2873 = vmatprep.mubr.bf16.mxu0 0
        %2874 = vmatmul.mubr.bf16.gmra.mxu0 %v2713
        %v2875 = vpop.f32.mrf.mxu0
        %v2876 = vadd.f32 0.0, %v2875
        %v2877 = vpop.f32.mrf.mxu0
        %v2878 = vadd.f32 0.0, %v2877
        %v2879 = vpop.f32.mrf.mxu0
        %v2880 = vadd.f32 0.0, %v2879
        %v2881 = vpop.f32.mrf.mxu0
        %v2882 = vadd.f32 0.0, %v2881
        %2883 = vmatprep.mubr.bf16.mxu0 0
        %2884 = vmatmul.mubr.bf16.gmra.mxu0 %v2716
        %v2885 = vpop.f32.mrf.mxu0
        %v2886 = vadd.f32 0.0, %v2885
        %v2887 = vpop.f32.mrf.mxu0
        %v2888 = vadd.f32 0.0, %v2887
        %v2889 = vpop.f32.mrf.mxu0
        %v2890 = vadd.f32 0.0, %v2889
        %v2891 = vpop.f32.mrf.mxu0
        %v2892 = vadd.f32 0.0, %v2891
        %2893 = vmatprep.mubr.bf16.mxu0 0
        %2894 = vmatmul.mubr.bf16.gmra.mxu0 %v2719
        %v2895 = vpop.f32.mrf.mxu0
        %v2896 = vadd.f32 0.0, %v2895
        %v2897 = vpop.f32.mrf.mxu0
        %v2898 = vadd.f32 0.0, %v2897
        %v2899 = vpop.f32.mrf.mxu0
        %v2900 = vadd.f32 0.0, %v2899
        %v2901 = vpop.f32.mrf.mxu0
        %v2902 = vadd.f32 0.0, %v2901
        %2903 = vmatprep.mubr.bf16.mxu0 0
        %2904 = vmatmul.mubr.bf16.gmra.mxu0 %v2722
        %v2905 = vpop.f32.mrf.mxu0
        %v2906 = vadd.f32 0.0, %v2905
        %v2907 = vpop.f32.mrf.mxu0
        %v2908 = vadd.f32 0.0, %v2907
        %v2909 = vpop.f32.mrf.mxu0
        %v2910 = vadd.f32 0.0, %v2909
        %v2911 = vpop.f32.mrf.mxu0
        %v2912 = vadd.f32 0.0, %v2911
        %2913 = vmatprep.mubr.bf16.mxu0 0
        %2914 = vmatmul.mubr.bf16.gmra.mxu0 %v2725
        %v2915 = vpop.f32.mrf.mxu0
        %v2916 = vadd.f32 0.0, %v2915
        %v2917 = vpop.f32.mrf.mxu0
        %v2918 = vadd.f32 0.0, %v2917
        %v2919 = vpop.f32.mrf.mxu0
        %v2920 = vadd.f32 0.0, %v2919
        %v2921 = vpop.f32.mrf.mxu0
        %v2922 = vadd.f32 0.0, %v2921
        %2923 = vmatprep.mubr.bf16.mxu0 0
        %2924 = vmatmul.mubr.bf16.gmra.mxu0 %v2728
        %v2925 = vpop.f32.mrf.mxu0
        %v2926 = vadd.f32 0.0, %v2925
        %v2927 = vpop.f32.mrf.mxu0
        %v2928 = vadd.f32 0.0, %v2927
        %v2929 = vpop.f32.mrf.mxu0
        %v2930 = vpop.f32.mrf.mxu0
        %2931 = vdwg.mxu0
        %2932 = vmatprep.subr.bf16.mxu0 0
        %2933 = vmatpush1.bf16.msra.mxu0 0
        %2934 = vmatprep.subr.bf16.mxu0 0
        %2935 = vmatpush1.bf16.msra.mxu0 0
        %2936 = vmatprep.subr.bf16.mxu0 0
        %2937 = vmatpush1.bf16.msra.mxu0 0
        %2938 = vmatprep.subr.bf16.mxu0 0
        %2939 = vmatpush1.bf16.msra.mxu0 0
        %2940 = vmatprep.subr.bf16.mxu0 %v1400
        %2941 = vmatpush1.bf16.msra.mxu0 %v1399
        %2942 = vmatprep.subr.bf16.mxu0 %v1388
        %2943 = vmatpush1.bf16.msra.mxu0 %v1387
        %2944 = vmatprep.subr.bf16.mxu0 %v1376
        %2945 = vmatpush1.bf16.msra.mxu0 %v1375
        %2946 = vmatprep.subr.bf16.mxu0 %v1364
        %2947 = vmatpush1.bf16.msra.mxu0 %v1363
        %2948 = vmatprep.subr.bf16.mxu0 0
        %2949 = vmatpush2.bf16.msra.mxu0 0
        %2950 = vmatprep.subr.bf16.mxu0 0
        %2951 = vmatpush2.bf16.msra.mxu0 0
        %2952 = vmatprep.subr.bf16.mxu0 0
        %2953 = vmatpush2.bf16.msra.mxu0 0
        %2954 = vmatprep.subr.bf16.mxu0 0
        %2955 = vmatpush2.bf16.msra.mxu0 0
        %2956 = vmatprep.subr.bf16.mxu0 0
        %2957 = vmatpush2.bf16.msra.mxu0 0
        %2958 = vmatprep.subr.bf16.mxu0 0
        %2959 = vmatpush2.bf16.msra.mxu0 0
        %2960 = vmatprep.subr.bf16.mxu0 0
        %2961 = vmatpush2.bf16.msra.mxu0 0
        %2962 = vmatprep.subr.bf16.mxu0 0
        %2963 = vmatpush2.bf16.msra.mxu0 0
        %2964 = vmatprep.mubr.bf16.mxu0 0
        %2965 = vmatmul.mubr.bf16.gmra.mxu0 %v2710
        %v2966 = vpop.f32.mrf.mxu0
        %v2967 = vadd.f32 0.0, %v2966
        %v2968 = vpop.f32.mrf.mxu0
        %v2969 = vadd.f32 0.0, %v2968
        %v2970 = vpop.f32.mrf.mxu0
        %v2971 = vadd.f32 0.0, %v2970
        %v2972 = vpop.f32.mrf.mxu0
        %v2973 = vadd.f32 0.0, %v2972
        %2974 = vmatprep.mubr.bf16.mxu0 0
        %2975 = vmatmul.mubr.bf16.gmra.mxu0 %v2713
        %v2976 = vpop.f32.mrf.mxu0
        %v2977 = vadd.f32 0.0, %v2976
        %v2978 = vpop.f32.mrf.mxu0
        %v2979 = vadd.f32 0.0, %v2978
        %v2980 = vpop.f32.mrf.mxu0
        %v2981 = vadd.f32 0.0, %v2980
        %v2982 = vpop.f32.mrf.mxu0
        %v2983 = vadd.f32 0.0, %v2982
        %2984 = vmatprep.mubr.bf16.mxu0 0
        %2985 = vmatmul.mubr.bf16.gmra.mxu0 %v2716
        %v2986 = vpop.f32.mrf.mxu0
        %v2987 = vadd.f32 0.0, %v2986
        %v2988 = vpop.f32.mrf.mxu0
        %v2989 = vadd.f32 0.0, %v2988
        %v2990 = vpop.f32.mrf.mxu0
        %v2991 = vadd.f32 0.0, %v2990
        %v2992 = vpop.f32.mrf.mxu0
        %v2993 = vadd.f32 0.0, %v2992
        %2994 = vmatprep.mubr.bf16.mxu0 0
        %2995 = vmatmul.mubr.bf16.gmra.mxu0 %v2719
        %v2996 = vpop.f32.mrf.mxu0
        %v2997 = vadd.f32 0.0, %v2996
        %v2998 = vpop.f32.mrf.mxu0
        %v2999 = vadd.f32 0.0, %v2998
        %v3000 = vpop.f32.mrf.mxu0
        %v3001 = vadd.f32 0.0, %v3000
        %v3002 = vpop.f32.mrf.mxu0
        %v3003 = vadd.f32 0.0, %v3002
        %3004 = vmatprep.mubr.bf16.mxu0 0
        %3005 = vmatmul.mubr.bf16.gmra.mxu0 %v2722
        %v3006 = vpop.f32.mrf.mxu0
        %v3007 = vadd.f32 0.0, %v3006
        %v3008 = vpop.f32.mrf.mxu0
        %v3009 = vadd.f32 0.0, %v3008
        %v3010 = vpop.f32.mrf.mxu0
        %v3011 = vadd.f32 0.0, %v3010
        %v3012 = vpop.f32.mrf.mxu0
        %v3013 = vadd.f32 0.0, %v3012
        %3014 = vmatprep.mubr.bf16.mxu0 0
        %3015 = vmatmul.mubr.bf16.gmra.mxu0 %v2725
        %v3016 = vpop.f32.mrf.mxu0
        %v3017 = vadd.f32 0.0, %v3016
        %v3018 = vpop.f32.mrf.mxu0
        %v3019 = vadd.f32 0.0, %v3018
        %v3020 = vpop.f32.mrf.mxu0
        %v3021 = vadd.f32 0.0, %v3020
        %v3022 = vpop.f32.mrf.mxu0
        %v3023 = vadd.f32 0.0, %v3022
        %3024 = vmatprep.mubr.bf16.mxu0 0
        %3025 = vmatmul.mubr.bf16.gmra.mxu0 %v2728
        %v3026 = vpop.f32.mrf.mxu0
        %v3027 = vadd.f32 0.0, %v3026
        %v3028 = vpop.f32.mrf.mxu0
        %v3029 = vadd.f32 0.0, %v3028
        %v3030 = vpop.f32.mrf.mxu0
        %v3031 = vpop.f32.mrf.mxu0
        %3032 = vdwg.mxu0
        %3033 = vmatprep.subr.bf16.mxu0 0
        %3034 = vmatpush1.bf16.msra.mxu0 0
        %3035 = vmatprep.subr.bf16.mxu0 0
        %3036 = vmatpush1.bf16.msra.mxu0 0
        %3037 = vmatprep.subr.bf16.mxu0 0
        %3038 = vmatpush1.bf16.msra.mxu0 0
        %3039 = vmatprep.subr.bf16.mxu0 0
        %3040 = vmatpush1.bf16.msra.mxu0 0
        %3041 = vmatprep.subr.bf16.mxu0 %v1402
        %3042 = vmatpush1.bf16.msra.mxu0 %v1401
        %3043 = vmatprep.subr.bf16.mxu0 %v1390
        %3044 = vmatpush1.bf16.msra.mxu0 %v1389
        %3045 = vmatprep.subr.bf16.mxu0 %v1378
        %3046 = vmatpush1.bf16.msra.mxu0 %v1377
        %3047 = vmatprep.subr.bf16.mxu0 %v1366
        %3048 = vmatpush1.bf16.msra.mxu0 %v1365
        %3049 = vmatprep.subr.bf16.mxu0 0
        %3050 = vmatpush2.bf16.msra.mxu0 0
        %3051 = vmatprep.subr.bf16.mxu0 0
        %3052 = vmatpush2.bf16.msra.mxu0 0
        %3053 = vmatprep.subr.bf16.mxu0 0
        %3054 = vmatpush2.bf16.msra.mxu0 0
        %3055 = vmatprep.subr.bf16.mxu0 0
        %3056 = vmatpush2.bf16.msra.mxu0 0
        %3057 = vmatprep.subr.bf16.mxu0 0
        %3058 = vmatpush2.bf16.msra.mxu0 0
        %3059 = vmatprep.subr.bf16.mxu0 0
        %3060 = vmatpush2.bf16.msra.mxu0 0
        %3061 = vmatprep.subr.bf16.mxu0 0
        %3062 = vmatpush2.bf16.msra.mxu0 0
        %3063 = vmatprep.subr.bf16.mxu0 0
        %3064 = vmatpush2.bf16.msra.mxu0 0
        %3065 = vmatprep.mubr.bf16.mxu0 0
        %3066 = vmatmul.mubr.bf16.gmra.mxu0 %v2710
        %v3067 = vpop.f32.mrf.mxu0
        %v3068 = vadd.f32 0.0, %v3067
        %v3069 = vpop.f32.mrf.mxu0
        %v3070 = vadd.f32 0.0, %v3069
        %v3071 = vpop.f32.mrf.mxu0
        %v3072 = vadd.f32 0.0, %v3071
        %v3073 = vpop.f32.mrf.mxu0
        %v3074 = vadd.f32 0.0, %v3073
        %3075 = vmatprep.mubr.bf16.mxu0 0
        %3076 = vmatmul.mubr.bf16.gmra.mxu0 %v2713
        %v3077 = vpop.f32.mrf.mxu0
        %v3078 = vadd.f32 0.0, %v3077
        %v3079 = vpop.f32.mrf.mxu0
        %v3080 = vadd.f32 0.0, %v3079
        %v3081 = vpop.f32.mrf.mxu0
        %v3082 = vadd.f32 0.0, %v3081
        %v3083 = vpop.f32.mrf.mxu0
        %v3084 = vadd.f32 0.0, %v3083
        %3085 = vmatprep.mubr.bf16.mxu0 0
        %3086 = vmatmul.mubr.bf16.gmra.mxu0 %v2716
        %v3087 = vpop.f32.mrf.mxu0
        %v3088 = vadd.f32 0.0, %v3087
        %v3089 = vpop.f32.mrf.mxu0
        %v3090 = vadd.f32 0.0, %v3089
        %v3091 = vpop.f32.mrf.mxu0
        %v3092 = vadd.f32 0.0, %v3091
        %v3093 = vpop.f32.mrf.mxu0
        %v3094 = vadd.f32 0.0, %v3093
        %3095 = vmatprep.mubr.bf16.mxu0 0
        %3096 = vmatmul.mubr.bf16.gmra.mxu0 %v2719
        %v3097 = vpop.f32.mrf.mxu0
        %v3098 = vadd.f32 0.0, %v3097
        %v3099 = vpop.f32.mrf.mxu0
        %v3100 = vadd.f32 0.0, %v3099
        %v3101 = vpop.f32.mrf.mxu0
        %v3102 = vadd.f32 0.0, %v3101
        %v3103 = vpop.f32.mrf.mxu0
        %v3104 = vadd.f32 0.0, %v3103
        %3105 = vmatprep.mubr.bf16.mxu0 0
        %3106 = vmatmul.mubr.bf16.gmra.mxu0 %v2722
        %v3107 = vpop.f32.mrf.mxu0
        %v3108 = vadd.f32 0.0, %v3107
        %v3109 = vpop.f32.mrf.mxu0
        %v3110 = vadd.f32 0.0, %v3109
        %v3111 = vpop.f32.mrf.mxu0
        %v3112 = vadd.f32 0.0, %v3111
        %v3113 = vpop.f32.mrf.mxu0
        %v3114 = vadd.f32 0.0, %v3113
        %3115 = vmatprep.mubr.bf16.mxu0 0
        %3116 = vmatmul.mubr.bf16.gmra.mxu0 %v2725
        %v3117 = vpop.f32.mrf.mxu0
        %v3118 = vadd.f32 0.0, %v3117
        %v3119 = vpop.f32.mrf.mxu0
        %v3120 = vadd.f32 0.0, %v3119
        %v3121 = vpop.f32.mrf.mxu0
        %v3122 = vadd.f32 0.0, %v3121
        %v3123 = vpop.f32.mrf.mxu0
        %v3124 = vadd.f32 0.0, %v3123
        %3125 = vmatprep.mubr.bf16.mxu0 0
        %3126 = vmatmul.mubr.bf16.gmra.mxu0 %v2728
        %v3127 = vpop.f32.mrf.mxu0
        %v3128 = vadd.f32 0.0, %v3127
        %v3129 = vpop.f32.mrf.mxu0
        %v3130 = vadd.f32 0.0, %v3129
        %v3131 = vpop.f32.mrf.mxu0
        %v3132 = vpop.f32.mrf.mxu0
        %3133 = vdwg.mxu0
        %3134 = vmatprep.subr.bf16.mxu0 0
        %3135 = vmatpush1.bf16.msra.mxu0 0
        %3136 = vmatprep.subr.bf16.mxu0 0
        %3137 = vmatpush1.bf16.msra.mxu0 0
        %3138 = vmatprep.subr.bf16.mxu0 0
        %3139 = vmatpush1.bf16.msra.mxu0 0
        %3140 = vmatprep.subr.bf16.mxu0 0
        %3141 = vmatpush1.bf16.msra.mxu0 0
        %3142 = vmatprep.subr.bf16.mxu0 %v1404
        %3143 = vmatpush1.bf16.msra.mxu0 %v1403
        %3144 = vmatprep.subr.bf16.mxu0 %v1392
        %3145 = vmatpush1.bf16.msra.mxu0 %v1391
        %3146 = vmatprep.subr.bf16.mxu0 %v1380
        %3147 = vmatpush1.bf16.msra.mxu0 %v1379
        %3148 = vmatprep.subr.bf16.mxu0 %v1368
        %3149 = vmatpush1.bf16.msra.mxu0 %v1367
        %3150 = vmatprep.subr.bf16.mxu0 0
        %3151 = vmatpush2.bf16.msra.mxu0 0
        %3152 = vmatprep.subr.bf16.mxu0 0
        %3153 = vmatpush2.bf16.msra.mxu0 0
        %3154 = vmatprep.subr.bf16.mxu0 0
        %3155 = vmatpush2.bf16.msra.mxu0 0
        %3156 = vmatprep.subr.bf16.mxu0 0
        %3157 = vmatpush2.bf16.msra.mxu0 0
        %3158 = vmatprep.subr.bf16.mxu0 0
        %3159 = vmatpush2.bf16.msra.mxu0 0
        %3160 = vmatprep.subr.bf16.mxu0 0
        %3161 = vmatpush2.bf16.msra.mxu0 0
        %3162 = vmatprep.subr.bf16.mxu0 0
        %3163 = vmatpush2.bf16.msra.mxu0 0
        %3164 = vmatprep.subr.bf16.mxu0 0
        %3165 = vmatpush2.bf16.msra.mxu0 0
        %3166 = vmatprep.mubr.bf16.mxu0 0
        %3167 = vmatmul.mubr.bf16.gmra.mxu0 %v2710
        %v3168 = vpop.f32.mrf.mxu0
        %v3169 = vadd.f32 0.0, %v3168
        %v3170 = vpop.f32.mrf.mxu0
        %v3171 = vadd.f32 0.0, %v3170
        %v3172 = vpop.f32.mrf.mxu0
        %v3173 = vadd.f32 0.0, %v3172
        %v3174 = vpop.f32.mrf.mxu0
        %v3175 = vadd.f32 0.0, %v3174
        %3176 = vmatprep.mubr.bf16.mxu0 0
        %3177 = vmatmul.mubr.bf16.gmra.mxu0 %v2713
        %v3178 = vpop.f32.mrf.mxu0
        %v3179 = vadd.f32 0.0, %v3178
        %v3180 = vpop.f32.mrf.mxu0
        %v3181 = vadd.f32 0.0, %v3180
        %v3182 = vpop.f32.mrf.mxu0
        %v3183 = vadd.f32 0.0, %v3182
        %v3184 = vpop.f32.mrf.mxu0
        %v3185 = vadd.f32 0.0, %v3184
        %3186 = vmatprep.mubr.bf16.mxu0 0
        %3187 = vmatmul.mubr.bf16.gmra.mxu0 %v2716
        %v3188 = vpop.f32.mrf.mxu0
        %v3189 = vadd.f32 0.0, %v3188
        %v3190 = vpop.f32.mrf.mxu0
        %v3191 = vadd.f32 0.0, %v3190
        %v3192 = vpop.f32.mrf.mxu0
        %v3193 = vadd.f32 0.0, %v3192
        %v3194 = vpop.f32.mrf.mxu0
        %v3195 = vadd.f32 0.0, %v3194
        %3196 = vmatprep.mubr.bf16.mxu0 0
        %3197 = vmatmul.mubr.bf16.gmra.mxu0 %v2719
        %v3198 = vpop.f32.mrf.mxu0
        %v3199 = vadd.f32 0.0, %v3198
        %v3200 = vpop.f32.mrf.mxu0
        %v3201 = vadd.f32 0.0, %v3200
        %v3202 = vpop.f32.mrf.mxu0
        %v3203 = vadd.f32 0.0, %v3202
        %v3204 = vpop.f32.mrf.mxu0
        %v3205 = vadd.f32 0.0, %v3204
        %3206 = vmatprep.mubr.bf16.mxu0 0
        %3207 = vmatmul.mubr.bf16.gmra.mxu0 %v2722
        %v3208 = vpop.f32.mrf.mxu0
        %v3209 = vadd.f32 0.0, %v3208
        %v3210 = vpop.f32.mrf.mxu0
        %v3211 = vadd.f32 0.0, %v3210
        %v3212 = vpop.f32.mrf.mxu0
        %v3213 = vadd.f32 0.0, %v3212
        %v3214 = vpop.f32.mrf.mxu0
        %v3215 = vadd.f32 0.0, %v3214
        %3216 = vmatprep.mubr.bf16.mxu0 0
        %3217 = vmatmul.mubr.bf16.gmra.mxu0 %v2725
        %v3218 = vpop.f32.mrf.mxu0
        %v3219 = vadd.f32 0.0, %v3218
        %v3220 = vpop.f32.mrf.mxu0
        %v3221 = vadd.f32 0.0, %v3220
        %v3222 = vpop.f32.mrf.mxu0
        %v3223 = vadd.f32 0.0, %v3222
        %v3224 = vpop.f32.mrf.mxu0
        %v3225 = vadd.f32 0.0, %v3224
        %3226 = vmatprep.mubr.bf16.mxu0 0
        %3227 = vmatmul.mubr.bf16.gmra.mxu0 %v2728
        %v3228 = vpop.f32.mrf.mxu0
        %v3229 = vadd.f32 0.0, %v3228
        %v3230 = vpop.f32.mrf.mxu0
        %v3231 = vadd.f32 0.0, %v3230
        %v3232 = vpop.f32.mrf.mxu0
        %v3233 = vpop.f32.mrf.mxu0
        %3234 = vdwg.mxu0
        %3235 = vmatprep.subr.bf16.mxu0 0
        %3236 = vmatpush1.bf16.msra.mxu0 0
        %3237 = vmatprep.subr.bf16.mxu0 0
        %3238 = vmatpush1.bf16.msra.mxu0 0
        %3239 = vmatprep.subr.bf16.mxu0 0
        %3240 = vmatpush1.bf16.msra.mxu0 0
        %3241 = vmatprep.subr.bf16.mxu0 0
        %3242 = vmatpush1.bf16.msra.mxu0 0
        %3243 = vmatprep.subr.bf16.mxu0 %v1406
        %3244 = vmatpush1.bf16.msra.mxu0 %v1405
        %3245 = vmatprep.subr.bf16.mxu0 %v1394
        %3246 = vmatpush1.bf16.msra.mxu0 %v1393
        %3247 = vmatprep.subr.bf16.mxu0 %v1382
        %3248 = vmatpush1.bf16.msra.mxu0 %v1381
        %3249 = vmatprep.subr.bf16.mxu0 %v1370
        %3250 = vmatpush1.bf16.msra.mxu0 %v1369
        %3251 = vmatprep.subr.bf16.mxu0 0
        %3252 = vmatpush2.bf16.msra.mxu0 0
        %3253 = vmatprep.subr.bf16.mxu0 0
        %3254 = vmatpush2.bf16.msra.mxu0 0
        %3255 = vmatprep.subr.bf16.mxu0 0
        %3256 = vmatpush2.bf16.msra.mxu0 0
        %3257 = vmatprep.subr.bf16.mxu0 0
        %3258 = vmatpush2.bf16.msra.mxu0 0
        %3259 = vmatprep.subr.bf16.mxu0 0
        %3260 = vmatpush2.bf16.msra.mxu0 0
        %3261 = vmatprep.subr.bf16.mxu0 0
        %3262 = vmatpush2.bf16.msra.mxu0 0
        %3263 = vmatprep.subr.bf16.mxu0 0
        %3264 = vmatpush2.bf16.msra.mxu0 0
        %3265 = vmatprep.subr.bf16.mxu0 0
        %3266 = vmatpush2.bf16.msra.mxu0 0
        %3267 = vmatprep.mubr.bf16.mxu0 0
        %3268 = vmatmul.mubr.bf16.gmra.mxu0 %v2710
        %v3269 = vpop.f32.mrf.mxu0
        %v3270 = vadd.f32 0.0, %v3269
        %v3271 = vpop.f32.mrf.mxu0
        %v3272 = vadd.f32 0.0, %v3271
        %v3273 = vpop.f32.mrf.mxu0
        %v3274 = vadd.f32 0.0, %v3273
        %v3275 = vpop.f32.mrf.mxu0
        %v3276 = vadd.f32 0.0, %v3275
        %3277 = vmatprep.mubr.bf16.mxu0 0
        %3278 = vmatmul.mubr.bf16.gmra.mxu0 %v2713
        %v3279 = vpop.f32.mrf.mxu0
        %v3280 = vadd.f32 0.0, %v3279
        %v3281 = vpop.f32.mrf.mxu0
        %v3282 = vadd.f32 0.0, %v3281
        %v3283 = vpop.f32.mrf.mxu0
        %v3284 = vadd.f32 0.0, %v3283
        %v3285 = vpop.f32.mrf.mxu0
        %v3286 = vadd.f32 0.0, %v3285
        %3287 = vmatprep.mubr.bf16.mxu0 0
        %3288 = vmatmul.mubr.bf16.gmra.mxu0 %v2716
        %v3289 = vpop.f32.mrf.mxu0
        %v3290 = vadd.f32 0.0, %v3289
        %v3291 = vpop.f32.mrf.mxu0
        %v3292 = vadd.f32 0.0, %v3291
        %v3293 = vpop.f32.mrf.mxu0
        %v3294 = vadd.f32 0.0, %v3293
        %v3295 = vpop.f32.mrf.mxu0
        %v3296 = vadd.f32 0.0, %v3295
        %3297 = vmatprep.mubr.bf16.mxu0 0
        %3298 = vmatmul.mubr.bf16.gmra.mxu0 %v2719
        %v3299 = vpop.f32.mrf.mxu0
        %v3300 = vadd.f32 0.0, %v3299
        %v3301 = vpop.f32.mrf.mxu0
        %v3302 = vadd.f32 0.0, %v3301
        %v3303 = vpop.f32.mrf.mxu0
        %v3304 = vadd.f32 0.0, %v3303
        %v3305 = vpop.f32.mrf.mxu0
        %v3306 = vadd.f32 0.0, %v3305
        %3307 = vmatprep.mubr.bf16.mxu0 0
        %3308 = vmatmul.mubr.bf16.gmra.mxu0 %v2722
        %v3309 = vpop.f32.mrf.mxu0
        %v3310 = vadd.f32 0.0, %v3309
        %v3311 = vpop.f32.mrf.mxu0
        %v3312 = vadd.f32 0.0, %v3311
        %v3313 = vpop.f32.mrf.mxu0
        %v3314 = vadd.f32 0.0, %v3313
        %v3315 = vpop.f32.mrf.mxu0
        %v3316 = vadd.f32 0.0, %v3315
        %3317 = vmatprep.mubr.bf16.mxu0 0
        %3318 = vmatmul.mubr.bf16.gmra.mxu0 %v2725
        %v3319 = vpop.f32.mrf.mxu0
        %v3320 = vadd.f32 0.0, %v3319
        %v3321 = vpop.f32.mrf.mxu0
        %v3322 = vadd.f32 0.0, %v3321
        %v3323 = vpop.f32.mrf.mxu0
        %v3324 = vadd.f32 0.0, %v3323
        %v3325 = vpop.f32.mrf.mxu0
        %v3326 = vadd.f32 0.0, %v3325
        %3327 = vmatprep.mubr.bf16.mxu0 0
        %3328 = vmatmul.mubr.bf16.gmra.mxu0 %v2728
        %v3329 = vpop.f32.mrf.mxu0
        %v3330 = vadd.f32 0.0, %v3329
        %v3331 = vpop.f32.mrf.mxu0
        %v3332 = vadd.f32 0.0, %v3331
        %v3333 = vpop.f32.mrf.mxu0
        %v3334 = vpop.f32.mrf.mxu0
        %3335 = vdwg.mxu0
        %v3336 = vadd.f32 %v2138, %v2765
        %v3337 = vadd.f32 %v2140, %v2767
        %v3338 = vadd.f32 %v2239, %v2866
        %v3339 = vadd.f32 %v2241, %v2868
        %v3340 = vadd.f32 %v2340, %v2967
        %v3341 = vadd.f32 %v2342, %v2969
        %v3342 = vadd.f32 %v2441, %v3068
        %v3343 = vadd.f32 %v2443, %v3070
        %v3344 = vadd.f32 %v2542, %v3169
        %v3345 = vadd.f32 %v2544, %v3171
        %v3346 = vadd.f32 %v2643, %v3270
        %v3347 = vadd.f32 %v2645, %v3272
        %v3348 = vadd.f32 %v2142, %v2769
        %v3349 = vadd.f32 %v2144, %v2771
        %v3350 = vadd.f32 %v2243, %v2870
        %v3351 = vadd.f32 %v2245, %v2872
        %v3352 = vadd.f32 %v2344, %v2971
        %v3353 = vadd.f32 %v2346, %v2973
        %v3354 = vadd.f32 %v2445, %v3072
        %v3355 = vadd.f32 %v2447, %v3074
        %v3356 = vadd.f32 %v2546, %v3173
        %v3357 = vadd.f32 %v2548, %v3175
        %v3358 = vadd.f32 %v2647, %v3274
        %v3359 = vadd.f32 %v2649, %v3276
        %v3360 = vadd.f32 %v2148, %v2775
        %v3361 = vadd.f32 %v2150, %v2777
        %v3362 = vadd.f32 %v2249, %v2876
        %v3363 = vadd.f32 %v2251, %v2878
        %v3364 = vadd.f32 %v2350, %v2977
        %v3365 = vadd.f32 %v2352, %v2979
        %v3366 = vadd.f32 %v2451, %v3078
        %v3367 = vadd.f32 %v2453, %v3080
        %v3368 = vadd.f32 %v2552, %v3179
        %v3369 = vadd.f32 %v2554, %v3181
        %v3370 = vadd.f32 %v2653, %v3280
        %v3371 = vadd.f32 %v2655, %v3282
        %v3372 = vadd.f32 %v2152, %v2779
        %v3373 = vadd.f32 %v2154, %v2781
        %v3374 = vadd.f32 %v2253, %v2880
        %v3375 = vadd.f32 %v2255, %v2882
        %v3376 = vadd.f32 %v2354, %v2981
        %v3377 = vadd.f32 %v2356, %v2983
        %v3378 = vadd.f32 %v2455, %v3082
        %v3379 = vadd.f32 %v2457, %v3084
        %v3380 = vadd.f32 %v2556, %v3183
        %v3381 = vadd.f32 %v2558, %v3185
        %v3382 = vadd.f32 %v2657, %v3284
        %v3383 = vadd.f32 %v2659, %v3286
        %v3384 = vadd.f32 %v2158, %v2785
        %v3385 = vadd.f32 %v2160, %v2787
        %v3386 = vadd.f32 %v2259, %v2886
        %v3387 = vadd.f32 %v2261, %v2888
        %v3388 = vadd.f32 %v2360, %v2987
        %v3389 = vadd.f32 %v2362, %v2989
        %v3390 = vadd.f32 %v2461, %v3088
        %v3391 = vadd.f32 %v2463, %v3090
        %v3392 = vadd.f32 %v2562, %v3189
        %v3393 = vadd.f32 %v2564, %v3191
        %v3394 = vadd.f32 %v2663, %v3290
        %v3395 = vadd.f32 %v2665, %v3292
        %v3396 = vadd.f32 %v2162, %v2789
        %v3397 = vadd.f32 %v2164, %v2791
        %v3398 = vadd.f32 %v2263, %v2890
        %v3399 = vadd.f32 %v2265, %v2892
        %v3400 = vadd.f32 %v2364, %v2991
        %v3401 = vadd.f32 %v2366, %v2993
        %v3402 = vadd.f32 %v2465, %v3092
        %v3403 = vadd.f32 %v2467, %v3094
        %v3404 = vadd.f32 %v2566, %v3193
        %v3405 = vadd.f32 %v2568, %v3195
        %v3406 = vadd.f32 %v2667, %v3294
        %v3407 = vadd.f32 %v2669, %v3296
        %v3408 = vadd.f32 %v2168, %v2795
        %v3409 = vadd.f32 %v2170, %v2797
        %v3410 = vadd.f32 %v2269, %v2896
        %v3411 = vadd.f32 %v2271, %v2898
        %v3412 = vadd.f32 %v2370, %v2997
        %v3413 = vadd.f32 %v2372, %v2999
        %v3414 = vadd.f32 %v2471, %v3098
        %v3415 = vadd.f32 %v2473, %v3100
        %v3416 = vadd.f32 %v2572, %v3199
        %v3417 = vadd.f32 %v2574, %v3201
        %v3418 = vadd.f32 %v2673, %v3300
        %v3419 = vadd.f32 %v2675, %v3302
        %v3420 = vadd.f32 %v2172, %v2799
        %v3421 = vadd.f32 %v2174, %v2801
        %v3422 = vadd.f32 %v2273, %v2900
        %v3423 = vadd.f32 %v2275, %v2902
        %v3424 = vadd.f32 %v2374, %v3001
        %v3425 = vadd.f32 %v2376, %v3003
        %v3426 = vadd.f32 %v2475, %v3102
        %v3427 = vadd.f32 %v2477, %v3104
        %v3428 = vadd.f32 %v2576, %v3203
        %v3429 = vadd.f32 %v2578, %v3205
        %v3430 = vadd.f32 %v2677, %v3304
        %v3431 = vadd.f32 %v2679, %v3306
        %v3432 = vadd.f32 %v2178, %v2805
        %v3433 = vadd.f32 %v2180, %v2807
        %v3434 = vadd.f32 %v2279, %v2906
        %v3435 = vadd.f32 %v2281, %v2908
        %v3436 = vadd.f32 %v2380, %v3007
        %v3437 = vadd.f32 %v2382, %v3009
        %v3438 = vadd.f32 %v2481, %v3108
        %v3439 = vadd.f32 %v2483, %v3110
        %v3440 = vadd.f32 %v2582, %v3209
        %v3441 = vadd.f32 %v2584, %v3211
        %v3442 = vadd.f32 %v2683, %v3310
        %v3443 = vadd.f32 %v2685, %v3312
        %v3444 = vadd.f32 %v2182, %v2809
        %v3445 = vadd.f32 %v2184, %v2811
        %v3446 = vadd.f32 %v2283, %v2910
        %v3447 = vadd.f32 %v2285, %v2912
        %v3448 = vadd.f32 %v2384, %v3011
        %v3449 = vadd.f32 %v2386, %v3013
        %v3450 = vadd.f32 %v2485, %v3112
        %v3451 = vadd.f32 %v2487, %v3114
        %v3452 = vadd.f32 %v2586, %v3213
        %v3453 = vadd.f32 %v2588, %v3215
        %v3454 = vadd.f32 %v2687, %v3314
        %v3455 = vadd.f32 %v2689, %v3316
        %v3456 = vadd.f32 %v2188, %v2815
        %v3457 = vadd.f32 %v2190, %v2817
        %v3458 = vadd.f32 %v2289, %v2916
        %v3459 = vadd.f32 %v2291, %v2918
        %v3460 = vadd.f32 %v2390, %v3017
        %v3461 = vadd.f32 %v2392, %v3019
        %v3462 = vadd.f32 %v2491, %v3118
        %v3463 = vadd.f32 %v2493, %v3120
        %v3464 = vadd.f32 %v2592, %v3219
        %v3465 = vadd.f32 %v2594, %v3221
        %v3466 = vadd.f32 %v2693, %v3320
        %v3467 = vadd.f32 %v2695, %v3322
        %v3468 = vadd.f32 %v2192, %v2819
        %v3469 = vadd.f32 %v2194, %v2821
        %v3470 = vadd.f32 %v2293, %v2920
        %v3471 = vadd.f32 %v2295, %v2922
        %v3472 = vadd.f32 %v2394, %v3021
        %v3473 = vadd.f32 %v2396, %v3023
        %v3474 = vadd.f32 %v2495, %v3122
        %v3475 = vadd.f32 %v2497, %v3124
        %v3476 = vadd.f32 %v2596, %v3223
        %v3477 = vadd.f32 %v2598, %v3225
        %v3478 = vadd.f32 %v2697, %v3324
        %v3479 = vadd.f32 %v2699, %v3326
        %v3480 = vadd.f32 %v2198, %v2825
        %v3481 = vadd.f32 %v2200, %v2827
        %v3482 = vadd.f32 %v2299, %v2926
        %v3483 = vadd.f32 %v2301, %v2928
        %v3484 = vadd.f32 %v2400, %v3027
        %v3485 = vadd.f32 %v2402, %v3029
        %v3486 = vadd.f32 %v2501, %v3128
        %v3487 = vadd.f32 %v2503, %v3130
        %v3488 = vadd.f32 %v2602, %v3229
        %v3489 = vadd.f32 %v2604, %v3231
        %v3490 = vadd.f32 %v2703, %v3330
        %v3491 = vadd.f32 %v2705, %v3332
        %v3492 = vmul.f32 %v3336, %v986
        %v3493 = vmul.f32 %v3337, %v987
        %v3494 = vmul.f32 %v3338, %v988
        %v3495 = vmul.f32 %v3339, %v989
        %v3496 = vmul.f32 %v3340, %v990
        %v3497 = vmul.f32 %v3341, %v991
        %v3498 = vmul.f32 %v3342, %v992
        %v3499 = vmul.f32 %v3343, %v993
        %v3500 = vmul.f32 %v3344, %v994
        %v3501 = vmul.f32 %v3345, %v995
        %v3502 = vmul.f32 %v3346, %v996
        %v3503 = vmul.f32 %v3347, %v997
        %v3504 = vmul.f32 %v3348, %v998
        %v3505 = vmul.f32 %v3349, %v999
        %v3506 = vmul.f32 %v3350, %v1000
        %v3507 = vmul.f32 %v3351, %v1001
        %v3508 = vmul.f32 %v3352, %v1002
        %v3509 = vmul.f32 %v3353, %v1003
        %v3510 = vmul.f32 %v3354, %v1004
        %v3511 = vmul.f32 %v3355, %v1005
        %v3512 = vmul.f32 %v3356, %v1006
        %v3513 = vmul.f32 %v3357, %v1007
        %v3514 = vmul.f32 %v3358, %v1008
        %v3515 = vmul.f32 %v3359, %v1009
        %v3516 = vmul.f32 %v3360, %v1010
        %v3517 = vmul.f32 %v3361, %v1011
        %v3518 = vmul.f32 %v3362, %v1012
        %v3519 = vmul.f32 %v3363, %v1013
        %v3520 = vmul.f32 %v3364, %v1014
        %v3521 = vmul.f32 %v3365, %v1015
        %v3522 = vmul.f32 %v3366, %v1016
        %v3523 = vmul.f32 %v3367, %v1017
        %v3524 = vmul.f32 %v3368, %v1018
        %v3525 = vmul.f32 %v3369, %v1019
        %v3526 = vmul.f32 %v3370, %v1020
        %v3527 = vmul.f32 %v3371, %v1021
        %v3528 = vmul.f32 %v3372, %v1022
        %v3529 = vmul.f32 %v3373, %v1023
        %v3530 = vmul.f32 %v3374, %v1024
        %v3531 = vmul.f32 %v3375, %v1025
        %v3532 = vmul.f32 %v3376, %v1026
        %v3533 = vmul.f32 %v3377, %v1027
        %v3534 = vmul.f32 %v3378, %v1028
        %v3535 = vmul.f32 %v3379, %v1029
        %v3536 = vmul.f32 %v3380, %v1030
        %v3537 = vmul.f32 %v3381, %v1031
        %v3538 = vmul.f32 %v3382, %v1032
        %v3539 = vmul.f32 %v3383, %v1033
        %v3540 = vmul.f32 %v3384, %v1034
        %v3541 = vmul.f32 %v3385, %v1035
        %v3542 = vmul.f32 %v3386, %v1036
        %v3543 = vmul.f32 %v3387, %v1037
        %v3544 = vmul.f32 %v3388, %v1038
        %v3545 = vmul.f32 %v3389, %v1039
        %v3546 = vmul.f32 %v3390, %v1040
        %v3547 = vmul.f32 %v3391, %v1041
        %v3548 = vmul.f32 %v3392, %v1042
        %v3549 = vmul.f32 %v3393, %v1043
        %v3550 = vmul.f32 %v3394, %v1044
        %v3551 = vmul.f32 %v3395, %v1045
        %v3552 = vmul.f32 %v3396, %v1046
        %v3553 = vmul.f32 %v3397, %v1047
        %v3554 = vmul.f32 %v3398, %v1048
        %v3555 = vmul.f32 %v3399, %v1049
        %v3556 = vmul.f32 %v3400, %v1050
        %v3557 = vmul.f32 %v3401, %v1051
        %v3558 = vmul.f32 %v3402, %v1052
        %v3559 = vmul.f32 %v3403, %v1053
        %v3560 = vmul.f32 %v3404, %v1054
        %v3561 = vmul.f32 %v3405, %v1055
        %v3562 = vmul.f32 %v3406, %v1056
        %v3563 = vmul.f32 %v3407, %v1057
        %v3564 = vmul.f32 %v3408, %v1058
        %v3565 = vmul.f32 %v3409, %v1059
        %v3566 = vmul.f32 %v3410, %v1060
        %v3567 = vmul.f32 %v3411, %v1061
        %v3568 = vmul.f32 %v3412, %v1062
        %v3569 = vmul.f32 %v3413, %v1063
        %v3570 = vmul.f32 %v3414, %v1064
        %v3571 = vmul.f32 %v3415, %v1065
        %v3572 = vmul.f32 %v3416, %v1066
        %v3573 = vmul.f32 %v3417, %v1067
        %v3574 = vmul.f32 %v3418, %v1068
        %v3575 = vmul.f32 %v3419, %v1069
        %v3576 = vmul.f32 %v3420, %v1070
        %v3577 = vmul.f32 %v3421, %v1071
        %v3578 = vmul.f32 %v3422, %v1072
        %v3579 = vmul.f32 %v3423, %v1073
        %v3580 = vmul.f32 %v3424, %v1074
        %v3581 = vmul.f32 %v3425, %v1075
        %v3582 = vmul.f32 %v3426, %v1076
        %v3583 = vmul.f32 %v3427, %v1077
        %v3584 = vmul.f32 %v3428, %v1078
        %v3585 = vmul.f32 %v3429, %v1079
        %v3586 = vmul.f32 %v3430, %v1080
        %v3587 = vmul.f32 %v3431, %v1081
        %v3588 = vmul.f32 %v3432, %v1082
        %v3589 = vmul.f32 %v3433, %v1083
        %v3590 = vmul.f32 %v3434, %v1084
        %v3591 = vmul.f32 %v3435, %v1085
        %v3592 = vmul.f32 %v3436, %v1086
        %v3593 = vmul.f32 %v3437, %v1087
        %v3594 = vmul.f32 %v3438, %v1088
        %v3595 = vmul.f32 %v3439, %v1089
        %v3596 = vmul.f32 %v3440, %v1090
        %v3597 = vmul.f32 %v3441, %v1091
        %v3598 = vmul.f32 %v3442, %v1092
        %v3599 = vmul.f32 %v3443, %v1093
        %v3600 = vmul.f32 %v3444, %v1094
        %v3601 = vmul.f32 %v3445, %v1095
        %v3602 = vmul.f32 %v3446, %v1096
        %v3603 = vmul.f32 %v3447, %v1097
        %v3604 = vmul.f32 %v3448, %v1098
        %v3605 = vmul.f32 %v3449, %v1099
        %v3606 = vmul.f32 %v3450, %v1100
        %v3607 = vmul.f32 %v3451, %v1101
        %v3608 = vmul.f32 %v3452, %v1102
        %v3609 = vmul.f32 %v3453, %v1103
        %v3610 = vmul.f32 %v3454, %v1104
        %v3611 = vmul.f32 %v3455, %v1105
        %v3612 = vmul.f32 %v3456, %v1106
        %v3613 = vmul.f32 %v3457, %v1107
        %v3614 = vmul.f32 %v3458, %v1108
        %v3615 = vmul.f32 %v3459, %v1109
        %v3616 = vmul.f32 %v3460, %v1110
        %v3617 = vmul.f32 %v3461, %v1111
        %v3618 = vmul.f32 %v3462, %v1112
        %v3619 = vmul.f32 %v3463, %v1113
        %v3620 = vmul.f32 %v3464, %v1114
        %v3621 = vmul.f32 %v3465, %v1115
        %v3622 = vmul.f32 %v3466, %v1116
        %v3623 = vmul.f32 %v3467, %v1117
        %v3624 = vmul.f32 %v3468, %v1118
        %v3625 = vmul.f32 %v3469, %v1119
        %v3626 = vmul.f32 %v3470, %v1120
        %v3627 = vmul.f32 %v3471, %v1121
        %v3628 = vmul.f32 %v3472, %v1122
        %v3629 = vmul.f32 %v3473, %v1123
        %v3630 = vmul.f32 %v3474, %v1124
        %v3631 = vmul.f32 %v3475, %v1125
        %v3632 = vmul.f32 %v3476, %v1126
        %v3633 = vmul.f32 %v3477, %v1127
        %v3634 = vmul.f32 %v3478, %v1128
        %v3635 = vmul.f32 %v3479, %v1129
        %v3636 = vmul.f32 %v3480, %v1130
        %v3637 = vmul.f32 %v3481, %v1131
        %v3638 = vmul.f32 %v3482, %v1132
        %v3639 = vmul.f32 %v3483, %v1133
        %v3640 = vmul.f32 %v3484, %v1134
        %v3641 = vmul.f32 %v3485, %v1135
        %v3642 = vmul.f32 %v3486, %v1136
        %v3643 = vmul.f32 %v3487, %v1137
        %v3644 = vmul.f32 %v3488, %v1138
        %v3645 = vmul.f32 %v3489, %v1139
        %v3646 = vmul.f32 %v3490, %v1140
        %v3647 = vmul.f32 %v3491, %v1141
        %v3648 = vpack.c.bf16 %v3504, %v3492
        %v3649 = vpack.c.bf16 %v3505, %v3493
        %v3650 = vpack.c.bf16 %v3506, %v3494
        %v3651 = vpack.c.bf16 %v3507, %v3495
        %v3652 = vpack.c.bf16 %v3508, %v3496
        %v3653 = vpack.c.bf16 %v3509, %v3497
        %v3654 = vpack.c.bf16 %v3510, %v3498
        %v3655 = vpack.c.bf16 %v3511, %v3499
        %v3656 = vpack.c.bf16 %v3512, %v3500
        %v3657 = vpack.c.bf16 %v3513, %v3501
        %v3658 = vpack.c.bf16 %v3514, %v3502
        %v3659 = vpack.c.bf16 %v3515, %v3503
        %v3660 = vpack.c.bf16 %v3528, %v3516
        %v3661 = vpack.c.bf16 %v3529, %v3517
        %v3662 = vpack.c.bf16 %v3530, %v3518
        %v3663 = vpack.c.bf16 %v3531, %v3519
        %v3664 = vpack.c.bf16 %v3532, %v3520
        %v3665 = vpack.c.bf16 %v3533, %v3521
        %v3666 = vpack.c.bf16 %v3534, %v3522
        %v3667 = vpack.c.bf16 %v3535, %v3523
        %v3668 = vpack.c.bf16 %v3536, %v3524
        %v3669 = vpack.c.bf16 %v3537, %v3525
        %v3670 = vpack.c.bf16 %v3538, %v3526
        %v3671 = vpack.c.bf16 %v3539, %v3527
        %v3672 = vpack.c.bf16 %v3552, %v3540
        %v3673 = vpack.c.bf16 %v3553, %v3541
        %v3674 = vpack.c.bf16 %v3554, %v3542
        %v3675 = vpack.c.bf16 %v3555, %v3543
        %v3676 = vpack.c.bf16 %v3556, %v3544
        %v3677 = vpack.c.bf16 %v3557, %v3545
        %v3678 = vpack.c.bf16 %v3558, %v3546
        %v3679 = vpack.c.bf16 %v3559, %v3547
        %v3680 = vpack.c.bf16 %v3560, %v3548
        %v3681 = vpack.c.bf16 %v3561, %v3549
        %v3682 = vpack.c.bf16 %v3562, %v3550
        %v3683 = vpack.c.bf16 %v3563, %v3551
        %v3684 = vpack.c.bf16 %v3576, %v3564
        %v3685 = vpack.c.bf16 %v3577, %v3565
        %v3686 = vpack.c.bf16 %v3578, %v3566
        %v3687 = vpack.c.bf16 %v3579, %v3567
        %v3688 = vpack.c.bf16 %v3580, %v3568
        %v3689 = vpack.c.bf16 %v3581, %v3569
        %v3690 = vpack.c.bf16 %v3582, %v3570
        %v3691 = vpack.c.bf16 %v3583, %v3571
        %v3692 = vpack.c.bf16 %v3584, %v3572
        %v3693 = vpack.c.bf16 %v3585, %v3573
        %v3694 = vpack.c.bf16 %v3586, %v3574
        %v3695 = vpack.c.bf16 %v3587, %v3575
        %v3696 = vpack.c.bf16 %v3600, %v3588
        %v3697 = vpack.c.bf16 %v3601, %v3589
        %v3698 = vpack.c.bf16 %v3602, %v3590
        %v3699 = vpack.c.bf16 %v3603, %v3591
        %v3700 = vpack.c.bf16 %v3604, %v3592
        %v3701 = vpack.c.bf16 %v3605, %v3593
        %v3702 = vpack.c.bf16 %v3606, %v3594
        %v3703 = vpack.c.bf16 %v3607, %v3595
        %v3704 = vpack.c.bf16 %v3608, %v3596
        %v3705 = vpack.c.bf16 %v3609, %v3597
        %v3706 = vpack.c.bf16 %v3610, %v3598
        %v3707 = vpack.c.bf16 %v3611, %v3599
        %v3708 = vpack.c.bf16 %v3624, %v3612
        %v3709 = vpack.c.bf16 %v3625, %v3613
        %v3710 = vpack.c.bf16 %v3626, %v3614
        %v3711 = vpack.c.bf16 %v3627, %v3615
        %v3712 = vpack.c.bf16 %v3628, %v3616
        %v3713 = vpack.c.bf16 %v3629, %v3617
        %v3714 = vpack.c.bf16 %v3630, %v3618
        %v3715 = vpack.c.bf16 %v3631, %v3619
        %v3716 = vpack.c.bf16 %v3632, %v3620
        %v3717 = vpack.c.bf16 %v3633, %v3621
        %v3718 = vpack.c.bf16 %v3634, %v3622
        %v3719 = vpack.c.bf16 %v3635, %v3623
        %v3720 = vpack.c.bf16 %v3636, %v3636
        %v3721 = vpack.c.bf16 %v3637, %v3637
        %v3722 = vpack.c.bf16 %v3638, %v3638
        %v3723 = vpack.c.bf16 %v3639, %v3639
        %v3724 = vpack.c.bf16 %v3640, %v3640
        %v3725 = vpack.c.bf16 %v3641, %v3641
        %v3726 = vpack.c.bf16 %v3642, %v3642
        %v3727 = vpack.c.bf16 %v3643, %v3643
        %v3728 = vpack.c.bf16 %v3644, %v3644
        %v3729 = vpack.c.bf16 %v3645, %v3645
        %v3730 = vpack.c.bf16 %v3646, %v3646
        %v3731 = vpack.c.bf16 %v3647, %v3647
        %v3732 = vunpack.c.l.bf16 %v3648
        %v3733 = vunpack.c.l.bf16 %v3649
        %v3734 = vunpack.c.l.bf16 %v3650
        %v3735 = vunpack.c.l.bf16 %v3651
        %v3736 = vunpack.c.l.bf16 %v3652
        %v3737 = vunpack.c.l.bf16 %v3653
        %v3738 = vunpack.c.l.bf16 %v3654
        %v3739 = vunpack.c.l.bf16 %v3655
        %v3740 = vunpack.c.l.bf16 %v3656
        %v3741 = vunpack.c.l.bf16 %v3657
        %v3742 = vunpack.c.l.bf16 %v3658
        %v3743 = vunpack.c.l.bf16 %v3659
        %v3744 = vunpack.c.h.bf16 %v3648
        %v3745 = vunpack.c.h.bf16 %v3649
        %v3746 = vunpack.c.h.bf16 %v3650
        %v3747 = vunpack.c.h.bf16 %v3651
        %v3748 = vunpack.c.h.bf16 %v3652
        %v3749 = vunpack.c.h.bf16 %v3653
        %v3750 = vunpack.c.h.bf16 %v3654
        %v3751 = vunpack.c.h.bf16 %v3655
        %v3752 = vunpack.c.h.bf16 %v3656
        %v3753 = vunpack.c.h.bf16 %v3657
        %v3754 = vunpack.c.h.bf16 %v3658
        %v3755 = vunpack.c.h.bf16 %v3659
        %v3756 = vunpack.c.l.bf16 %v3660
        %v3757 = vunpack.c.l.bf16 %v3661
        %v3758 = vunpack.c.l.bf16 %v3662
        %v3759 = vunpack.c.l.bf16 %v3663
        %v3760 = vunpack.c.l.bf16 %v3664
        %v3761 = vunpack.c.l.bf16 %v3665
        %v3762 = vunpack.c.l.bf16 %v3666
        %v3763 = vunpack.c.l.bf16 %v3667
        %v3764 = vunpack.c.l.bf16 %v3668
        %v3765 = vunpack.c.l.bf16 %v3669
        %v3766 = vunpack.c.l.bf16 %v3670
        %v3767 = vunpack.c.l.bf16 %v3671
        %v3768 = vunpack.c.h.bf16 %v3660
        %v3769 = vunpack.c.h.bf16 %v3661
        %v3770 = vunpack.c.h.bf16 %v3662
        %v3771 = vunpack.c.h.bf16 %v3663
        %v3772 = vunpack.c.h.bf16 %v3664
        %v3773 = vunpack.c.h.bf16 %v3665
        %v3774 = vunpack.c.h.bf16 %v3666
        %v3775 = vunpack.c.h.bf16 %v3667
        %v3776 = vunpack.c.h.bf16 %v3668
        %v3777 = vunpack.c.h.bf16 %v3669
        %v3778 = vunpack.c.h.bf16 %v3670
        %v3779 = vunpack.c.h.bf16 %v3671
        %v3780 = vunpack.c.l.bf16 %v3672
        %v3781 = vunpack.c.l.bf16 %v3673
        %v3782 = vunpack.c.l.bf16 %v3674
        %v3783 = vunpack.c.l.bf16 %v3675
        %v3784 = vunpack.c.l.bf16 %v3676
        %v3785 = vunpack.c.l.bf16 %v3677
        %v3786 = vunpack.c.l.bf16 %v3678
        %v3787 = vunpack.c.l.bf16 %v3679
        %v3788 = vunpack.c.l.bf16 %v3680
        %v3789 = vunpack.c.l.bf16 %v3681
        %v3790 = vunpack.c.l.bf16 %v3682
        %v3791 = vunpack.c.l.bf16 %v3683
        %v3792 = vunpack.c.h.bf16 %v3672
        %v3793 = vunpack.c.h.bf16 %v3673
        %v3794 = vunpack.c.h.bf16 %v3674
        %v3795 = vunpack.c.h.bf16 %v3675
        %v3796 = vunpack.c.h.bf16 %v3676
        %v3797 = vunpack.c.h.bf16 %v3677
        %v3798 = vunpack.c.h.bf16 %v3678
        %v3799 = vunpack.c.h.bf16 %v3679
        %v3800 = vunpack.c.h.bf16 %v3680
        %v3801 = vunpack.c.h.bf16 %v3681
        %v3802 = vunpack.c.h.bf16 %v3682
        %v3803 = vunpack.c.h.bf16 %v3683
        %v3804 = vunpack.c.l.bf16 %v3684
        %v3805 = vunpack.c.l.bf16 %v3685
        %v3806 = vunpack.c.l.bf16 %v3686
        %v3807 = vunpack.c.l.bf16 %v3687
        %v3808 = vunpack.c.l.bf16 %v3688
        %v3809 = vunpack.c.l.bf16 %v3689
        %v3810 = vunpack.c.l.bf16 %v3690
        %v3811 = vunpack.c.l.bf16 %v3691
        %v3812 = vunpack.c.l.bf16 %v3692
        %v3813 = vunpack.c.l.bf16 %v3693
        %v3814 = vunpack.c.l.bf16 %v3694
        %v3815 = vunpack.c.l.bf16 %v3695
        %v3816 = vunpack.c.h.bf16 %v3684
        %v3817 = vunpack.c.h.bf16 %v3685
        %v3818 = vunpack.c.h.bf16 %v3686
        %v3819 = vunpack.c.h.bf16 %v3687
        %v3820 = vunpack.c.h.bf16 %v3688
        %v3821 = vunpack.c.h.bf16 %v3689
        %v3822 = vunpack.c.h.bf16 %v3690
        %v3823 = vunpack.c.h.bf16 %v3691
        %v3824 = vunpack.c.h.bf16 %v3692
        %v3825 = vunpack.c.h.bf16 %v3693
        %v3826 = vunpack.c.h.bf16 %v3694
        %v3827 = vunpack.c.h.bf16 %v3695
        %v3828 = vunpack.c.l.bf16 %v3696
        %v3829 = vunpack.c.l.bf16 %v3697
        %v3830 = vunpack.c.l.bf16 %v3698
        %v3831 = vunpack.c.l.bf16 %v3699
        %v3832 = vunpack.c.l.bf16 %v3700
        %v3833 = vunpack.c.l.bf16 %v3701
        %v3834 = vunpack.c.l.bf16 %v3702
        %v3835 = vunpack.c.l.bf16 %v3703
        %v3836 = vunpack.c.l.bf16 %v3704
        %v3837 = vunpack.c.l.bf16 %v3705
        %v3838 = vunpack.c.l.bf16 %v3706
        %v3839 = vunpack.c.l.bf16 %v3707
        %v3840 = vunpack.c.h.bf16 %v3696
        %v3841 = vunpack.c.h.bf16 %v3697
        %v3842 = vunpack.c.h.bf16 %v3698
        %v3843 = vunpack.c.h.bf16 %v3699
        %v3844 = vunpack.c.h.bf16 %v3700
        %v3845 = vunpack.c.h.bf16 %v3701
        %v3846 = vunpack.c.h.bf16 %v3702
        %v3847 = vunpack.c.h.bf16 %v3703
        %v3848 = vunpack.c.h.bf16 %v3704
        %v3849 = vunpack.c.h.bf16 %v3705
        %v3850 = vunpack.c.h.bf16 %v3706
        %v3851 = vunpack.c.h.bf16 %v3707
        %v3852 = vunpack.c.l.bf16 %v3708
        %v3853 = vunpack.c.l.bf16 %v3709
        %v3854 = vunpack.c.l.bf16 %v3710
        %v3855 = vunpack.c.l.bf16 %v3711
        %v3856 = vunpack.c.l.bf16 %v3712
        %v3857 = vunpack.c.l.bf16 %v3713
        %v3858 = vunpack.c.l.bf16 %v3714
        %v3859 = vunpack.c.l.bf16 %v3715
        %v3860 = vunpack.c.l.bf16 %v3716
        %v3861 = vunpack.c.l.bf16 %v3717
        %v3862 = vunpack.c.l.bf16 %v3718
        %v3863 = vunpack.c.l.bf16 %v3719
        %v3864 = vunpack.c.h.bf16 %v3708
        %v3865 = vunpack.c.h.bf16 %v3709
        %v3866 = vunpack.c.h.bf16 %v3710
        %v3867 = vunpack.c.h.bf16 %v3711
        %v3868 = vunpack.c.h.bf16 %v3712
        %v3869 = vunpack.c.h.bf16 %v3713
        %v3870 = vunpack.c.h.bf16 %v3714
        %v3871 = vunpack.c.h.bf16 %v3715
        %v3872 = vunpack.c.h.bf16 %v3716
        %v3873 = vunpack.c.h.bf16 %v3717
        %v3874 = vunpack.c.h.bf16 %v3718
        %v3875 = vunpack.c.h.bf16 %v3719
        %v3876 = vunpack.c.l.bf16 %v3720
        %v3877 = vunpack.c.l.bf16 %v3721
        %v3878 = vunpack.c.l.bf16 %v3722
        %v3879 = vunpack.c.l.bf16 %v3723
        %v3880 = vunpack.c.l.bf16 %v3724
        %v3881 = vunpack.c.l.bf16 %v3725
        %v3882 = vunpack.c.l.bf16 %v3726
        %v3883 = vunpack.c.l.bf16 %v3727
        %v3884 = vunpack.c.l.bf16 %v3728
        %v3885 = vunpack.c.l.bf16 %v3729
        %v3886 = vunpack.c.l.bf16 %v3730
        %v3887 = vunpack.c.l.bf16 %v3731
        %v3888 = vsub.f32 %v3492, %v3732
        %v3889 = vsub.f32 %v3493, %v3733
        %v3890 = vsub.f32 %v3494, %v3734
        %v3891 = vsub.f32 %v3495, %v3735
        %v3892 = vsub.f32 %v3496, %v3736
        %v3893 = vsub.f32 %v3497, %v3737
        %v3894 = vsub.f32 %v3498, %v3738
        %v3895 = vsub.f32 %v3499, %v3739
        %v3896 = vsub.f32 %v3500, %v3740
        %v3897 = vsub.f32 %v3501, %v3741
        %v3898 = vsub.f32 %v3502, %v3742
        %v3899 = vsub.f32 %v3503, %v3743
        %v3900 = vsub.f32 %v3504, %v3744
        %v3901 = vsub.f32 %v3505, %v3745
        %v3902 = vsub.f32 %v3506, %v3746
        %v3903 = vsub.f32 %v3507, %v3747
        %v3904 = vsub.f32 %v3508, %v3748
        %v3905 = vsub.f32 %v3509, %v3749
        %v3906 = vsub.f32 %v3510, %v3750
        %v3907 = vsub.f32 %v3511, %v3751
        %v3908 = vsub.f32 %v3512, %v3752
        %v3909 = vsub.f32 %v3513, %v3753
        %v3910 = vsub.f32 %v3514, %v3754
        %v3911 = vsub.f32 %v3515, %v3755
        %v3912 = vsub.f32 %v3516, %v3756
        %v3913 = vsub.f32 %v3517, %v3757
        %v3914 = vsub.f32 %v3518, %v3758
        %v3915 = vsub.f32 %v3519, %v3759
        %v3916 = vsub.f32 %v3520, %v3760
        %v3917 = vsub.f32 %v3521, %v3761
        %v3918 = vsub.f32 %v3522, %v3762
        %v3919 = vsub.f32 %v3523, %v3763
        %v3920 = vsub.f32 %v3524, %v3764
        %v3921 = vsub.f32 %v3525, %v3765
        %v3922 = vsub.f32 %v3526, %v3766
        %v3923 = vsub.f32 %v3527, %v3767
        %v3924 = vsub.f32 %v3528, %v3768
        %v3925 = vsub.f32 %v3529, %v3769
        %v3926 = vsub.f32 %v3530, %v3770
        %v3927 = vsub.f32 %v3531, %v3771
        %v3928 = vsub.f32 %v3532, %v3772
        %v3929 = vsub.f32 %v3533, %v3773
        %v3930 = vsub.f32 %v3534, %v3774
        %v3931 = vsub.f32 %v3535, %v3775
        %v3932 = vsub.f32 %v3536, %v3776
        %v3933 = vsub.f32 %v3537, %v3777
        %v3934 = vsub.f32 %v3538, %v3778
        %v3935 = vsub.f32 %v3539, %v3779
        %v3936 = vsub.f32 %v3540, %v3780
        %v3937 = vsub.f32 %v3541, %v3781
        %v3938 = vsub.f32 %v3542, %v3782
        %v3939 = vsub.f32 %v3543, %v3783
        %v3940 = vsub.f32 %v3544, %v3784
        %v3941 = vsub.f32 %v3545, %v3785
        %v3942 = vsub.f32 %v3546, %v3786
        %v3943 = vsub.f32 %v3547, %v3787
        %v3944 = vsub.f32 %v3548, %v3788
        %v3945 = vsub.f32 %v3549, %v3789
        %v3946 = vsub.f32 %v3550, %v3790
        %v3947 = vsub.f32 %v3551, %v3791
        %v3948 = vsub.f32 %v3552, %v3792
        %v3949 = vsub.f32 %v3553, %v3793
        %v3950 = vsub.f32 %v3554, %v3794
        %v3951 = vsub.f32 %v3555, %v3795
        %v3952 = vsub.f32 %v3556, %v3796
        %v3953 = vsub.f32 %v3557, %v3797
        %v3954 = vsub.f32 %v3558, %v3798
        %v3955 = vsub.f32 %v3559, %v3799
        %v3956 = vsub.f32 %v3560, %v3800
        %v3957 = vsub.f32 %v3561, %v3801
        %v3958 = vsub.f32 %v3562, %v3802
        %v3959 = vsub.f32 %v3563, %v3803
        %v3960 = vsub.f32 %v3564, %v3804
        %v3961 = vsub.f32 %v3565, %v3805
        %v3962 = vsub.f32 %v3566, %v3806
        %v3963 = vsub.f32 %v3567, %v3807
        %v3964 = vsub.f32 %v3568, %v3808
        %v3965 = vsub.f32 %v3569, %v3809
        %v3966 = vsub.f32 %v3570, %v3810
        %v3967 = vsub.f32 %v3571, %v3811
        %v3968 = vsub.f32 %v3572, %v3812
        %v3969 = vsub.f32 %v3573, %v3813
        %v3970 = vsub.f32 %v3574, %v3814
        %v3971 = vsub.f32 %v3575, %v3815
        %v3972 = vsub.f32 %v3576, %v3816
        %v3973 = vsub.f32 %v3577, %v3817
        %v3974 = vsub.f32 %v3578, %v3818
        %v3975 = vsub.f32 %v3579, %v3819
        %v3976 = vsub.f32 %v3580, %v3820
        %v3977 = vsub.f32 %v3581, %v3821
        %v3978 = vsub.f32 %v3582, %v3822
        %v3979 = vsub.f32 %v3583, %v3823
        %v3980 = vsub.f32 %v3584, %v3824
        %v3981 = vsub.f32 %v3585, %v3825
        %v3982 = vsub.f32 %v3586, %v3826
        %v3983 = vsub.f32 %v3587, %v3827
        %v3984 = vsub.f32 %v3588, %v3828
        %v3985 = vsub.f32 %v3589, %v3829
        %v3986 = vsub.f32 %v3590, %v3830
        %v3987 = vsub.f32 %v3591, %v3831
        %v3988 = vsub.f32 %v3592, %v3832
        %v3989 = vsub.f32 %v3593, %v3833
        %v3990 = vsub.f32 %v3594, %v3834
        %v3991 = vsub.f32 %v3595, %v3835
        %v3992 = vsub.f32 %v3596, %v3836
        %v3993 = vsub.f32 %v3597, %v3837
        %v3994 = vsub.f32 %v3598, %v3838
        %v3995 = vsub.f32 %v3599, %v3839
        %v3996 = vsub.f32 %v3600, %v3840
        %v3997 = vsub.f32 %v3601, %v3841
        %v3998 = vsub.f32 %v3602, %v3842
        %v3999 = vsub.f32 %v3603, %v3843
        %v4000 = vsub.f32 %v3604, %v3844
        %v4001 = vsub.f32 %v3605, %v3845
        %v4002 = vsub.f32 %v3606, %v3846
        %v4003 = vsub.f32 %v3607, %v3847
        %v4004 = vsub.f32 %v3608, %v3848
        %v4005 = vsub.f32 %v3609, %v3849
        %v4006 = vsub.f32 %v3610, %v3850
        %v4007 = vsub.f32 %v3611, %v3851
        %v4008 = vsub.f32 %v3612, %v3852
        %v4009 = vsub.f32 %v3613, %v3853
        %v4010 = vsub.f32 %v3614, %v3854
        %v4011 = vsub.f32 %v3615, %v3855
        %v4012 = vsub.f32 %v3616, %v3856
        %v4013 = vsub.f32 %v3617, %v3857
        %v4014 = vsub.f32 %v3618, %v3858
        %v4015 = vsub.f32 %v3619, %v3859
        %v4016 = vsub.f32 %v3620, %v3860
        %v4017 = vsub.f32 %v3621, %v3861
        %v4018 = vsub.f32 %v3622, %v3862
        %v4019 = vsub.f32 %v3623, %v3863
        %v4020 = vsub.f32 %v3624, %v3864
        %v4021 = vsub.f32 %v3625, %v3865
        %v4022 = vsub.f32 %v3626, %v3866
        %v4023 = vsub.f32 %v3627, %v3867
        %v4024 = vsub.f32 %v3628, %v3868
        %v4025 = vsub.f32 %v3629, %v3869
        %v4026 = vsub.f32 %v3630, %v3870
        %v4027 = vsub.f32 %v3631, %v3871
        %v4028 = vsub.f32 %v3632, %v3872
        %v4029 = vsub.f32 %v3633, %v3873
        %v4030 = vsub.f32 %v3634, %v3874
        %v4031 = vsub.f32 %v3635, %v3875
        %v4032 = vsub.f32 %v3636, %v3876
        %v4033 = vsub.f32 %v3637, %v3877
        %v4034 = vsub.f32 %v3638, %v3878
        %v4035 = vsub.f32 %v3639, %v3879
        %v4036 = vsub.f32 %v3640, %v3880
        %v4037 = vsub.f32 %v3641, %v3881
        %v4038 = vsub.f32 %v3642, %v3882
        %v4039 = vsub.f32 %v3643, %v3883
        %v4040 = vsub.f32 %v3644, %v3884
        %v4041 = vsub.f32 %v3645, %v3885
        %v4042 = vsub.f32 %v3646, %v3886
        %v4043 = vsub.f32 %v3647, %v3887
        %v4044 = vpack.c.bf16 %v3900, %v3888
        %v4045 = vpack.c.bf16 %v3901, %v3889
        %v4046 = vpack.c.bf16 %v3902, %v3890
        %v4047 = vpack.c.bf16 %v3903, %v3891
        %v4048 = vpack.c.bf16 %v3904, %v3892
        %v4049 = vpack.c.bf16 %v3905, %v3893
        %v4050 = vpack.c.bf16 %v3906, %v3894
        %v4051 = vpack.c.bf16 %v3907, %v3895
        %v4052 = vpack.c.bf16 %v3908, %v3896
        %v4053 = vpack.c.bf16 %v3909, %v3897
        %v4054 = vpack.c.bf16 %v3910, %v3898
        %v4055 = vpack.c.bf16 %v3911, %v3899
        %v4056 = vpack.c.bf16 %v3924, %v3912
        %v4057 = vpack.c.bf16 %v3925, %v3913
        %v4058 = vpack.c.bf16 %v3926, %v3914
        %v4059 = vpack.c.bf16 %v3927, %v3915
        %v4060 = vpack.c.bf16 %v3928, %v3916
        %v4061 = vpack.c.bf16 %v3929, %v3917
        %v4062 = vpack.c.bf16 %v3930, %v3918
        %v4063 = vpack.c.bf16 %v3931, %v3919
        %v4064 = vpack.c.bf16 %v3932, %v3920
        %v4065 = vpack.c.bf16 %v3933, %v3921
        %v4066 = vpack.c.bf16 %v3934, %v3922
        %v4067 = vpack.c.bf16 %v3935, %v3923
        %v4068 = vpack.c.bf16 %v3948, %v3936
        %v4069 = vpack.c.bf16 %v3949, %v3937
        %v4070 = vpack.c.bf16 %v3950, %v3938
        %v4071 = vpack.c.bf16 %v3951, %v3939
        %v4072 = vpack.c.bf16 %v3952, %v3940
        %v4073 = vpack.c.bf16 %v3953, %v3941
        %v4074 = vpack.c.bf16 %v3954, %v3942
        %v4075 = vpack.c.bf16 %v3955, %v3943
        %v4076 = vpack.c.bf16 %v3956, %v3944
        %v4077 = vpack.c.bf16 %v3957, %v3945
        %v4078 = vpack.c.bf16 %v3958, %v3946
        %v4079 = vpack.c.bf16 %v3959, %v3947
        %v4080 = vpack.c.bf16 %v3972, %v3960
        %v4081 = vpack.c.bf16 %v3973, %v3961
        %v4082 = vpack.c.bf16 %v3974, %v3962
        %v4083 = vpack.c.bf16 %v3975, %v3963
        %v4084 = vpack.c.bf16 %v3976, %v3964
        %v4085 = vpack.c.bf16 %v3977, %v3965
        %v4086 = vpack.c.bf16 %v3978, %v3966
        %v4087 = vpack.c.bf16 %v3979, %v3967
        %v4088 = vpack.c.bf16 %v3980, %v3968
        %v4089 = vpack.c.bf16 %v3981, %v3969
        %v4090 = vpack.c.bf16 %v3982, %v3970
        %v4091 = vpack.c.bf16 %v3983, %v3971
        %v4092 = vpack.c.bf16 %v3996, %v3984
        %v4093 = vpack.c.bf16 %v3997, %v3985
        %v4094 = vpack.c.bf16 %v3998, %v3986
        %v4095 = vpack.c.bf16 %v3999, %v3987
        %v4096 = vpack.c.bf16 %v4000, %v3988
        %v4097 = vpack.c.bf16 %v4001, %v3989
        %v4098 = vpack.c.bf16 %v4002, %v3990
        %v4099 = vpack.c.bf16 %v4003, %v3991
        %v4100 = vpack.c.bf16 %v4004, %v3992
        %v4101 = vpack.c.bf16 %v4005, %v3993
        %v4102 = vpack.c.bf16 %v4006, %v3994
        %v4103 = vpack.c.bf16 %v4007, %v3995
        %v4104 = vpack.c.bf16 %v4020, %v4008
        %v4105 = vpack.c.bf16 %v4021, %v4009
        %v4106 = vpack.c.bf16 %v4022, %v4010
        %v4107 = vpack.c.bf16 %v4023, %v4011
        %v4108 = vpack.c.bf16 %v4024, %v4012
        %v4109 = vpack.c.bf16 %v4025, %v4013
        %v4110 = vpack.c.bf16 %v4026, %v4014
        %v4111 = vpack.c.bf16 %v4027, %v4015
        %v4112 = vpack.c.bf16 %v4028, %v4016
        %v4113 = vpack.c.bf16 %v4029, %v4017
        %v4114 = vpack.c.bf16 %v4030, %v4018
        %v4115 = vpack.c.bf16 %v4031, %v4019
        %v4116 = vpack.c.bf16 %v4032, %v4032
        %v4117 = vpack.c.bf16 %v4033, %v4033
        %v4118 = vpack.c.bf16 %v4034, %v4034
        %v4119 = vpack.c.bf16 %v4035, %v4035
        %v4120 = vpack.c.bf16 %v4036, %v4036
        %v4121 = vpack.c.bf16 %v4037, %v4037
        %v4122 = vpack.c.bf16 %v4038, %v4038
        %v4123 = vpack.c.bf16 %v4039, %v4039
        %v4124 = vpack.c.bf16 %v4040, %v4040
        %v4125 = vpack.c.bf16 %v4041, %v4041
        %v4126 = vpack.c.bf16 %v4042, %v4042
        %v4127 = vpack.c.bf16 %v4043, %v4043
        %v4128 = vunpack.c.l.bf16 %v4044
        %v4129 = vunpack.c.l.bf16 %v4045
        %v4130 = vunpack.c.l.bf16 %v4046
        %v4131 = vunpack.c.l.bf16 %v4047
        %v4132 = vunpack.c.l.bf16 %v4048
        %v4133 = vunpack.c.l.bf16 %v4049
        %v4134 = vunpack.c.l.bf16 %v4050
        %v4135 = vunpack.c.l.bf16 %v4051
        %v4136 = vunpack.c.l.bf16 %v4052
        %v4137 = vunpack.c.l.bf16 %v4053
        %v4138 = vunpack.c.l.bf16 %v4054
        %v4139 = vunpack.c.l.bf16 %v4055
        %v4140 = vunpack.c.h.bf16 %v4044
        %v4141 = vunpack.c.h.bf16 %v4045
        %v4142 = vunpack.c.h.bf16 %v4046
        %v4143 = vunpack.c.h.bf16 %v4047
        %v4144 = vunpack.c.h.bf16 %v4048
        %v4145 = vunpack.c.h.bf16 %v4049
        %v4146 = vunpack.c.h.bf16 %v4050
        %v4147 = vunpack.c.h.bf16 %v4051
        %v4148 = vunpack.c.h.bf16 %v4052
        %v4149 = vunpack.c.h.bf16 %v4053
        %v4150 = vunpack.c.h.bf16 %v4054
        %v4151 = vunpack.c.h.bf16 %v4055
        %v4152 = vunpack.c.l.bf16 %v4056
        %v4153 = vunpack.c.l.bf16 %v4057
        %v4154 = vunpack.c.l.bf16 %v4058
        %v4155 = vunpack.c.l.bf16 %v4059
        %v4156 = vunpack.c.l.bf16 %v4060
        %v4157 = vunpack.c.l.bf16 %v4061
        %v4158 = vunpack.c.l.bf16 %v4062
        %v4159 = vunpack.c.l.bf16 %v4063
        %v4160 = vunpack.c.l.bf16 %v4064
        %v4161 = vunpack.c.l.bf16 %v4065
        %v4162 = vunpack.c.l.bf16 %v4066
        %v4163 = vunpack.c.l.bf16 %v4067
        %v4164 = vunpack.c.h.bf16 %v4056
        %v4165 = vunpack.c.h.bf16 %v4057
        %v4166 = vunpack.c.h.bf16 %v4058
        %v4167 = vunpack.c.h.bf16 %v4059
        %v4168 = vunpack.c.h.bf16 %v4060
        %v4169 = vunpack.c.h.bf16 %v4061
        %v4170 = vunpack.c.h.bf16 %v4062
        %v4171 = vunpack.c.h.bf16 %v4063
        %v4172 = vunpack.c.h.bf16 %v4064
        %v4173 = vunpack.c.h.bf16 %v4065
        %v4174 = vunpack.c.h.bf16 %v4066
        %v4175 = vunpack.c.h.bf16 %v4067
        %v4176 = vunpack.c.l.bf16 %v4068
        %v4177 = vunpack.c.l.bf16 %v4069
        %v4178 = vunpack.c.l.bf16 %v4070
        %v4179 = vunpack.c.l.bf16 %v4071
        %v4180 = vunpack.c.l.bf16 %v4072
        %v4181 = vunpack.c.l.bf16 %v4073
        %v4182 = vunpack.c.l.bf16 %v4074
        %v4183 = vunpack.c.l.bf16 %v4075
        %v4184 = vunpack.c.l.bf16 %v4076
        %v4185 = vunpack.c.l.bf16 %v4077
        %v4186 = vunpack.c.l.bf16 %v4078
        %v4187 = vunpack.c.l.bf16 %v4079
        %v4188 = vunpack.c.h.bf16 %v4068
        %v4189 = vunpack.c.h.bf16 %v4069
        %v4190 = vunpack.c.h.bf16 %v4070
        %v4191 = vunpack.c.h.bf16 %v4071
        %v4192 = vunpack.c.h.bf16 %v4072
        %v4193 = vunpack.c.h.bf16 %v4073
        %v4194 = vunpack.c.h.bf16 %v4074
        %v4195 = vunpack.c.h.bf16 %v4075
        %v4196 = vunpack.c.h.bf16 %v4076
        %v4197 = vunpack.c.h.bf16 %v4077
        %v4198 = vunpack.c.h.bf16 %v4078
        %v4199 = vunpack.c.h.bf16 %v4079
        %v4200 = vunpack.c.l.bf16 %v4080
        %v4201 = vunpack.c.l.bf16 %v4081
        %v4202 = vunpack.c.l.bf16 %v4082
        %v4203 = vunpack.c.l.bf16 %v4083
        %v4204 = vunpack.c.l.bf16 %v4084
        %v4205 = vunpack.c.l.bf16 %v4085
        %v4206 = vunpack.c.l.bf16 %v4086
        %v4207 = vunpack.c.l.bf16 %v4087
        %v4208 = vunpack.c.l.bf16 %v4088
        %v4209 = vunpack.c.l.bf16 %v4089
        %v4210 = vunpack.c.l.bf16 %v4090
        %v4211 = vunpack.c.l.bf16 %v4091
        %v4212 = vunpack.c.h.bf16 %v4080
        %v4213 = vunpack.c.h.bf16 %v4081
        %v4214 = vunpack.c.h.bf16 %v4082
        %v4215 = vunpack.c.h.bf16 %v4083
        %v4216 = vunpack.c.h.bf16 %v4084
        %v4217 = vunpack.c.h.bf16 %v4085
        %v4218 = vunpack.c.h.bf16 %v4086
        %v4219 = vunpack.c.h.bf16 %v4087
        %v4220 = vunpack.c.h.bf16 %v4088
        %v4221 = vunpack.c.h.bf16 %v4089
        %v4222 = vunpack.c.h.bf16 %v4090
        %v4223 = vunpack.c.h.bf16 %v4091
        %v4224 = vunpack.c.l.bf16 %v4092
        %v4225 = vunpack.c.l.bf16 %v4093
        %v4226 = vunpack.c.l.bf16 %v4094
        %v4227 = vunpack.c.l.bf16 %v4095
        %v4228 = vunpack.c.l.bf16 %v4096
        %v4229 = vunpack.c.l.bf16 %v4097
        %v4230 = vunpack.c.l.bf16 %v4098
        %v4231 = vunpack.c.l.bf16 %v4099
        %v4232 = vunpack.c.l.bf16 %v4100
        %v4233 = vunpack.c.l.bf16 %v4101
        %v4234 = vunpack.c.l.bf16 %v4102
        %v4235 = vunpack.c.l.bf16 %v4103
        %v4236 = vunpack.c.h.bf16 %v4092
        %v4237 = vunpack.c.h.bf16 %v4093
        %v4238 = vunpack.c.h.bf16 %v4094
        %v4239 = vunpack.c.h.bf16 %v4095
        %v4240 = vunpack.c.h.bf16 %v4096
        %v4241 = vunpack.c.h.bf16 %v4097
        %v4242 = vunpack.c.h.bf16 %v4098
        %v4243 = vunpack.c.h.bf16 %v4099
        %v4244 = vunpack.c.h.bf16 %v4100
        %v4245 = vunpack.c.h.bf16 %v4101
        %v4246 = vunpack.c.h.bf16 %v4102
        %v4247 = vunpack.c.h.bf16 %v4103
        %v4248 = vunpack.c.l.bf16 %v4104
        %v4249 = vunpack.c.l.bf16 %v4105
        %v4250 = vunpack.c.l.bf16 %v4106
        %v4251 = vunpack.c.l.bf16 %v4107
        %v4252 = vunpack.c.l.bf16 %v4108
        %v4253 = vunpack.c.l.bf16 %v4109
        %v4254 = vunpack.c.l.bf16 %v4110
        %v4255 = vunpack.c.l.bf16 %v4111
        %v4256 = vunpack.c.l.bf16 %v4112
        %v4257 = vunpack.c.l.bf16 %v4113
        %v4258 = vunpack.c.l.bf16 %v4114
        %v4259 = vunpack.c.l.bf16 %v4115
        %v4260 = vunpack.c.h.bf16 %v4104
        %v4261 = vunpack.c.h.bf16 %v4105
        %v4262 = vunpack.c.h.bf16 %v4106
        %v4263 = vunpack.c.h.bf16 %v4107
        %v4264 = vunpack.c.h.bf16 %v4108
        %v4265 = vunpack.c.h.bf16 %v4109
        %v4266 = vunpack.c.h.bf16 %v4110
        %v4267 = vunpack.c.h.bf16 %v4111
        %v4268 = vunpack.c.h.bf16 %v4112
        %v4269 = vunpack.c.h.bf16 %v4113
        %v4270 = vunpack.c.h.bf16 %v4114
        %v4271 = vunpack.c.h.bf16 %v4115
        %v4272 = vunpack.c.l.bf16 %v4116
        %v4273 = vunpack.c.l.bf16 %v4117
        %v4274 = vunpack.c.l.bf16 %v4118
        %v4275 = vunpack.c.l.bf16 %v4119
        %v4276 = vunpack.c.l.bf16 %v4120
        %v4277 = vunpack.c.l.bf16 %v4121
        %v4278 = vunpack.c.l.bf16 %v4122
        %v4279 = vunpack.c.l.bf16 %v4123
        %v4280 = vunpack.c.l.bf16 %v4124
        %v4281 = vunpack.c.l.bf16 %v4125
        %v4282 = vunpack.c.l.bf16 %v4126
        %v4283 = vunpack.c.l.bf16 %v4127
        %v4284 = vsub.f32 %v3888, %v4128
        %v4285 = vsub.f32 %v3889, %v4129
        %v4286 = vsub.f32 %v3890, %v4130
        %v4287 = vsub.f32 %v3891, %v4131
        %v4288 = vsub.f32 %v3892, %v4132
        %v4289 = vsub.f32 %v3893, %v4133
        %v4290 = vsub.f32 %v3894, %v4134
        %v4291 = vsub.f32 %v3895, %v4135
        %v4292 = vsub.f32 %v3896, %v4136
        %v4293 = vsub.f32 %v3897, %v4137
        %v4294 = vsub.f32 %v3898, %v4138
        %v4295 = vsub.f32 %v3899, %v4139
        %v4296 = vsub.f32 %v3900, %v4140
        %v4297 = vsub.f32 %v3901, %v4141
        %v4298 = vsub.f32 %v3902, %v4142
        %v4299 = vsub.f32 %v3903, %v4143
        %v4300 = vsub.f32 %v3904, %v4144
        %v4301 = vsub.f32 %v3905, %v4145
        %v4302 = vsub.f32 %v3906, %v4146
        %v4303 = vsub.f32 %v3907, %v4147
        %v4304 = vsub.f32 %v3908, %v4148
        %v4305 = vsub.f32 %v3909, %v4149
        %v4306 = vsub.f32 %v3910, %v4150
        %v4307 = vsub.f32 %v3911, %v4151
        %v4308 = vsub.f32 %v3912, %v4152
        %v4309 = vsub.f32 %v3913, %v4153
        %v4310 = vsub.f32 %v3914, %v4154
        %v4311 = vsub.f32 %v3915, %v4155
        %v4312 = vsub.f32 %v3916, %v4156
        %v4313 = vsub.f32 %v3917, %v4157
        %v4314 = vsub.f32 %v3918, %v4158
        %v4315 = vsub.f32 %v3919, %v4159
        %v4316 = vsub.f32 %v3920, %v4160
        %v4317 = vsub.f32 %v3921, %v4161
        %v4318 = vsub.f32 %v3922, %v4162
        %v4319 = vsub.f32 %v3923, %v4163
        %v4320 = vsub.f32 %v3924, %v4164
        %v4321 = vsub.f32 %v3925, %v4165
        %v4322 = vsub.f32 %v3926, %v4166
        %v4323 = vsub.f32 %v3927, %v4167
        %v4324 = vsub.f32 %v3928, %v4168
        %v4325 = vsub.f32 %v3929, %v4169
        %v4326 = vsub.f32 %v3930, %v4170
        %v4327 = vsub.f32 %v3931, %v4171
        %v4328 = vsub.f32 %v3932, %v4172
        %v4329 = vsub.f32 %v3933, %v4173
        %v4330 = vsub.f32 %v3934, %v4174
        %v4331 = vsub.f32 %v3935, %v4175
        %v4332 = vsub.f32 %v3936, %v4176
        %v4333 = vsub.f32 %v3937, %v4177
        %v4334 = vsub.f32 %v3938, %v4178
        %v4335 = vsub.f32 %v3939, %v4179
        %v4336 = vsub.f32 %v3940, %v4180
        %v4337 = vsub.f32 %v3941, %v4181
        %v4338 = vsub.f32 %v3942, %v4182
        %v4339 = vsub.f32 %v3943, %v4183
        %v4340 = vsub.f32 %v3944, %v4184
        %v4341 = vsub.f32 %v3945, %v4185
        %v4342 = vsub.f32 %v3946, %v4186
        %v4343 = vsub.f32 %v3947, %v4187
        %v4344 = vsub.f32 %v3948, %v4188
        %v4345 = vsub.f32 %v3949, %v4189
        %v4346 = vsub.f32 %v3950, %v4190
        %v4347 = vsub.f32 %v3951, %v4191
        %v4348 = vsub.f32 %v3952, %v4192
        %v4349 = vsub.f32 %v3953, %v4193
        %v4350 = vsub.f32 %v3954, %v4194
        %v4351 = vsub.f32 %v3955, %v4195
        %v4352 = vsub.f32 %v3956, %v4196
        %v4353 = vsub.f32 %v3957, %v4197
        %v4354 = vsub.f32 %v3958, %v4198
        %v4355 = vsub.f32 %v3959, %v4199
        %v4356 = vsub.f32 %v3960, %v4200
        %v4357 = vsub.f32 %v3961, %v4201
        %v4358 = vsub.f32 %v3962, %v4202
        %v4359 = vsub.f32 %v3963, %v4203
        %v4360 = vsub.f32 %v3964, %v4204
        %v4361 = vsub.f32 %v3965, %v4205
        %v4362 = vsub.f32 %v3966, %v4206
        %v4363 = vsub.f32 %v3967, %v4207
        %v4364 = vsub.f32 %v3968, %v4208
        %v4365 = vsub.f32 %v3969, %v4209
        %v4366 = vsub.f32 %v3970, %v4210
        %v4367 = vsub.f32 %v3971, %v4211
        %v4368 = vsub.f32 %v3972, %v4212
        %v4369 = vsub.f32 %v3973, %v4213
        %v4370 = vsub.f32 %v3974, %v4214
        %v4371 = vsub.f32 %v3975, %v4215
        %v4372 = vsub.f32 %v3976, %v4216
        %v4373 = vsub.f32 %v3977, %v4217
        %v4374 = vsub.f32 %v3978, %v4218
        %v4375 = vsub.f32 %v3979, %v4219
        %v4376 = vsub.f32 %v3980, %v4220
        %v4377 = vsub.f32 %v3981, %v4221
        %v4378 = vsub.f32 %v3982, %v4222
        %v4379 = vsub.f32 %v3983, %v4223
        %v4380 = vsub.f32 %v3984, %v4224
        %v4381 = vsub.f32 %v3985, %v4225
        %v4382 = vsub.f32 %v3986, %v4226
        %v4383 = vsub.f32 %v3987, %v4227
        %v4384 = vsub.f32 %v3988, %v4228
        %v4385 = vsub.f32 %v3989, %v4229
        %v4386 = vsub.f32 %v3990, %v4230
        %v4387 = vsub.f32 %v3991, %v4231
        %v4388 = vsub.f32 %v3992, %v4232
        %v4389 = vsub.f32 %v3993, %v4233
        %v4390 = vsub.f32 %v3994, %v4234
        %v4391 = vsub.f32 %v3995, %v4235
        %v4392 = vsub.f32 %v3996, %v4236
        %v4393 = vsub.f32 %v3997, %v4237
        %v4394 = vsub.f32 %v3998, %v4238
        %v4395 = vsub.f32 %v3999, %v4239
        %v4396 = vsub.f32 %v4000, %v4240
        %v4397 = vsub.f32 %v4001, %v4241
        %v4398 = vsub.f32 %v4002, %v4242
        %v4399 = vsub.f32 %v4003, %v4243
        %v4400 = vsub.f32 %v4004, %v4244
        %v4401 = vsub.f32 %v4005, %v4245
        %v4402 = vsub.f32 %v4006, %v4246
        %v4403 = vsub.f32 %v4007, %v4247
        %v4404 = vsub.f32 %v4008, %v4248
        %v4405 = vsub.f32 %v4009, %v4249
        %v4406 = vsub.f32 %v4010, %v4250
        %v4407 = vsub.f32 %v4011, %v4251
        %v4408 = vsub.f32 %v4012, %v4252
        %v4409 = vsub.f32 %v4013, %v4253
        %v4410 = vsub.f32 %v4014, %v4254
        %v4411 = vsub.f32 %v4015, %v4255
        %v4412 = vsub.f32 %v4016, %v4256
        %v4413 = vsub.f32 %v4017, %v4257
        %v4414 = vsub.f32 %v4018, %v4258
        %v4415 = vsub.f32 %v4019, %v4259
        %v4416 = vsub.f32 %v4020, %v4260
        %v4417 = vsub.f32 %v4021, %v4261
        %v4418 = vsub.f32 %v4022, %v4262
        %v4419 = vsub.f32 %v4023, %v4263
        %v4420 = vsub.f32 %v4024, %v4264
        %v4421 = vsub.f32 %v4025, %v4265
        %v4422 = vsub.f32 %v4026, %v4266
        %v4423 = vsub.f32 %v4027, %v4267
        %v4424 = vsub.f32 %v4028, %v4268
        %v4425 = vsub.f32 %v4029, %v4269
        %v4426 = vsub.f32 %v4030, %v4270
        %v4427 = vsub.f32 %v4031, %v4271
        %v4428 = vsub.f32 %v4032, %v4272
        %v4429 = vsub.f32 %v4033, %v4273
        %v4430 = vsub.f32 %v4034, %v4274
        %v4431 = vsub.f32 %v4035, %v4275
        %v4432 = vsub.f32 %v4036, %v4276
        %v4433 = vsub.f32 %v4037, %v4277
        %v4434 = vsub.f32 %v4038, %v4278
        %v4435 = vsub.f32 %v4039, %v4279
        %v4436 = vsub.f32 %v4040, %v4280
        %v4437 = vsub.f32 %v4041, %v4281
        %v4438 = vsub.f32 %v4042, %v4282
        %v4439 = vsub.f32 %v4043, %v4283
        %v4440 = vpack.c.bf16 %v4296, %v4284
        %v4441 = vpack.c.bf16 %v4297, %v4285
        %v4442 = vpack.c.bf16 %v4298, %v4286
        %v4443 = vpack.c.bf16 %v4299, %v4287
        %v4444 = vpack.c.bf16 %v4300, %v4288
        %v4445 = vpack.c.bf16 %v4301, %v4289
        %v4446 = vpack.c.bf16 %v4302, %v4290
        %v4447 = vpack.c.bf16 %v4303, %v4291
        %v4448 = vpack.c.bf16 %v4304, %v4292
        %v4449 = vpack.c.bf16 %v4305, %v4293
        %v4450 = vpack.c.bf16 %v4306, %v4294
        %v4451 = vpack.c.bf16 %v4307, %v4295
        %v4452 = vpack.c.bf16 %v4320, %v4308
        %v4453 = vpack.c.bf16 %v4321, %v4309
        %v4454 = vpack.c.bf16 %v4322, %v4310
        %v4455 = vpack.c.bf16 %v4323, %v4311
        %v4456 = vpack.c.bf16 %v4324, %v4312
        %v4457 = vpack.c.bf16 %v4325, %v4313
        %v4458 = vpack.c.bf16 %v4326, %v4314
        %v4459 = vpack.c.bf16 %v4327, %v4315
        %v4460 = vpack.c.bf16 %v4328, %v4316
        %v4461 = vpack.c.bf16 %v4329, %v4317
        %v4462 = vpack.c.bf16 %v4330, %v4318
        %v4463 = vpack.c.bf16 %v4331, %v4319
        %v4464 = vpack.c.bf16 %v4344, %v4332
        %v4465 = vpack.c.bf16 %v4345, %v4333
        %v4466 = vpack.c.bf16 %v4346, %v4334
        %v4467 = vpack.c.bf16 %v4347, %v4335
        %v4468 = vpack.c.bf16 %v4348, %v4336
        %v4469 = vpack.c.bf16 %v4349, %v4337
        %v4470 = vpack.c.bf16 %v4350, %v4338
        %v4471 = vpack.c.bf16 %v4351, %v4339
        %v4472 = vpack.c.bf16 %v4352, %v4340
        %v4473 = vpack.c.bf16 %v4353, %v4341
        %v4474 = vpack.c.bf16 %v4354, %v4342
        %v4475 = vpack.c.bf16 %v4355, %v4343
        %v4476 = vpack.c.bf16 %v4368, %v4356
        %v4477 = vpack.c.bf16 %v4369, %v4357
        %v4478 = vpack.c.bf16 %v4370, %v4358
        %v4479 = vpack.c.bf16 %v4371, %v4359
        %v4480 = vpack.c.bf16 %v4372, %v4360
        %v4481 = vpack.c.bf16 %v4373, %v4361
        %v4482 = vpack.c.bf16 %v4374, %v4362
        %v4483 = vpack.c.bf16 %v4375, %v4363
        %v4484 = vpack.c.bf16 %v4376, %v4364
        %v4485 = vpack.c.bf16 %v4377, %v4365
        %v4486 = vpack.c.bf16 %v4378, %v4366
        %v4487 = vpack.c.bf16 %v4379, %v4367
        %v4488 = vpack.c.bf16 %v4392, %v4380
        %v4489 = vpack.c.bf16 %v4393, %v4381
        %v4490 = vpack.c.bf16 %v4394, %v4382
        %v4491 = vpack.c.bf16 %v4395, %v4383
        %v4492 = vpack.c.bf16 %v4396, %v4384
        %v4493 = vpack.c.bf16 %v4397, %v4385
        %v4494 = vpack.c.bf16 %v4398, %v4386
        %v4495 = vpack.c.bf16 %v4399, %v4387
        %v4496 = vpack.c.bf16 %v4400, %v4388
        %v4497 = vpack.c.bf16 %v4401, %v4389
        %v4498 = vpack.c.bf16 %v4402, %v4390
        %v4499 = vpack.c.bf16 %v4403, %v4391
        %v4500 = vpack.c.bf16 %v4416, %v4404
        %v4501 = vpack.c.bf16 %v4417, %v4405
        %v4502 = vpack.c.bf16 %v4418, %v4406
        %v4503 = vpack.c.bf16 %v4419, %v4407
        %v4504 = vpack.c.bf16 %v4420, %v4408
        %v4505 = vpack.c.bf16 %v4421, %v4409
        %v4506 = vpack.c.bf16 %v4422, %v4410
        %v4507 = vpack.c.bf16 %v4423, %v4411
        %v4508 = vpack.c.bf16 %v4424, %v4412
        %v4509 = vpack.c.bf16 %v4425, %v4413
        %v4510 = vpack.c.bf16 %v4426, %v4414
        %v4511 = vpack.c.bf16 %v4427, %v4415
        %v4512 = vpack.c.bf16 %v4428, %v4428
        %v4513 = vpack.c.bf16 %v4429, %v4429
        %v4514 = vpack.c.bf16 %v4430, %v4430
        %v4515 = vpack.c.bf16 %v4431, %v4431
        %v4516 = vpack.c.bf16 %v4432, %v4432
        %v4517 = vpack.c.bf16 %v4433, %v4433
        %v4518 = vpack.c.bf16 %v4434, %v4434
        %v4519 = vpack.c.bf16 %v4435, %v4435
        %v4520 = vpack.c.bf16 %v4436, %v4436
        %v4521 = vpack.c.bf16 %v4437, %v4437
        %v4522 = vpack.c.bf16 %v4438, %v4438
        %v4523 = vpack.c.bf16 %v4439, %v4439
        %v4716 = vunpack.c.l.b16 %v554
        %v4717 = vunpack.c.l.b16 %v555
        %v4718 = vunpack.c.l.b16 %v556
        %v4719 = vunpack.c.l.b16 %v557
        %v4720 = vunpack.c.l.b16 %v558
        %v4721 = vunpack.c.l.b16 %v559
        %v4722 = vunpack.c.l.b16 %v560
        %v4723 = vunpack.c.l.b16 %v561
        %v4724 = vunpack.c.l.b16 %v562
        %v4725 = vunpack.c.l.b16 %v563
        %v4726 = vunpack.c.l.b16 %v564
        %v4727 = vunpack.c.l.b16 %v565
        %v4728 = vunpack.c.l.b16 %v566
        %v4729 = vunpack.c.l.b16 %v567
        %v4730 = vunpack.c.l.b16 %v568
        %v4731 = vunpack.c.l.b16 %v569
        %v4732 = vunpack.c.l.b16 %v570
        %v4733 = vunpack.c.l.b16 %v571
        %v4734 = vunpack.c.l.b16 %v572
        %v4735 = vunpack.c.l.b16 %v573
        %v4736 = vunpack.c.l.b16 %v574
        %v4737 = vunpack.c.l.b16 %v575
        %v4738 = vunpack.c.l.b16 %v576
        %v4739 = vunpack.c.l.b16 %v577
        %v4740 = vunpack.c.l.b16 %v578
        %v4741 = vunpack.c.l.b16 %v579
        %v4742 = vunpack.c.l.b16 %v580
        %v4743 = vunpack.c.l.b16 %v581
        %v4744 = vunpack.c.l.b16 %v582
        %v4745 = vunpack.c.l.b16 %v583
        %v4746 = vunpack.c.l.b16 %v584
        %v4747 = vunpack.c.l.b16 %v585
        %v4748 = vunpack.c.l.b16 %v586
        %v4749 = vunpack.c.l.b16 %v587
        %v4750 = vunpack.c.l.b16 %v588
        %v4751 = vunpack.c.l.b16 %v589
        %v4752 = vunpack.c.l.b16 %v590
        %v4753 = vunpack.c.l.b16 %v591
        %v4754 = vunpack.c.l.b16 %v592
        %v4755 = vunpack.c.l.b16 %v593
        %v4756 = vunpack.c.l.b16 %v594
        %v4757 = vunpack.c.l.b16 %v595
        %v4758 = vunpack.c.l.b16 %v596
        %v4759 = vunpack.c.l.b16 %v597
        %v4760 = vunpack.c.l.b16 %v598
        %v4761 = vunpack.c.l.b16 %v599
        %v4762 = vunpack.c.l.b16 %v600
        %v4763 = vunpack.c.l.b16 %v601
        %v4764 = vunpack.c.l.b16 %v602
        %v4765 = vunpack.c.l.b16 %v603
        %v4766 = vunpack.c.l.b16 %v604
        %v4767 = vunpack.c.l.b16 %v605
        %v4768 = vunpack.c.l.b16 %v606
        %v4769 = vunpack.c.l.b16 %v607
        %v4770 = vunpack.c.l.b16 %v608
        %v4771 = vunpack.c.l.b16 %v609
        %v4772 = vunpack.c.l.b16 %v610
        %v4773 = vunpack.c.l.b16 %v611
        %v4774 = vunpack.c.l.b16 %v612
        %v4775 = vunpack.c.l.b16 %v613
        %v4776 = vunpack.c.l.b16 %v614
        %v4777 = vunpack.c.l.b16 %v615
        %v4778 = vunpack.c.l.b16 %v616
        %v4779 = vunpack.c.l.b16 %v617
        %v4780 = vunpack.c.l.b16 %v618
        %v4781 = vunpack.c.l.b16 %v619
        %v4782 = vunpack.c.l.b16 %v620
        %v4783 = vunpack.c.l.b16 %v621
        %v4784 = vunpack.c.l.b16 %v622
        %v4785 = vunpack.c.l.b16 %v623
        %v4786 = vunpack.c.l.b16 %v624
        %v4787 = vunpack.c.l.b16 %v625
        %v4788 = vunpack.c.l.b16 %v626
        %v4789 = vunpack.c.l.b16 %v627
        %v4790 = vunpack.c.l.b16 %v628
        %v4791 = vunpack.c.l.b16 %v629
        %v4792 = vunpack.c.l.b16 %v630
        %v4793 = vunpack.c.l.b16 %v631
        %v4794 = vunpack.c.l.b16 %v632
        %v4795 = vunpack.c.l.b16 %v633
        %v4796 = vunpack.c.l.b16 %v634
        %v4797 = vunpack.c.l.b16 %v635
        %v4798 = vunpack.c.l.b16 %v636
        %v4799 = vunpack.c.l.b16 %v637
        %v4800 = vunpack.c.l.b16 %v638
        %v4801 = vunpack.c.l.b16 %v639
        %v4802 = vunpack.c.l.b16 %v640
        %v4803 = vunpack.c.l.b16 %v641
        %v4804 = vunpack.c.l.b16 %v642
        %v4805 = vunpack.c.l.b16 %v643
        %v4806 = vunpack.c.l.b16 %v644
        %v4807 = vunpack.c.l.b16 %v645
        %v4808 = vunpack.c.l.b16 %v646
        %v4809 = vunpack.c.l.b16 %v647
        %v4810 = vunpack.c.l.b16 %v648
        %v4811 = vunpack.c.l.b16 %v649
        %v4812 = vunpack.c.l.b16 %v650
        %v4813 = vunpack.c.l.b16 %v651
        %v4814 = vunpack.c.l.b16 %v652
        %v4815 = vunpack.c.l.b16 %v653
        %v4816 = vunpack.c.l.b16 %v654
        %v4817 = vunpack.c.l.b16 %v655
        %v4818 = vunpack.c.l.b16 %v656
        %v4819 = vunpack.c.l.b16 %v657
        %v4820 = vunpack.c.l.b16 %v658
        %v4821 = vunpack.c.l.b16 %v659
        %v4822 = vunpack.c.l.b16 %v660
        %v4823 = vunpack.c.l.b16 %v661
        %v4824 = vunpack.c.l.b16 %v662
        %v4825 = vunpack.c.l.b16 %v663
        %v4826 = vunpack.c.l.b16 %v664
        %v4827 = vunpack.c.l.b16 %v665
        %v4828 = vunpack.c.l.b16 %v666
        %v4829 = vunpack.c.l.b16 %v667
        %v4830 = vunpack.c.l.b16 %v668
        %v4831 = vunpack.c.l.b16 %v669
        %v4832 = vunpack.c.l.b16 %v670
        %v4833 = vunpack.c.l.b16 %v671
        %v4834 = vunpack.c.l.b16 %v672
        %v4835 = vunpack.c.l.b16 %v673
        %v4836 = vunpack.c.l.b16 %v674
        %v4837 = vunpack.c.l.b16 %v675
        %v4838 = vunpack.c.l.b16 %v676
        %v4839 = vunpack.c.l.b16 %v677
        %v4840 = vunpack.c.l.b16 %v678
        %v4841 = vunpack.c.l.b16 %v679
        %v4842 = vunpack.c.l.b16 %v680
        %v4843 = vunpack.c.l.b16 %v681
        %v4844 = vunpack.c.l.b16 %v682
        %v4845 = vunpack.c.l.b16 %v683
        %v4846 = vunpack.c.l.b16 %v684
        %v4847 = vunpack.c.l.b16 %v685
        %v4848 = vunpack.c.l.b16 %v686
        %v4849 = vunpack.c.l.b16 %v687
        %v4850 = vunpack.c.l.b16 %v688
        %v4851 = vunpack.c.l.b16 %v689
        %v4852 = vunpack.c.l.b16 %v690
        %v4853 = vunpack.c.l.b16 %v691
        %v4854 = vunpack.c.l.b16 %v692
        %v4855 = vunpack.c.l.b16 %v693
        %v4856 = vunpack.c.l.b16 %v694
        %v4857 = vunpack.c.l.b16 %v695
        %v4858 = vunpack.c.l.b16 %v696
        %v4859 = vunpack.c.l.b16 %v697
        %v4860 = vunpack.c.l.b16 %v698
        %v4861 = vunpack.c.l.b16 %v699
        %v4862 = vunpack.c.l.b16 %v700
        %v4863 = vunpack.c.l.b16 %v701
        %v4864 = vunpack.c.l.b16 %v702
        %v4865 = vunpack.c.l.b16 %v703
        %v4866 = vunpack.c.l.b16 %v704
        %v4867 = vunpack.c.l.b16 %v705
        %v4868 = vunpack.c.l.b16 %v706
        %v4869 = vunpack.c.l.b16 %v707
        %v4870 = vunpack.c.l.b16 %v708
        %v4871 = vunpack.c.l.b16 %v709
        %v4872 = vunpack.c.l.b16 %v710
        %v4873 = vunpack.c.l.b16 %v711
        %v4874 = vunpack.c.l.b16 %v712
        %v4875 = vunpack.c.l.b16 %v713
        %v4876 = vunpack.c.l.b16 %v714
        %v4877 = vunpack.c.l.b16 %v715
        %v4878 = vunpack.c.l.b16 %v716
        %v4879 = vunpack.c.l.b16 %v717
        %v4880 = vunpack.c.l.b16 %v718
        %v4881 = vunpack.c.l.b16 %v719
        %v4882 = vunpack.c.l.b16 %v720
        %v4883 = vunpack.c.l.b16 %v721
        %v4884 = vunpack.c.l.b16 %v722
        %v4885 = vunpack.c.l.b16 %v723
        %v4886 = vunpack.c.l.b16 %v724
        %v4887 = vunpack.c.l.b16 %v725
        %v4888 = vunpack.c.l.b16 %v726
        %v4889 = vunpack.c.l.b16 %v727
        %v4890 = vunpack.c.l.b16 %v728
        %v4891 = vunpack.c.l.b16 %v729
        %v4892 = vunpack.c.l.b16 %v730
        %v4893 = vunpack.c.l.b16 %v731
        %v4894 = vunpack.c.l.b16 %v732
        %v4895 = vunpack.c.l.b16 %v733
        %v4896 = vunpack.c.l.b16 %v734
        %v4897 = vunpack.c.l.b16 %v735
        %v4898 = vunpack.c.l.b16 %v736
        %v4899 = vunpack.c.l.b16 %v737
        %v4900 = vunpack.c.l.b16 %v738
        %v4901 = vunpack.c.l.b16 %v739
        %v4902 = vunpack.c.l.b16 %v740
        %v4903 = vunpack.c.l.b16 %v741
        %v4904 = vunpack.c.l.b16 %v742
        %v4905 = vunpack.c.l.b16 %v743
        %v4906 = vunpack.c.l.b16 %v744
        %v4907 = vunpack.c.l.b16 %v745
        %v4908 = vpack.c.b16 %v4717, %v4716
        %v4909 = vpack.c.b16 %v4719, %v4718
        %v4910 = vpack.c.b16 %v4721, %v4720
        %v4911 = vpack.c.b16 %v4723, %v4722
        %v4912 = vpack.c.b16 %v4725, %v4724
        %v4913 = vpack.c.b16 %v4727, %v4726
        %v4914 = vpack.c.b16 %v4729, %v4728
        %v4915 = vpack.c.b16 %v4731, %v4730
        %v4916 = vpack.c.b16 %v4733, %v4732
        %v4917 = vpack.c.b16 %v4735, %v4734
        %v4918 = vpack.c.b16 %v4737, %v4736
        %v4919 = vpack.c.b16 %v4739, %v4738
        %v4920 = vpack.c.b16 %v4741, %v4740
        %v4921 = vpack.c.b16 %v4743, %v4742
        %v4922 = vpack.c.b16 %v4745, %v4744
        %v4923 = vpack.c.b16 %v4747, %v4746
        %v4924 = vpack.c.b16 %v4749, %v4748
        %v4925 = vpack.c.b16 %v4751, %v4750
        %v4926 = vpack.c.b16 %v4753, %v4752
        %v4927 = vpack.c.b16 %v4755, %v4754
        %v4928 = vpack.c.b16 %v4757, %v4756
        %v4929 = vpack.c.b16 %v4759, %v4758
        %v4930 = vpack.c.b16 %v4761, %v4760
        %v4931 = vpack.c.b16 %v4763, %v4762
        %v4932 = vpack.c.b16 %v4765, %v4764
        %v4933 = vpack.c.b16 %v4767, %v4766
        %v4934 = vpack.c.b16 %v4769, %v4768
        %v4935 = vpack.c.b16 %v4771, %v4770
        %v4936 = vpack.c.b16 %v4773, %v4772
        %v4937 = vpack.c.b16 %v4775, %v4774
        %v4938 = vpack.c.b16 %v4777, %v4776
        %v4939 = vpack.c.b16 %v4779, %v4778
        %v4940 = vpack.c.b16 %v4781, %v4780
        %v4941 = vpack.c.b16 %v4783, %v4782
        %v4942 = vpack.c.b16 %v4785, %v4784
        %v4943 = vpack.c.b16 %v4787, %v4786
        %v4944 = vpack.c.b16 %v4789, %v4788
        %v4945 = vpack.c.b16 %v4791, %v4790
        %v4946 = vpack.c.b16 %v4793, %v4792
        %v4947 = vpack.c.b16 %v4795, %v4794
        %v4948 = vpack.c.b16 %v4797, %v4796
        %v4949 = vpack.c.b16 %v4799, %v4798
        %v4950 = vpack.c.b16 %v4801, %v4800
        %v4951 = vpack.c.b16 %v4803, %v4802
        %v4952 = vpack.c.b16 %v4805, %v4804
        %v4953 = vpack.c.b16 %v4807, %v4806
        %v4954 = vpack.c.b16 %v4809, %v4808
        %v4955 = vpack.c.b16 %v4811, %v4810
        %v4956 = vpack.c.b16 %v4813, %v4812
        %v4957 = vpack.c.b16 %v4815, %v4814
        %v4958 = vpack.c.b16 %v4817, %v4816
        %v4959 = vpack.c.b16 %v4819, %v4818
        %v4960 = vpack.c.b16 %v4821, %v4820
        %v4961 = vpack.c.b16 %v4823, %v4822
        %v4962 = vpack.c.b16 %v4825, %v4824
        %v4963 = vpack.c.b16 %v4827, %v4826
        %v4964 = vpack.c.b16 %v4829, %v4828
        %v4965 = vpack.c.b16 %v4831, %v4830
        %v4966 = vpack.c.b16 %v4833, %v4832
        %v4967 = vpack.c.b16 %v4835, %v4834
        %v4968 = vpack.c.b16 %v4837, %v4836
        %v4969 = vpack.c.b16 %v4839, %v4838
        %v4970 = vpack.c.b16 %v4841, %v4840
        %v4971 = vpack.c.b16 %v4843, %v4842
        %v4972 = vpack.c.b16 %v4845, %v4844
        %v4973 = vpack.c.b16 %v4847, %v4846
        %v4974 = vpack.c.b16 %v4849, %v4848
        %v4975 = vpack.c.b16 %v4851, %v4850
        %v4976 = vpack.c.b16 %v4853, %v4852
        %v4977 = vpack.c.b16 %v4855, %v4854
        %v4978 = vpack.c.b16 %v4857, %v4856
        %v4979 = vpack.c.b16 %v4859, %v4858
        %v4980 = vpack.c.b16 %v4861, %v4860
        %v4981 = vpack.c.b16 %v4863, %v4862
        %v4982 = vpack.c.b16 %v4865, %v4864
        %v4983 = vpack.c.b16 %v4867, %v4866
        %v4984 = vpack.c.b16 %v4869, %v4868
        %v4985 = vpack.c.b16 %v4871, %v4870
        %v4986 = vpack.c.b16 %v4873, %v4872
        %v4987 = vpack.c.b16 %v4875, %v4874
        %v4988 = vpack.c.b16 %v4877, %v4876
        %v4989 = vpack.c.b16 %v4879, %v4878
        %v4990 = vpack.c.b16 %v4881, %v4880
        %v4991 = vpack.c.b16 %v4883, %v4882
        %v4992 = vpack.c.b16 %v4885, %v4884
        %v4993 = vpack.c.b16 %v4887, %v4886
        %v4994 = vpack.c.b16 %v4889, %v4888
        %v4995 = vpack.c.b16 %v4891, %v4890
        %v4996 = vpack.c.b16 %v4893, %v4892
        %v4997 = vpack.c.b16 %v4895, %v4894
        %v4998 = vpack.c.b16 %v4897, %v4896
        %v4999 = vpack.c.b16 %v4899, %v4898
        %v5000 = vpack.c.b16 %v4901, %v4900
        %v5001 = vpack.c.b16 %v4903, %v4902
        %v5002 = vpack.c.b16 %v4905, %v4904
        %v5003 = vpack.c.b16 %v4907, %v4906
        %5100 = vmatprep.subr.bf16.mxu0 0
        %5101 = vmatpush1.bf16.msra.mxu0 %v4915
        %5102 = vmatprep.subr.bf16.mxu0 0
        %5103 = vmatpush1.bf16.msra.mxu0 %v4914
        %5104 = vmatprep.subr.bf16.mxu0 0
        %5105 = vmatpush1.bf16.msra.mxu0 %v4913
        %5106 = vmatprep.subr.bf16.mxu0 0
        %5107 = vmatpush1.bf16.msra.mxu0 %v4912
        %5108 = vmatprep.subr.bf16.mxu0 0
        %5109 = vmatpush1.bf16.msra.mxu0 %v4911
        %5110 = vmatprep.subr.bf16.mxu0 0
        %5111 = vmatpush1.bf16.msra.mxu0 %v4910
        %5112 = vmatprep.subr.bf16.mxu0 0
        %5113 = vmatpush1.bf16.msra.mxu0 %v4909
        %5114 = vmatprep.subr.bf16.mxu0 0
        %5115 = vmatpush1.bf16.msra.mxu0 %v4908
        %5116 = vmatprep.subr.bf16.mxu0 0
        %5117 = vmatpush2.bf16.msra.mxu0 %v4923
        %5118 = vmatprep.subr.bf16.mxu0 0
        %5119 = vmatpush2.bf16.msra.mxu0 %v4922
        %5120 = vmatprep.subr.bf16.mxu0 0
        %5121 = vmatpush2.bf16.msra.mxu0 %v4921
        %5122 = vmatprep.subr.bf16.mxu0 0
        %5123 = vmatpush2.bf16.msra.mxu0 %v4920
        %5124 = vmatprep.subr.bf16.mxu0 0
        %5125 = vmatpush2.bf16.msra.mxu0 %v4919
        %5126 = vmatprep.subr.bf16.mxu0 0
        %5127 = vmatpush2.bf16.msra.mxu0 %v4918
        %5128 = vmatprep.subr.bf16.mxu0 0
        %5129 = vmatpush2.bf16.msra.mxu0 %v4917
        %5130 = vmatprep.subr.bf16.mxu0 0
        %5131 = vmatpush2.bf16.msra.mxu0 %v4916
        %5132 = vmatprep.mubr.bf16.mxu0 %v4045
        %5133 = vmatmul.mubr.bf16.gmra.mxu0 %v4044
        %v5134 = vpop.f32.mrf.mxu0
        %v5135 = vadd.f32 0.0, %v5134
        %v5136 = vpop.f32.mrf.mxu0
        %v5137 = vpop.f32.mrf.mxu0
        %v5138 = vadd.f32 0.0, %v5137
        %v5139 = vpop.f32.mrf.mxu0
        %5140 = vmatprep.mubr.bf16.mxu0 %v4057
        %5141 = vmatmul.mubr.bf16.gmra.mxu0 %v4056
        %v5142 = vpop.f32.mrf.mxu0
        %v5143 = vadd.f32 0.0, %v5142
        %v5144 = vpop.f32.mrf.mxu0
        %v5145 = vpop.f32.mrf.mxu0
        %v5146 = vadd.f32 0.0, %v5145
        %v5147 = vpop.f32.mrf.mxu0
        %5148 = vmatprep.mubr.bf16.mxu0 %v4069
        %5149 = vmatmul.mubr.bf16.gmra.mxu0 %v4068
        %v5150 = vpop.f32.mrf.mxu0
        %v5151 = vadd.f32 0.0, %v5150
        %v5152 = vpop.f32.mrf.mxu0
        %v5153 = vpop.f32.mrf.mxu0
        %v5154 = vadd.f32 0.0, %v5153
        %v5155 = vpop.f32.mrf.mxu0
        %5156 = vmatprep.mubr.bf16.mxu0 %v4081
        %5157 = vmatmul.mubr.bf16.gmra.mxu0 %v4080
        %v5158 = vpop.f32.mrf.mxu0
        %v5159 = vadd.f32 0.0, %v5158
        %v5160 = vpop.f32.mrf.mxu0
        %v5161 = vpop.f32.mrf.mxu0
        %v5162 = vadd.f32 0.0, %v5161
        %v5163 = vpop.f32.mrf.mxu0
        %5164 = vmatprep.mubr.bf16.mxu0 %v4093
        %5165 = vmatmul.mubr.bf16.gmra.mxu0 %v4092
        %v5166 = vpop.f32.mrf.mxu0
        %v5167 = vadd.f32 0.0, %v5166
        %v5168 = vpop.f32.mrf.mxu0
        %v5169 = vpop.f32.mrf.mxu0
        %v5170 = vadd.f32 0.0, %v5169
        %v5171 = vpop.f32.mrf.mxu0
        %5172 = vmatprep.mubr.bf16.mxu0 %v4105
        %5173 = vmatmul.mubr.bf16.gmra.mxu0 %v4104
        %v5174 = vpop.f32.mrf.mxu0
        %v5175 = vadd.f32 0.0, %v5174
        %v5176 = vpop.f32.mrf.mxu0
        %v5177 = vpop.f32.mrf.mxu0
        %v5178 = vadd.f32 0.0, %v5177
        %v5179 = vpop.f32.mrf.mxu0
        %5180 = vmatprep.mubr.bf16.mxu0 %v4117
        %5181 = vmatmul.mubr.bf16.gmra.mxu0 %v4116
        %v5182 = vpop.f32.mrf.mxu0
        %v5183 = vadd.f32 0.0, %v5182
        %v5184 = vpop.f32.mrf.mxu0
        %v5185 = vpop.f32.mrf.mxu0
        %v5186 = vpop.f32.mrf.mxu0
        %5187 = vdwg.mxu0
        %5188 = vmatprep.subr.bf16.mxu0 0
        %5189 = vmatpush1.bf16.msra.mxu0 %v4931
        %5190 = vmatprep.subr.bf16.mxu0 0
        %5191 = vmatpush1.bf16.msra.mxu0 %v4930
        %5192 = vmatprep.subr.bf16.mxu0 0
        %5193 = vmatpush1.bf16.msra.mxu0 %v4929
        %5194 = vmatprep.subr.bf16.mxu0 0
        %5195 = vmatpush1.bf16.msra.mxu0 %v4928
        %5196 = vmatprep.subr.bf16.mxu0 0
        %5197 = vmatpush1.bf16.msra.mxu0 %v4927
        %5198 = vmatprep.subr.bf16.mxu0 0
        %5199 = vmatpush1.bf16.msra.mxu0 %v4926
        %5200 = vmatprep.subr.bf16.mxu0 0
        %5201 = vmatpush1.bf16.msra.mxu0 %v4925
        %5202 = vmatprep.subr.bf16.mxu0 0
        %5203 = vmatpush1.bf16.msra.mxu0 %v4924
        %5204 = vmatprep.subr.bf16.mxu0 0
        %5205 = vmatpush2.bf16.msra.mxu0 %v4939
        %5206 = vmatprep.subr.bf16.mxu0 0
        %5207 = vmatpush2.bf16.msra.mxu0 %v4938
        %5208 = vmatprep.subr.bf16.mxu0 0
        %5209 = vmatpush2.bf16.msra.mxu0 %v4937
        %5210 = vmatprep.subr.bf16.mxu0 0
        %5211 = vmatpush2.bf16.msra.mxu0 %v4936
        %5212 = vmatprep.subr.bf16.mxu0 0
        %5213 = vmatpush2.bf16.msra.mxu0 %v4935
        %5214 = vmatprep.subr.bf16.mxu0 0
        %5215 = vmatpush2.bf16.msra.mxu0 %v4934
        %5216 = vmatprep.subr.bf16.mxu0 0
        %5217 = vmatpush2.bf16.msra.mxu0 %v4933
        %5218 = vmatprep.subr.bf16.mxu0 0
        %5219 = vmatpush2.bf16.msra.mxu0 %v4932
        %5220 = vmatprep.mubr.bf16.mxu0 %v4047
        %5221 = vmatmul.mubr.bf16.gmra.mxu0 %v4046
        %v5222 = vpop.f32.mrf.mxu0
        %v5223 = vadd.f32 %v5135, %v5222
        %v5224 = vpop.f32.mrf.mxu0
        %v5225 = vpop.f32.mrf.mxu0
        %v5226 = vadd.f32 %v5138, %v5225
        %v5227 = vpop.f32.mrf.mxu0
        %5228 = vmatprep.mubr.bf16.mxu0 %v4059
        %5229 = vmatmul.mubr.bf16.gmra.mxu0 %v4058
        %v5230 = vpop.f32.mrf.mxu0
        %v5231 = vadd.f32 %v5143, %v5230
        %v5232 = vpop.f32.mrf.mxu0
        %v5233 = vpop.f32.mrf.mxu0
        %v5234 = vadd.f32 %v5146, %v5233
        %v5235 = vpop.f32.mrf.mxu0
        %5236 = vmatprep.mubr.bf16.mxu0 %v4071
        %5237 = vmatmul.mubr.bf16.gmra.mxu0 %v4070
        %v5238 = vpop.f32.mrf.mxu0
        %v5239 = vadd.f32 %v5151, %v5238
        %v5240 = vpop.f32.mrf.mxu0
        %v5241 = vpop.f32.mrf.mxu0
        %v5242 = vadd.f32 %v5154, %v5241
        %v5243 = vpop.f32.mrf.mxu0
        %5244 = vmatprep.mubr.bf16.mxu0 %v4083
        %5245 = vmatmul.mubr.bf16.gmra.mxu0 %v4082
        %v5246 = vpop.f32.mrf.mxu0
        %v5247 = vadd.f32 %v5159, %v5246
        %v5248 = vpop.f32.mrf.mxu0
        %v5249 = vpop.f32.mrf.mxu0
        %v5250 = vadd.f32 %v5162, %v5249
        %v5251 = vpop.f32.mrf.mxu0
        %5252 = vmatprep.mubr.bf16.mxu0 %v4095
        %5253 = vmatmul.mubr.bf16.gmra.mxu0 %v4094
        %v5254 = vpop.f32.mrf.mxu0
        %v5255 = vadd.f32 %v5167, %v5254
        %v5256 = vpop.f32.mrf.mxu0
        %v5257 = vpop.f32.mrf.mxu0
        %v5258 = vadd.f32 %v5170, %v5257
        %v5259 = vpop.f32.mrf.mxu0
        %5260 = vmatprep.mubr.bf16.mxu0 %v4107
        %5261 = vmatmul.mubr.bf16.gmra.mxu0 %v4106
        %v5262 = vpop.f32.mrf.mxu0
        %v5263 = vadd.f32 %v5175, %v5262
        %v5264 = vpop.f32.mrf.mxu0
        %v5265 = vpop.f32.mrf.mxu0
        %v5266 = vadd.f32 %v5178, %v5265
        %v5267 = vpop.f32.mrf.mxu0
        %5268 = vmatprep.mubr.bf16.mxu0 %v4119
        %5269 = vmatmul.mubr.bf16.gmra.mxu0 %v4118
        %v5270 = vpop.f32.mrf.mxu0
        %v5271 = vadd.f32 %v5183, %v5270
        %v5272 = vpop.f32.mrf.mxu0
        %v5273 = vpop.f32.mrf.mxu0
        %v5274 = vpop.f32.mrf.mxu0
        %5275 = vdwg.mxu0
        %5276 = vmatprep.subr.bf16.mxu0 0
        %5277 = vmatpush1.bf16.msra.mxu0 %v4947
        %5278 = vmatprep.subr.bf16.mxu0 0
        %5279 = vmatpush1.bf16.msra.mxu0 %v4946
        %5280 = vmatprep.subr.bf16.mxu0 0
        %5281 = vmatpush1.bf16.msra.mxu0 %v4945
        %5282 = vmatprep.subr.bf16.mxu0 0
        %5283 = vmatpush1.bf16.msra.mxu0 %v4944
        %5284 = vmatprep.subr.bf16.mxu0 0
        %5285 = vmatpush1.bf16.msra.mxu0 %v4943
        %5286 = vmatprep.subr.bf16.mxu0 0
        %5287 = vmatpush1.bf16.msra.mxu0 %v4942
        %5288 = vmatprep.subr.bf16.mxu0 0
        %5289 = vmatpush1.bf16.msra.mxu0 %v4941
        %5290 = vmatprep.subr.bf16.mxu0 0
        %5291 = vmatpush1.bf16.msra.mxu0 %v4940
        %5292 = vmatprep.subr.bf16.mxu0 0
        %5293 = vmatpush2.bf16.msra.mxu0 %v4955
        %5294 = vmatprep.subr.bf16.mxu0 0
        %5295 = vmatpush2.bf16.msra.mxu0 %v4954
        %5296 = vmatprep.subr.bf16.mxu0 0
        %5297 = vmatpush2.bf16.msra.mxu0 %v4953
        %5298 = vmatprep.subr.bf16.mxu0 0
        %5299 = vmatpush2.bf16.msra.mxu0 %v4952
        %5300 = vmatprep.subr.bf16.mxu0 0
        %5301 = vmatpush2.bf16.msra.mxu0 %v4951
        %5302 = vmatprep.subr.bf16.mxu0 0
        %5303 = vmatpush2.bf16.msra.mxu0 %v4950
        %5304 = vmatprep.subr.bf16.mxu0 0
        %5305 = vmatpush2.bf16.msra.mxu0 %v4949
        %5306 = vmatprep.subr.bf16.mxu0 0
        %5307 = vmatpush2.bf16.msra.mxu0 %v4948
        %5308 = vmatprep.mubr.bf16.mxu0 %v4049
        %5309 = vmatmul.mubr.bf16.gmra.mxu0 %v4048
        %v5310 = vpop.f32.mrf.mxu0
        %v5311 = vadd.f32 %v5223, %v5310
        %v5312 = vpop.f32.mrf.mxu0
        %v5313 = vpop.f32.mrf.mxu0
        %v5314 = vadd.f32 %v5226, %v5313
        %v5315 = vpop.f32.mrf.mxu0
        %5316 = vmatprep.mubr.bf16.mxu0 %v4061
        %5317 = vmatmul.mubr.bf16.gmra.mxu0 %v4060
        %v5318 = vpop.f32.mrf.mxu0
        %v5319 = vadd.f32 %v5231, %v5318
        %v5320 = vpop.f32.mrf.mxu0
        %v5321 = vpop.f32.mrf.mxu0
        %v5322 = vadd.f32 %v5234, %v5321
        %v5323 = vpop.f32.mrf.mxu0
        %5324 = vmatprep.mubr.bf16.mxu0 %v4073
        %5325 = vmatmul.mubr.bf16.gmra.mxu0 %v4072
        %v5326 = vpop.f32.mrf.mxu0
        %v5327 = vadd.f32 %v5239, %v5326
        %v5328 = vpop.f32.mrf.mxu0
        %v5329 = vpop.f32.mrf.mxu0
        %v5330 = vadd.f32 %v5242, %v5329
        %v5331 = vpop.f32.mrf.mxu0
        %5332 = vmatprep.mubr.bf16.mxu0 %v4085
        %5333 = vmatmul.mubr.bf16.gmra.mxu0 %v4084
        %v5334 = vpop.f32.mrf.mxu0
        %v5335 = vadd.f32 %v5247, %v5334
        %v5336 = vpop.f32.mrf.mxu0
        %v5337 = vpop.f32.mrf.mxu0
        %v5338 = vadd.f32 %v5250, %v5337
        %v5339 = vpop.f32.mrf.mxu0
        %5340 = vmatprep.mubr.bf16.mxu0 %v4097
        %5341 = vmatmul.mubr.bf16.gmra.mxu0 %v4096
        %v5342 = vpop.f32.mrf.mxu0
        %v5343 = vadd.f32 %v5255, %v5342
        %v5344 = vpop.f32.mrf.mxu0
        %v5345 = vpop.f32.mrf.mxu0
        %v5346 = vadd.f32 %v5258, %v5345
        %v5347 = vpop.f32.mrf.mxu0
        %5348 = vmatprep.mubr.bf16.mxu0 %v4109
        %5349 = vmatmul.mubr.bf16.gmra.mxu0 %v4108
        %v5350 = vpop.f32.mrf.mxu0
        %v5351 = vadd.f32 %v5263, %v5350
        %v5352 = vpop.f32.mrf.mxu0
        %v5353 = vpop.f32.mrf.mxu0
        %v5354 = vadd.f32 %v5266, %v5353
        %v5355 = vpop.f32.mrf.mxu0
        %5356 = vmatprep.mubr.bf16.mxu0 %v4121
        %5357 = vmatmul.mubr.bf16.gmra.mxu0 %v4120
        %v5358 = vpop.f32.mrf.mxu0
        %v5359 = vadd.f32 %v5271, %v5358
        %v5360 = vpop.f32.mrf.mxu0
        %v5361 = vpop.f32.mrf.mxu0
        %v5362 = vpop.f32.mrf.mxu0
        %5363 = vdwg.mxu0
        %5364 = vmatprep.subr.bf16.mxu0 0
        %5365 = vmatpush1.bf16.msra.mxu0 %v4963
        %5366 = vmatprep.subr.bf16.mxu0 0
        %5367 = vmatpush1.bf16.msra.mxu0 %v4962
        %5368 = vmatprep.subr.bf16.mxu0 0
        %5369 = vmatpush1.bf16.msra.mxu0 %v4961
        %5370 = vmatprep.subr.bf16.mxu0 0
        %5371 = vmatpush1.bf16.msra.mxu0 %v4960
        %5372 = vmatprep.subr.bf16.mxu0 0
        %5373 = vmatpush1.bf16.msra.mxu0 %v4959
        %5374 = vmatprep.subr.bf16.mxu0 0
        %5375 = vmatpush1.bf16.msra.mxu0 %v4958
        %5376 = vmatprep.subr.bf16.mxu0 0
        %5377 = vmatpush1.bf16.msra.mxu0 %v4957
        %5378 = vmatprep.subr.bf16.mxu0 0
        %5379 = vmatpush1.bf16.msra.mxu0 %v4956
        %5380 = vmatprep.subr.bf16.mxu0 0
        %5381 = vmatpush2.bf16.msra.mxu0 %v4971
        %5382 = vmatprep.subr.bf16.mxu0 0
        %5383 = vmatpush2.bf16.msra.mxu0 %v4970
        %5384 = vmatprep.subr.bf16.mxu0 0
        %5385 = vmatpush2.bf16.msra.mxu0 %v4969
        %5386 = vmatprep.subr.bf16.mxu0 0
        %5387 = vmatpush2.bf16.msra.mxu0 %v4968
        %5388 = vmatprep.subr.bf16.mxu0 0
        %5389 = vmatpush2.bf16.msra.mxu0 %v4967
        %5390 = vmatprep.subr.bf16.mxu0 0
        %5391 = vmatpush2.bf16.msra.mxu0 %v4966
        %5392 = vmatprep.subr.bf16.mxu0 0
        %5393 = vmatpush2.bf16.msra.mxu0 %v4965
        %5394 = vmatprep.subr.bf16.mxu0 0
        %5395 = vmatpush2.bf16.msra.mxu0 %v4964
        %5396 = vmatprep.mubr.bf16.mxu0 %v4051
        %5397 = vmatmul.mubr.bf16.gmra.mxu0 %v4050
        %v5398 = vpop.f32.mrf.mxu0
        %v5399 = vadd.f32 %v5311, %v5398
        %v5400 = vpop.f32.mrf.mxu0
        %v5401 = vpop.f32.mrf.mxu0
        %v5402 = vadd.f32 %v5314, %v5401
        %v5403 = vpop.f32.mrf.mxu0
        %5404 = vmatprep.mubr.bf16.mxu0 %v4063
        %5405 = vmatmul.mubr.bf16.gmra.mxu0 %v4062
        %v5406 = vpop.f32.mrf.mxu0
        %v5407 = vadd.f32 %v5319, %v5406
        %v5408 = vpop.f32.mrf.mxu0
        %v5409 = vpop.f32.mrf.mxu0
        %v5410 = vadd.f32 %v5322, %v5409
        %v5411 = vpop.f32.mrf.mxu0
        %5412 = vmatprep.mubr.bf16.mxu0 %v4075
        %5413 = vmatmul.mubr.bf16.gmra.mxu0 %v4074
        %v5414 = vpop.f32.mrf.mxu0
        %v5415 = vadd.f32 %v5327, %v5414
        %v5416 = vpop.f32.mrf.mxu0
        %v5417 = vpop.f32.mrf.mxu0
        %v5418 = vadd.f32 %v5330, %v5417
        %v5419 = vpop.f32.mrf.mxu0
        %5420 = vmatprep.mubr.bf16.mxu0 %v4087
        %5421 = vmatmul.mubr.bf16.gmra.mxu0 %v4086
        %v5422 = vpop.f32.mrf.mxu0
        %v5423 = vadd.f32 %v5335, %v5422
        %v5424 = vpop.f32.mrf.mxu0
        %v5425 = vpop.f32.mrf.mxu0
        %v5426 = vadd.f32 %v5338, %v5425
        %v5427 = vpop.f32.mrf.mxu0
        %5428 = vmatprep.mubr.bf16.mxu0 %v4099
        %5429 = vmatmul.mubr.bf16.gmra.mxu0 %v4098
        %v5430 = vpop.f32.mrf.mxu0
        %v5431 = vadd.f32 %v5343, %v5430
        %v5432 = vpop.f32.mrf.mxu0
        %v5433 = vpop.f32.mrf.mxu0
        %v5434 = vadd.f32 %v5346, %v5433
        %v5435 = vpop.f32.mrf.mxu0
        %5436 = vmatprep.mubr.bf16.mxu0 %v4111
        %5437 = vmatmul.mubr.bf16.gmra.mxu0 %v4110
        %v5438 = vpop.f32.mrf.mxu0
        %v5439 = vadd.f32 %v5351, %v5438
        %v5440 = vpop.f32.mrf.mxu0
        %v5441 = vpop.f32.mrf.mxu0
        %v5442 = vadd.f32 %v5354, %v5441
        %v5443 = vpop.f32.mrf.mxu0
        %5444 = vmatprep.mubr.bf16.mxu0 %v4123
        %5445 = vmatmul.mubr.bf16.gmra.mxu0 %v4122
        %v5446 = vpop.f32.mrf.mxu0
        %v5447 = vadd.f32 %v5359, %v5446
        %v5448 = vpop.f32.mrf.mxu0
        %v5449 = vpop.f32.mrf.mxu0
        %v5450 = vpop.f32.mrf.mxu0
        %5451 = vdwg.mxu0
        %5452 = vmatprep.subr.bf16.mxu0 0
        %5453 = vmatpush1.bf16.msra.mxu0 %v4979
        %5454 = vmatprep.subr.bf16.mxu0 0
        %5455 = vmatpush1.bf16.msra.mxu0 %v4978
        %5456 = vmatprep.subr.bf16.mxu0 0
        %5457 = vmatpush1.bf16.msra.mxu0 %v4977
        %5458 = vmatprep.subr.bf16.mxu0 0
        %5459 = vmatpush1.bf16.msra.mxu0 %v4976
        %5460 = vmatprep.subr.bf16.mxu0 0
        %5461 = vmatpush1.bf16.msra.mxu0 %v4975
        %5462 = vmatprep.subr.bf16.mxu0 0
        %5463 = vmatpush1.bf16.msra.mxu0 %v4974
        %5464 = vmatprep.subr.bf16.mxu0 0
        %5465 = vmatpush1.bf16.msra.mxu0 %v4973
        %5466 = vmatprep.subr.bf16.mxu0 0
        %5467 = vmatpush1.bf16.msra.mxu0 %v4972
        %5468 = vmatprep.subr.bf16.mxu0 0
        %5469 = vmatpush2.bf16.msra.mxu0 %v4987
        %5470 = vmatprep.subr.bf16.mxu0 0
        %5471 = vmatpush2.bf16.msra.mxu0 %v4986
        %5472 = vmatprep.subr.bf16.mxu0 0
        %5473 = vmatpush2.bf16.msra.mxu0 %v4985
        %5474 = vmatprep.subr.bf16.mxu0 0
        %5475 = vmatpush2.bf16.msra.mxu0 %v4984
        %5476 = vmatprep.subr.bf16.mxu0 0
        %5477 = vmatpush2.bf16.msra.mxu0 %v4983
        %5478 = vmatprep.subr.bf16.mxu0 0
        %5479 = vmatpush2.bf16.msra.mxu0 %v4982
        %5480 = vmatprep.subr.bf16.mxu0 0
        %5481 = vmatpush2.bf16.msra.mxu0 %v4981
        %5482 = vmatprep.subr.bf16.mxu0 0
        %5483 = vmatpush2.bf16.msra.mxu0 %v4980
        %5484 = vmatprep.mubr.bf16.mxu0 %v4053
        %5485 = vmatmul.mubr.bf16.gmra.mxu0 %v4052
        %v5486 = vpop.f32.mrf.mxu0
        %v5487 = vadd.f32 %v5399, %v5486
        %v5488 = vpop.f32.mrf.mxu0
        %v5489 = vpop.f32.mrf.mxu0
        %v5490 = vadd.f32 %v5402, %v5489
        %v5491 = vpop.f32.mrf.mxu0
        %5492 = vmatprep.mubr.bf16.mxu0 %v4065
        %5493 = vmatmul.mubr.bf16.gmra.mxu0 %v4064
        %v5494 = vpop.f32.mrf.mxu0
        %v5495 = vadd.f32 %v5407, %v5494
        %v5496 = vpop.f32.mrf.mxu0
        %v5497 = vpop.f32.mrf.mxu0
        %v5498 = vadd.f32 %v5410, %v5497
        %v5499 = vpop.f32.mrf.mxu0
        %5500 = vmatprep.mubr.bf16.mxu0 %v4077
        %5501 = vmatmul.mubr.bf16.gmra.mxu0 %v4076
        %v5502 = vpop.f32.mrf.mxu0
        %v5503 = vadd.f32 %v5415, %v5502
        %v5504 = vpop.f32.mrf.mxu0
        %v5505 = vpop.f32.mrf.mxu0
        %v5506 = vadd.f32 %v5418, %v5505
        %v5507 = vpop.f32.mrf.mxu0
        %5508 = vmatprep.mubr.bf16.mxu0 %v4089
        %5509 = vmatmul.mubr.bf16.gmra.mxu0 %v4088
        %v5510 = vpop.f32.mrf.mxu0
        %v5511 = vadd.f32 %v5423, %v5510
        %v5512 = vpop.f32.mrf.mxu0
        %v5513 = vpop.f32.mrf.mxu0
        %v5514 = vadd.f32 %v5426, %v5513
        %v5515 = vpop.f32.mrf.mxu0
        %5516 = vmatprep.mubr.bf16.mxu0 %v4101
        %5517 = vmatmul.mubr.bf16.gmra.mxu0 %v4100
        %v5518 = vpop.f32.mrf.mxu0
        %v5519 = vadd.f32 %v5431, %v5518
        %v5520 = vpop.f32.mrf.mxu0
        %v5521 = vpop.f32.mrf.mxu0
        %v5522 = vadd.f32 %v5434, %v5521
        %v5523 = vpop.f32.mrf.mxu0
        %5524 = vmatprep.mubr.bf16.mxu0 %v4113
        %5525 = vmatmul.mubr.bf16.gmra.mxu0 %v4112
        %v5526 = vpop.f32.mrf.mxu0
        %v5527 = vadd.f32 %v5439, %v5526
        %v5528 = vpop.f32.mrf.mxu0
        %v5529 = vpop.f32.mrf.mxu0
        %v5530 = vadd.f32 %v5442, %v5529
        %v5531 = vpop.f32.mrf.mxu0
        %5532 = vmatprep.mubr.bf16.mxu0 %v4125
        %5533 = vmatmul.mubr.bf16.gmra.mxu0 %v4124
        %v5534 = vpop.f32.mrf.mxu0
        %v5535 = vadd.f32 %v5447, %v5534
        %v5536 = vpop.f32.mrf.mxu0
        %v5537 = vpop.f32.mrf.mxu0
        %v5538 = vpop.f32.mrf.mxu0
        %5539 = vdwg.mxu0
        %5540 = vmatprep.subr.bf16.mxu0 0
        %5541 = vmatpush1.bf16.msra.mxu0 %v4995
        %5542 = vmatprep.subr.bf16.mxu0 0
        %5543 = vmatpush1.bf16.msra.mxu0 %v4994
        %5544 = vmatprep.subr.bf16.mxu0 0
        %5545 = vmatpush1.bf16.msra.mxu0 %v4993
        %5546 = vmatprep.subr.bf16.mxu0 0
        %5547 = vmatpush1.bf16.msra.mxu0 %v4992
        %5548 = vmatprep.subr.bf16.mxu0 0
        %5549 = vmatpush1.bf16.msra.mxu0 %v4991
        %5550 = vmatprep.subr.bf16.mxu0 0
        %5551 = vmatpush1.bf16.msra.mxu0 %v4990
        %5552 = vmatprep.subr.bf16.mxu0 0
        %5553 = vmatpush1.bf16.msra.mxu0 %v4989
        %5554 = vmatprep.subr.bf16.mxu0 0
        %5555 = vmatpush1.bf16.msra.mxu0 %v4988
        %5556 = vmatprep.subr.bf16.mxu0 0
        %5557 = vmatpush2.bf16.msra.mxu0 %v5003
        %5558 = vmatprep.subr.bf16.mxu0 0
        %5559 = vmatpush2.bf16.msra.mxu0 %v5002
        %5560 = vmatprep.subr.bf16.mxu0 0
        %5561 = vmatpush2.bf16.msra.mxu0 %v5001
        %5562 = vmatprep.subr.bf16.mxu0 0
        %5563 = vmatpush2.bf16.msra.mxu0 %v5000
        %5564 = vmatprep.subr.bf16.mxu0 0
        %5565 = vmatpush2.bf16.msra.mxu0 %v4999
        %5566 = vmatprep.subr.bf16.mxu0 0
        %5567 = vmatpush2.bf16.msra.mxu0 %v4998
        %5568 = vmatprep.subr.bf16.mxu0 0
        %5569 = vmatpush2.bf16.msra.mxu0 %v4997
        %5570 = vmatprep.subr.bf16.mxu0 0
        %5571 = vmatpush2.bf16.msra.mxu0 %v4996
        %5572 = vmatprep.mubr.bf16.mxu0 %v4055
        %5573 = vmatmul.mubr.bf16.gmra.mxu0 %v4054
        %v5574 = vpop.f32.mrf.mxu0
        %v5575 = vadd.f32 %v5487, %v5574
        %v5576 = vpop.f32.mrf.mxu0
        %v5577 = vpop.f32.mrf.mxu0
        %v5578 = vadd.f32 %v5490, %v5577
        %v5579 = vpop.f32.mrf.mxu0
        %5580 = vmatprep.mubr.bf16.mxu0 %v4067
        %5581 = vmatmul.mubr.bf16.gmra.mxu0 %v4066
        %v5582 = vpop.f32.mrf.mxu0
        %v5583 = vadd.f32 %v5495, %v5582
        %v5584 = vpop.f32.mrf.mxu0
        %v5585 = vpop.f32.mrf.mxu0
        %v5586 = vadd.f32 %v5498, %v5585
        %v5587 = vpop.f32.mrf.mxu0
        %5588 = vmatprep.mubr.bf16.mxu0 %v4079
        %5589 = vmatmul.mubr.bf16.gmra.mxu0 %v4078
        %v5590 = vpop.f32.mrf.mxu0
        %v5591 = vadd.f32 %v5503, %v5590
        %v5592 = vpop.f32.mrf.mxu0
        %v5593 = vpop.f32.mrf.mxu0
        %v5594 = vadd.f32 %v5506, %v5593
        %v5595 = vpop.f32.mrf.mxu0
        %5596 = vmatprep.mubr.bf16.mxu0 %v4091
        %5597 = vmatmul.mubr.bf16.gmra.mxu0 %v4090
        %v5598 = vpop.f32.mrf.mxu0
        %v5599 = vadd.f32 %v5511, %v5598
        %v5600 = vpop.f32.mrf.mxu0
        %v5601 = vpop.f32.mrf.mxu0
        %v5602 = vadd.f32 %v5514, %v5601
        %v5603 = vpop.f32.mrf.mxu0
        %5604 = vmatprep.mubr.bf16.mxu0 %v4103
        %5605 = vmatmul.mubr.bf16.gmra.mxu0 %v4102
        %v5606 = vpop.f32.mrf.mxu0
        %v5607 = vadd.f32 %v5519, %v5606
        %v5608 = vpop.f32.mrf.mxu0
        %v5609 = vpop.f32.mrf.mxu0
        %v5610 = vadd.f32 %v5522, %v5609
        %v5611 = vpop.f32.mrf.mxu0
        %5612 = vmatprep.mubr.bf16.mxu0 %v4115
        %5613 = vmatmul.mubr.bf16.gmra.mxu0 %v4114
        %v5614 = vpop.f32.mrf.mxu0
        %v5615 = vadd.f32 %v5527, %v5614
        %v5616 = vpop.f32.mrf.mxu0
        %v5617 = vpop.f32.mrf.mxu0
        %v5618 = vadd.f32 %v5530, %v5617
        %v5619 = vpop.f32.mrf.mxu0
        %5620 = vmatprep.mubr.bf16.mxu0 %v4127
        %5621 = vmatmul.mubr.bf16.gmra.mxu0 %v4126
        %v5622 = vpop.f32.mrf.mxu0
        %v5623 = vadd.f32 %v5535, %v5622
        %v5624 = vpop.f32.mrf.mxu0
        %v5625 = vpop.f32.mrf.mxu0
        %v5626 = vpop.f32.mrf.mxu0
        %5627 = vdwg.mxu0
        %5628 = vmatprep.subr.bf16.mxu0 0
        %5629 = vmatpush1.bf16.msra.mxu0 %v4915
        %5630 = vmatprep.subr.bf16.mxu0 0
        %5631 = vmatpush1.bf16.msra.mxu0 %v4914
        %5632 = vmatprep.subr.bf16.mxu0 0
        %5633 = vmatpush1.bf16.msra.mxu0 %v4913
        %5634 = vmatprep.subr.bf16.mxu0 0
        %5635 = vmatpush1.bf16.msra.mxu0 %v4912
        %5636 = vmatprep.subr.bf16.mxu0 0
        %5637 = vmatpush1.bf16.msra.mxu0 %v4911
        %5638 = vmatprep.subr.bf16.mxu0 0
        %5639 = vmatpush1.bf16.msra.mxu0 %v4910
        %5640 = vmatprep.subr.bf16.mxu0 0
        %5641 = vmatpush1.bf16.msra.mxu0 %v4909
        %5642 = vmatprep.subr.bf16.mxu0 0
        %5643 = vmatpush1.bf16.msra.mxu0 %v4908
        %5644 = vmatprep.subr.bf16.mxu0 0
        %5645 = vmatpush2.bf16.msra.mxu0 %v4923
        %5646 = vmatprep.subr.bf16.mxu0 0
        %5647 = vmatpush2.bf16.msra.mxu0 %v4922
        %5648 = vmatprep.subr.bf16.mxu0 0
        %5649 = vmatpush2.bf16.msra.mxu0 %v4921
        %5650 = vmatprep.subr.bf16.mxu0 0
        %5651 = vmatpush2.bf16.msra.mxu0 %v4920
        %5652 = vmatprep.subr.bf16.mxu0 0
        %5653 = vmatpush2.bf16.msra.mxu0 %v4919
        %5654 = vmatprep.subr.bf16.mxu0 0
        %5655 = vmatpush2.bf16.msra.mxu0 %v4918
        %5656 = vmatprep.subr.bf16.mxu0 0
        %5657 = vmatpush2.bf16.msra.mxu0 %v4917
        %5658 = vmatprep.subr.bf16.mxu0 0
        %5659 = vmatpush2.bf16.msra.mxu0 %v4916
        %5660 = vmatprep.mubr.bf16.mxu0 %v3649
        %5661 = vmatmul.mubr.bf16.gmra.mxu0 %v3648
        %v5662 = vpop.f32.mrf.mxu0
        %v5663 = vadd.f32 %v5575, %v5662
        %v5664 = vpop.f32.mrf.mxu0
        %v5665 = vpop.f32.mrf.mxu0
        %v5666 = vadd.f32 %v5578, %v5665
        %v5667 = vpop.f32.mrf.mxu0
        %5668 = vmatprep.mubr.bf16.mxu0 %v3661
        %5669 = vmatmul.mubr.bf16.gmra.mxu0 %v3660
        %v5670 = vpop.f32.mrf.mxu0
        %v5671 = vadd.f32 %v5583, %v5670
        %v5672 = vpop.f32.mrf.mxu0
        %v5673 = vpop.f32.mrf.mxu0
        %v5674 = vadd.f32 %v5586, %v5673
        %v5675 = vpop.f32.mrf.mxu0
        %5676 = vmatprep.mubr.bf16.mxu0 %v3673
        %5677 = vmatmul.mubr.bf16.gmra.mxu0 %v3672
        %v5678 = vpop.f32.mrf.mxu0
        %v5679 = vadd.f32 %v5591, %v5678
        %v5680 = vpop.f32.mrf.mxu0
        %v5681 = vpop.f32.mrf.mxu0
        %v5682 = vadd.f32 %v5594, %v5681
        %v5683 = vpop.f32.mrf.mxu0
        %5684 = vmatprep.mubr.bf16.mxu0 %v3685
        %5685 = vmatmul.mubr.bf16.gmra.mxu0 %v3684
        %v5686 = vpop.f32.mrf.mxu0
        %v5687 = vadd.f32 %v5599, %v5686
        %v5688 = vpop.f32.mrf.mxu0
        %v5689 = vpop.f32.mrf.mxu0
        %v5690 = vadd.f32 %v5602, %v5689
        %v5691 = vpop.f32.mrf.mxu0
        %5692 = vmatprep.mubr.bf16.mxu0 %v3697
        %5693 = vmatmul.mubr.bf16.gmra.mxu0 %v3696
        %v5694 = vpop.f32.mrf.mxu0
        %v5695 = vadd.f32 %v5607, %v5694
        %v5696 = vpop.f32.mrf.mxu0
        %v5697 = vpop.f32.mrf.mxu0
        %v5698 = vadd.f32 %v5610, %v5697
        %v5699 = vpop.f32.mrf.mxu0
        %5700 = vmatprep.mubr.bf16.mxu0 %v3709
        %5701 = vmatmul.mubr.bf16.gmra.mxu0 %v3708
        %v5702 = vpop.f32.mrf.mxu0
        %v5703 = vadd.f32 %v5615, %v5702
        %v5704 = vpop.f32.mrf.mxu0
        %v5705 = vpop.f32.mrf.mxu0
        %v5706 = vadd.f32 %v5618, %v5705
        %v5707 = vpop.f32.mrf.mxu0
        %5708 = vmatprep.mubr.bf16.mxu0 %v3721
        %5709 = vmatmul.mubr.bf16.gmra.mxu0 %v3720
        %v5710 = vpop.f32.mrf.mxu0
        %v5711 = vadd.f32 %v5623, %v5710
        %v5712 = vpop.f32.mrf.mxu0
        %v5713 = vpop.f32.mrf.mxu0
        %v5714 = vpop.f32.mrf.mxu0
        %5715 = vdwg.mxu0
        %5716 = vmatprep.subr.bf16.mxu0 0
        %5717 = vmatpush1.bf16.msra.mxu0 %v4931
        %5718 = vmatprep.subr.bf16.mxu0 0
        %5719 = vmatpush1.bf16.msra.mxu0 %v4930
        %5720 = vmatprep.subr.bf16.mxu0 0
        %5721 = vmatpush1.bf16.msra.mxu0 %v4929
        %5722 = vmatprep.subr.bf16.mxu0 0
        %5723 = vmatpush1.bf16.msra.mxu0 %v4928
        %5724 = vmatprep.subr.bf16.mxu0 0
        %5725 = vmatpush1.bf16.msra.mxu0 %v4927
        %5726 = vmatprep.subr.bf16.mxu0 0
        %5727 = vmatpush1.bf16.msra.mxu0 %v4926
        %5728 = vmatprep.subr.bf16.mxu0 0
        %5729 = vmatpush1.bf16.msra.mxu0 %v4925
        %5730 = vmatprep.subr.bf16.mxu0 0
        %5731 = vmatpush1.bf16.msra.mxu0 %v4924
        %5732 = vmatprep.subr.bf16.mxu0 0
        %5733 = vmatpush2.bf16.msra.mxu0 %v4939
        %5734 = vmatprep.subr.bf16.mxu0 0
        %5735 = vmatpush2.bf16.msra.mxu0 %v4938
        %5736 = vmatprep.subr.bf16.mxu0 0
        %5737 = vmatpush2.bf16.msra.mxu0 %v4937
        %5738 = vmatprep.subr.bf16.mxu0 0
        %5739 = vmatpush2.bf16.msra.mxu0 %v4936
        %5740 = vmatprep.subr.bf16.mxu0 0
        %5741 = vmatpush2.bf16.msra.mxu0 %v4935
        %5742 = vmatprep.subr.bf16.mxu0 0
        %5743 = vmatpush2.bf16.msra.mxu0 %v4934
        %5744 = vmatprep.subr.bf16.mxu0 0
        %5745 = vmatpush2.bf16.msra.mxu0 %v4933
        %5746 = vmatprep.subr.bf16.mxu0 0
        %5747 = vmatpush2.bf16.msra.mxu0 %v4932
        %5748 = vmatprep.mubr.bf16.mxu0 %v3651
        %5749 = vmatmul.mubr.bf16.gmra.mxu0 %v3650
        %v5750 = vpop.f32.mrf.mxu0
        %v5751 = vadd.f32 %v5663, %v5750
        %v5752 = vpop.f32.mrf.mxu0
        %v5753 = vpop.f32.mrf.mxu0
        %v5754 = vadd.f32 %v5666, %v5753
        %v5755 = vpop.f32.mrf.mxu0
        %5756 = vmatprep.mubr.bf16.mxu0 %v3663
        %5757 = vmatmul.mubr.bf16.gmra.mxu0 %v3662
        %v5758 = vpop.f32.mrf.mxu0
        %v5759 = vadd.f32 %v5671, %v5758
        %v5760 = vpop.f32.mrf.mxu0
        %v5761 = vpop.f32.mrf.mxu0
        %v5762 = vadd.f32 %v5674, %v5761
        %v5763 = vpop.f32.mrf.mxu0
        %5764 = vmatprep.mubr.bf16.mxu0 %v3675
        %5765 = vmatmul.mubr.bf16.gmra.mxu0 %v3674
        %v5766 = vpop.f32.mrf.mxu0
        %v5767 = vadd.f32 %v5679, %v5766
        %v5768 = vpop.f32.mrf.mxu0
        %v5769 = vpop.f32.mrf.mxu0
        %v5770 = vadd.f32 %v5682, %v5769
        %v5771 = vpop.f32.mrf.mxu0
        %5772 = vmatprep.mubr.bf16.mxu0 %v3687
        %5773 = vmatmul.mubr.bf16.gmra.mxu0 %v3686
        %v5774 = vpop.f32.mrf.mxu0
        %v5775 = vadd.f32 %v5687, %v5774
        %v5776 = vpop.f32.mrf.mxu0
        %v5777 = vpop.f32.mrf.mxu0
        %v5778 = vadd.f32 %v5690, %v5777
        %v5779 = vpop.f32.mrf.mxu0
        %5780 = vmatprep.mubr.bf16.mxu0 %v3699
        %5781 = vmatmul.mubr.bf16.gmra.mxu0 %v3698
        %v5782 = vpop.f32.mrf.mxu0
        %v5783 = vadd.f32 %v5695, %v5782
        %v5784 = vpop.f32.mrf.mxu0
        %v5785 = vpop.f32.mrf.mxu0
        %v5786 = vadd.f32 %v5698, %v5785
        %v5787 = vpop.f32.mrf.mxu0
        %5788 = vmatprep.mubr.bf16.mxu0 %v3711
        %5789 = vmatmul.mubr.bf16.gmra.mxu0 %v3710
        %v5790 = vpop.f32.mrf.mxu0
        %v5791 = vadd.f32 %v5703, %v5790
        %v5792 = vpop.f32.mrf.mxu0
        %v5793 = vpop.f32.mrf.mxu0
        %v5794 = vadd.f32 %v5706, %v5793
        %v5795 = vpop.f32.mrf.mxu0
        %5796 = vmatprep.mubr.bf16.mxu0 %v3723
        %5797 = vmatmul.mubr.bf16.gmra.mxu0 %v3722
        %v5798 = vpop.f32.mrf.mxu0
        %v5799 = vadd.f32 %v5711, %v5798
        %v5800 = vpop.f32.mrf.mxu0
        %v5801 = vpop.f32.mrf.mxu0
        %v5802 = vpop.f32.mrf.mxu0
        %5803 = vdwg.mxu0
        %5804 = vmatprep.subr.bf16.mxu0 0
        %5805 = vmatpush1.bf16.msra.mxu0 %v4947
        %5806 = vmatprep.subr.bf16.mxu0 0
        %5807 = vmatpush1.bf16.msra.mxu0 %v4946
        %5808 = vmatprep.subr.bf16.mxu0 0
        %5809 = vmatpush1.bf16.msra.mxu0 %v4945
        %5810 = vmatprep.subr.bf16.mxu0 0
        %5811 = vmatpush1.bf16.msra.mxu0 %v4944
        %5812 = vmatprep.subr.bf16.mxu0 0
        %5813 = vmatpush1.bf16.msra.mxu0 %v4943
        %5814 = vmatprep.subr.bf16.mxu0 0
        %5815 = vmatpush1.bf16.msra.mxu0 %v4942
        %5816 = vmatprep.subr.bf16.mxu0 0
        %5817 = vmatpush1.bf16.msra.mxu0 %v4941
        %5818 = vmatprep.subr.bf16.mxu0 0
        %5819 = vmatpush1.bf16.msra.mxu0 %v4940
        %5820 = vmatprep.subr.bf16.mxu0 0
        %5821 = vmatpush2.bf16.msra.mxu0 %v4955
        %5822 = vmatprep.subr.bf16.mxu0 0
        %5823 = vmatpush2.bf16.msra.mxu0 %v4954
        %5824 = vmatprep.subr.bf16.mxu0 0
        %5825 = vmatpush2.bf16.msra.mxu0 %v4953
        %5826 = vmatprep.subr.bf16.mxu0 0
        %5827 = vmatpush2.bf16.msra.mxu0 %v4952
        %5828 = vmatprep.subr.bf16.mxu0 0
        %5829 = vmatpush2.bf16.msra.mxu0 %v4951
        %5830 = vmatprep.subr.bf16.mxu0 0
        %5831 = vmatpush2.bf16.msra.mxu0 %v4950
        %5832 = vmatprep.subr.bf16.mxu0 0
        %5833 = vmatpush2.bf16.msra.mxu0 %v4949
        %5834 = vmatprep.subr.bf16.mxu0 0
        %5835 = vmatpush2.bf16.msra.mxu0 %v4948
        %5836 = vmatprep.mubr.bf16.mxu0 %v3653
        %5837 = vmatmul.mubr.bf16.gmra.mxu0 %v3652
        %v5838 = vpop.f32.mrf.mxu0
        %v5839 = vadd.f32 %v5751, %v5838
        %v5840 = vpop.f32.mrf.mxu0
        %v5841 = vpop.f32.mrf.mxu0
        %v5842 = vadd.f32 %v5754, %v5841
        %v5843 = vpop.f32.mrf.mxu0
        %5844 = vmatprep.mubr.bf16.mxu0 %v3665
        %5845 = vmatmul.mubr.bf16.gmra.mxu0 %v3664
        %v5846 = vpop.f32.mrf.mxu0
        %v5847 = vadd.f32 %v5759, %v5846
        %v5848 = vpop.f32.mrf.mxu0
        %v5849 = vpop.f32.mrf.mxu0
        %v5850 = vadd.f32 %v5762, %v5849
        %v5851 = vpop.f32.mrf.mxu0
        %5852 = vmatprep.mubr.bf16.mxu0 %v3677
        %5853 = vmatmul.mubr.bf16.gmra.mxu0 %v3676
        %v5854 = vpop.f32.mrf.mxu0
        %v5855 = vadd.f32 %v5767, %v5854
        %v5856 = vpop.f32.mrf.mxu0
        %v5857 = vpop.f32.mrf.mxu0
        %v5858 = vadd.f32 %v5770, %v5857
        %v5859 = vpop.f32.mrf.mxu0
        %5860 = vmatprep.mubr.bf16.mxu0 %v3689
        %5861 = vmatmul.mubr.bf16.gmra.mxu0 %v3688
        %v5862 = vpop.f32.mrf.mxu0
        %v5863 = vadd.f32 %v5775, %v5862
        %v5864 = vpop.f32.mrf.mxu0
        %v5865 = vpop.f32.mrf.mxu0
        %v5866 = vadd.f32 %v5778, %v5865
        %v5867 = vpop.f32.mrf.mxu0
        %5868 = vmatprep.mubr.bf16.mxu0 %v3701
        %5869 = vmatmul.mubr.bf16.gmra.mxu0 %v3700
        %v5870 = vpop.f32.mrf.mxu0
        %v5871 = vadd.f32 %v5783, %v5870
        %v5872 = vpop.f32.mrf.mxu0
        %v5873 = vpop.f32.mrf.mxu0
        %v5874 = vadd.f32 %v5786, %v5873
        %v5875 = vpop.f32.mrf.mxu0
        %5876 = vmatprep.mubr.bf16.mxu0 %v3713
        %5877 = vmatmul.mubr.bf16.gmra.mxu0 %v3712
        %v5878 = vpop.f32.mrf.mxu0
        %v5879 = vadd.f32 %v5791, %v5878
        %v5880 = vpop.f32.mrf.mxu0
        %v5881 = vpop.f32.mrf.mxu0
        %v5882 = vadd.f32 %v5794, %v5881
        %v5883 = vpop.f32.mrf.mxu0
        %5884 = vmatprep.mubr.bf16.mxu0 %v3725
        %5885 = vmatmul.mubr.bf16.gmra.mxu0 %v3724
        %v5886 = vpop.f32.mrf.mxu0
        %v5887 = vadd.f32 %v5799, %v5886
        %v5888 = vpop.f32.mrf.mxu0
        %v5889 = vpop.f32.mrf.mxu0
        %v5890 = vpop.f32.mrf.mxu0
        %5891 = vdwg.mxu0
        %5892 = vmatprep.subr.bf16.mxu0 0
        %5893 = vmatpush1.bf16.msra.mxu0 %v4963
        %5894 = vmatprep.subr.bf16.mxu0 0
        %5895 = vmatpush1.bf16.msra.mxu0 %v4962
        %5896 = vmatprep.subr.bf16.mxu0 0
        %5897 = vmatpush1.bf16.msra.mxu0 %v4961
        %5898 = vmatprep.subr.bf16.mxu0 0
        %5899 = vmatpush1.bf16.msra.mxu0 %v4960
        %5900 = vmatprep.subr.bf16.mxu0 0
        %5901 = vmatpush1.bf16.msra.mxu0 %v4959
        %5902 = vmatprep.subr.bf16.mxu0 0
        %5903 = vmatpush1.bf16.msra.mxu0 %v4958
        %5904 = vmatprep.subr.bf16.mxu0 0
        %5905 = vmatpush1.bf16.msra.mxu0 %v4957
        %5906 = vmatprep.subr.bf16.mxu0 0
        %5907 = vmatpush1.bf16.msra.mxu0 %v4956
        %5908 = vmatprep.subr.bf16.mxu0 0
        %5909 = vmatpush2.bf16.msra.mxu0 %v4971
        %5910 = vmatprep.subr.bf16.mxu0 0
        %5911 = vmatpush2.bf16.msra.mxu0 %v4970
        %5912 = vmatprep.subr.bf16.mxu0 0
        %5913 = vmatpush2.bf16.msra.mxu0 %v4969
        %5914 = vmatprep.subr.bf16.mxu0 0
        %5915 = vmatpush2.bf16.msra.mxu0 %v4968
        %5916 = vmatprep.subr.bf16.mxu0 0
        %5917 = vmatpush2.bf16.msra.mxu0 %v4967
        %5918 = vmatprep.subr.bf16.mxu0 0
        %5919 = vmatpush2.bf16.msra.mxu0 %v4966
        %5920 = vmatprep.subr.bf16.mxu0 0
        %5921 = vmatpush2.bf16.msra.mxu0 %v4965
        %5922 = vmatprep.subr.bf16.mxu0 0
        %5923 = vmatpush2.bf16.msra.mxu0 %v4964
        %5924 = vmatprep.mubr.bf16.mxu0 %v3655
        %5925 = vmatmul.mubr.bf16.gmra.mxu0 %v3654
        %v5926 = vpop.f32.mrf.mxu0
        %v5927 = vadd.f32 %v5839, %v5926
        %v5928 = vpop.f32.mrf.mxu0
        %v5929 = vpop.f32.mrf.mxu0
        %v5930 = vadd.f32 %v5842, %v5929
        %v5931 = vpop.f32.mrf.mxu0
        %5932 = vmatprep.mubr.bf16.mxu0 %v3667
        %5933 = vmatmul.mubr.bf16.gmra.mxu0 %v3666
        %v5934 = vpop.f32.mrf.mxu0
        %v5935 = vadd.f32 %v5847, %v5934
        %v5936 = vpop.f32.mrf.mxu0
        %v5937 = vpop.f32.mrf.mxu0
        %v5938 = vadd.f32 %v5850, %v5937
        %v5939 = vpop.f32.mrf.mxu0
        %5940 = vmatprep.mubr.bf16.mxu0 %v3679
        %5941 = vmatmul.mubr.bf16.gmra.mxu0 %v3678
        %v5942 = vpop.f32.mrf.mxu0
        %v5943 = vadd.f32 %v5855, %v5942
        %v5944 = vpop.f32.mrf.mxu0
        %v5945 = vpop.f32.mrf.mxu0
        %v5946 = vadd.f32 %v5858, %v5945
        %v5947 = vpop.f32.mrf.mxu0
        %5948 = vmatprep.mubr.bf16.mxu0 %v3691
        %5949 = vmatmul.mubr.bf16.gmra.mxu0 %v3690
        %v5950 = vpop.f32.mrf.mxu0
        %v5951 = vadd.f32 %v5863, %v5950
        %v5952 = vpop.f32.mrf.mxu0
        %v5953 = vpop.f32.mrf.mxu0
        %v5954 = vadd.f32 %v5866, %v5953
        %v5955 = vpop.f32.mrf.mxu0
        %5956 = vmatprep.mubr.bf16.mxu0 %v3703
        %5957 = vmatmul.mubr.bf16.gmra.mxu0 %v3702
        %v5958 = vpop.f32.mrf.mxu0
        %v5959 = vadd.f32 %v5871, %v5958
        %v5960 = vpop.f32.mrf.mxu0
        %v5961 = vpop.f32.mrf.mxu0
        %v5962 = vadd.f32 %v5874, %v5961
        %v5963 = vpop.f32.mrf.mxu0
        %5964 = vmatprep.mubr.bf16.mxu0 %v3715
        %5965 = vmatmul.mubr.bf16.gmra.mxu0 %v3714
        %v5966 = vpop.f32.mrf.mxu0
        %v5967 = vadd.f32 %v5879, %v5966
        %v5968 = vpop.f32.mrf.mxu0
        %v5969 = vpop.f32.mrf.mxu0
        %v5970 = vadd.f32 %v5882, %v5969
        %v5971 = vpop.f32.mrf.mxu0
        %5972 = vmatprep.mubr.bf16.mxu0 %v3727
        %5973 = vmatmul.mubr.bf16.gmra.mxu0 %v3726
        %v5974 = vpop.f32.mrf.mxu0
        %v5975 = vadd.f32 %v5887, %v5974
        %v5976 = vpop.f32.mrf.mxu0
        %v5977 = vpop.f32.mrf.mxu0
        %v5978 = vpop.f32.mrf.mxu0
        %5979 = vdwg.mxu0
        %5980 = vmatprep.subr.bf16.mxu0 0
        %5981 = vmatpush1.bf16.msra.mxu0 %v4979
        %5982 = vmatprep.subr.bf16.mxu0 0
        %5983 = vmatpush1.bf16.msra.mxu0 %v4978
        %5984 = vmatprep.subr.bf16.mxu0 0
        %5985 = vmatpush1.bf16.msra.mxu0 %v4977
        %5986 = vmatprep.subr.bf16.mxu0 0
        %5987 = vmatpush1.bf16.msra.mxu0 %v4976
        %5988 = vmatprep.subr.bf16.mxu0 0
        %5989 = vmatpush1.bf16.msra.mxu0 %v4975
        %5990 = vmatprep.subr.bf16.mxu0 0
        %5991 = vmatpush1.bf16.msra.mxu0 %v4974
        %5992 = vmatprep.subr.bf16.mxu0 0
        %5993 = vmatpush1.bf16.msra.mxu0 %v4973
        %5994 = vmatprep.subr.bf16.mxu0 0
        %5995 = vmatpush1.bf16.msra.mxu0 %v4972
        %5996 = vmatprep.subr.bf16.mxu0 0
        %5997 = vmatpush2.bf16.msra.mxu0 %v4987
        %5998 = vmatprep.subr.bf16.mxu0 0
        %5999 = vmatpush2.bf16.msra.mxu0 %v4986
        %6000 = vmatprep.subr.bf16.mxu0 0
        %6001 = vmatpush2.bf16.msra.mxu0 %v4985
        %6002 = vmatprep.subr.bf16.mxu0 0
        %6003 = vmatpush2.bf16.msra.mxu0 %v4984
        %6004 = vmatprep.subr.bf16.mxu0 0
        %6005 = vmatpush2.bf16.msra.mxu0 %v4983
        %6006 = vmatprep.subr.bf16.mxu0 0
        %6007 = vmatpush2.bf16.msra.mxu0 %v4982
        %6008 = vmatprep.subr.bf16.mxu0 0
        %6009 = vmatpush2.bf16.msra.mxu0 %v4981
        %6010 = vmatprep.subr.bf16.mxu0 0
        %6011 = vmatpush2.bf16.msra.mxu0 %v4980
        %6012 = vmatprep.mubr.bf16.mxu0 %v3657
        %6013 = vmatmul.mubr.bf16.gmra.mxu0 %v3656
        %v6014 = vpop.f32.mrf.mxu0
        %v6015 = vadd.f32 %v5927, %v6014
        %v6016 = vpop.f32.mrf.mxu0
        %v6017 = vpop.f32.mrf.mxu0
        %v6018 = vadd.f32 %v5930, %v6017
        %v6019 = vpop.f32.mrf.mxu0
        %6020 = vmatprep.mubr.bf16.mxu0 %v3669
        %6021 = vmatmul.mubr.bf16.gmra.mxu0 %v3668
        %v6022 = vpop.f32.mrf.mxu0
        %v6023 = vadd.f32 %v5935, %v6022
        %v6024 = vpop.f32.mrf.mxu0
        %v6025 = vpop.f32.mrf.mxu0
        %v6026 = vadd.f32 %v5938, %v6025
        %v6027 = vpop.f32.mrf.mxu0
        %6028 = vmatprep.mubr.bf16.mxu0 %v3681
        %6029 = vmatmul.mubr.bf16.gmra.mxu0 %v3680
        %v6030 = vpop.f32.mrf.mxu0
        %v6031 = vadd.f32 %v5943, %v6030
        %v6032 = vpop.f32.mrf.mxu0
        %v6033 = vpop.f32.mrf.mxu0
        %v6034 = vadd.f32 %v5946, %v6033
        %v6035 = vpop.f32.mrf.mxu0
        %6036 = vmatprep.mubr.bf16.mxu0 %v3693
        %6037 = vmatmul.mubr.bf16.gmra.mxu0 %v3692
        %v6038 = vpop.f32.mrf.mxu0
        %v6039 = vadd.f32 %v5951, %v6038
        %v6040 = vpop.f32.mrf.mxu0
        %v6041 = vpop.f32.mrf.mxu0
        %v6042 = vadd.f32 %v5954, %v6041
        %v6043 = vpop.f32.mrf.mxu0
        %6044 = vmatprep.mubr.bf16.mxu0 %v3705
        %6045 = vmatmul.mubr.bf16.gmra.mxu0 %v3704
        %v6046 = vpop.f32.mrf.mxu0
        %v6047 = vadd.f32 %v5959, %v6046
        %v6048 = vpop.f32.mrf.mxu0
        %v6049 = vpop.f32.mrf.mxu0
        %v6050 = vadd.f32 %v5962, %v6049
        %v6051 = vpop.f32.mrf.mxu0
        %6052 = vmatprep.mubr.bf16.mxu0 %v3717
        %6053 = vmatmul.mubr.bf16.gmra.mxu0 %v3716
        %v6054 = vpop.f32.mrf.mxu0
        %v6055 = vadd.f32 %v5967, %v6054
        %v6056 = vpop.f32.mrf.mxu0
        %v6057 = vpop.f32.mrf.mxu0
        %v6058 = vadd.f32 %v5970, %v6057
        %v6059 = vpop.f32.mrf.mxu0
        %6060 = vmatprep.mubr.bf16.mxu0 %v3729
        %6061 = vmatmul.mubr.bf16.gmra.mxu0 %v3728
        %v6062 = vpop.f32.mrf.mxu0
        %v6063 = vadd.f32 %v5975, %v6062
        %v6064 = vpop.f32.mrf.mxu0
        %v6065 = vpop.f32.mrf.mxu0
        %v6066 = vpop.f32.mrf.mxu0
        %6067 = vdwg.mxu0
        %6068 = vmatprep.subr.bf16.mxu0 0
        %6069 = vmatpush1.bf16.msra.mxu0 %v4995
        %6070 = vmatprep.subr.bf16.mxu0 0
        %6071 = vmatpush1.bf16.msra.mxu0 %v4994
        %6072 = vmatprep.subr.bf16.mxu0 0
        %6073 = vmatpush1.bf16.msra.mxu0 %v4993
        %6074 = vmatprep.subr.bf16.mxu0 0
        %6075 = vmatpush1.bf16.msra.mxu0 %v4992
        %6076 = vmatprep.subr.bf16.mxu0 0
        %6077 = vmatpush1.bf16.msra.mxu0 %v4991
        %6078 = vmatprep.subr.bf16.mxu0 0
        %6079 = vmatpush1.bf16.msra.mxu0 %v4990
        %6080 = vmatprep.subr.bf16.mxu0 0
        %6081 = vmatpush1.bf16.msra.mxu0 %v4989
        %6082 = vmatprep.subr.bf16.mxu0 0
        %6083 = vmatpush1.bf16.msra.mxu0 %v4988
        %6084 = vmatprep.subr.bf16.mxu0 0
        %6085 = vmatpush2.bf16.msra.mxu0 %v5003
        %6086 = vmatprep.subr.bf16.mxu0 0
        %6087 = vmatpush2.bf16.msra.mxu0 %v5002
        %6088 = vmatprep.subr.bf16.mxu0 0
        %6089 = vmatpush2.bf16.msra.mxu0 %v5001
        %6090 = vmatprep.subr.bf16.mxu0 0
        %6091 = vmatpush2.bf16.msra.mxu0 %v5000
        %6092 = vmatprep.subr.bf16.mxu0 0
        %6093 = vmatpush2.bf16.msra.mxu0 %v4999
        %6094 = vmatprep.subr.bf16.mxu0 0
        %6095 = vmatpush2.bf16.msra.mxu0 %v4998
        %6096 = vmatprep.subr.bf16.mxu0 0
        %6097 = vmatpush2.bf16.msra.mxu0 %v4997
        %6098 = vmatprep.subr.bf16.mxu0 0
        %6099 = vmatpush2.bf16.msra.mxu0 %v4996
        %6100 = vmatprep.mubr.bf16.mxu0 %v3659
        %6101 = vmatmul.mubr.bf16.gmra.mxu0 %v3658
        %v6102 = vpop.f32.mrf.mxu0
        %v6103 = vadd.f32 %v6015, %v6102
        %v6104 = vpop.f32.mrf.mxu0
        %v6105 = vpop.f32.mrf.mxu0
        %v6106 = vadd.f32 %v6018, %v6105
        %v6107 = vpop.f32.mrf.mxu0
        %6108 = vmatprep.mubr.bf16.mxu0 %v3671
        %6109 = vmatmul.mubr.bf16.gmra.mxu0 %v3670
        %v6110 = vpop.f32.mrf.mxu0
        %v6111 = vadd.f32 %v6023, %v6110
        %v6112 = vpop.f32.mrf.mxu0
        %v6113 = vpop.f32.mrf.mxu0
        %v6114 = vadd.f32 %v6026, %v6113
        %v6115 = vpop.f32.mrf.mxu0
        %6116 = vmatprep.mubr.bf16.mxu0 %v3683
        %6117 = vmatmul.mubr.bf16.gmra.mxu0 %v3682
        %v6118 = vpop.f32.mrf.mxu0
        %v6119 = vadd.f32 %v6031, %v6118
        %v6120 = vpop.f32.mrf.mxu0
        %v6121 = vpop.f32.mrf.mxu0
        %v6122 = vadd.f32 %v6034, %v6121
        %v6123 = vpop.f32.mrf.mxu0
        %6124 = vmatprep.mubr.bf16.mxu0 %v3695
        %6125 = vmatmul.mubr.bf16.gmra.mxu0 %v3694
        %v6126 = vpop.f32.mrf.mxu0
        %v6127 = vadd.f32 %v6039, %v6126
        %v6128 = vpop.f32.mrf.mxu0
        %v6129 = vpop.f32.mrf.mxu0
        %v6130 = vadd.f32 %v6042, %v6129
        %v6131 = vpop.f32.mrf.mxu0
        %6132 = vmatprep.mubr.bf16.mxu0 %v3707
        %6133 = vmatmul.mubr.bf16.gmra.mxu0 %v3706
        %v6134 = vpop.f32.mrf.mxu0
        %v6135 = vadd.f32 %v6047, %v6134
        %v6136 = vpop.f32.mrf.mxu0
        %v6137 = vpop.f32.mrf.mxu0
        %v6138 = vadd.f32 %v6050, %v6137
        %v6139 = vpop.f32.mrf.mxu0
        %6140 = vmatprep.mubr.bf16.mxu0 %v3719
        %6141 = vmatmul.mubr.bf16.gmra.mxu0 %v3718
        %v6142 = vpop.f32.mrf.mxu0
        %v6143 = vadd.f32 %v6055, %v6142
        %v6144 = vpop.f32.mrf.mxu0
        %v6145 = vpop.f32.mrf.mxu0
        %v6146 = vadd.f32 %v6058, %v6145
        %v6147 = vpop.f32.mrf.mxu0
        %6148 = vmatprep.mubr.bf16.mxu0 %v3731
        %6149 = vmatmul.mubr.bf16.gmra.mxu0 %v3730
        %v6150 = vpop.f32.mrf.mxu0
        %v6151 = vadd.f32 %v6063, %v6150
        %v6152 = vpop.f32.mrf.mxu0
        %v6153 = vpop.f32.mrf.mxu0
        %v6154 = vpop.f32.mrf.mxu0
        %6155 = vdwg.mxu0
        %6156 = vmatprep.subr.bf16.mxu0 0
        %6157 = vmatpush1.bf16.msra.mxu0 %v4915
        %6158 = vmatprep.subr.bf16.mxu0 0
        %6159 = vmatpush1.bf16.msra.mxu0 %v4914
        %6160 = vmatprep.subr.bf16.mxu0 0
        %6161 = vmatpush1.bf16.msra.mxu0 %v4913
        %6162 = vmatprep.subr.bf16.mxu0 0
        %6163 = vmatpush1.bf16.msra.mxu0 %v4912
        %6164 = vmatprep.subr.bf16.mxu0 0
        %6165 = vmatpush1.bf16.msra.mxu0 %v4911
        %6166 = vmatprep.subr.bf16.mxu0 0
        %6167 = vmatpush1.bf16.msra.mxu0 %v4910
        %6168 = vmatprep.subr.bf16.mxu0 0
        %6169 = vmatpush1.bf16.msra.mxu0 %v4909
        %6170 = vmatprep.subr.bf16.mxu0 0
        %6171 = vmatpush1.bf16.msra.mxu0 %v4908
        %6172 = vmatprep.subr.bf16.mxu0 0
        %6173 = vmatpush2.bf16.msra.mxu0 %v4923
        %6174 = vmatprep.subr.bf16.mxu0 0
        %6175 = vmatpush2.bf16.msra.mxu0 %v4922
        %6176 = vmatprep.subr.bf16.mxu0 0
        %6177 = vmatpush2.bf16.msra.mxu0 %v4921
        %6178 = vmatprep.subr.bf16.mxu0 0
        %6179 = vmatpush2.bf16.msra.mxu0 %v4920
        %6180 = vmatprep.subr.bf16.mxu0 0
        %6181 = vmatpush2.bf16.msra.mxu0 %v4919
        %6182 = vmatprep.subr.bf16.mxu0 0
        %6183 = vmatpush2.bf16.msra.mxu0 %v4918
        %6184 = vmatprep.subr.bf16.mxu0 0
        %6185 = vmatpush2.bf16.msra.mxu0 %v4917
        %6186 = vmatprep.subr.bf16.mxu0 0
        %6187 = vmatpush2.bf16.msra.mxu0 %v4916
        %6188 = vmatprep.mubr.bf16.mxu0 %v4441
        %6189 = vmatmul.mubr.bf16.gmra.mxu0 %v4440
        %v6190 = vpop.f32.mrf.mxu0
        %v6191 = vadd.f32 0.0, %v6190
        %v6192 = vpop.f32.mrf.mxu0
        %v6193 = vpop.f32.mrf.mxu0
        %v6194 = vadd.f32 0.0, %v6193
        %v6195 = vpop.f32.mrf.mxu0
        %6196 = vmatprep.mubr.bf16.mxu0 %v4453
        %6197 = vmatmul.mubr.bf16.gmra.mxu0 %v4452
        %v6198 = vpop.f32.mrf.mxu0
        %v6199 = vadd.f32 0.0, %v6198
        %v6200 = vpop.f32.mrf.mxu0
        %v6201 = vpop.f32.mrf.mxu0
        %v6202 = vadd.f32 0.0, %v6201
        %v6203 = vpop.f32.mrf.mxu0
        %6204 = vmatprep.mubr.bf16.mxu0 %v4465
        %6205 = vmatmul.mubr.bf16.gmra.mxu0 %v4464
        %v6206 = vpop.f32.mrf.mxu0
        %v6207 = vadd.f32 0.0, %v6206
        %v6208 = vpop.f32.mrf.mxu0
        %v6209 = vpop.f32.mrf.mxu0
        %v6210 = vadd.f32 0.0, %v6209
        %v6211 = vpop.f32.mrf.mxu0
        %6212 = vmatprep.mubr.bf16.mxu0 %v4477
        %6213 = vmatmul.mubr.bf16.gmra.mxu0 %v4476
        %v6214 = vpop.f32.mrf.mxu0
        %v6215 = vadd.f32 0.0, %v6214
        %v6216 = vpop.f32.mrf.mxu0
        %v6217 = vpop.f32.mrf.mxu0
        %v6218 = vadd.f32 0.0, %v6217
        %v6219 = vpop.f32.mrf.mxu0
        %6220 = vmatprep.mubr.bf16.mxu0 %v4489
        %6221 = vmatmul.mubr.bf16.gmra.mxu0 %v4488
        %v6222 = vpop.f32.mrf.mxu0
        %v6223 = vadd.f32 0.0, %v6222
        %v6224 = vpop.f32.mrf.mxu0
        %v6225 = vpop.f32.mrf.mxu0
        %v6226 = vadd.f32 0.0, %v6225
        %v6227 = vpop.f32.mrf.mxu0
        %6228 = vmatprep.mubr.bf16.mxu0 %v4501
        %6229 = vmatmul.mubr.bf16.gmra.mxu0 %v4500
        %v6230 = vpop.f32.mrf.mxu0
        %v6231 = vadd.f32 0.0, %v6230
        %v6232 = vpop.f32.mrf.mxu0
        %v6233 = vpop.f32.mrf.mxu0
        %v6234 = vadd.f32 0.0, %v6233
        %v6235 = vpop.f32.mrf.mxu0
        %6236 = vmatprep.mubr.bf16.mxu0 %v4513
        %6237 = vmatmul.mubr.bf16.gmra.mxu0 %v4512
        %v6238 = vpop.f32.mrf.mxu0
        %v6239 = vadd.f32 0.0, %v6238
        %v6240 = vpop.f32.mrf.mxu0
        %v6241 = vpop.f32.mrf.mxu0
        %v6242 = vpop.f32.mrf.mxu0
        %6243 = vdwg.mxu0
        %6244 = vmatprep.subr.bf16.mxu0 0
        %6245 = vmatpush1.bf16.msra.mxu0 %v4931
        %6246 = vmatprep.subr.bf16.mxu0 0
        %6247 = vmatpush1.bf16.msra.mxu0 %v4930
        %6248 = vmatprep.subr.bf16.mxu0 0
        %6249 = vmatpush1.bf16.msra.mxu0 %v4929
        %6250 = vmatprep.subr.bf16.mxu0 0
        %6251 = vmatpush1.bf16.msra.mxu0 %v4928
        %6252 = vmatprep.subr.bf16.mxu0 0
        %6253 = vmatpush1.bf16.msra.mxu0 %v4927
        %6254 = vmatprep.subr.bf16.mxu0 0
        %6255 = vmatpush1.bf16.msra.mxu0 %v4926
        %6256 = vmatprep.subr.bf16.mxu0 0
        %6257 = vmatpush1.bf16.msra.mxu0 %v4925
        %6258 = vmatprep.subr.bf16.mxu0 0
        %6259 = vmatpush1.bf16.msra.mxu0 %v4924
        %6260 = vmatprep.subr.bf16.mxu0 0
        %6261 = vmatpush2.bf16.msra.mxu0 %v4939
        %6262 = vmatprep.subr.bf16.mxu0 0
        %6263 = vmatpush2.bf16.msra.mxu0 %v4938
        %6264 = vmatprep.subr.bf16.mxu0 0
        %6265 = vmatpush2.bf16.msra.mxu0 %v4937
        %6266 = vmatprep.subr.bf16.mxu0 0
        %6267 = vmatpush2.bf16.msra.mxu0 %v4936
        %6268 = vmatprep.subr.bf16.mxu0 0
        %6269 = vmatpush2.bf16.msra.mxu0 %v4935
        %6270 = vmatprep.subr.bf16.mxu0 0
        %6271 = vmatpush2.bf16.msra.mxu0 %v4934
        %6272 = vmatprep.subr.bf16.mxu0 0
        %6273 = vmatpush2.bf16.msra.mxu0 %v4933
        %6274 = vmatprep.subr.bf16.mxu0 0
        %6275 = vmatpush2.bf16.msra.mxu0 %v4932
        %6276 = vmatprep.mubr.bf16.mxu0 %v4443
        %6277 = vmatmul.mubr.bf16.gmra.mxu0 %v4442
        %v6278 = vpop.f32.mrf.mxu0
        %v6279 = vadd.f32 %v6191, %v6278
        %v6280 = vpop.f32.mrf.mxu0
        %v6281 = vpop.f32.mrf.mxu0
        %v6282 = vadd.f32 %v6194, %v6281
        %v6283 = vpop.f32.mrf.mxu0
        %6284 = vmatprep.mubr.bf16.mxu0 %v4455
        %6285 = vmatmul.mubr.bf16.gmra.mxu0 %v4454
        %v6286 = vpop.f32.mrf.mxu0
        %v6287 = vadd.f32 %v6199, %v6286
        %v6288 = vpop.f32.mrf.mxu0
        %v6289 = vpop.f32.mrf.mxu0
        %v6290 = vadd.f32 %v6202, %v6289
        %v6291 = vpop.f32.mrf.mxu0
        %6292 = vmatprep.mubr.bf16.mxu0 %v4467
        %6293 = vmatmul.mubr.bf16.gmra.mxu0 %v4466
        %v6294 = vpop.f32.mrf.mxu0
        %v6295 = vadd.f32 %v6207, %v6294
        %v6296 = vpop.f32.mrf.mxu0
        %v6297 = vpop.f32.mrf.mxu0
        %v6298 = vadd.f32 %v6210, %v6297
        %v6299 = vpop.f32.mrf.mxu0
        %6300 = vmatprep.mubr.bf16.mxu0 %v4479
        %6301 = vmatmul.mubr.bf16.gmra.mxu0 %v4478
        %v6302 = vpop.f32.mrf.mxu0
        %v6303 = vadd.f32 %v6215, %v6302
        %v6304 = vpop.f32.mrf.mxu0
        %v6305 = vpop.f32.mrf.mxu0
        %v6306 = vadd.f32 %v6218, %v6305
        %v6307 = vpop.f32.mrf.mxu0
        %6308 = vmatprep.mubr.bf16.mxu0 %v4491
        %6309 = vmatmul.mubr.bf16.gmra.mxu0 %v4490
        %v6310 = vpop.f32.mrf.mxu0
        %v6311 = vadd.f32 %v6223, %v6310
        %v6312 = vpop.f32.mrf.mxu0
        %v6313 = vpop.f32.mrf.mxu0
        %v6314 = vadd.f32 %v6226, %v6313
        %v6315 = vpop.f32.mrf.mxu0
        %6316 = vmatprep.mubr.bf16.mxu0 %v4503
        %6317 = vmatmul.mubr.bf16.gmra.mxu0 %v4502
        %v6318 = vpop.f32.mrf.mxu0
        %v6319 = vadd.f32 %v6231, %v6318
        %v6320 = vpop.f32.mrf.mxu0
        %v6321 = vpop.f32.mrf.mxu0
        %v6322 = vadd.f32 %v6234, %v6321
        %v6323 = vpop.f32.mrf.mxu0
        %6324 = vmatprep.mubr.bf16.mxu0 %v4515
        %6325 = vmatmul.mubr.bf16.gmra.mxu0 %v4514
        %v6326 = vpop.f32.mrf.mxu0
        %v6327 = vadd.f32 %v6239, %v6326
        %v6328 = vpop.f32.mrf.mxu0
        %v6329 = vpop.f32.mrf.mxu0
        %v6330 = vpop.f32.mrf.mxu0
        %6331 = vdwg.mxu0
        %6332 = vmatprep.subr.bf16.mxu0 0
        %6333 = vmatpush1.bf16.msra.mxu0 %v4947
        %6334 = vmatprep.subr.bf16.mxu0 0
        %6335 = vmatpush1.bf16.msra.mxu0 %v4946
        %6336 = vmatprep.subr.bf16.mxu0 0
        %6337 = vmatpush1.bf16.msra.mxu0 %v4945
        %6338 = vmatprep.subr.bf16.mxu0 0
        %6339 = vmatpush1.bf16.msra.mxu0 %v4944
        %6340 = vmatprep.subr.bf16.mxu0 0
        %6341 = vmatpush1.bf16.msra.mxu0 %v4943
        %6342 = vmatprep.subr.bf16.mxu0 0
        %6343 = vmatpush1.bf16.msra.mxu0 %v4942
        %6344 = vmatprep.subr.bf16.mxu0 0
        %6345 = vmatpush1.bf16.msra.mxu0 %v4941
        %6346 = vmatprep.subr.bf16.mxu0 0
        %6347 = vmatpush1.bf16.msra.mxu0 %v4940
        %6348 = vmatprep.subr.bf16.mxu0 0
        %6349 = vmatpush2.bf16.msra.mxu0 %v4955
        %6350 = vmatprep.subr.bf16.mxu0 0
        %6351 = vmatpush2.bf16.msra.mxu0 %v4954
        %6352 = vmatprep.subr.bf16.mxu0 0
        %6353 = vmatpush2.bf16.msra.mxu0 %v4953
        %6354 = vmatprep.subr.bf16.mxu0 0
        %6355 = vmatpush2.bf16.msra.mxu0 %v4952
        %6356 = vmatprep.subr.bf16.mxu0 0
        %6357 = vmatpush2.bf16.msra.mxu0 %v4951
        %6358 = vmatprep.subr.bf16.mxu0 0
        %6359 = vmatpush2.bf16.msra.mxu0 %v4950
        %6360 = vmatprep.subr.bf16.mxu0 0
        %6361 = vmatpush2.bf16.msra.mxu0 %v4949
        %6362 = vmatprep.subr.bf16.mxu0 0
        %6363 = vmatpush2.bf16.msra.mxu0 %v4948
        %6364 = vmatprep.mubr.bf16.mxu0 %v4445
        %6365 = vmatmul.mubr.bf16.gmra.mxu0 %v4444
        %v6366 = vpop.f32.mrf.mxu0
        %v6367 = vadd.f32 %v6279, %v6366
        %v6368 = vpop.f32.mrf.mxu0
        %v6369 = vpop.f32.mrf.mxu0
        %v6370 = vadd.f32 %v6282, %v6369
        %v6371 = vpop.f32.mrf.mxu0
        %6372 = vmatprep.mubr.bf16.mxu0 %v4457
        %6373 = vmatmul.mubr.bf16.gmra.mxu0 %v4456
        %v6374 = vpop.f32.mrf.mxu0
        %v6375 = vadd.f32 %v6287, %v6374
        %v6376 = vpop.f32.mrf.mxu0
        %v6377 = vpop.f32.mrf.mxu0
        %v6378 = vadd.f32 %v6290, %v6377
        %v6379 = vpop.f32.mrf.mxu0
        %6380 = vmatprep.mubr.bf16.mxu0 %v4469
        %6381 = vmatmul.mubr.bf16.gmra.mxu0 %v4468
        %v6382 = vpop.f32.mrf.mxu0
        %v6383 = vadd.f32 %v6295, %v6382
        %v6384 = vpop.f32.mrf.mxu0
        %v6385 = vpop.f32.mrf.mxu0
        %v6386 = vadd.f32 %v6298, %v6385
        %v6387 = vpop.f32.mrf.mxu0
        %6388 = vmatprep.mubr.bf16.mxu0 %v4481
        %6389 = vmatmul.mubr.bf16.gmra.mxu0 %v4480
        %v6390 = vpop.f32.mrf.mxu0
        %v6391 = vadd.f32 %v6303, %v6390
        %v6392 = vpop.f32.mrf.mxu0
        %v6393 = vpop.f32.mrf.mxu0
        %v6394 = vadd.f32 %v6306, %v6393
        %v6395 = vpop.f32.mrf.mxu0
        %6396 = vmatprep.mubr.bf16.mxu0 %v4493
        %6397 = vmatmul.mubr.bf16.gmra.mxu0 %v4492
        %v6398 = vpop.f32.mrf.mxu0
        %v6399 = vadd.f32 %v6311, %v6398
        %v6400 = vpop.f32.mrf.mxu0
        %v6401 = vpop.f32.mrf.mxu0
        %v6402 = vadd.f32 %v6314, %v6401
        %v6403 = vpop.f32.mrf.mxu0
        %6404 = vmatprep.mubr.bf16.mxu0 %v4505
        %6405 = vmatmul.mubr.bf16.gmra.mxu0 %v4504
        %v6406 = vpop.f32.mrf.mxu0
        %v6407 = vadd.f32 %v6319, %v6406
        %v6408 = vpop.f32.mrf.mxu0
        %v6409 = vpop.f32.mrf.mxu0
        %v6410 = vadd.f32 %v6322, %v6409
        %v6411 = vpop.f32.mrf.mxu0
        %6412 = vmatprep.mubr.bf16.mxu0 %v4517
        %6413 = vmatmul.mubr.bf16.gmra.mxu0 %v4516
        %v6414 = vpop.f32.mrf.mxu0
        %v6415 = vadd.f32 %v6327, %v6414
        %v6416 = vpop.f32.mrf.mxu0
        %v6417 = vpop.f32.mrf.mxu0
        %v6418 = vpop.f32.mrf.mxu0
        %6419 = vdwg.mxu0
        %6420 = vmatprep.subr.bf16.mxu0 0
        %6421 = vmatpush1.bf16.msra.mxu0 %v4963
        %6422 = vmatprep.subr.bf16.mxu0 0
        %6423 = vmatpush1.bf16.msra.mxu0 %v4962
        %6424 = vmatprep.subr.bf16.mxu0 0
        %6425 = vmatpush1.bf16.msra.mxu0 %v4961
        %6426 = vmatprep.subr.bf16.mxu0 0
        %6427 = vmatpush1.bf16.msra.mxu0 %v4960
        %6428 = vmatprep.subr.bf16.mxu0 0
        %6429 = vmatpush1.bf16.msra.mxu0 %v4959
        %6430 = vmatprep.subr.bf16.mxu0 0
        %6431 = vmatpush1.bf16.msra.mxu0 %v4958
        %6432 = vmatprep.subr.bf16.mxu0 0
        %6433 = vmatpush1.bf16.msra.mxu0 %v4957
        %6434 = vmatprep.subr.bf16.mxu0 0
        %6435 = vmatpush1.bf16.msra.mxu0 %v4956
        %6436 = vmatprep.subr.bf16.mxu0 0
        %6437 = vmatpush2.bf16.msra.mxu0 %v4971
        %6438 = vmatprep.subr.bf16.mxu0 0
        %6439 = vmatpush2.bf16.msra.mxu0 %v4970
        %6440 = vmatprep.subr.bf16.mxu0 0
        %6441 = vmatpush2.bf16.msra.mxu0 %v4969
        %6442 = vmatprep.subr.bf16.mxu0 0
        %6443 = vmatpush2.bf16.msra.mxu0 %v4968
        %6444 = vmatprep.subr.bf16.mxu0 0
        %6445 = vmatpush2.bf16.msra.mxu0 %v4967
        %6446 = vmatprep.subr.bf16.mxu0 0
        %6447 = vmatpush2.bf16.msra.mxu0 %v4966
        %6448 = vmatprep.subr.bf16.mxu0 0
        %6449 = vmatpush2.bf16.msra.mxu0 %v4965
        %6450 = vmatprep.subr.bf16.mxu0 0
        %6451 = vmatpush2.bf16.msra.mxu0 %v4964
        %6452 = vmatprep.mubr.bf16.mxu0 %v4447
        %6453 = vmatmul.mubr.bf16.gmra.mxu0 %v4446
        %v6454 = vpop.f32.mrf.mxu0
        %v6455 = vadd.f32 %v6367, %v6454
        %v6456 = vpop.f32.mrf.mxu0
        %v6457 = vpop.f32.mrf.mxu0
        %v6458 = vadd.f32 %v6370, %v6457
        %v6459 = vpop.f32.mrf.mxu0
        %6460 = vmatprep.mubr.bf16.mxu0 %v4459
        %6461 = vmatmul.mubr.bf16.gmra.mxu0 %v4458
        %v6462 = vpop.f32.mrf.mxu0
        %v6463 = vadd.f32 %v6375, %v6462
        %v6464 = vpop.f32.mrf.mxu0
        %v6465 = vpop.f32.mrf.mxu0
        %v6466 = vadd.f32 %v6378, %v6465
        %v6467 = vpop.f32.mrf.mxu0
        %6468 = vmatprep.mubr.bf16.mxu0 %v4471
        %6469 = vmatmul.mubr.bf16.gmra.mxu0 %v4470
        %v6470 = vpop.f32.mrf.mxu0
        %v6471 = vadd.f32 %v6383, %v6470
        %v6472 = vpop.f32.mrf.mxu0
        %v6473 = vpop.f32.mrf.mxu0
        %v6474 = vadd.f32 %v6386, %v6473
        %v6475 = vpop.f32.mrf.mxu0
        %6476 = vmatprep.mubr.bf16.mxu0 %v4483
        %6477 = vmatmul.mubr.bf16.gmra.mxu0 %v4482
        %v6478 = vpop.f32.mrf.mxu0
        %v6479 = vadd.f32 %v6391, %v6478
        %v6480 = vpop.f32.mrf.mxu0
        %v6481 = vpop.f32.mrf.mxu0
        %v6482 = vadd.f32 %v6394, %v6481
        %v6483 = vpop.f32.mrf.mxu0
        %6484 = vmatprep.mubr.bf16.mxu0 %v4495
        %6485 = vmatmul.mubr.bf16.gmra.mxu0 %v4494
        %v6486 = vpop.f32.mrf.mxu0
        %v6487 = vadd.f32 %v6399, %v6486
        %v6488 = vpop.f32.mrf.mxu0
        %v6489 = vpop.f32.mrf.mxu0
        %v6490 = vadd.f32 %v6402, %v6489
        %v6491 = vpop.f32.mrf.mxu0
        %6492 = vmatprep.mubr.bf16.mxu0 %v4507
        %6493 = vmatmul.mubr.bf16.gmra.mxu0 %v4506
        %v6494 = vpop.f32.mrf.mxu0
        %v6495 = vadd.f32 %v6407, %v6494
        %v6496 = vpop.f32.mrf.mxu0
        %v6497 = vpop.f32.mrf.mxu0
        %v6498 = vadd.f32 %v6410, %v6497
        %v6499 = vpop.f32.mrf.mxu0
        %6500 = vmatprep.mubr.bf16.mxu0 %v4519
        %6501 = vmatmul.mubr.bf16.gmra.mxu0 %v4518
        %v6502 = vpop.f32.mrf.mxu0
        %v6503 = vadd.f32 %v6415, %v6502
        %v6504 = vpop.f32.mrf.mxu0
        %v6505 = vpop.f32.mrf.mxu0
        %v6506 = vpop.f32.mrf.mxu0
        %6507 = vdwg.mxu0
        %6508 = vmatprep.subr.bf16.mxu0 0
        %6509 = vmatpush1.bf16.msra.mxu0 %v4979
        %6510 = vmatprep.subr.bf16.mxu0 0
        %6511 = vmatpush1.bf16.msra.mxu0 %v4978
        %6512 = vmatprep.subr.bf16.mxu0 0
        %6513 = vmatpush1.bf16.msra.mxu0 %v4977
        %6514 = vmatprep.subr.bf16.mxu0 0
        %6515 = vmatpush1.bf16.msra.mxu0 %v4976
        %6516 = vmatprep.subr.bf16.mxu0 0
        %6517 = vmatpush1.bf16.msra.mxu0 %v4975
        %6518 = vmatprep.subr.bf16.mxu0 0
        %6519 = vmatpush1.bf16.msra.mxu0 %v4974
        %6520 = vmatprep.subr.bf16.mxu0 0
        %6521 = vmatpush1.bf16.msra.mxu0 %v4973
        %6522 = vmatprep.subr.bf16.mxu0 0
        %6523 = vmatpush1.bf16.msra.mxu0 %v4972
        %6524 = vmatprep.subr.bf16.mxu0 0
        %6525 = vmatpush2.bf16.msra.mxu0 %v4987
        %6526 = vmatprep.subr.bf16.mxu0 0
        %6527 = vmatpush2.bf16.msra.mxu0 %v4986
        %6528 = vmatprep.subr.bf16.mxu0 0
        %6529 = vmatpush2.bf16.msra.mxu0 %v4985
        %6530 = vmatprep.subr.bf16.mxu0 0
        %6531 = vmatpush2.bf16.msra.mxu0 %v4984
        %6532 = vmatprep.subr.bf16.mxu0 0
        %6533 = vmatpush2.bf16.msra.mxu0 %v4983
        %6534 = vmatprep.subr.bf16.mxu0 0
        %6535 = vmatpush2.bf16.msra.mxu0 %v4982
        %6536 = vmatprep.subr.bf16.mxu0 0
        %6537 = vmatpush2.bf16.msra.mxu0 %v4981
        %6538 = vmatprep.subr.bf16.mxu0 0
        %6539 = vmatpush2.bf16.msra.mxu0 %v4980
        %6540 = vmatprep.mubr.bf16.mxu0 %v4449
        %6541 = vmatmul.mubr.bf16.gmra.mxu0 %v4448
        %v6542 = vpop.f32.mrf.mxu0
        %v6543 = vadd.f32 %v6455, %v6542
        %v6544 = vpop.f32.mrf.mxu0
        %v6545 = vpop.f32.mrf.mxu0
        %v6546 = vadd.f32 %v6458, %v6545
        %v6547 = vpop.f32.mrf.mxu0
        %6548 = vmatprep.mubr.bf16.mxu0 %v4461
        %6549 = vmatmul.mubr.bf16.gmra.mxu0 %v4460
        %v6550 = vpop.f32.mrf.mxu0
        %v6551 = vadd.f32 %v6463, %v6550
        %v6552 = vpop.f32.mrf.mxu0
        %v6553 = vpop.f32.mrf.mxu0
        %v6554 = vadd.f32 %v6466, %v6553
        %v6555 = vpop.f32.mrf.mxu0
        %6556 = vmatprep.mubr.bf16.mxu0 %v4473
        %6557 = vmatmul.mubr.bf16.gmra.mxu0 %v4472
        %v6558 = vpop.f32.mrf.mxu0
        %v6559 = vadd.f32 %v6471, %v6558
        %v6560 = vpop.f32.mrf.mxu0
        %v6561 = vpop.f32.mrf.mxu0
        %v6562 = vadd.f32 %v6474, %v6561
        %v6563 = vpop.f32.mrf.mxu0
        %6564 = vmatprep.mubr.bf16.mxu0 %v4485
        %6565 = vmatmul.mubr.bf16.gmra.mxu0 %v4484
        %v6566 = vpop.f32.mrf.mxu0
        %v6567 = vadd.f32 %v6479, %v6566
        %v6568 = vpop.f32.mrf.mxu0
        %v6569 = vpop.f32.mrf.mxu0
        %v6570 = vadd.f32 %v6482, %v6569
        %v6571 = vpop.f32.mrf.mxu0
        %6572 = vmatprep.mubr.bf16.mxu0 %v4497
        %6573 = vmatmul.mubr.bf16.gmra.mxu0 %v4496
        %v6574 = vpop.f32.mrf.mxu0
        %v6575 = vadd.f32 %v6487, %v6574
        %v6576 = vpop.f32.mrf.mxu0
        %v6577 = vpop.f32.mrf.mxu0
        %v6578 = vadd.f32 %v6490, %v6577
        %v6579 = vpop.f32.mrf.mxu0
        %6580 = vmatprep.mubr.bf16.mxu0 %v4509
        %6581 = vmatmul.mubr.bf16.gmra.mxu0 %v4508
        %v6582 = vpop.f32.mrf.mxu0
        %v6583 = vadd.f32 %v6495, %v6582
        %v6584 = vpop.f32.mrf.mxu0
        %v6585 = vpop.f32.mrf.mxu0
        %v6586 = vadd.f32 %v6498, %v6585
        %v6587 = vpop.f32.mrf.mxu0
        %6588 = vmatprep.mubr.bf16.mxu0 %v4521
        %6589 = vmatmul.mubr.bf16.gmra.mxu0 %v4520
        %v6590 = vpop.f32.mrf.mxu0
        %v6591 = vadd.f32 %v6503, %v6590
        %v6592 = vpop.f32.mrf.mxu0
        %v6593 = vpop.f32.mrf.mxu0
        %v6594 = vpop.f32.mrf.mxu0
        %6595 = vdwg.mxu0
        %6596 = vmatprep.subr.bf16.mxu0 0
        %6597 = vmatpush1.bf16.msra.mxu0 %v4995
        %6598 = vmatprep.subr.bf16.mxu0 0
        %6599 = vmatpush1.bf16.msra.mxu0 %v4994
        %6600 = vmatprep.subr.bf16.mxu0 0
        %6601 = vmatpush1.bf16.msra.mxu0 %v4993
        %6602 = vmatprep.subr.bf16.mxu0 0
        %6603 = vmatpush1.bf16.msra.mxu0 %v4992
        %6604 = vmatprep.subr.bf16.mxu0 0
        %6605 = vmatpush1.bf16.msra.mxu0 %v4991
        %6606 = vmatprep.subr.bf16.mxu0 0
        %6607 = vmatpush1.bf16.msra.mxu0 %v4990
        %6608 = vmatprep.subr.bf16.mxu0 0
        %6609 = vmatpush1.bf16.msra.mxu0 %v4989
        %6610 = vmatprep.subr.bf16.mxu0 0
        %6611 = vmatpush1.bf16.msra.mxu0 %v4988
        %6612 = vmatprep.subr.bf16.mxu0 0
        %6613 = vmatpush2.bf16.msra.mxu0 %v5003
        %6614 = vmatprep.subr.bf16.mxu0 0
        %6615 = vmatpush2.bf16.msra.mxu0 %v5002
        %6616 = vmatprep.subr.bf16.mxu0 0
        %6617 = vmatpush2.bf16.msra.mxu0 %v5001
        %6618 = vmatprep.subr.bf16.mxu0 0
        %6619 = vmatpush2.bf16.msra.mxu0 %v5000
        %6620 = vmatprep.subr.bf16.mxu0 0
        %6621 = vmatpush2.bf16.msra.mxu0 %v4999
        %6622 = vmatprep.subr.bf16.mxu0 0
        %6623 = vmatpush2.bf16.msra.mxu0 %v4998
        %6624 = vmatprep.subr.bf16.mxu0 0
        %6625 = vmatpush2.bf16.msra.mxu0 %v4997
        %6626 = vmatprep.subr.bf16.mxu0 0
        %6627 = vmatpush2.bf16.msra.mxu0 %v4996
        %6628 = vmatprep.mubr.bf16.mxu0 %v4451
        %6629 = vmatmul.mubr.bf16.gmra.mxu0 %v4450
        %v6630 = vpop.f32.mrf.mxu0
        %v6631 = vadd.f32 %v6543, %v6630
        %v6632 = vpop.f32.mrf.mxu0
        %v6633 = vpop.f32.mrf.mxu0
        %v6634 = vadd.f32 %v6546, %v6633
        %v6635 = vpop.f32.mrf.mxu0
        %6636 = vmatprep.mubr.bf16.mxu0 %v4463
        %6637 = vmatmul.mubr.bf16.gmra.mxu0 %v4462
        %v6638 = vpop.f32.mrf.mxu0
        %v6639 = vadd.f32 %v6551, %v6638
        %v6640 = vpop.f32.mrf.mxu0
        %v6641 = vpop.f32.mrf.mxu0
        %v6642 = vadd.f32 %v6554, %v6641
        %v6643 = vpop.f32.mrf.mxu0
        %6644 = vmatprep.mubr.bf16.mxu0 %v4475
        %6645 = vmatmul.mubr.bf16.gmra.mxu0 %v4474
        %v6646 = vpop.f32.mrf.mxu0
        %v6647 = vadd.f32 %v6559, %v6646
        %v6648 = vpop.f32.mrf.mxu0
        %v6649 = vpop.f32.mrf.mxu0
        %v6650 = vadd.f32 %v6562, %v6649
        %v6651 = vpop.f32.mrf.mxu0
        %6652 = vmatprep.mubr.bf16.mxu0 %v4487
        %6653 = vmatmul.mubr.bf16.gmra.mxu0 %v4486
        %v6654 = vpop.f32.mrf.mxu0
        %v6655 = vadd.f32 %v6567, %v6654
        %v6656 = vpop.f32.mrf.mxu0
        %v6657 = vpop.f32.mrf.mxu0
        %v6658 = vadd.f32 %v6570, %v6657
        %v6659 = vpop.f32.mrf.mxu0
        %6660 = vmatprep.mubr.bf16.mxu0 %v4499
        %6661 = vmatmul.mubr.bf16.gmra.mxu0 %v4498
        %v6662 = vpop.f32.mrf.mxu0
        %v6663 = vadd.f32 %v6575, %v6662
        %v6664 = vpop.f32.mrf.mxu0
        %v6665 = vpop.f32.mrf.mxu0
        %v6666 = vadd.f32 %v6578, %v6665
        %v6667 = vpop.f32.mrf.mxu0
        %6668 = vmatprep.mubr.bf16.mxu0 %v4511
        %6669 = vmatmul.mubr.bf16.gmra.mxu0 %v4510
        %v6670 = vpop.f32.mrf.mxu0
        %v6671 = vadd.f32 %v6583, %v6670
        %v6672 = vpop.f32.mrf.mxu0
        %v6673 = vpop.f32.mrf.mxu0
        %v6674 = vadd.f32 %v6586, %v6673
        %v6675 = vpop.f32.mrf.mxu0
        %6676 = vmatprep.mubr.bf16.mxu0 %v4523
        %6677 = vmatmul.mubr.bf16.gmra.mxu0 %v4522
        %v6678 = vpop.f32.mrf.mxu0
        %v6679 = vadd.f32 %v6591, %v6678
        %v6680 = vpop.f32.mrf.mxu0
        %v6681 = vpop.f32.mrf.mxu0
        %v6682 = vpop.f32.mrf.mxu0
        %6683 = vdwg.mxu0
        %v6684 = vadd.f32 %v6103, %v6631
        %v6685 = vadd.f32 %v6106, %v6634
        %v6686 = vadd.f32 %v6111, %v6639
        %v6687 = vadd.f32 %v6114, %v6642
        %v6688 = vadd.f32 %v6119, %v6647
        %v6689 = vadd.f32 %v6122, %v6650
        %v6690 = vadd.f32 %v6127, %v6655
        %v6691 = vadd.f32 %v6130, %v6658
        %v6692 = vadd.f32 %v6135, %v6663
        %v6693 = vadd.f32 %v6138, %v6666
        %v6694 = vadd.f32 %v6143, %v6671
        %v6695 = vadd.f32 %v6146, %v6674
        %v6696 = vadd.f32 %v6151, %v6679
        %v6697 = vpack.c.bf16 %v6685, %v6684
        %v6698 = vpack.c.bf16 %v6687, %v6686
        %v6699 = vpack.c.bf16 %v6689, %v6688
        %v6700 = vpack.c.bf16 %v6691, %v6690
        %v6701 = vpack.c.bf16 %v6693, %v6692
        %v6702 = vpack.c.bf16 %v6695, %v6694
        %v6703 = vpack.c.bf16 %v6696, %v6696
        %v6704 = vunpack.c.l.bf16 %v6697
        %v6705 = vunpack.c.h.bf16 %v6697
        %v6706 = vunpack.c.l.bf16 %v6698
        %v6707 = vunpack.c.h.bf16 %v6698
        %v6708 = vunpack.c.l.bf16 %v6699
        %v6709 = vunpack.c.h.bf16 %v6699
        %v6710 = vunpack.c.l.bf16 %v6700
        %v6711 = vunpack.c.h.bf16 %v6700
        %v6712 = vunpack.c.l.bf16 %v6701
        %v6713 = vunpack.c.h.bf16 %v6701
        %v6714 = vunpack.c.l.bf16 %v6702
        %v6715 = vunpack.c.h.bf16 %v6702
        %v6716 = vunpack.c.l.bf16 %v6703
        %v6717 = vsub.f32 %v6684, %v6704
        %v6718 = vsub.f32 %v6685, %v6705
        %v6719 = vsub.f32 %v6686, %v6706
        %v6720 = vsub.f32 %v6687, %v6707
        %v6721 = vsub.f32 %v6688, %v6708
        %v6722 = vsub.f32 %v6689, %v6709
        %v6723 = vsub.f32 %v6690, %v6710
        %v6724 = vsub.f32 %v6691, %v6711
        %v6725 = vsub.f32 %v6692, %v6712
        %v6726 = vsub.f32 %v6693, %v6713
        %v6727 = vsub.f32 %v6694, %v6714
        %v6728 = vsub.f32 %v6695, %v6715
        %v6729 = vsub.f32 %v6696, %v6716
        %v6730 = vpack.c.bf16 %v6718, %v6717
        %v6731 = vpack.c.bf16 %v6720, %v6719
        %v6732 = vpack.c.bf16 %v6722, %v6721
        %v6733 = vpack.c.bf16 %v6724, %v6723
        %v6734 = vpack.c.bf16 %v6726, %v6725
        %v6735 = vpack.c.bf16 %v6728, %v6727
        %v6736 = vpack.c.bf16 %v6729, %v6729
        %v6737 = vunpack.c.l.bf16 %v6730
        %v6738 = vunpack.c.h.bf16 %v6730
        %v6739 = vunpack.c.l.bf16 %v6731
        %v6740 = vunpack.c.h.bf16 %v6731
        %v6741 = vunpack.c.l.bf16 %v6732
        %v6742 = vunpack.c.h.bf16 %v6732
        %v6743 = vunpack.c.l.bf16 %v6733
        %v6744 = vunpack.c.h.bf16 %v6733
        %v6745 = vunpack.c.l.bf16 %v6734
        %v6746 = vunpack.c.h.bf16 %v6734
        %v6747 = vunpack.c.l.bf16 %v6735
        %v6748 = vunpack.c.h.bf16 %v6735
        %v6749 = vunpack.c.l.bf16 %v6736
        %v6750 = vsub.f32 %v6717, %v6737
        %v6751 = vsub.f32 %v6718, %v6738
        %v6752 = vsub.f32 %v6719, %v6739
        %v6753 = vsub.f32 %v6720, %v6740
        %v6754 = vsub.f32 %v6721, %v6741
        %v6755 = vsub.f32 %v6722, %v6742
        %v6756 = vsub.f32 %v6723, %v6743
        %v6757 = vsub.f32 %v6724, %v6744
        %v6758 = vsub.f32 %v6725, %v6745
        %v6759 = vsub.f32 %v6726, %v6746
        %v6760 = vsub.f32 %v6727, %v6747
        %v6761 = vsub.f32 %v6728, %v6748
        %v6762 = vsub.f32 %v6729, %v6749
        %v6763 = vpack.c.bf16 %v6751, %v6750
        %v6764 = vpack.c.bf16 %v6753, %v6752
        %v6765 = vpack.c.bf16 %v6755, %v6754
        %v6766 = vpack.c.bf16 %v6757, %v6756
        %v6767 = vpack.c.bf16 %v6759, %v6758
        %v6768 = vpack.c.bf16 %v6761, %v6760
        %v6769 = vpack.c.bf16 %v6762, %v6762
        %v6788 = vunpack.c.l.b16 %v746
        %v6789 = vunpack.c.h.b16 %v746
        %v6790 = vunpack.c.l.b16 %v747
        %v6791 = vunpack.c.h.b16 %v747
        %v6792 = vunpack.c.l.b16 %v748
        %v6793 = vunpack.c.h.b16 %v748
        %v6794 = vunpack.c.l.b16 %v749
        %v6795 = vunpack.c.h.b16 %v749
        %v6796 = vunpack.c.l.b16 %v750
        %v6797 = vunpack.c.h.b16 %v750
        %v6798 = vunpack.c.l.b16 %v751
        %v6799 = vunpack.c.h.b16 %v751
        %v6800 = vunpack.c.l.b16 %v752
        %v6801 = vunpack.c.h.b16 %v752
        %v6802 = vunpack.c.l.b16 %v753
        %v6803 = vunpack.c.h.b16 %v753
        %v6804 = vunpack.c.l.b16 %v754
        %v6805 = vunpack.c.h.b16 %v754
        %v6806 = vunpack.c.l.b16 %v755
        %v6807 = vunpack.c.h.b16 %v755
        %v6808 = vunpack.c.l.b16 %v756
        %v6809 = vunpack.c.h.b16 %v756
        %v6810 = vunpack.c.l.b16 %v757
        %v6811 = vunpack.c.h.b16 %v757
        %v6812 = vunpack.c.l.b16 %v758
        %v6813 = vunpack.c.h.b16 %v758
        %v6814 = vunpack.c.l.b16 %v759
        %v6815 = vunpack.c.h.b16 %v759
        %v6816 = vunpack.c.l.b16 %v760
        %v6817 = vunpack.c.h.b16 %v760
        %v6818 = vunpack.c.l.b16 %v761
        %v6819 = vunpack.c.h.b16 %v761
        %v6820 = vunpack.c.l.b16 %v762
        %v6821 = vunpack.c.h.b16 %v762
        %v6822 = vunpack.c.l.b16 %v763
        %v6823 = vunpack.c.h.b16 %v763
        %v6824 = vpack.c.b16 %v6800, %v6788
        %v6825 = vpack.c.b16 %v6801, %v6789
        %v6826 = vpack.c.b16 %v6802, %v6790
        %v6827 = vpack.c.b16 %v6803, %v6791
        %v6828 = vpack.c.b16 %v6804, %v6792
        %v6829 = vpack.c.b16 %v6805, %v6793
        %v6830 = vpack.c.b16 %v6806, %v6794
        %v6831 = vpack.c.b16 %v6807, %v6795
        %v6832 = vpack.c.b16 %v6808, %v6796
        %v6833 = vpack.c.b16 %v6809, %v6797
        %v6834 = vpack.c.b16 %v6810, %v6798
        %v6835 = vpack.c.b16 %v6811, %v6799
        %v6836 = vpack.c.b16 %v6812, %v6812
        %v6837 = vpack.c.b16 %v6813, %v6813
        %v6838 = vpack.c.b16 %v6814, %v6814
        %v6839 = vpack.c.b16 %v6815, %v6815
        %v6840 = vpack.c.b16 %v6816, %v6816
        %v6841 = vpack.c.b16 %v6817, %v6817
        %v6842 = vpack.c.b16 %v6818, %v6818
        %v6843 = vpack.c.b16 %v6819, %v6819
        %v6844 = vpack.c.b16 %v6820, %v6820
        %v6845 = vpack.c.b16 %v6821, %v6821
        %v6846 = vpack.c.b16 %v6822, %v6822
        %v6847 = vpack.c.b16 %v6823, %v6823
        %vm6860 = vcmask 195584
        %v6862 = vsel %vm6860, %v6730, 0
        %v6865 = vsel %vm6860, %v6731, 0
        %v6868 = vsel %vm6860, %v6732, 0
        %v6871 = vsel %vm6860, %v6733, 0
        %v6874 = vsel %vm6860, %v6734, 0
        %v6877 = vsel %vm6860, %v6735, 0
        %v6880 = vsel %vm6860, %v6736, 0
        %vm6882 = vcmask 1043456
        %v6884 = vsel %vm6882, %v6836, 0
        %v6887 = vsel %vm6882, %v6837, 0
        %v6890 = vsel %vm6882, %v6838, 0
        %v6893 = vsel %vm6882, %v6839, 0
        %v6896 = vsel %vm6882, %v6840, 0
        %v6899 = vsel %vm6882, %v6841, 0
        %v6902 = vsel %vm6882, %v6842, 0
        %v6905 = vsel %vm6882, %v6843, 0
        %v6908 = vsel %vm6882, %v6844, 0
        %v6911 = vsel %vm6882, %v6845, 0
        %v6914 = vsel %vm6882, %v6846, 0
        %v6917 = vsel %vm6882, %v6847, 0
        %6919 = vmatprep.subr.bf16.mxu0 0
        %6920 = vmatpush1.bf16.msra.mxu0 0
        %6921 = vmatprep.subr.bf16.mxu0 0
        %6922 = vmatpush1.bf16.msra.mxu0 0
        %6923 = vmatprep.subr.bf16.mxu0 0
        %6924 = vmatpush1.bf16.msra.mxu0 0
        %6925 = vmatprep.subr.bf16.mxu0 0
        %6926 = vmatpush1.bf16.msra.mxu0 0
        %6927 = vmatprep.subr.bf16.mxu0 0
        %6928 = vmatpush1.bf16.msra.mxu0 0
        %6929 = vmatprep.subr.bf16.mxu0 0
        %6930 = vmatpush1.bf16.msra.mxu0 0
        %6931 = vmatprep.subr.bf16.mxu0 %v6887
        %6932 = vmatpush1.bf16.msra.mxu0 %v6884
        %6933 = vmatprep.subr.bf16.mxu0 %v6825
        %6934 = vmatpush1.bf16.msra.mxu0 %v6824
        %6935 = vmatprep.subr.bf16.mxu0 0
        %6936 = vmatpush2.bf16.msra.mxu0 0
        %6937 = vmatprep.subr.bf16.mxu0 0
        %6938 = vmatpush2.bf16.msra.mxu0 0
        %6939 = vmatprep.subr.bf16.mxu0 0
        %6940 = vmatpush2.bf16.msra.mxu0 0
        %6941 = vmatprep.subr.bf16.mxu0 0
        %6942 = vmatpush2.bf16.msra.mxu0 0
        %6943 = vmatprep.subr.bf16.mxu0 0
        %6944 = vmatpush2.bf16.msra.mxu0 0
        %6945 = vmatprep.subr.bf16.mxu0 0
        %6946 = vmatpush2.bf16.msra.mxu0 0
        %6947 = vmatprep.subr.bf16.mxu0 0
        %6948 = vmatpush2.bf16.msra.mxu0 0
        %6949 = vmatprep.subr.bf16.mxu0 0
        %6950 = vmatpush2.bf16.msra.mxu0 0
        %6951 = vmatprep.mubr.bf16.mxu0 0
        %6952 = vmatmul.mubr.bf16.gmra.mxu0 %v6862
        %v6953 = vpop.f32.mrf.mxu0
        %v6954 = vadd.f32 0.0, %v6953
        %v6955 = vpop.f32.mrf.mxu0
        %v6956 = vadd.f32 0.0, %v6955
        %v6957 = vpop.f32.mrf.mxu0
        %v6958 = vadd.f32 0.0, %v6957
        %v6959 = vpop.f32.mrf.mxu0
        %v6960 = vadd.f32 0.0, %v6959
        %6961 = vmatprep.mubr.bf16.mxu0 0
        %6962 = vmatmul.mubr.bf16.gmra.mxu0 %v6865
        %v6963 = vpop.f32.mrf.mxu0
        %v6964 = vadd.f32 0.0, %v6963
        %v6965 = vpop.f32.mrf.mxu0
        %v6966 = vadd.f32 0.0, %v6965
        %v6967 = vpop.f32.mrf.mxu0
        %v6968 = vadd.f32 0.0, %v6967
        %v6969 = vpop.f32.mrf.mxu0
        %v6970 = vadd.f32 0.0, %v6969
        %6971 = vmatprep.mubr.bf16.mxu0 0
        %6972 = vmatmul.mubr.bf16.gmra.mxu0 %v6868
        %v6973 = vpop.f32.mrf.mxu0
        %v6974 = vadd.f32 0.0, %v6973
        %v6975 = vpop.f32.mrf.mxu0
        %v6976 = vadd.f32 0.0, %v6975
        %v6977 = vpop.f32.mrf.mxu0
        %v6978 = vadd.f32 0.0, %v6977
        %v6979 = vpop.f32.mrf.mxu0
        %v6980 = vadd.f32 0.0, %v6979
        %6981 = vmatprep.mubr.bf16.mxu0 0
        %6982 = vmatmul.mubr.bf16.gmra.mxu0 %v6871
        %v6983 = vpop.f32.mrf.mxu0
        %v6984 = vadd.f32 0.0, %v6983
        %v6985 = vpop.f32.mrf.mxu0
        %v6986 = vadd.f32 0.0, %v6985
        %v6987 = vpop.f32.mrf.mxu0
        %v6988 = vadd.f32 0.0, %v6987
        %v6989 = vpop.f32.mrf.mxu0
        %v6990 = vadd.f32 0.0, %v6989
        %6991 = vmatprep.mubr.bf16.mxu0 0
        %6992 = vmatmul.mubr.bf16.gmra.mxu0 %v6874
        %v6993 = vpop.f32.mrf.mxu0
        %v6994 = vadd.f32 0.0, %v6993
        %v6995 = vpop.f32.mrf.mxu0
        %v6996 = vadd.f32 0.0, %v6995
        %v6997 = vpop.f32.mrf.mxu0
        %v6998 = vadd.f32 0.0, %v6997
        %v6999 = vpop.f32.mrf.mxu0
        %v7000 = vadd.f32 0.0, %v6999
        %7001 = vmatprep.mubr.bf16.mxu0 0
        %7002 = vmatmul.mubr.bf16.gmra.mxu0 %v6877
        %v7003 = vpop.f32.mrf.mxu0
        %v7004 = vadd.f32 0.0, %v7003
        %v7005 = vpop.f32.mrf.mxu0
        %v7006 = vadd.f32 0.0, %v7005
        %v7007 = vpop.f32.mrf.mxu0
        %v7008 = vadd.f32 0.0, %v7007
        %v7009 = vpop.f32.mrf.mxu0
        %v7010 = vadd.f32 0.0, %v7009
        %7011 = vmatprep.mubr.bf16.mxu0 0
        %7012 = vmatmul.mubr.bf16.gmra.mxu0 %v6880
        %v7013 = vpop.f32.mrf.mxu0
        %v7014 = vadd.f32 0.0, %v7013
        %v7015 = vpop.f32.mrf.mxu0
        %v7016 = vadd.f32 0.0, %v7015
        %v7017 = vpop.f32.mrf.mxu0
        %v7018 = vpop.f32.mrf.mxu0
        %7019 = vdwg.mxu0
        %7020 = vmatprep.subr.bf16.mxu0 0
        %7021 = vmatpush1.bf16.msra.mxu0 0
        %7022 = vmatprep.subr.bf16.mxu0 0
        %7023 = vmatpush1.bf16.msra.mxu0 0
        %7024 = vmatprep.subr.bf16.mxu0 0
        %7025 = vmatpush1.bf16.msra.mxu0 0
        %7026 = vmatprep.subr.bf16.mxu0 0
        %7027 = vmatpush1.bf16.msra.mxu0 0
        %7028 = vmatprep.subr.bf16.mxu0 0
        %7029 = vmatpush1.bf16.msra.mxu0 0
        %7030 = vmatprep.subr.bf16.mxu0 0
        %7031 = vmatpush1.bf16.msra.mxu0 0
        %7032 = vmatprep.subr.bf16.mxu0 %v6893
        %7033 = vmatpush1.bf16.msra.mxu0 %v6890
        %7034 = vmatprep.subr.bf16.mxu0 %v6827
        %7035 = vmatpush1.bf16.msra.mxu0 %v6826
        %7036 = vmatprep.subr.bf16.mxu0 0
        %7037 = vmatpush2.bf16.msra.mxu0 0
        %7038 = vmatprep.subr.bf16.mxu0 0
        %7039 = vmatpush2.bf16.msra.mxu0 0
        %7040 = vmatprep.subr.bf16.mxu0 0
        %7041 = vmatpush2.bf16.msra.mxu0 0
        %7042 = vmatprep.subr.bf16.mxu0 0
        %7043 = vmatpush2.bf16.msra.mxu0 0
        %7044 = vmatprep.subr.bf16.mxu0 0
        %7045 = vmatpush2.bf16.msra.mxu0 0
        %7046 = vmatprep.subr.bf16.mxu0 0
        %7047 = vmatpush2.bf16.msra.mxu0 0
        %7048 = vmatprep.subr.bf16.mxu0 0
        %7049 = vmatpush2.bf16.msra.mxu0 0
        %7050 = vmatprep.subr.bf16.mxu0 0
        %7051 = vmatpush2.bf16.msra.mxu0 0
        %7052 = vmatprep.mubr.bf16.mxu0 0
        %7053 = vmatmul.mubr.bf16.gmra.mxu0 %v6862
        %v7054 = vpop.f32.mrf.mxu0
        %v7055 = vadd.f32 0.0, %v7054
        %v7056 = vpop.f32.mrf.mxu0
        %v7057 = vadd.f32 0.0, %v7056
        %v7058 = vpop.f32.mrf.mxu0
        %v7059 = vadd.f32 0.0, %v7058
        %v7060 = vpop.f32.mrf.mxu0
        %v7061 = vadd.f32 0.0, %v7060
        %7062 = vmatprep.mubr.bf16.mxu0 0
        %7063 = vmatmul.mubr.bf16.gmra.mxu0 %v6865
        %v7064 = vpop.f32.mrf.mxu0
        %v7065 = vadd.f32 0.0, %v7064
        %v7066 = vpop.f32.mrf.mxu0
        %v7067 = vadd.f32 0.0, %v7066
        %v7068 = vpop.f32.mrf.mxu0
        %v7069 = vadd.f32 0.0, %v7068
        %v7070 = vpop.f32.mrf.mxu0
        %v7071 = vadd.f32 0.0, %v7070
        %7072 = vmatprep.mubr.bf16.mxu0 0
        %7073 = vmatmul.mubr.bf16.gmra.mxu0 %v6868
        %v7074 = vpop.f32.mrf.mxu0
        %v7075 = vadd.f32 0.0, %v7074
        %v7076 = vpop.f32.mrf.mxu0
        %v7077 = vadd.f32 0.0, %v7076
        %v7078 = vpop.f32.mrf.mxu0
        %v7079 = vadd.f32 0.0, %v7078
        %v7080 = vpop.f32.mrf.mxu0
        %v7081 = vadd.f32 0.0, %v7080
        %7082 = vmatprep.mubr.bf16.mxu0 0
        %7083 = vmatmul.mubr.bf16.gmra.mxu0 %v6871
        %v7084 = vpop.f32.mrf.mxu0
        %v7085 = vadd.f32 0.0, %v7084
        %v7086 = vpop.f32.mrf.mxu0
        %v7087 = vadd.f32 0.0, %v7086
        %v7088 = vpop.f32.mrf.mxu0
        %v7089 = vadd.f32 0.0, %v7088
        %v7090 = vpop.f32.mrf.mxu0
        %v7091 = vadd.f32 0.0, %v7090
        %7092 = vmatprep.mubr.bf16.mxu0 0
        %7093 = vmatmul.mubr.bf16.gmra.mxu0 %v6874
        %v7094 = vpop.f32.mrf.mxu0
        %v7095 = vadd.f32 0.0, %v7094
        %v7096 = vpop.f32.mrf.mxu0
        %v7097 = vadd.f32 0.0, %v7096
        %v7098 = vpop.f32.mrf.mxu0
        %v7099 = vadd.f32 0.0, %v7098
        %v7100 = vpop.f32.mrf.mxu0
        %v7101 = vadd.f32 0.0, %v7100
        %7102 = vmatprep.mubr.bf16.mxu0 0
        %7103 = vmatmul.mubr.bf16.gmra.mxu0 %v6877
        %v7104 = vpop.f32.mrf.mxu0
        %v7105 = vadd.f32 0.0, %v7104
        %v7106 = vpop.f32.mrf.mxu0
        %v7107 = vadd.f32 0.0, %v7106
        %v7108 = vpop.f32.mrf.mxu0
        %v7109 = vadd.f32 0.0, %v7108
        %v7110 = vpop.f32.mrf.mxu0
        %v7111 = vadd.f32 0.0, %v7110
        %7112 = vmatprep.mubr.bf16.mxu0 0
        %7113 = vmatmul.mubr.bf16.gmra.mxu0 %v6880
        %v7114 = vpop.f32.mrf.mxu0
        %v7115 = vadd.f32 0.0, %v7114
        %v7116 = vpop.f32.mrf.mxu0
        %v7117 = vadd.f32 0.0, %v7116
        %v7118 = vpop.f32.mrf.mxu0
        %v7119 = vpop.f32.mrf.mxu0
        %7120 = vdwg.mxu0
        %7121 = vmatprep.subr.bf16.mxu0 0
        %7122 = vmatpush1.bf16.msra.mxu0 0
        %7123 = vmatprep.subr.bf16.mxu0 0
        %7124 = vmatpush1.bf16.msra.mxu0 0
        %7125 = vmatprep.subr.bf16.mxu0 0
        %7126 = vmatpush1.bf16.msra.mxu0 0
        %7127 = vmatprep.subr.bf16.mxu0 0
        %7128 = vmatpush1.bf16.msra.mxu0 0
        %7129 = vmatprep.subr.bf16.mxu0 0
        %7130 = vmatpush1.bf16.msra.mxu0 0
        %7131 = vmatprep.subr.bf16.mxu0 0
        %7132 = vmatpush1.bf16.msra.mxu0 0
        %7133 = vmatprep.subr.bf16.mxu0 %v6899
        %7134 = vmatpush1.bf16.msra.mxu0 %v6896
        %7135 = vmatprep.subr.bf16.mxu0 %v6829
        %7136 = vmatpush1.bf16.msra.mxu0 %v6828
        %7137 = vmatprep.subr.bf16.mxu0 0
        %7138 = vmatpush2.bf16.msra.mxu0 0
        %7139 = vmatprep.subr.bf16.mxu0 0
        %7140 = vmatpush2.bf16.msra.mxu0 0
        %7141 = vmatprep.subr.bf16.mxu0 0
        %7142 = vmatpush2.bf16.msra.mxu0 0
        %7143 = vmatprep.subr.bf16.mxu0 0
        %7144 = vmatpush2.bf16.msra.mxu0 0
        %7145 = vmatprep.subr.bf16.mxu0 0
        %7146 = vmatpush2.bf16.msra.mxu0 0
        %7147 = vmatprep.subr.bf16.mxu0 0
        %7148 = vmatpush2.bf16.msra.mxu0 0
        %7149 = vmatprep.subr.bf16.mxu0 0
        %7150 = vmatpush2.bf16.msra.mxu0 0
        %7151 = vmatprep.subr.bf16.mxu0 0
        %7152 = vmatpush2.bf16.msra.mxu0 0
        %7153 = vmatprep.mubr.bf16.mxu0 0
        %7154 = vmatmul.mubr.bf16.gmra.mxu0 %v6862
        %v7155 = vpop.f32.mrf.mxu0
        %v7156 = vadd.f32 0.0, %v7155
        %v7157 = vpop.f32.mrf.mxu0
        %v7158 = vadd.f32 0.0, %v7157
        %v7159 = vpop.f32.mrf.mxu0
        %v7160 = vadd.f32 0.0, %v7159
        %v7161 = vpop.f32.mrf.mxu0
        %v7162 = vadd.f32 0.0, %v7161
        %7163 = vmatprep.mubr.bf16.mxu0 0
        %7164 = vmatmul.mubr.bf16.gmra.mxu0 %v6865
        %v7165 = vpop.f32.mrf.mxu0
        %v7166 = vadd.f32 0.0, %v7165
        %v7167 = vpop.f32.mrf.mxu0
        %v7168 = vadd.f32 0.0, %v7167
        %v7169 = vpop.f32.mrf.mxu0
        %v7170 = vadd.f32 0.0, %v7169
        %v7171 = vpop.f32.mrf.mxu0
        %v7172 = vadd.f32 0.0, %v7171
        %7173 = vmatprep.mubr.bf16.mxu0 0
        %7174 = vmatmul.mubr.bf16.gmra.mxu0 %v6868
        %v7175 = vpop.f32.mrf.mxu0
        %v7176 = vadd.f32 0.0, %v7175
        %v7177 = vpop.f32.mrf.mxu0
        %v7178 = vadd.f32 0.0, %v7177
        %v7179 = vpop.f32.mrf.mxu0
        %v7180 = vadd.f32 0.0, %v7179
        %v7181 = vpop.f32.mrf.mxu0
        %v7182 = vadd.f32 0.0, %v7181
        %7183 = vmatprep.mubr.bf16.mxu0 0
        %7184 = vmatmul.mubr.bf16.gmra.mxu0 %v6871
        %v7185 = vpop.f32.mrf.mxu0
        %v7186 = vadd.f32 0.0, %v7185
        %v7187 = vpop.f32.mrf.mxu0
        %v7188 = vadd.f32 0.0, %v7187
        %v7189 = vpop.f32.mrf.mxu0
        %v7190 = vadd.f32 0.0, %v7189
        %v7191 = vpop.f32.mrf.mxu0
        %v7192 = vadd.f32 0.0, %v7191
        %7193 = vmatprep.mubr.bf16.mxu0 0
        %7194 = vmatmul.mubr.bf16.gmra.mxu0 %v6874
        %v7195 = vpop.f32.mrf.mxu0
        %v7196 = vadd.f32 0.0, %v7195
        %v7197 = vpop.f32.mrf.mxu0
        %v7198 = vadd.f32 0.0, %v7197
        %v7199 = vpop.f32.mrf.mxu0
        %v7200 = vadd.f32 0.0, %v7199
        %v7201 = vpop.f32.mrf.mxu0
        %v7202 = vadd.f32 0.0, %v7201
        %7203 = vmatprep.mubr.bf16.mxu0 0
        %7204 = vmatmul.mubr.bf16.gmra.mxu0 %v6877
        %v7205 = vpop.f32.mrf.mxu0
        %v7206 = vadd.f32 0.0, %v7205
        %v7207 = vpop.f32.mrf.mxu0
        %v7208 = vadd.f32 0.0, %v7207
        %v7209 = vpop.f32.mrf.mxu0
        %v7210 = vadd.f32 0.0, %v7209
        %v7211 = vpop.f32.mrf.mxu0
        %v7212 = vadd.f32 0.0, %v7211
        %7213 = vmatprep.mubr.bf16.mxu0 0
        %7214 = vmatmul.mubr.bf16.gmra.mxu0 %v6880
        %v7215 = vpop.f32.mrf.mxu0
        %v7216 = vadd.f32 0.0, %v7215
        %v7217 = vpop.f32.mrf.mxu0
        %v7218 = vadd.f32 0.0, %v7217
        %v7219 = vpop.f32.mrf.mxu0
        %v7220 = vpop.f32.mrf.mxu0
        %7221 = vdwg.mxu0
        %7222 = vmatprep.subr.bf16.mxu0 0
        %7223 = vmatpush1.bf16.msra.mxu0 0
        %7224 = vmatprep.subr.bf16.mxu0 0
        %7225 = vmatpush1.bf16.msra.mxu0 0
        %7226 = vmatprep.subr.bf16.mxu0 0
        %7227 = vmatpush1.bf16.msra.mxu0 0
        %7228 = vmatprep.subr.bf16.mxu0 0
        %7229 = vmatpush1.bf16.msra.mxu0 0
        %7230 = vmatprep.subr.bf16.mxu0 0
        %7231 = vmatpush1.bf16.msra.mxu0 0
        %7232 = vmatprep.subr.bf16.mxu0 0
        %7233 = vmatpush1.bf16.msra.mxu0 0
        %7234 = vmatprep.subr.bf16.mxu0 %v6905
        %7235 = vmatpush1.bf16.msra.mxu0 %v6902
        %7236 = vmatprep.subr.bf16.mxu0 %v6831
        %7237 = vmatpush1.bf16.msra.mxu0 %v6830
        %7238 = vmatprep.subr.bf16.mxu0 0
        %7239 = vmatpush2.bf16.msra.mxu0 0
        %7240 = vmatprep.subr.bf16.mxu0 0
        %7241 = vmatpush2.bf16.msra.mxu0 0
        %7242 = vmatprep.subr.bf16.mxu0 0
        %7243 = vmatpush2.bf16.msra.mxu0 0
        %7244 = vmatprep.subr.bf16.mxu0 0
        %7245 = vmatpush2.bf16.msra.mxu0 0
        %7246 = vmatprep.subr.bf16.mxu0 0
        %7247 = vmatpush2.bf16.msra.mxu0 0
        %7248 = vmatprep.subr.bf16.mxu0 0
        %7249 = vmatpush2.bf16.msra.mxu0 0
        %7250 = vmatprep.subr.bf16.mxu0 0
        %7251 = vmatpush2.bf16.msra.mxu0 0
        %7252 = vmatprep.subr.bf16.mxu0 0
        %7253 = vmatpush2.bf16.msra.mxu0 0
        %7254 = vmatprep.mubr.bf16.mxu0 0
        %7255 = vmatmul.mubr.bf16.gmra.mxu0 %v6862
        %v7256 = vpop.f32.mrf.mxu0
        %v7257 = vadd.f32 0.0, %v7256
        %v7258 = vpop.f32.mrf.mxu0
        %v7259 = vadd.f32 0.0, %v7258
        %v7260 = vpop.f32.mrf.mxu0
        %v7261 = vadd.f32 0.0, %v7260
        %v7262 = vpop.f32.mrf.mxu0
        %v7263 = vadd.f32 0.0, %v7262
        %7264 = vmatprep.mubr.bf16.mxu0 0
        %7265 = vmatmul.mubr.bf16.gmra.mxu0 %v6865
        %v7266 = vpop.f32.mrf.mxu0
        %v7267 = vadd.f32 0.0, %v7266
        %v7268 = vpop.f32.mrf.mxu0
        %v7269 = vadd.f32 0.0, %v7268
        %v7270 = vpop.f32.mrf.mxu0
        %v7271 = vadd.f32 0.0, %v7270
        %v7272 = vpop.f32.mrf.mxu0
        %v7273 = vadd.f32 0.0, %v7272
        %7274 = vmatprep.mubr.bf16.mxu0 0
        %7275 = vmatmul.mubr.bf16.gmra.mxu0 %v6868
        %v7276 = vpop.f32.mrf.mxu0
        %v7277 = vadd.f32 0.0, %v7276
        %v7278 = vpop.f32.mrf.mxu0
        %v7279 = vadd.f32 0.0, %v7278
        %v7280 = vpop.f32.mrf.mxu0
        %v7281 = vadd.f32 0.0, %v7280
        %v7282 = vpop.f32.mrf.mxu0
        %v7283 = vadd.f32 0.0, %v7282
        %7284 = vmatprep.mubr.bf16.mxu0 0
        %7285 = vmatmul.mubr.bf16.gmra.mxu0 %v6871
        %v7286 = vpop.f32.mrf.mxu0
        %v7287 = vadd.f32 0.0, %v7286
        %v7288 = vpop.f32.mrf.mxu0
        %v7289 = vadd.f32 0.0, %v7288
        %v7290 = vpop.f32.mrf.mxu0
        %v7291 = vadd.f32 0.0, %v7290
        %v7292 = vpop.f32.mrf.mxu0
        %v7293 = vadd.f32 0.0, %v7292
        %7294 = vmatprep.mubr.bf16.mxu0 0
        %7295 = vmatmul.mubr.bf16.gmra.mxu0 %v6874
        %v7296 = vpop.f32.mrf.mxu0
        %v7297 = vadd.f32 0.0, %v7296
        %v7298 = vpop.f32.mrf.mxu0
        %v7299 = vadd.f32 0.0, %v7298
        %v7300 = vpop.f32.mrf.mxu0
        %v7301 = vadd.f32 0.0, %v7300
        %v7302 = vpop.f32.mrf.mxu0
        %v7303 = vadd.f32 0.0, %v7302
        %7304 = vmatprep.mubr.bf16.mxu0 0
        %7305 = vmatmul.mubr.bf16.gmra.mxu0 %v6877
        %v7306 = vpop.f32.mrf.mxu0
        %v7307 = vadd.f32 0.0, %v7306
        %v7308 = vpop.f32.mrf.mxu0
        %v7309 = vadd.f32 0.0, %v7308
        %v7310 = vpop.f32.mrf.mxu0
        %v7311 = vadd.f32 0.0, %v7310
        %v7312 = vpop.f32.mrf.mxu0
        %v7313 = vadd.f32 0.0, %v7312
        %7314 = vmatprep.mubr.bf16.mxu0 0
        %7315 = vmatmul.mubr.bf16.gmra.mxu0 %v6880
        %v7316 = vpop.f32.mrf.mxu0
        %v7317 = vadd.f32 0.0, %v7316
        %v7318 = vpop.f32.mrf.mxu0
        %v7319 = vadd.f32 0.0, %v7318
        %v7320 = vpop.f32.mrf.mxu0
        %v7321 = vpop.f32.mrf.mxu0
        %7322 = vdwg.mxu0
        %7323 = vmatprep.subr.bf16.mxu0 0
        %7324 = vmatpush1.bf16.msra.mxu0 0
        %7325 = vmatprep.subr.bf16.mxu0 0
        %7326 = vmatpush1.bf16.msra.mxu0 0
        %7327 = vmatprep.subr.bf16.mxu0 0
        %7328 = vmatpush1.bf16.msra.mxu0 0
        %7329 = vmatprep.subr.bf16.mxu0 0
        %7330 = vmatpush1.bf16.msra.mxu0 0
        %7331 = vmatprep.subr.bf16.mxu0 0
        %7332 = vmatpush1.bf16.msra.mxu0 0
        %7333 = vmatprep.subr.bf16.mxu0 0
        %7334 = vmatpush1.bf16.msra.mxu0 0
        %7335 = vmatprep.subr.bf16.mxu0 %v6911
        %7336 = vmatpush1.bf16.msra.mxu0 %v6908
        %7337 = vmatprep.subr.bf16.mxu0 %v6833
        %7338 = vmatpush1.bf16.msra.mxu0 %v6832
        %7339 = vmatprep.subr.bf16.mxu0 0
        %7340 = vmatpush2.bf16.msra.mxu0 0
        %7341 = vmatprep.subr.bf16.mxu0 0
        %7342 = vmatpush2.bf16.msra.mxu0 0
        %7343 = vmatprep.subr.bf16.mxu0 0
        %7344 = vmatpush2.bf16.msra.mxu0 0
        %7345 = vmatprep.subr.bf16.mxu0 0
        %7346 = vmatpush2.bf16.msra.mxu0 0
        %7347 = vmatprep.subr.bf16.mxu0 0
        %7348 = vmatpush2.bf16.msra.mxu0 0
        %7349 = vmatprep.subr.bf16.mxu0 0
        %7350 = vmatpush2.bf16.msra.mxu0 0
        %7351 = vmatprep.subr.bf16.mxu0 0
        %7352 = vmatpush2.bf16.msra.mxu0 0
        %7353 = vmatprep.subr.bf16.mxu0 0
        %7354 = vmatpush2.bf16.msra.mxu0 0
        %7355 = vmatprep.mubr.bf16.mxu0 0
        %7356 = vmatmul.mubr.bf16.gmra.mxu0 %v6862
        %v7357 = vpop.f32.mrf.mxu0
        %v7358 = vadd.f32 0.0, %v7357
        %v7359 = vpop.f32.mrf.mxu0
        %v7360 = vadd.f32 0.0, %v7359
        %v7361 = vpop.f32.mrf.mxu0
        %v7362 = vadd.f32 0.0, %v7361
        %v7363 = vpop.f32.mrf.mxu0
        %v7364 = vadd.f32 0.0, %v7363
        %7365 = vmatprep.mubr.bf16.mxu0 0
        %7366 = vmatmul.mubr.bf16.gmra.mxu0 %v6865
        %v7367 = vpop.f32.mrf.mxu0
        %v7368 = vadd.f32 0.0, %v7367
        %v7369 = vpop.f32.mrf.mxu0
        %v7370 = vadd.f32 0.0, %v7369
        %v7371 = vpop.f32.mrf.mxu0
        %v7372 = vadd.f32 0.0, %v7371
        %v7373 = vpop.f32.mrf.mxu0
        %v7374 = vadd.f32 0.0, %v7373
        %7375 = vmatprep.mubr.bf16.mxu0 0
        %7376 = vmatmul.mubr.bf16.gmra.mxu0 %v6868
        %v7377 = vpop.f32.mrf.mxu0
        %v7378 = vadd.f32 0.0, %v7377
        %v7379 = vpop.f32.mrf.mxu0
        %v7380 = vadd.f32 0.0, %v7379
        %v7381 = vpop.f32.mrf.mxu0
        %v7382 = vadd.f32 0.0, %v7381
        %v7383 = vpop.f32.mrf.mxu0
        %v7384 = vadd.f32 0.0, %v7383
        %7385 = vmatprep.mubr.bf16.mxu0 0
        %7386 = vmatmul.mubr.bf16.gmra.mxu0 %v6871
        %v7387 = vpop.f32.mrf.mxu0
        %v7388 = vadd.f32 0.0, %v7387
        %v7389 = vpop.f32.mrf.mxu0
        %v7390 = vadd.f32 0.0, %v7389
        %v7391 = vpop.f32.mrf.mxu0
        %v7392 = vadd.f32 0.0, %v7391
        %v7393 = vpop.f32.mrf.mxu0
        %v7394 = vadd.f32 0.0, %v7393
        %7395 = vmatprep.mubr.bf16.mxu0 0
        %7396 = vmatmul.mubr.bf16.gmra.mxu0 %v6874
        %v7397 = vpop.f32.mrf.mxu0
        %v7398 = vadd.f32 0.0, %v7397
        %v7399 = vpop.f32.mrf.mxu0
        %v7400 = vadd.f32 0.0, %v7399
        %v7401 = vpop.f32.mrf.mxu0
        %v7402 = vadd.f32 0.0, %v7401
        %v7403 = vpop.f32.mrf.mxu0
        %v7404 = vadd.f32 0.0, %v7403
        %7405 = vmatprep.mubr.bf16.mxu0 0
        %7406 = vmatmul.mubr.bf16.gmra.mxu0 %v6877
        %v7407 = vpop.f32.mrf.mxu0
        %v7408 = vadd.f32 0.0, %v7407
        %v7409 = vpop.f32.mrf.mxu0
        %v7410 = vadd.f32 0.0, %v7409
        %v7411 = vpop.f32.mrf.mxu0
        %v7412 = vadd.f32 0.0, %v7411
        %v7413 = vpop.f32.mrf.mxu0
        %v7414 = vadd.f32 0.0, %v7413
        %7415 = vmatprep.mubr.bf16.mxu0 0
        %7416 = vmatmul.mubr.bf16.gmra.mxu0 %v6880
        %v7417 = vpop.f32.mrf.mxu0
        %v7418 = vadd.f32 0.0, %v7417
        %v7419 = vpop.f32.mrf.mxu0
        %v7420 = vadd.f32 0.0, %v7419
        %v7421 = vpop.f32.mrf.mxu0
        %v7422 = vpop.f32.mrf.mxu0
        %7423 = vdwg.mxu0
        %7424 = vmatprep.subr.bf16.mxu0 0
        %7425 = vmatpush1.bf16.msra.mxu0 0
        %7426 = vmatprep.subr.bf16.mxu0 0
        %7427 = vmatpush1.bf16.msra.mxu0 0
        %7428 = vmatprep.subr.bf16.mxu0 0
        %7429 = vmatpush1.bf16.msra.mxu0 0
        %7430 = vmatprep.subr.bf16.mxu0 0
        %7431 = vmatpush1.bf16.msra.mxu0 0
        %7432 = vmatprep.subr.bf16.mxu0 0
        %7433 = vmatpush1.bf16.msra.mxu0 0
        %7434 = vmatprep.subr.bf16.mxu0 0
        %7435 = vmatpush1.bf16.msra.mxu0 0
        %7436 = vmatprep.subr.bf16.mxu0 %v6917
        %7437 = vmatpush1.bf16.msra.mxu0 %v6914
        %7438 = vmatprep.subr.bf16.mxu0 %v6835
        %7439 = vmatpush1.bf16.msra.mxu0 %v6834
        %7440 = vmatprep.subr.bf16.mxu0 0
        %7441 = vmatpush2.bf16.msra.mxu0 0
        %7442 = vmatprep.subr.bf16.mxu0 0
        %7443 = vmatpush2.bf16.msra.mxu0 0
        %7444 = vmatprep.subr.bf16.mxu0 0
        %7445 = vmatpush2.bf16.msra.mxu0 0
        %7446 = vmatprep.subr.bf16.mxu0 0
        %7447 = vmatpush2.bf16.msra.mxu0 0
        %7448 = vmatprep.subr.bf16.mxu0 0
        %7449 = vmatpush2.bf16.msra.mxu0 0
        %7450 = vmatprep.subr.bf16.mxu0 0
        %7451 = vmatpush2.bf16.msra.mxu0 0
        %7452 = vmatprep.subr.bf16.mxu0 0
        %7453 = vmatpush2.bf16.msra.mxu0 0
        %7454 = vmatprep.subr.bf16.mxu0 0
        %7455 = vmatpush2.bf16.msra.mxu0 0
        %7456 = vmatprep.mubr.bf16.mxu0 0
        %7457 = vmatmul.mubr.bf16.gmra.mxu0 %v6862
        %v7458 = vpop.f32.mrf.mxu0
        %v7459 = vadd.f32 0.0, %v7458
        %v7460 = vpop.f32.mrf.mxu0
        %v7461 = vadd.f32 0.0, %v7460
        %v7462 = vpop.f32.mrf.mxu0
        %v7463 = vadd.f32 0.0, %v7462
        %v7464 = vpop.f32.mrf.mxu0
        %v7465 = vadd.f32 0.0, %v7464
        %7466 = vmatprep.mubr.bf16.mxu0 0
        %7467 = vmatmul.mubr.bf16.gmra.mxu0 %v6865
        %v7468 = vpop.f32.mrf.mxu0
        %v7469 = vadd.f32 0.0, %v7468
        %v7470 = vpop.f32.mrf.mxu0
        %v7471 = vadd.f32 0.0, %v7470
        %v7472 = vpop.f32.mrf.mxu0
        %v7473 = vadd.f32 0.0, %v7472
        %v7474 = vpop.f32.mrf.mxu0
        %v7475 = vadd.f32 0.0, %v7474
        %7476 = vmatprep.mubr.bf16.mxu0 0
        %7477 = vmatmul.mubr.bf16.gmra.mxu0 %v6868
        %v7478 = vpop.f32.mrf.mxu0
        %v7479 = vadd.f32 0.0, %v7478
        %v7480 = vpop.f32.mrf.mxu0
        %v7481 = vadd.f32 0.0, %v7480
        %v7482 = vpop.f32.mrf.mxu0
        %v7483 = vadd.f32 0.0, %v7482
        %v7484 = vpop.f32.mrf.mxu0
        %v7485 = vadd.f32 0.0, %v7484
        %7486 = vmatprep.mubr.bf16.mxu0 0
        %7487 = vmatmul.mubr.bf16.gmra.mxu0 %v6871
        %v7488 = vpop.f32.mrf.mxu0
        %v7489 = vadd.f32 0.0, %v7488
        %v7490 = vpop.f32.mrf.mxu0
        %v7491 = vadd.f32 0.0, %v7490
        %v7492 = vpop.f32.mrf.mxu0
        %v7493 = vadd.f32 0.0, %v7492
        %v7494 = vpop.f32.mrf.mxu0
        %v7495 = vadd.f32 0.0, %v7494
        %7496 = vmatprep.mubr.bf16.mxu0 0
        %7497 = vmatmul.mubr.bf16.gmra.mxu0 %v6874
        %v7498 = vpop.f32.mrf.mxu0
        %v7499 = vadd.f32 0.0, %v7498
        %v7500 = vpop.f32.mrf.mxu0
        %v7501 = vadd.f32 0.0, %v7500
        %v7502 = vpop.f32.mrf.mxu0
        %v7503 = vadd.f32 0.0, %v7502
        %v7504 = vpop.f32.mrf.mxu0
        %v7505 = vadd.f32 0.0, %v7504
        %7506 = vmatprep.mubr.bf16.mxu0 0
        %7507 = vmatmul.mubr.bf16.gmra.mxu0 %v6877
        %v7508 = vpop.f32.mrf.mxu0
        %v7509 = vadd.f32 0.0, %v7508
        %v7510 = vpop.f32.mrf.mxu0
        %v7511 = vadd.f32 0.0, %v7510
        %v7512 = vpop.f32.mrf.mxu0
        %v7513 = vadd.f32 0.0, %v7512
        %v7514 = vpop.f32.mrf.mxu0
        %v7515 = vadd.f32 0.0, %v7514
        %7516 = vmatprep.mubr.bf16.mxu0 0
        %7517 = vmatmul.mubr.bf16.gmra.mxu0 %v6880
        %v7518 = vpop.f32.mrf.mxu0
        %v7519 = vadd.f32 0.0, %v7518
        %v7520 = vpop.f32.mrf.mxu0
        %v7521 = vadd.f32 0.0, %v7520
        %v7522 = vpop.f32.mrf.mxu0
        %v7523 = vpop.f32.mrf.mxu0
        %7524 = vdwg.mxu0
        %v7526 = vsel %vm6860, %v6697, 0
        %v7529 = vsel %vm6860, %v6698, 0
        %v7532 = vsel %vm6860, %v6699, 0
        %v7535 = vsel %vm6860, %v6700, 0
        %v7538 = vsel %vm6860, %v6701, 0
        %v7541 = vsel %vm6860, %v6702, 0
        %v7544 = vsel %vm6860, %v6703, 0
        %7546 = vmatprep.subr.bf16.mxu0 0
        %7547 = vmatpush1.bf16.msra.mxu0 0
        %7548 = vmatprep.subr.bf16.mxu0 0
        %7549 = vmatpush1.bf16.msra.mxu0 0
        %7550 = vmatprep.subr.bf16.mxu0 0
        %7551 = vmatpush1.bf16.msra.mxu0 0
        %7552 = vmatprep.subr.bf16.mxu0 0
        %7553 = vmatpush1.bf16.msra.mxu0 0
        %7554 = vmatprep.subr.bf16.mxu0 0
        %7555 = vmatpush1.bf16.msra.mxu0 0
        %7556 = vmatprep.subr.bf16.mxu0 0
        %7557 = vmatpush1.bf16.msra.mxu0 0
        %7558 = vmatprep.subr.bf16.mxu0 %v6887
        %7559 = vmatpush1.bf16.msra.mxu0 %v6884
        %7560 = vmatprep.subr.bf16.mxu0 %v6825
        %7561 = vmatpush1.bf16.msra.mxu0 %v6824
        %7562 = vmatprep.subr.bf16.mxu0 0
        %7563 = vmatpush2.bf16.msra.mxu0 0
        %7564 = vmatprep.subr.bf16.mxu0 0
        %7565 = vmatpush2.bf16.msra.mxu0 0
        %7566 = vmatprep.subr.bf16.mxu0 0
        %7567 = vmatpush2.bf16.msra.mxu0 0
        %7568 = vmatprep.subr.bf16.mxu0 0
        %7569 = vmatpush2.bf16.msra.mxu0 0
        %7570 = vmatprep.subr.bf16.mxu0 0
        %7571 = vmatpush2.bf16.msra.mxu0 0
        %7572 = vmatprep.subr.bf16.mxu0 0
        %7573 = vmatpush2.bf16.msra.mxu0 0
        %7574 = vmatprep.subr.bf16.mxu0 0
        %7575 = vmatpush2.bf16.msra.mxu0 0
        %7576 = vmatprep.subr.bf16.mxu0 0
        %7577 = vmatpush2.bf16.msra.mxu0 0
        %7578 = vmatprep.mubr.bf16.mxu0 0
        %7579 = vmatmul.mubr.bf16.gmra.mxu0 %v7526
        %v7580 = vpop.f32.mrf.mxu0
        %v7581 = vadd.f32 %v6954, %v7580
        %v7582 = vpop.f32.mrf.mxu0
        %v7583 = vadd.f32 %v6956, %v7582
        %v7584 = vpop.f32.mrf.mxu0
        %v7585 = vadd.f32 %v6958, %v7584
        %v7586 = vpop.f32.mrf.mxu0
        %v7587 = vadd.f32 %v6960, %v7586
        %7588 = vmatprep.mubr.bf16.mxu0 0
        %7589 = vmatmul.mubr.bf16.gmra.mxu0 %v7529
        %v7590 = vpop.f32.mrf.mxu0
        %v7591 = vadd.f32 %v6964, %v7590
        %v7592 = vpop.f32.mrf.mxu0
        %v7593 = vadd.f32 %v6966, %v7592
        %v7594 = vpop.f32.mrf.mxu0
        %v7595 = vadd.f32 %v6968, %v7594
        %v7596 = vpop.f32.mrf.mxu0
        %v7597 = vadd.f32 %v6970, %v7596
        %7598 = vmatprep.mubr.bf16.mxu0 0
        %7599 = vmatmul.mubr.bf16.gmra.mxu0 %v7532
        %v7600 = vpop.f32.mrf.mxu0
        %v7601 = vadd.f32 %v6974, %v7600
        %v7602 = vpop.f32.mrf.mxu0
        %v7603 = vadd.f32 %v6976, %v7602
        %v7604 = vpop.f32.mrf.mxu0
        %v7605 = vadd.f32 %v6978, %v7604
        %v7606 = vpop.f32.mrf.mxu0
        %v7607 = vadd.f32 %v6980, %v7606
        %7608 = vmatprep.mubr.bf16.mxu0 0
        %7609 = vmatmul.mubr.bf16.gmra.mxu0 %v7535
        %v7610 = vpop.f32.mrf.mxu0
        %v7611 = vadd.f32 %v6984, %v7610
        %v7612 = vpop.f32.mrf.mxu0
        %v7613 = vadd.f32 %v6986, %v7612
        %v7614 = vpop.f32.mrf.mxu0
        %v7615 = vadd.f32 %v6988, %v7614
        %v7616 = vpop.f32.mrf.mxu0
        %v7617 = vadd.f32 %v6990, %v7616
        %7618 = vmatprep.mubr.bf16.mxu0 0
        %7619 = vmatmul.mubr.bf16.gmra.mxu0 %v7538
        %v7620 = vpop.f32.mrf.mxu0
        %v7621 = vadd.f32 %v6994, %v7620
        %v7622 = vpop.f32.mrf.mxu0
        %v7623 = vadd.f32 %v6996, %v7622
        %v7624 = vpop.f32.mrf.mxu0
        %v7625 = vadd.f32 %v6998, %v7624
        %v7626 = vpop.f32.mrf.mxu0
        %v7627 = vadd.f32 %v7000, %v7626
        %7628 = vmatprep.mubr.bf16.mxu0 0
        %7629 = vmatmul.mubr.bf16.gmra.mxu0 %v7541
        %v7630 = vpop.f32.mrf.mxu0
        %v7631 = vadd.f32 %v7004, %v7630
        %v7632 = vpop.f32.mrf.mxu0
        %v7633 = vadd.f32 %v7006, %v7632
        %v7634 = vpop.f32.mrf.mxu0
        %v7635 = vadd.f32 %v7008, %v7634
        %v7636 = vpop.f32.mrf.mxu0
        %v7637 = vadd.f32 %v7010, %v7636
        %7638 = vmatprep.mubr.bf16.mxu0 0
        %7639 = vmatmul.mubr.bf16.gmra.mxu0 %v7544
        %v7640 = vpop.f32.mrf.mxu0
        %v7641 = vadd.f32 %v7014, %v7640
        %v7642 = vpop.f32.mrf.mxu0
        %v7643 = vadd.f32 %v7016, %v7642
        %v7644 = vpop.f32.mrf.mxu0
        %v7645 = vpop.f32.mrf.mxu0
        %7646 = vdwg.mxu0
        %7647 = vmatprep.subr.bf16.mxu0 0
        %7648 = vmatpush1.bf16.msra.mxu0 0
        %7649 = vmatprep.subr.bf16.mxu0 0
        %7650 = vmatpush1.bf16.msra.mxu0 0
        %7651 = vmatprep.subr.bf16.mxu0 0
        %7652 = vmatpush1.bf16.msra.mxu0 0
        %7653 = vmatprep.subr.bf16.mxu0 0
        %7654 = vmatpush1.bf16.msra.mxu0 0
        %7655 = vmatprep.subr.bf16.mxu0 0
        %7656 = vmatpush1.bf16.msra.mxu0 0
        %7657 = vmatprep.subr.bf16.mxu0 0
        %7658 = vmatpush1.bf16.msra.mxu0 0
        %7659 = vmatprep.subr.bf16.mxu0 %v6893
        %7660 = vmatpush1.bf16.msra.mxu0 %v6890
        %7661 = vmatprep.subr.bf16.mxu0 %v6827
        %7662 = vmatpush1.bf16.msra.mxu0 %v6826
        %7663 = vmatprep.subr.bf16.mxu0 0
        %7664 = vmatpush2.bf16.msra.mxu0 0
        %7665 = vmatprep.subr.bf16.mxu0 0
        %7666 = vmatpush2.bf16.msra.mxu0 0
        %7667 = vmatprep.subr.bf16.mxu0 0
        %7668 = vmatpush2.bf16.msra.mxu0 0
        %7669 = vmatprep.subr.bf16.mxu0 0
        %7670 = vmatpush2.bf16.msra.mxu0 0
        %7671 = vmatprep.subr.bf16.mxu0 0
        %7672 = vmatpush2.bf16.msra.mxu0 0
        %7673 = vmatprep.subr.bf16.mxu0 0
        %7674 = vmatpush2.bf16.msra.mxu0 0
        %7675 = vmatprep.subr.bf16.mxu0 0
        %7676 = vmatpush2.bf16.msra.mxu0 0
        %7677 = vmatprep.subr.bf16.mxu0 0
        %7678 = vmatpush2.bf16.msra.mxu0 0
        %7679 = vmatprep.mubr.bf16.mxu0 0
        %7680 = vmatmul.mubr.bf16.gmra.mxu0 %v7526
        %v7681 = vpop.f32.mrf.mxu0
        %v7682 = vadd.f32 %v7055, %v7681
        %v7683 = vpop.f32.mrf.mxu0
        %v7684 = vadd.f32 %v7057, %v7683
        %v7685 = vpop.f32.mrf.mxu0
        %v7686 = vadd.f32 %v7059, %v7685
        %v7687 = vpop.f32.mrf.mxu0
        %v7688 = vadd.f32 %v7061, %v7687
        %7689 = vmatprep.mubr.bf16.mxu0 0
        %7690 = vmatmul.mubr.bf16.gmra.mxu0 %v7529
        %v7691 = vpop.f32.mrf.mxu0
        %v7692 = vadd.f32 %v7065, %v7691
        %v7693 = vpop.f32.mrf.mxu0
        %v7694 = vadd.f32 %v7067, %v7693
        %v7695 = vpop.f32.mrf.mxu0
        %v7696 = vadd.f32 %v7069, %v7695
        %v7697 = vpop.f32.mrf.mxu0
        %v7698 = vadd.f32 %v7071, %v7697
        %7699 = vmatprep.mubr.bf16.mxu0 0
        %7700 = vmatmul.mubr.bf16.gmra.mxu0 %v7532
        %v7701 = vpop.f32.mrf.mxu0
        %v7702 = vadd.f32 %v7075, %v7701
        %v7703 = vpop.f32.mrf.mxu0
        %v7704 = vadd.f32 %v7077, %v7703
        %v7705 = vpop.f32.mrf.mxu0
        %v7706 = vadd.f32 %v7079, %v7705
        %v7707 = vpop.f32.mrf.mxu0
        %v7708 = vadd.f32 %v7081, %v7707
        %7709 = vmatprep.mubr.bf16.mxu0 0
        %7710 = vmatmul.mubr.bf16.gmra.mxu0 %v7535
        %v7711 = vpop.f32.mrf.mxu0
        %v7712 = vadd.f32 %v7085, %v7711
        %v7713 = vpop.f32.mrf.mxu0
        %v7714 = vadd.f32 %v7087, %v7713
        %v7715 = vpop.f32.mrf.mxu0
        %v7716 = vadd.f32 %v7089, %v7715
        %v7717 = vpop.f32.mrf.mxu0
        %v7718 = vadd.f32 %v7091, %v7717
        %7719 = vmatprep.mubr.bf16.mxu0 0
        %7720 = vmatmul.mubr.bf16.gmra.mxu0 %v7538
        %v7721 = vpop.f32.mrf.mxu0
        %v7722 = vadd.f32 %v7095, %v7721
        %v7723 = vpop.f32.mrf.mxu0
        %v7724 = vadd.f32 %v7097, %v7723
        %v7725 = vpop.f32.mrf.mxu0
        %v7726 = vadd.f32 %v7099, %v7725
        %v7727 = vpop.f32.mrf.mxu0
        %v7728 = vadd.f32 %v7101, %v7727
        %7729 = vmatprep.mubr.bf16.mxu0 0
        %7730 = vmatmul.mubr.bf16.gmra.mxu0 %v7541
        %v7731 = vpop.f32.mrf.mxu0
        %v7732 = vadd.f32 %v7105, %v7731
        %v7733 = vpop.f32.mrf.mxu0
        %v7734 = vadd.f32 %v7107, %v7733
        %v7735 = vpop.f32.mrf.mxu0
        %v7736 = vadd.f32 %v7109, %v7735
        %v7737 = vpop.f32.mrf.mxu0
        %v7738 = vadd.f32 %v7111, %v7737
        %7739 = vmatprep.mubr.bf16.mxu0 0
        %7740 = vmatmul.mubr.bf16.gmra.mxu0 %v7544
        %v7741 = vpop.f32.mrf.mxu0
        %v7742 = vadd.f32 %v7115, %v7741
        %v7743 = vpop.f32.mrf.mxu0
        %v7744 = vadd.f32 %v7117, %v7743
        %v7745 = vpop.f32.mrf.mxu0
        %v7746 = vpop.f32.mrf.mxu0
        %7747 = vdwg.mxu0
        %7748 = vmatprep.subr.bf16.mxu0 0
        %7749 = vmatpush1.bf16.msra.mxu0 0
        %7750 = vmatprep.subr.bf16.mxu0 0
        %7751 = vmatpush1.bf16.msra.mxu0 0
        %7752 = vmatprep.subr.bf16.mxu0 0
        %7753 = vmatpush1.bf16.msra.mxu0 0
        %7754 = vmatprep.subr.bf16.mxu0 0
        %7755 = vmatpush1.bf16.msra.mxu0 0
        %7756 = vmatprep.subr.bf16.mxu0 0
        %7757 = vmatpush1.bf16.msra.mxu0 0
        %7758 = vmatprep.subr.bf16.mxu0 0
        %7759 = vmatpush1.bf16.msra.mxu0 0
        %7760 = vmatprep.subr.bf16.mxu0 %v6899
        %7761 = vmatpush1.bf16.msra.mxu0 %v6896
        %7762 = vmatprep.subr.bf16.mxu0 %v6829
        %7763 = vmatpush1.bf16.msra.mxu0 %v6828
        %7764 = vmatprep.subr.bf16.mxu0 0
        %7765 = vmatpush2.bf16.msra.mxu0 0
        %7766 = vmatprep.subr.bf16.mxu0 0
        %7767 = vmatpush2.bf16.msra.mxu0 0
        %7768 = vmatprep.subr.bf16.mxu0 0
        %7769 = vmatpush2.bf16.msra.mxu0 0
        %7770 = vmatprep.subr.bf16.mxu0 0
        %7771 = vmatpush2.bf16.msra.mxu0 0
        %7772 = vmatprep.subr.bf16.mxu0 0
        %7773 = vmatpush2.bf16.msra.mxu0 0
        %7774 = vmatprep.subr.bf16.mxu0 0
        %7775 = vmatpush2.bf16.msra.mxu0 0
        %7776 = vmatprep.subr.bf16.mxu0 0
        %7777 = vmatpush2.bf16.msra.mxu0 0
        %7778 = vmatprep.subr.bf16.mxu0 0
        %7779 = vmatpush2.bf16.msra.mxu0 0
        %7780 = vmatprep.mubr.bf16.mxu0 0
        %7781 = vmatmul.mubr.bf16.gmra.mxu0 %v7526
        %v7782 = vpop.f32.mrf.mxu0
        %v7783 = vadd.f32 %v7156, %v7782
        %v7784 = vpop.f32.mrf.mxu0
        %v7785 = vadd.f32 %v7158, %v7784
        %v7786 = vpop.f32.mrf.mxu0
        %v7787 = vadd.f32 %v7160, %v7786
        %v7788 = vpop.f32.mrf.mxu0
        %v7789 = vadd.f32 %v7162, %v7788
        %7790 = vmatprep.mubr.bf16.mxu0 0
        %7791 = vmatmul.mubr.bf16.gmra.mxu0 %v7529
        %v7792 = vpop.f32.mrf.mxu0
        %v7793 = vadd.f32 %v7166, %v7792
        %v7794 = vpop.f32.mrf.mxu0
        %v7795 = vadd.f32 %v7168, %v7794
        %v7796 = vpop.f32.mrf.mxu0
        %v7797 = vadd.f32 %v7170, %v7796
        %v7798 = vpop.f32.mrf.mxu0
        %v7799 = vadd.f32 %v7172, %v7798
        %7800 = vmatprep.mubr.bf16.mxu0 0
        %7801 = vmatmul.mubr.bf16.gmra.mxu0 %v7532
        %v7802 = vpop.f32.mrf.mxu0
        %v7803 = vadd.f32 %v7176, %v7802
        %v7804 = vpop.f32.mrf.mxu0
        %v7805 = vadd.f32 %v7178, %v7804
        %v7806 = vpop.f32.mrf.mxu0
        %v7807 = vadd.f32 %v7180, %v7806
        %v7808 = vpop.f32.mrf.mxu0
        %v7809 = vadd.f32 %v7182, %v7808
        %7810 = vmatprep.mubr.bf16.mxu0 0
        %7811 = vmatmul.mubr.bf16.gmra.mxu0 %v7535
        %v7812 = vpop.f32.mrf.mxu0
        %v7813 = vadd.f32 %v7186, %v7812
        %v7814 = vpop.f32.mrf.mxu0
        %v7815 = vadd.f32 %v7188, %v7814
        %v7816 = vpop.f32.mrf.mxu0
        %v7817 = vadd.f32 %v7190, %v7816
        %v7818 = vpop.f32.mrf.mxu0
        %v7819 = vadd.f32 %v7192, %v7818
        %7820 = vmatprep.mubr.bf16.mxu0 0
        %7821 = vmatmul.mubr.bf16.gmra.mxu0 %v7538
        %v7822 = vpop.f32.mrf.mxu0
        %v7823 = vadd.f32 %v7196, %v7822
        %v7824 = vpop.f32.mrf.mxu0
        %v7825 = vadd.f32 %v7198, %v7824
        %v7826 = vpop.f32.mrf.mxu0
        %v7827 = vadd.f32 %v7200, %v7826
        %v7828 = vpop.f32.mrf.mxu0
        %v7829 = vadd.f32 %v7202, %v7828
        %7830 = vmatprep.mubr.bf16.mxu0 0
        %7831 = vmatmul.mubr.bf16.gmra.mxu0 %v7541
        %v7832 = vpop.f32.mrf.mxu0
        %v7833 = vadd.f32 %v7206, %v7832
        %v7834 = vpop.f32.mrf.mxu0
        %v7835 = vadd.f32 %v7208, %v7834
        %v7836 = vpop.f32.mrf.mxu0
        %v7837 = vadd.f32 %v7210, %v7836
        %v7838 = vpop.f32.mrf.mxu0
        %v7839 = vadd.f32 %v7212, %v7838
        %7840 = vmatprep.mubr.bf16.mxu0 0
        %7841 = vmatmul.mubr.bf16.gmra.mxu0 %v7544
        %v7842 = vpop.f32.mrf.mxu0
        %v7843 = vadd.f32 %v7216, %v7842
        %v7844 = vpop.f32.mrf.mxu0
        %v7845 = vadd.f32 %v7218, %v7844
        %v7846 = vpop.f32.mrf.mxu0
        %v7847 = vpop.f32.mrf.mxu0
        %7848 = vdwg.mxu0
        %7849 = vmatprep.subr.bf16.mxu0 0
        %7850 = vmatpush1.bf16.msra.mxu0 0
        %7851 = vmatprep.subr.bf16.mxu0 0
        %7852 = vmatpush1.bf16.msra.mxu0 0
        %7853 = vmatprep.subr.bf16.mxu0 0
        %7854 = vmatpush1.bf16.msra.mxu0 0
        %7855 = vmatprep.subr.bf16.mxu0 0
        %7856 = vmatpush1.bf16.msra.mxu0 0
        %7857 = vmatprep.subr.bf16.mxu0 0
        %7858 = vmatpush1.bf16.msra.mxu0 0
        %7859 = vmatprep.subr.bf16.mxu0 0
        %7860 = vmatpush1.bf16.msra.mxu0 0
        %7861 = vmatprep.subr.bf16.mxu0 %v6905
        %7862 = vmatpush1.bf16.msra.mxu0 %v6902
        %7863 = vmatprep.subr.bf16.mxu0 %v6831
        %7864 = vmatpush1.bf16.msra.mxu0 %v6830
        %7865 = vmatprep.subr.bf16.mxu0 0
        %7866 = vmatpush2.bf16.msra.mxu0 0
        %7867 = vmatprep.subr.bf16.mxu0 0
        %7868 = vmatpush2.bf16.msra.mxu0 0
        %7869 = vmatprep.subr.bf16.mxu0 0
        %7870 = vmatpush2.bf16.msra.mxu0 0
        %7871 = vmatprep.subr.bf16.mxu0 0
        %7872 = vmatpush2.bf16.msra.mxu0 0
        %7873 = vmatprep.subr.bf16.mxu0 0
        %7874 = vmatpush2.bf16.msra.mxu0 0
        %7875 = vmatprep.subr.bf16.mxu0 0
        %7876 = vmatpush2.bf16.msra.mxu0 0
        %7877 = vmatprep.subr.bf16.mxu0 0
        %7878 = vmatpush2.bf16.msra.mxu0 0
        %7879 = vmatprep.subr.bf16.mxu0 0
        %7880 = vmatpush2.bf16.msra.mxu0 0
        %7881 = vmatprep.mubr.bf16.mxu0 0
        %7882 = vmatmul.mubr.bf16.gmra.mxu0 %v7526
        %v7883 = vpop.f32.mrf.mxu0
        %v7884 = vadd.f32 %v7257, %v7883
        %v7885 = vpop.f32.mrf.mxu0
        %v7886 = vadd.f32 %v7259, %v7885
        %v7887 = vpop.f32.mrf.mxu0
        %v7888 = vadd.f32 %v7261, %v7887
        %v7889 = vpop.f32.mrf.mxu0
        %v7890 = vadd.f32 %v7263, %v7889
        %7891 = vmatprep.mubr.bf16.mxu0 0
        %7892 = vmatmul.mubr.bf16.gmra.mxu0 %v7529
        %v7893 = vpop.f32.mrf.mxu0
        %v7894 = vadd.f32 %v7267, %v7893
        %v7895 = vpop.f32.mrf.mxu0
        %v7896 = vadd.f32 %v7269, %v7895
        %v7897 = vpop.f32.mrf.mxu0
        %v7898 = vadd.f32 %v7271, %v7897
        %v7899 = vpop.f32.mrf.mxu0
        %v7900 = vadd.f32 %v7273, %v7899
        %7901 = vmatprep.mubr.bf16.mxu0 0
        %7902 = vmatmul.mubr.bf16.gmra.mxu0 %v7532
        %v7903 = vpop.f32.mrf.mxu0
        %v7904 = vadd.f32 %v7277, %v7903
        %v7905 = vpop.f32.mrf.mxu0
        %v7906 = vadd.f32 %v7279, %v7905
        %v7907 = vpop.f32.mrf.mxu0
        %v7908 = vadd.f32 %v7281, %v7907
        %v7909 = vpop.f32.mrf.mxu0
        %v7910 = vadd.f32 %v7283, %v7909
        %7911 = vmatprep.mubr.bf16.mxu0 0
        %7912 = vmatmul.mubr.bf16.gmra.mxu0 %v7535
        %v7913 = vpop.f32.mrf.mxu0
        %v7914 = vadd.f32 %v7287, %v7913
        %v7915 = vpop.f32.mrf.mxu0
        %v7916 = vadd.f32 %v7289, %v7915
        %v7917 = vpop.f32.mrf.mxu0
        %v7918 = vadd.f32 %v7291, %v7917
        %v7919 = vpop.f32.mrf.mxu0
        %v7920 = vadd.f32 %v7293, %v7919
        %7921 = vmatprep.mubr.bf16.mxu0 0
        %7922 = vmatmul.mubr.bf16.gmra.mxu0 %v7538
        %v7923 = vpop.f32.mrf.mxu0
        %v7924 = vadd.f32 %v7297, %v7923
        %v7925 = vpop.f32.mrf.mxu0
        %v7926 = vadd.f32 %v7299, %v7925
        %v7927 = vpop.f32.mrf.mxu0
        %v7928 = vadd.f32 %v7301, %v7927
        %v7929 = vpop.f32.mrf.mxu0
        %v7930 = vadd.f32 %v7303, %v7929
        %7931 = vmatprep.mubr.bf16.mxu0 0
        %7932 = vmatmul.mubr.bf16.gmra.mxu0 %v7541
        %v7933 = vpop.f32.mrf.mxu0
        %v7934 = vadd.f32 %v7307, %v7933
        %v7935 = vpop.f32.mrf.mxu0
        %v7936 = vadd.f32 %v7309, %v7935
        %v7937 = vpop.f32.mrf.mxu0
        %v7938 = vadd.f32 %v7311, %v7937
        %v7939 = vpop.f32.mrf.mxu0
        %v7940 = vadd.f32 %v7313, %v7939
        %7941 = vmatprep.mubr.bf16.mxu0 0
        %7942 = vmatmul.mubr.bf16.gmra.mxu0 %v7544
        %v7943 = vpop.f32.mrf.mxu0
        %v7944 = vadd.f32 %v7317, %v7943
        %v7945 = vpop.f32.mrf.mxu0
        %v7946 = vadd.f32 %v7319, %v7945
        %v7947 = vpop.f32.mrf.mxu0
        %v7948 = vpop.f32.mrf.mxu0
        %7949 = vdwg.mxu0
        %7950 = vmatprep.subr.bf16.mxu0 0
        %7951 = vmatpush1.bf16.msra.mxu0 0
        %7952 = vmatprep.subr.bf16.mxu0 0
        %7953 = vmatpush1.bf16.msra.mxu0 0
        %7954 = vmatprep.subr.bf16.mxu0 0
        %7955 = vmatpush1.bf16.msra.mxu0 0
        %7956 = vmatprep.subr.bf16.mxu0 0
        %7957 = vmatpush1.bf16.msra.mxu0 0
        %7958 = vmatprep.subr.bf16.mxu0 0
        %7959 = vmatpush1.bf16.msra.mxu0 0
        %7960 = vmatprep.subr.bf16.mxu0 0
        %7961 = vmatpush1.bf16.msra.mxu0 0
        %7962 = vmatprep.subr.bf16.mxu0 %v6911
        %7963 = vmatpush1.bf16.msra.mxu0 %v6908
        %7964 = vmatprep.subr.bf16.mxu0 %v6833
        %7965 = vmatpush1.bf16.msra.mxu0 %v6832
        %7966 = vmatprep.subr.bf16.mxu0 0
        %7967 = vmatpush2.bf16.msra.mxu0 0
        %7968 = vmatprep.subr.bf16.mxu0 0
        %7969 = vmatpush2.bf16.msra.mxu0 0
        %7970 = vmatprep.subr.bf16.mxu0 0
        %7971 = vmatpush2.bf16.msra.mxu0 0
        %7972 = vmatprep.subr.bf16.mxu0 0
        %7973 = vmatpush2.bf16.msra.mxu0 0
        %7974 = vmatprep.subr.bf16.mxu0 0
        %7975 = vmatpush2.bf16.msra.mxu0 0
        %7976 = vmatprep.subr.bf16.mxu0 0
        %7977 = vmatpush2.bf16.msra.mxu0 0
        %7978 = vmatprep.subr.bf16.mxu0 0
        %7979 = vmatpush2.bf16.msra.mxu0 0
        %7980 = vmatprep.subr.bf16.mxu0 0
        %7981 = vmatpush2.bf16.msra.mxu0 0
        %7982 = vmatprep.mubr.bf16.mxu0 0
        %7983 = vmatmul.mubr.bf16.gmra.mxu0 %v7526
        %v7984 = vpop.f32.mrf.mxu0
        %v7985 = vadd.f32 %v7358, %v7984
        %v7986 = vpop.f32.mrf.mxu0
        %v7987 = vadd.f32 %v7360, %v7986
        %v7988 = vpop.f32.mrf.mxu0
        %v7989 = vadd.f32 %v7362, %v7988
        %v7990 = vpop.f32.mrf.mxu0
        %v7991 = vadd.f32 %v7364, %v7990
        %7992 = vmatprep.mubr.bf16.mxu0 0
        %7993 = vmatmul.mubr.bf16.gmra.mxu0 %v7529
        %v7994 = vpop.f32.mrf.mxu0
        %v7995 = vadd.f32 %v7368, %v7994
        %v7996 = vpop.f32.mrf.mxu0
        %v7997 = vadd.f32 %v7370, %v7996
        %v7998 = vpop.f32.mrf.mxu0
        %v7999 = vadd.f32 %v7372, %v7998
        %v8000 = vpop.f32.mrf.mxu0
        %v8001 = vadd.f32 %v7374, %v8000
        %8002 = vmatprep.mubr.bf16.mxu0 0
        %8003 = vmatmul.mubr.bf16.gmra.mxu0 %v7532
        %v8004 = vpop.f32.mrf.mxu0
        %v8005 = vadd.f32 %v7378, %v8004
        %v8006 = vpop.f32.mrf.mxu0
        %v8007 = vadd.f32 %v7380, %v8006
        %v8008 = vpop.f32.mrf.mxu0
        %v8009 = vadd.f32 %v7382, %v8008
        %v8010 = vpop.f32.mrf.mxu0
        %v8011 = vadd.f32 %v7384, %v8010
        %8012 = vmatprep.mubr.bf16.mxu0 0
        %8013 = vmatmul.mubr.bf16.gmra.mxu0 %v7535
        %v8014 = vpop.f32.mrf.mxu0
        %v8015 = vadd.f32 %v7388, %v8014
        %v8016 = vpop.f32.mrf.mxu0
        %v8017 = vadd.f32 %v7390, %v8016
        %v8018 = vpop.f32.mrf.mxu0
        %v8019 = vadd.f32 %v7392, %v8018
        %v8020 = vpop.f32.mrf.mxu0
        %v8021 = vadd.f32 %v7394, %v8020
        %8022 = vmatprep.mubr.bf16.mxu0 0
        %8023 = vmatmul.mubr.bf16.gmra.mxu0 %v7538
        %v8024 = vpop.f32.mrf.mxu0
        %v8025 = vadd.f32 %v7398, %v8024
        %v8026 = vpop.f32.mrf.mxu0
        %v8027 = vadd.f32 %v7400, %v8026
        %v8028 = vpop.f32.mrf.mxu0
        %v8029 = vadd.f32 %v7402, %v8028
        %v8030 = vpop.f32.mrf.mxu0
        %v8031 = vadd.f32 %v7404, %v8030
        %8032 = vmatprep.mubr.bf16.mxu0 0
        %8033 = vmatmul.mubr.bf16.gmra.mxu0 %v7541
        %v8034 = vpop.f32.mrf.mxu0
        %v8035 = vadd.f32 %v7408, %v8034
        %v8036 = vpop.f32.mrf.mxu0
        %v8037 = vadd.f32 %v7410, %v8036
        %v8038 = vpop.f32.mrf.mxu0
        %v8039 = vadd.f32 %v7412, %v8038
        %v8040 = vpop.f32.mrf.mxu0
        %v8041 = vadd.f32 %v7414, %v8040
        %8042 = vmatprep.mubr.bf16.mxu0 0
        %8043 = vmatmul.mubr.bf16.gmra.mxu0 %v7544
        %v8044 = vpop.f32.mrf.mxu0
        %v8045 = vadd.f32 %v7418, %v8044
        %v8046 = vpop.f32.mrf.mxu0
        %v8047 = vadd.f32 %v7420, %v8046
        %v8048 = vpop.f32.mrf.mxu0
        %v8049 = vpop.f32.mrf.mxu0
        %8050 = vdwg.mxu0
        %8051 = vmatprep.subr.bf16.mxu0 0
        %8052 = vmatpush1.bf16.msra.mxu0 0
        %8053 = vmatprep.subr.bf16.mxu0 0
        %8054 = vmatpush1.bf16.msra.mxu0 0
        %8055 = vmatprep.subr.bf16.mxu0 0
        %8056 = vmatpush1.bf16.msra.mxu0 0
        %8057 = vmatprep.subr.bf16.mxu0 0
        %8058 = vmatpush1.bf16.msra.mxu0 0
        %8059 = vmatprep.subr.bf16.mxu0 0
        %8060 = vmatpush1.bf16.msra.mxu0 0
        %8061 = vmatprep.subr.bf16.mxu0 0
        %8062 = vmatpush1.bf16.msra.mxu0 0
        %8063 = vmatprep.subr.bf16.mxu0 %v6917
        %8064 = vmatpush1.bf16.msra.mxu0 %v6914
        %8065 = vmatprep.subr.bf16.mxu0 %v6835
        %8066 = vmatpush1.bf16.msra.mxu0 %v6834
        %8067 = vmatprep.subr.bf16.mxu0 0
        %8068 = vmatpush2.bf16.msra.mxu0 0
        %8069 = vmatprep.subr.bf16.mxu0 0
        %8070 = vmatpush2.bf16.msra.mxu0 0
        %8071 = vmatprep.subr.bf16.mxu0 0
        %8072 = vmatpush2.bf16.msra.mxu0 0
        %8073 = vmatprep.subr.bf16.mxu0 0
        %8074 = vmatpush2.bf16.msra.mxu0 0
        %8075 = vmatprep.subr.bf16.mxu0 0
        %8076 = vmatpush2.bf16.msra.mxu0 0
        %8077 = vmatprep.subr.bf16.mxu0 0
        %8078 = vmatpush2.bf16.msra.mxu0 0
        %8079 = vmatprep.subr.bf16.mxu0 0
        %8080 = vmatpush2.bf16.msra.mxu0 0
        %8081 = vmatprep.subr.bf16.mxu0 0
        %8082 = vmatpush2.bf16.msra.mxu0 0
        %8083 = vmatprep.mubr.bf16.mxu0 0
        %8084 = vmatmul.mubr.bf16.gmra.mxu0 %v7526
        %v8085 = vpop.f32.mrf.mxu0
        %v8086 = vadd.f32 %v7459, %v8085
        %v8087 = vpop.f32.mrf.mxu0
        %v8088 = vadd.f32 %v7461, %v8087
        %v8089 = vpop.f32.mrf.mxu0
        %v8090 = vadd.f32 %v7463, %v8089
        %v8091 = vpop.f32.mrf.mxu0
        %v8092 = vadd.f32 %v7465, %v8091
        %8093 = vmatprep.mubr.bf16.mxu0 0
        %8094 = vmatmul.mubr.bf16.gmra.mxu0 %v7529
        %v8095 = vpop.f32.mrf.mxu0
        %v8096 = vadd.f32 %v7469, %v8095
        %v8097 = vpop.f32.mrf.mxu0
        %v8098 = vadd.f32 %v7471, %v8097
        %v8099 = vpop.f32.mrf.mxu0
        %v8100 = vadd.f32 %v7473, %v8099
        %v8101 = vpop.f32.mrf.mxu0
        %v8102 = vadd.f32 %v7475, %v8101
        %8103 = vmatprep.mubr.bf16.mxu0 0
        %8104 = vmatmul.mubr.bf16.gmra.mxu0 %v7532
        %v8105 = vpop.f32.mrf.mxu0
        %v8106 = vadd.f32 %v7479, %v8105
        %v8107 = vpop.f32.mrf.mxu0
        %v8108 = vadd.f32 %v7481, %v8107
        %v8109 = vpop.f32.mrf.mxu0
        %v8110 = vadd.f32 %v7483, %v8109
        %v8111 = vpop.f32.mrf.mxu0
        %v8112 = vadd.f32 %v7485, %v8111
        %8113 = vmatprep.mubr.bf16.mxu0 0
        %8114 = vmatmul.mubr.bf16.gmra.mxu0 %v7535
        %v8115 = vpop.f32.mrf.mxu0
        %v8116 = vadd.f32 %v7489, %v8115
        %v8117 = vpop.f32.mrf.mxu0
        %v8118 = vadd.f32 %v7491, %v8117
        %v8119 = vpop.f32.mrf.mxu0
        %v8120 = vadd.f32 %v7493, %v8119
        %v8121 = vpop.f32.mrf.mxu0
        %v8122 = vadd.f32 %v7495, %v8121
        %8123 = vmatprep.mubr.bf16.mxu0 0
        %8124 = vmatmul.mubr.bf16.gmra.mxu0 %v7538
        %v8125 = vpop.f32.mrf.mxu0
        %v8126 = vadd.f32 %v7499, %v8125
        %v8127 = vpop.f32.mrf.mxu0
        %v8128 = vadd.f32 %v7501, %v8127
        %v8129 = vpop.f32.mrf.mxu0
        %v8130 = vadd.f32 %v7503, %v8129
        %v8131 = vpop.f32.mrf.mxu0
        %v8132 = vadd.f32 %v7505, %v8131
        %8133 = vmatprep.mubr.bf16.mxu0 0
        %8134 = vmatmul.mubr.bf16.gmra.mxu0 %v7541
        %v8135 = vpop.f32.mrf.mxu0
        %v8136 = vadd.f32 %v7509, %v8135
        %v8137 = vpop.f32.mrf.mxu0
        %v8138 = vadd.f32 %v7511, %v8137
        %v8139 = vpop.f32.mrf.mxu0
        %v8140 = vadd.f32 %v7513, %v8139
        %v8141 = vpop.f32.mrf.mxu0
        %v8142 = vadd.f32 %v7515, %v8141
        %8143 = vmatprep.mubr.bf16.mxu0 0
        %8144 = vmatmul.mubr.bf16.gmra.mxu0 %v7544
        %v8145 = vpop.f32.mrf.mxu0
        %v8146 = vadd.f32 %v7519, %v8145
        %v8147 = vpop.f32.mrf.mxu0
        %v8148 = vadd.f32 %v7521, %v8147
        %v8149 = vpop.f32.mrf.mxu0
        %v8150 = vpop.f32.mrf.mxu0
        %8151 = vdwg.mxu0
        %v8153 = vsel %vm6860, %v6763, 0
        %v8156 = vsel %vm6860, %v6764, 0
        %v8159 = vsel %vm6860, %v6765, 0
        %v8162 = vsel %vm6860, %v6766, 0
        %v8165 = vsel %vm6860, %v6767, 0
        %v8168 = vsel %vm6860, %v6768, 0
        %v8171 = vsel %vm6860, %v6769, 0
        %8173 = vmatprep.subr.bf16.mxu0 0
        %8174 = vmatpush1.bf16.msra.mxu0 0
        %8175 = vmatprep.subr.bf16.mxu0 0
        %8176 = vmatpush1.bf16.msra.mxu0 0
        %8177 = vmatprep.subr.bf16.mxu0 0
        %8178 = vmatpush1.bf16.msra.mxu0 0
        %8179 = vmatprep.subr.bf16.mxu0 0
        %8180 = vmatpush1.bf16.msra.mxu0 0
        %8181 = vmatprep.subr.bf16.mxu0 0
        %8182 = vmatpush1.bf16.msra.mxu0 0
        %8183 = vmatprep.subr.bf16.mxu0 0
        %8184 = vmatpush1.bf16.msra.mxu0 0
        %8185 = vmatprep.subr.bf16.mxu0 %v6887
        %8186 = vmatpush1.bf16.msra.mxu0 %v6884
        %8187 = vmatprep.subr.bf16.mxu0 %v6825
        %8188 = vmatpush1.bf16.msra.mxu0 %v6824
        %8189 = vmatprep.subr.bf16.mxu0 0
        %8190 = vmatpush2.bf16.msra.mxu0 0
        %8191 = vmatprep.subr.bf16.mxu0 0
        %8192 = vmatpush2.bf16.msra.mxu0 0
        %8193 = vmatprep.subr.bf16.mxu0 0
        %8194 = vmatpush2.bf16.msra.mxu0 0
        %8195 = vmatprep.subr.bf16.mxu0 0
        %8196 = vmatpush2.bf16.msra.mxu0 0
        %8197 = vmatprep.subr.bf16.mxu0 0
        %8198 = vmatpush2.bf16.msra.mxu0 0
        %8199 = vmatprep.subr.bf16.mxu0 0
        %8200 = vmatpush2.bf16.msra.mxu0 0
        %8201 = vmatprep.subr.bf16.mxu0 0
        %8202 = vmatpush2.bf16.msra.mxu0 0
        %8203 = vmatprep.subr.bf16.mxu0 0
        %8204 = vmatpush2.bf16.msra.mxu0 0
        %8205 = vmatprep.mubr.bf16.mxu0 0
        %8206 = vmatmul.mubr.bf16.gmra.mxu0 %v8153
        %v8207 = vpop.f32.mrf.mxu0
        %v8208 = vadd.f32 0.0, %v8207
        %v8209 = vpop.f32.mrf.mxu0
        %v8210 = vadd.f32 0.0, %v8209
        %v8211 = vpop.f32.mrf.mxu0
        %v8212 = vadd.f32 0.0, %v8211
        %v8213 = vpop.f32.mrf.mxu0
        %v8214 = vadd.f32 0.0, %v8213
        %8215 = vmatprep.mubr.bf16.mxu0 0
        %8216 = vmatmul.mubr.bf16.gmra.mxu0 %v8156
        %v8217 = vpop.f32.mrf.mxu0
        %v8218 = vadd.f32 0.0, %v8217
        %v8219 = vpop.f32.mrf.mxu0
        %v8220 = vadd.f32 0.0, %v8219
        %v8221 = vpop.f32.mrf.mxu0
        %v8222 = vadd.f32 0.0, %v8221
        %v8223 = vpop.f32.mrf.mxu0
        %v8224 = vadd.f32 0.0, %v8223
        %8225 = vmatprep.mubr.bf16.mxu0 0
        %8226 = vmatmul.mubr.bf16.gmra.mxu0 %v8159
        %v8227 = vpop.f32.mrf.mxu0
        %v8228 = vadd.f32 0.0, %v8227
        %v8229 = vpop.f32.mrf.mxu0
        %v8230 = vadd.f32 0.0, %v8229
        %v8231 = vpop.f32.mrf.mxu0
        %v8232 = vadd.f32 0.0, %v8231
        %v8233 = vpop.f32.mrf.mxu0
        %v8234 = vadd.f32 0.0, %v8233
        %8235 = vmatprep.mubr.bf16.mxu0 0
        %8236 = vmatmul.mubr.bf16.gmra.mxu0 %v8162
        %v8237 = vpop.f32.mrf.mxu0
        %v8238 = vadd.f32 0.0, %v8237
        %v8239 = vpop.f32.mrf.mxu0
        %v8240 = vadd.f32 0.0, %v8239
        %v8241 = vpop.f32.mrf.mxu0
        %v8242 = vadd.f32 0.0, %v8241
        %v8243 = vpop.f32.mrf.mxu0
        %v8244 = vadd.f32 0.0, %v8243
        %8245 = vmatprep.mubr.bf16.mxu0 0
        %8246 = vmatmul.mubr.bf16.gmra.mxu0 %v8165
        %v8247 = vpop.f32.mrf.mxu0
        %v8248 = vadd.f32 0.0, %v8247
        %v8249 = vpop.f32.mrf.mxu0
        %v8250 = vadd.f32 0.0, %v8249
        %v8251 = vpop.f32.mrf.mxu0
        %v8252 = vadd.f32 0.0, %v8251
        %v8253 = vpop.f32.mrf.mxu0
        %v8254 = vadd.f32 0.0, %v8253
        %8255 = vmatprep.mubr.bf16.mxu0 0
        %8256 = vmatmul.mubr.bf16.gmra.mxu0 %v8168
        %v8257 = vpop.f32.mrf.mxu0
        %v8258 = vadd.f32 0.0, %v8257
        %v8259 = vpop.f32.mrf.mxu0
        %v8260 = vadd.f32 0.0, %v8259
        %v8261 = vpop.f32.mrf.mxu0
        %v8262 = vadd.f32 0.0, %v8261
        %v8263 = vpop.f32.mrf.mxu0
        %v8264 = vadd.f32 0.0, %v8263
        %8265 = vmatprep.mubr.bf16.mxu0 0
        %8266 = vmatmul.mubr.bf16.gmra.mxu0 %v8171
        %v8267 = vpop.f32.mrf.mxu0
        %v8268 = vadd.f32 0.0, %v8267
        %v8269 = vpop.f32.mrf.mxu0
        %v8270 = vadd.f32 0.0, %v8269
        %v8271 = vpop.f32.mrf.mxu0
        %v8272 = vpop.f32.mrf.mxu0
        %8273 = vdwg.mxu0
        %8274 = vmatprep.subr.bf16.mxu0 0
        %8275 = vmatpush1.bf16.msra.mxu0 0
        %8276 = vmatprep.subr.bf16.mxu0 0
        %8277 = vmatpush1.bf16.msra.mxu0 0
        %8278 = vmatprep.subr.bf16.mxu0 0
        %8279 = vmatpush1.bf16.msra.mxu0 0
        %8280 = vmatprep.subr.bf16.mxu0 0
        %8281 = vmatpush1.bf16.msra.mxu0 0
        %8282 = vmatprep.subr.bf16.mxu0 0
        %8283 = vmatpush1.bf16.msra.mxu0 0
        %8284 = vmatprep.subr.bf16.mxu0 0
        %8285 = vmatpush1.bf16.msra.mxu0 0
        %8286 = vmatprep.subr.bf16.mxu0 %v6893
        %8287 = vmatpush1.bf16.msra.mxu0 %v6890
        %8288 = vmatprep.subr.bf16.mxu0 %v6827
        %8289 = vmatpush1.bf16.msra.mxu0 %v6826
        %8290 = vmatprep.subr.bf16.mxu0 0
        %8291 = vmatpush2.bf16.msra.mxu0 0
        %8292 = vmatprep.subr.bf16.mxu0 0
        %8293 = vmatpush2.bf16.msra.mxu0 0
        %8294 = vmatprep.subr.bf16.mxu0 0
        %8295 = vmatpush2.bf16.msra.mxu0 0
        %8296 = vmatprep.subr.bf16.mxu0 0
        %8297 = vmatpush2.bf16.msra.mxu0 0
        %8298 = vmatprep.subr.bf16.mxu0 0
        %8299 = vmatpush2.bf16.msra.mxu0 0
        %8300 = vmatprep.subr.bf16.mxu0 0
        %8301 = vmatpush2.bf16.msra.mxu0 0
        %8302 = vmatprep.subr.bf16.mxu0 0
        %8303 = vmatpush2.bf16.msra.mxu0 0
        %8304 = vmatprep.subr.bf16.mxu0 0
        %8305 = vmatpush2.bf16.msra.mxu0 0
        %8306 = vmatprep.mubr.bf16.mxu0 0
        %8307 = vmatmul.mubr.bf16.gmra.mxu0 %v8153
        %v8308 = vpop.f32.mrf.mxu0
        %v8309 = vadd.f32 0.0, %v8308
        %v8310 = vpop.f32.mrf.mxu0
        %v8311 = vadd.f32 0.0, %v8310
        %v8312 = vpop.f32.mrf.mxu0
        %v8313 = vadd.f32 0.0, %v8312
        %v8314 = vpop.f32.mrf.mxu0
        %v8315 = vadd.f32 0.0, %v8314
        %8316 = vmatprep.mubr.bf16.mxu0 0
        %8317 = vmatmul.mubr.bf16.gmra.mxu0 %v8156
        %v8318 = vpop.f32.mrf.mxu0
        %v8319 = vadd.f32 0.0, %v8318
        %v8320 = vpop.f32.mrf.mxu0
        %v8321 = vadd.f32 0.0, %v8320
        %v8322 = vpop.f32.mrf.mxu0
        %v8323 = vadd.f32 0.0, %v8322
        %v8324 = vpop.f32.mrf.mxu0
        %v8325 = vadd.f32 0.0, %v8324
        %8326 = vmatprep.mubr.bf16.mxu0 0
        %8327 = vmatmul.mubr.bf16.gmra.mxu0 %v8159
        %v8328 = vpop.f32.mrf.mxu0
        %v8329 = vadd.f32 0.0, %v8328
        %v8330 = vpop.f32.mrf.mxu0
        %v8331 = vadd.f32 0.0, %v8330
        %v8332 = vpop.f32.mrf.mxu0
        %v8333 = vadd.f32 0.0, %v8332
        %v8334 = vpop.f32.mrf.mxu0
        %v8335 = vadd.f32 0.0, %v8334
        %8336 = vmatprep.mubr.bf16.mxu0 0
        %8337 = vmatmul.mubr.bf16.gmra.mxu0 %v8162
        %v8338 = vpop.f32.mrf.mxu0
        %v8339 = vadd.f32 0.0, %v8338
        %v8340 = vpop.f32.mrf.mxu0
        %v8341 = vadd.f32 0.0, %v8340
        %v8342 = vpop.f32.mrf.mxu0
        %v8343 = vadd.f32 0.0, %v8342
        %v8344 = vpop.f32.mrf.mxu0
        %v8345 = vadd.f32 0.0, %v8344
        %8346 = vmatprep.mubr.bf16.mxu0 0
        %8347 = vmatmul.mubr.bf16.gmra.mxu0 %v8165
        %v8348 = vpop.f32.mrf.mxu0
        %v8349 = vadd.f32 0.0, %v8348
        %v8350 = vpop.f32.mrf.mxu0
        %v8351 = vadd.f32 0.0, %v8350
        %v8352 = vpop.f32.mrf.mxu0
        %v8353 = vadd.f32 0.0, %v8352
        %v8354 = vpop.f32.mrf.mxu0
        %v8355 = vadd.f32 0.0, %v8354
        %8356 = vmatprep.mubr.bf16.mxu0 0
        %8357 = vmatmul.mubr.bf16.gmra.mxu0 %v8168
        %v8358 = vpop.f32.mrf.mxu0
        %v8359 = vadd.f32 0.0, %v8358
        %v8360 = vpop.f32.mrf.mxu0
        %v8361 = vadd.f32 0.0, %v8360
        %v8362 = vpop.f32.mrf.mxu0
        %v8363 = vadd.f32 0.0, %v8362
        %v8364 = vpop.f32.mrf.mxu0
        %v8365 = vadd.f32 0.0, %v8364
        %8366 = vmatprep.mubr.bf16.mxu0 0
        %8367 = vmatmul.mubr.bf16.gmra.mxu0 %v8171
        %v8368 = vpop.f32.mrf.mxu0
        %v8369 = vadd.f32 0.0, %v8368
        %v8370 = vpop.f32.mrf.mxu0
        %v8371 = vadd.f32 0.0, %v8370
        %v8372 = vpop.f32.mrf.mxu0
        %v8373 = vpop.f32.mrf.mxu0
        %8374 = vdwg.mxu0
        %8375 = vmatprep.subr.bf16.mxu0 0
        %8376 = vmatpush1.bf16.msra.mxu0 0
        %8377 = vmatprep.subr.bf16.mxu0 0
        %8378 = vmatpush1.bf16.msra.mxu0 0
        %8379 = vmatprep.subr.bf16.mxu0 0
        %8380 = vmatpush1.bf16.msra.mxu0 0
        %8381 = vmatprep.subr.bf16.mxu0 0
        %8382 = vmatpush1.bf16.msra.mxu0 0
        %8383 = vmatprep.subr.bf16.mxu0 0
        %8384 = vmatpush1.bf16.msra.mxu0 0
        %8385 = vmatprep.subr.bf16.mxu0 0
        %8386 = vmatpush1.bf16.msra.mxu0 0
        %8387 = vmatprep.subr.bf16.mxu0 %v6899
        %8388 = vmatpush1.bf16.msra.mxu0 %v6896
        %8389 = vmatprep.subr.bf16.mxu0 %v6829
        %8390 = vmatpush1.bf16.msra.mxu0 %v6828
        %8391 = vmatprep.subr.bf16.mxu0 0
        %8392 = vmatpush2.bf16.msra.mxu0 0
        %8393 = vmatprep.subr.bf16.mxu0 0
        %8394 = vmatpush2.bf16.msra.mxu0 0
        %8395 = vmatprep.subr.bf16.mxu0 0
        %8396 = vmatpush2.bf16.msra.mxu0 0
        %8397 = vmatprep.subr.bf16.mxu0 0
        %8398 = vmatpush2.bf16.msra.mxu0 0
        %8399 = vmatprep.subr.bf16.mxu0 0
        %8400 = vmatpush2.bf16.msra.mxu0 0
        %8401 = vmatprep.subr.bf16.mxu0 0
        %8402 = vmatpush2.bf16.msra.mxu0 0
        %8403 = vmatprep.subr.bf16.mxu0 0
        %8404 = vmatpush2.bf16.msra.mxu0 0
        %8405 = vmatprep.subr.bf16.mxu0 0
        %8406 = vmatpush2.bf16.msra.mxu0 0
        %8407 = vmatprep.mubr.bf16.mxu0 0
        %8408 = vmatmul.mubr.bf16.gmra.mxu0 %v8153
        %v8409 = vpop.f32.mrf.mxu0
        %v8410 = vadd.f32 0.0, %v8409
        %v8411 = vpop.f32.mrf.mxu0
        %v8412 = vadd.f32 0.0, %v8411
        %v8413 = vpop.f32.mrf.mxu0
        %v8414 = vadd.f32 0.0, %v8413
        %v8415 = vpop.f32.mrf.mxu0
        %v8416 = vadd.f32 0.0, %v8415
        %8417 = vmatprep.mubr.bf16.mxu0 0
        %8418 = vmatmul.mubr.bf16.gmra.mxu0 %v8156
        %v8419 = vpop.f32.mrf.mxu0
        %v8420 = vadd.f32 0.0, %v8419
        %v8421 = vpop.f32.mrf.mxu0
        %v8422 = vadd.f32 0.0, %v8421
        %v8423 = vpop.f32.mrf.mxu0
        %v8424 = vadd.f32 0.0, %v8423
        %v8425 = vpop.f32.mrf.mxu0
        %v8426 = vadd.f32 0.0, %v8425
        %8427 = vmatprep.mubr.bf16.mxu0 0
        %8428 = vmatmul.mubr.bf16.gmra.mxu0 %v8159
        %v8429 = vpop.f32.mrf.mxu0
        %v8430 = vadd.f32 0.0, %v8429
        %v8431 = vpop.f32.mrf.mxu0
        %v8432 = vadd.f32 0.0, %v8431
        %v8433 = vpop.f32.mrf.mxu0
        %v8434 = vadd.f32 0.0, %v8433
        %v8435 = vpop.f32.mrf.mxu0
        %v8436 = vadd.f32 0.0, %v8435
        %8437 = vmatprep.mubr.bf16.mxu0 0
        %8438 = vmatmul.mubr.bf16.gmra.mxu0 %v8162
        %v8439 = vpop.f32.mrf.mxu0
        %v8440 = vadd.f32 0.0, %v8439
        %v8441 = vpop.f32.mrf.mxu0
        %v8442 = vadd.f32 0.0, %v8441
        %v8443 = vpop.f32.mrf.mxu0
        %v8444 = vadd.f32 0.0, %v8443
        %v8445 = vpop.f32.mrf.mxu0
        %v8446 = vadd.f32 0.0, %v8445
        %8447 = vmatprep.mubr.bf16.mxu0 0
        %8448 = vmatmul.mubr.bf16.gmra.mxu0 %v8165
        %v8449 = vpop.f32.mrf.mxu0
        %v8450 = vadd.f32 0.0, %v8449
        %v8451 = vpop.f32.mrf.mxu0
        %v8452 = vadd.f32 0.0, %v8451
        %v8453 = vpop.f32.mrf.mxu0
        %v8454 = vadd.f32 0.0, %v8453
        %v8455 = vpop.f32.mrf.mxu0
        %v8456 = vadd.f32 0.0, %v8455
        %8457 = vmatprep.mubr.bf16.mxu0 0
        %8458 = vmatmul.mubr.bf16.gmra.mxu0 %v8168
        %v8459 = vpop.f32.mrf.mxu0
        %v8460 = vadd.f32 0.0, %v8459
        %v8461 = vpop.f32.mrf.mxu0
        %v8462 = vadd.f32 0.0, %v8461
        %v8463 = vpop.f32.mrf.mxu0
        %v8464 = vadd.f32 0.0, %v8463
        %v8465 = vpop.f32.mrf.mxu0
        %v8466 = vadd.f32 0.0, %v8465
        %8467 = vmatprep.mubr.bf16.mxu0 0
        %8468 = vmatmul.mubr.bf16.gmra.mxu0 %v8171
        %v8469 = vpop.f32.mrf.mxu0
        %v8470 = vadd.f32 0.0, %v8469
        %v8471 = vpop.f32.mrf.mxu0
        %v8472 = vadd.f32 0.0, %v8471
        %v8473 = vpop.f32.mrf.mxu0
        %v8474 = vpop.f32.mrf.mxu0
        %8475 = vdwg.mxu0
        %8476 = vmatprep.subr.bf16.mxu0 0
        %8477 = vmatpush1.bf16.msra.mxu0 0
        %8478 = vmatprep.subr.bf16.mxu0 0
        %8479 = vmatpush1.bf16.msra.mxu0 0
        %8480 = vmatprep.subr.bf16.mxu0 0
        %8481 = vmatpush1.bf16.msra.mxu0 0
        %8482 = vmatprep.subr.bf16.mxu0 0
        %8483 = vmatpush1.bf16.msra.mxu0 0
        %8484 = vmatprep.subr.bf16.mxu0 0
        %8485 = vmatpush1.bf16.msra.mxu0 0
        %8486 = vmatprep.subr.bf16.mxu0 0
        %8487 = vmatpush1.bf16.msra.mxu0 0
        %8488 = vmatprep.subr.bf16.mxu0 %v6905
        %8489 = vmatpush1.bf16.msra.mxu0 %v6902
        %8490 = vmatprep.subr.bf16.mxu0 %v6831
        %8491 = vmatpush1.bf16.msra.mxu0 %v6830
        %8492 = vmatprep.subr.bf16.mxu0 0
        %8493 = vmatpush2.bf16.msra.mxu0 0
        %8494 = vmatprep.subr.bf16.mxu0 0
        %8495 = vmatpush2.bf16.msra.mxu0 0
        %8496 = vmatprep.subr.bf16.mxu0 0
        %8497 = vmatpush2.bf16.msra.mxu0 0
        %8498 = vmatprep.subr.bf16.mxu0 0
        %8499 = vmatpush2.bf16.msra.mxu0 0
        %8500 = vmatprep.subr.bf16.mxu0 0
        %8501 = vmatpush2.bf16.msra.mxu0 0
        %8502 = vmatprep.subr.bf16.mxu0 0
        %8503 = vmatpush2.bf16.msra.mxu0 0
        %8504 = vmatprep.subr.bf16.mxu0 0
        %8505 = vmatpush2.bf16.msra.mxu0 0
        %8506 = vmatprep.subr.bf16.mxu0 0
        %8507 = vmatpush2.bf16.msra.mxu0 0
        %8508 = vmatprep.mubr.bf16.mxu0 0
        %8509 = vmatmul.mubr.bf16.gmra.mxu0 %v8153
        %v8510 = vpop.f32.mrf.mxu0
        %v8511 = vadd.f32 0.0, %v8510
        %v8512 = vpop.f32.mrf.mxu0
        %v8513 = vadd.f32 0.0, %v8512
        %v8514 = vpop.f32.mrf.mxu0
        %v8515 = vadd.f32 0.0, %v8514
        %v8516 = vpop.f32.mrf.mxu0
        %v8517 = vadd.f32 0.0, %v8516
        %8518 = vmatprep.mubr.bf16.mxu0 0
        %8519 = vmatmul.mubr.bf16.gmra.mxu0 %v8156
        %v8520 = vpop.f32.mrf.mxu0
        %v8521 = vadd.f32 0.0, %v8520
        %v8522 = vpop.f32.mrf.mxu0
        %v8523 = vadd.f32 0.0, %v8522
        %v8524 = vpop.f32.mrf.mxu0
        %v8525 = vadd.f32 0.0, %v8524
        %v8526 = vpop.f32.mrf.mxu0
        %v8527 = vadd.f32 0.0, %v8526
        %8528 = vmatprep.mubr.bf16.mxu0 0
        %8529 = vmatmul.mubr.bf16.gmra.mxu0 %v8159
        %v8530 = vpop.f32.mrf.mxu0
        %v8531 = vadd.f32 0.0, %v8530
        %v8532 = vpop.f32.mrf.mxu0
        %v8533 = vadd.f32 0.0, %v8532
        %v8534 = vpop.f32.mrf.mxu0
        %v8535 = vadd.f32 0.0, %v8534
        %v8536 = vpop.f32.mrf.mxu0
        %v8537 = vadd.f32 0.0, %v8536
        %8538 = vmatprep.mubr.bf16.mxu0 0
        %8539 = vmatmul.mubr.bf16.gmra.mxu0 %v8162
        %v8540 = vpop.f32.mrf.mxu0
        %v8541 = vadd.f32 0.0, %v8540
        %v8542 = vpop.f32.mrf.mxu0
        %v8543 = vadd.f32 0.0, %v8542
        %v8544 = vpop.f32.mrf.mxu0
        %v8545 = vadd.f32 0.0, %v8544
        %v8546 = vpop.f32.mrf.mxu0
        %v8547 = vadd.f32 0.0, %v8546
        %8548 = vmatprep.mubr.bf16.mxu0 0
        %8549 = vmatmul.mubr.bf16.gmra.mxu0 %v8165
        %v8550 = vpop.f32.mrf.mxu0
        %v8551 = vadd.f32 0.0, %v8550
        %v8552 = vpop.f32.mrf.mxu0
        %v8553 = vadd.f32 0.0, %v8552
        %v8554 = vpop.f32.mrf.mxu0
        %v8555 = vadd.f32 0.0, %v8554
        %v8556 = vpop.f32.mrf.mxu0
        %v8557 = vadd.f32 0.0, %v8556
        %8558 = vmatprep.mubr.bf16.mxu0 0
        %8559 = vmatmul.mubr.bf16.gmra.mxu0 %v8168
        %v8560 = vpop.f32.mrf.mxu0
        %v8561 = vadd.f32 0.0, %v8560
        %v8562 = vpop.f32.mrf.mxu0
        %v8563 = vadd.f32 0.0, %v8562
        %v8564 = vpop.f32.mrf.mxu0
        %v8565 = vadd.f32 0.0, %v8564
        %v8566 = vpop.f32.mrf.mxu0
        %v8567 = vadd.f32 0.0, %v8566
        %8568 = vmatprep.mubr.bf16.mxu0 0
        %8569 = vmatmul.mubr.bf16.gmra.mxu0 %v8171
        %v8570 = vpop.f32.mrf.mxu0
        %v8571 = vadd.f32 0.0, %v8570
        %v8572 = vpop.f32.mrf.mxu0
        %v8573 = vadd.f32 0.0, %v8572
        %v8574 = vpop.f32.mrf.mxu0
        %v8575 = vpop.f32.mrf.mxu0
        %8576 = vdwg.mxu0
        %8577 = vmatprep.subr.bf16.mxu0 0
        %8578 = vmatpush1.bf16.msra.mxu0 0
        %8579 = vmatprep.subr.bf16.mxu0 0
        %8580 = vmatpush1.bf16.msra.mxu0 0
        %8581 = vmatprep.subr.bf16.mxu0 0
        %8582 = vmatpush1.bf16.msra.mxu0 0
        %8583 = vmatprep.subr.bf16.mxu0 0
        %8584 = vmatpush1.bf16.msra.mxu0 0
        %8585 = vmatprep.subr.bf16.mxu0 0
        %8586 = vmatpush1.bf16.msra.mxu0 0
        %8587 = vmatprep.subr.bf16.mxu0 0
        %8588 = vmatpush1.bf16.msra.mxu0 0
        %8589 = vmatprep.subr.bf16.mxu0 %v6911
        %8590 = vmatpush1.bf16.msra.mxu0 %v6908
        %8591 = vmatprep.subr.bf16.mxu0 %v6833
        %8592 = vmatpush1.bf16.msra.mxu0 %v6832
        %8593 = vmatprep.subr.bf16.mxu0 0
        %8594 = vmatpush2.bf16.msra.mxu0 0
        %8595 = vmatprep.subr.bf16.mxu0 0
        %8596 = vmatpush2.bf16.msra.mxu0 0
        %8597 = vmatprep.subr.bf16.mxu0 0
        %8598 = vmatpush2.bf16.msra.mxu0 0
        %8599 = vmatprep.subr.bf16.mxu0 0
        %8600 = vmatpush2.bf16.msra.mxu0 0
        %8601 = vmatprep.subr.bf16.mxu0 0
        %8602 = vmatpush2.bf16.msra.mxu0 0
        %8603 = vmatprep.subr.bf16.mxu0 0
        %8604 = vmatpush2.bf16.msra.mxu0 0
        %8605 = vmatprep.subr.bf16.mxu0 0
        %8606 = vmatpush2.bf16.msra.mxu0 0
        %8607 = vmatprep.subr.bf16.mxu0 0
        %8608 = vmatpush2.bf16.msra.mxu0 0
        %8609 = vmatprep.mubr.bf16.mxu0 0
        %8610 = vmatmul.mubr.bf16.gmra.mxu0 %v8153
        %v8611 = vpop.f32.mrf.mxu0
        %v8612 = vadd.f32 0.0, %v8611
        %v8613 = vpop.f32.mrf.mxu0
        %v8614 = vadd.f32 0.0, %v8613
        %v8615 = vpop.f32.mrf.mxu0
        %v8616 = vadd.f32 0.0, %v8615
        %v8617 = vpop.f32.mrf.mxu0
        %v8618 = vadd.f32 0.0, %v8617
        %8619 = vmatprep.mubr.bf16.mxu0 0
        %8620 = vmatmul.mubr.bf16.gmra.mxu0 %v8156
        %v8621 = vpop.f32.mrf.mxu0
        %v8622 = vadd.f32 0.0, %v8621
        %v8623 = vpop.f32.mrf.mxu0
        %v8624 = vadd.f32 0.0, %v8623
        %v8625 = vpop.f32.mrf.mxu0
        %v8626 = vadd.f32 0.0, %v8625
        %v8627 = vpop.f32.mrf.mxu0
        %v8628 = vadd.f32 0.0, %v8627
        %8629 = vmatprep.mubr.bf16.mxu0 0
        %8630 = vmatmul.mubr.bf16.gmra.mxu0 %v8159
        %v8631 = vpop.f32.mrf.mxu0
        %v8632 = vadd.f32 0.0, %v8631
        %v8633 = vpop.f32.mrf.mxu0
        %v8634 = vadd.f32 0.0, %v8633
        %v8635 = vpop.f32.mrf.mxu0
        %v8636 = vadd.f32 0.0, %v8635
        %v8637 = vpop.f32.mrf.mxu0
        %v8638 = vadd.f32 0.0, %v8637
        %8639 = vmatprep.mubr.bf16.mxu0 0
        %8640 = vmatmul.mubr.bf16.gmra.mxu0 %v8162
        %v8641 = vpop.f32.mrf.mxu0
        %v8642 = vadd.f32 0.0, %v8641
        %v8643 = vpop.f32.mrf.mxu0
        %v8644 = vadd.f32 0.0, %v8643
        %v8645 = vpop.f32.mrf.mxu0
        %v8646 = vadd.f32 0.0, %v8645
        %v8647 = vpop.f32.mrf.mxu0
        %v8648 = vadd.f32 0.0, %v8647
        %8649 = vmatprep.mubr.bf16.mxu0 0
        %8650 = vmatmul.mubr.bf16.gmra.mxu0 %v8165
        %v8651 = vpop.f32.mrf.mxu0
        %v8652 = vadd.f32 0.0, %v8651
        %v8653 = vpop.f32.mrf.mxu0
        %v8654 = vadd.f32 0.0, %v8653
        %v8655 = vpop.f32.mrf.mxu0
        %v8656 = vadd.f32 0.0, %v8655
        %v8657 = vpop.f32.mrf.mxu0
        %v8658 = vadd.f32 0.0, %v8657
        %8659 = vmatprep.mubr.bf16.mxu0 0
        %8660 = vmatmul.mubr.bf16.gmra.mxu0 %v8168
        %v8661 = vpop.f32.mrf.mxu0
        %v8662 = vadd.f32 0.0, %v8661
        %v8663 = vpop.f32.mrf.mxu0
        %v8664 = vadd.f32 0.0, %v8663
        %v8665 = vpop.f32.mrf.mxu0
        %v8666 = vadd.f32 0.0, %v8665
        %v8667 = vpop.f32.mrf.mxu0
        %v8668 = vadd.f32 0.0, %v8667
        %8669 = vmatprep.mubr.bf16.mxu0 0
        %8670 = vmatmul.mubr.bf16.gmra.mxu0 %v8171
        %v8671 = vpop.f32.mrf.mxu0
        %v8672 = vadd.f32 0.0, %v8671
        %v8673 = vpop.f32.mrf.mxu0
        %v8674 = vadd.f32 0.0, %v8673
        %v8675 = vpop.f32.mrf.mxu0
        %v8676 = vpop.f32.mrf.mxu0
        %8677 = vdwg.mxu0
        %8678 = vmatprep.subr.bf16.mxu0 0
        %8679 = vmatpush1.bf16.msra.mxu0 0
        %8680 = vmatprep.subr.bf16.mxu0 0
        %8681 = vmatpush1.bf16.msra.mxu0 0
        %8682 = vmatprep.subr.bf16.mxu0 0
        %8683 = vmatpush1.bf16.msra.mxu0 0
        %8684 = vmatprep.subr.bf16.mxu0 0
        %8685 = vmatpush1.bf16.msra.mxu0 0
        %8686 = vmatprep.subr.bf16.mxu0 0
        %8687 = vmatpush1.bf16.msra.mxu0 0
        %8688 = vmatprep.subr.bf16.mxu0 0
        %8689 = vmatpush1.bf16.msra.mxu0 0
        %8690 = vmatprep.subr.bf16.mxu0 %v6917
        %8691 = vmatpush1.bf16.msra.mxu0 %v6914
        %8692 = vmatprep.subr.bf16.mxu0 %v6835
        %8693 = vmatpush1.bf16.msra.mxu0 %v6834
        %8694 = vmatprep.subr.bf16.mxu0 0
        %8695 = vmatpush2.bf16.msra.mxu0 0
        %8696 = vmatprep.subr.bf16.mxu0 0
        %8697 = vmatpush2.bf16.msra.mxu0 0
        %8698 = vmatprep.subr.bf16.mxu0 0
        %8699 = vmatpush2.bf16.msra.mxu0 0
        %8700 = vmatprep.subr.bf16.mxu0 0
        %8701 = vmatpush2.bf16.msra.mxu0 0
        %8702 = vmatprep.subr.bf16.mxu0 0
        %8703 = vmatpush2.bf16.msra.mxu0 0
        %8704 = vmatprep.subr.bf16.mxu0 0
        %8705 = vmatpush2.bf16.msra.mxu0 0
        %8706 = vmatprep.subr.bf16.mxu0 0
        %8707 = vmatpush2.bf16.msra.mxu0 0
        %8708 = vmatprep.subr.bf16.mxu0 0
        %8709 = vmatpush2.bf16.msra.mxu0 0
        %8710 = vmatprep.mubr.bf16.mxu0 0
        %8711 = vmatmul.mubr.bf16.gmra.mxu0 %v8153
        %v8712 = vpop.f32.mrf.mxu0
        %v8713 = vadd.f32 0.0, %v8712
        %v8714 = vpop.f32.mrf.mxu0
        %v8715 = vadd.f32 0.0, %v8714
        %v8716 = vpop.f32.mrf.mxu0
        %v8717 = vadd.f32 0.0, %v8716
        %v8718 = vpop.f32.mrf.mxu0
        %v8719 = vadd.f32 0.0, %v8718
        %8720 = vmatprep.mubr.bf16.mxu0 0
        %8721 = vmatmul.mubr.bf16.gmra.mxu0 %v8156
        %v8722 = vpop.f32.mrf.mxu0
        %v8723 = vadd.f32 0.0, %v8722
        %v8724 = vpop.f32.mrf.mxu0
        %v8725 = vadd.f32 0.0, %v8724
        %v8726 = vpop.f32.mrf.mxu0
        %v8727 = vadd.f32 0.0, %v8726
        %v8728 = vpop.f32.mrf.mxu0
        %v8729 = vadd.f32 0.0, %v8728
        %8730 = vmatprep.mubr.bf16.mxu0 0
        %8731 = vmatmul.mubr.bf16.gmra.mxu0 %v8159
        %v8732 = vpop.f32.mrf.mxu0
        %v8733 = vadd.f32 0.0, %v8732
        %v8734 = vpop.f32.mrf.mxu0
        %v8735 = vadd.f32 0.0, %v8734
        %v8736 = vpop.f32.mrf.mxu0
        %v8737 = vadd.f32 0.0, %v8736
        %v8738 = vpop.f32.mrf.mxu0
        %v8739 = vadd.f32 0.0, %v8738
        %8740 = vmatprep.mubr.bf16.mxu0 0
        %8741 = vmatmul.mubr.bf16.gmra.mxu0 %v8162
        %v8742 = vpop.f32.mrf.mxu0
        %v8743 = vadd.f32 0.0, %v8742
        %v8744 = vpop.f32.mrf.mxu0
        %v8745 = vadd.f32 0.0, %v8744
        %v8746 = vpop.f32.mrf.mxu0
        %v8747 = vadd.f32 0.0, %v8746
        %v8748 = vpop.f32.mrf.mxu0
        %v8749 = vadd.f32 0.0, %v8748
        %8750 = vmatprep.mubr.bf16.mxu0 0
        %8751 = vmatmul.mubr.bf16.gmra.mxu0 %v8165
        %v8752 = vpop.f32.mrf.mxu0
        %v8753 = vadd.f32 0.0, %v8752
        %v8754 = vpop.f32.mrf.mxu0
        %v8755 = vadd.f32 0.0, %v8754
        %v8756 = vpop.f32.mrf.mxu0
        %v8757 = vadd.f32 0.0, %v8756
        %v8758 = vpop.f32.mrf.mxu0
        %v8759 = vadd.f32 0.0, %v8758
        %8760 = vmatprep.mubr.bf16.mxu0 0
        %8761 = vmatmul.mubr.bf16.gmra.mxu0 %v8168
        %v8762 = vpop.f32.mrf.mxu0
        %v8763 = vadd.f32 0.0, %v8762
        %v8764 = vpop.f32.mrf.mxu0
        %v8765 = vadd.f32 0.0, %v8764
        %v8766 = vpop.f32.mrf.mxu0
        %v8767 = vadd.f32 0.0, %v8766
        %v8768 = vpop.f32.mrf.mxu0
        %v8769 = vadd.f32 0.0, %v8768
        %8770 = vmatprep.mubr.bf16.mxu0 0
        %8771 = vmatmul.mubr.bf16.gmra.mxu0 %v8171
        %v8772 = vpop.f32.mrf.mxu0
        %v8773 = vadd.f32 0.0, %v8772
        %v8774 = vpop.f32.mrf.mxu0
        %v8775 = vadd.f32 0.0, %v8774
        %v8776 = vpop.f32.mrf.mxu0
        %v8777 = vpop.f32.mrf.mxu0
        %8778 = vdwg.mxu0
        %v8779 = vadd.f32 %v7581, %v8208
        %v8780 = vadd.f32 %v7583, %v8210
        %v8781 = vadd.f32 %v7682, %v8309
        %v8782 = vadd.f32 %v7684, %v8311
        %v8783 = vadd.f32 %v7783, %v8410
        %v8784 = vadd.f32 %v7785, %v8412
        %v8785 = vadd.f32 %v7884, %v8511
        %v8786 = vadd.f32 %v7886, %v8513
        %v8787 = vadd.f32 %v7985, %v8612
        %v8788 = vadd.f32 %v7987, %v8614
        %v8789 = vadd.f32 %v8086, %v8713
        %v8790 = vadd.f32 %v8088, %v8715
        %v8791 = vadd.f32 %v7585, %v8212
        %v8792 = vadd.f32 %v7587, %v8214
        %v8793 = vadd.f32 %v7686, %v8313
        %v8794 = vadd.f32 %v7688, %v8315
        %v8795 = vadd.f32 %v7787, %v8414
        %v8796 = vadd.f32 %v7789, %v8416
        %v8797 = vadd.f32 %v7888, %v8515
        %v8798 = vadd.f32 %v7890, %v8517
        %v8799 = vadd.f32 %v7989, %v8616
        %v8800 = vadd.f32 %v7991, %v8618
        %v8801 = vadd.f32 %v8090, %v8717
        %v8802 = vadd.f32 %v8092, %v8719
        %v8803 = vadd.f32 %v7591, %v8218
        %v8804 = vadd.f32 %v7593, %v8220
        %v8805 = vadd.f32 %v7692, %v8319
        %v8806 = vadd.f32 %v7694, %v8321
        %v8807 = vadd.f32 %v7793, %v8420
        %v8808 = vadd.f32 %v7795, %v8422
        %v8809 = vadd.f32 %v7894, %v8521
        %v8810 = vadd.f32 %v7896, %v8523
        %v8811 = vadd.f32 %v7995, %v8622
        %v8812 = vadd.f32 %v7997, %v8624
        %v8813 = vadd.f32 %v8096, %v8723
        %v8814 = vadd.f32 %v8098, %v8725
        %v8815 = vadd.f32 %v7595, %v8222
        %v8816 = vadd.f32 %v7597, %v8224
        %v8817 = vadd.f32 %v7696, %v8323
        %v8818 = vadd.f32 %v7698, %v8325
        %v8819 = vadd.f32 %v7797, %v8424
        %v8820 = vadd.f32 %v7799, %v8426
        %v8821 = vadd.f32 %v7898, %v8525
        %v8822 = vadd.f32 %v7900, %v8527
        %v8823 = vadd.f32 %v7999, %v8626
        %v8824 = vadd.f32 %v8001, %v8628
        %v8825 = vadd.f32 %v8100, %v8727
        %v8826 = vadd.f32 %v8102, %v8729
        %v8827 = vadd.f32 %v7601, %v8228
        %v8828 = vadd.f32 %v7603, %v8230
        %v8829 = vadd.f32 %v7702, %v8329
        %v8830 = vadd.f32 %v7704, %v8331
        %v8831 = vadd.f32 %v7803, %v8430
        %v8832 = vadd.f32 %v7805, %v8432
        %v8833 = vadd.f32 %v7904, %v8531
        %v8834 = vadd.f32 %v7906, %v8533
        %v8835 = vadd.f32 %v8005, %v8632
        %v8836 = vadd.f32 %v8007, %v8634
        %v8837 = vadd.f32 %v8106, %v8733
        %v8838 = vadd.f32 %v8108, %v8735
        %v8839 = vadd.f32 %v7605, %v8232
        %v8840 = vadd.f32 %v7607, %v8234
        %v8841 = vadd.f32 %v7706, %v8333
        %v8842 = vadd.f32 %v7708, %v8335
        %v8843 = vadd.f32 %v7807, %v8434
        %v8844 = vadd.f32 %v7809, %v8436
        %v8845 = vadd.f32 %v7908, %v8535
        %v8846 = vadd.f32 %v7910, %v8537
        %v8847 = vadd.f32 %v8009, %v8636
        %v8848 = vadd.f32 %v8011, %v8638
        %v8849 = vadd.f32 %v8110, %v8737
        %v8850 = vadd.f32 %v8112, %v8739
        %v8851 = vadd.f32 %v7611, %v8238
        %v8852 = vadd.f32 %v7613, %v8240
        %v8853 = vadd.f32 %v7712, %v8339
        %v8854 = vadd.f32 %v7714, %v8341
        %v8855 = vadd.f32 %v7813, %v8440
        %v8856 = vadd.f32 %v7815, %v8442
        %v8857 = vadd.f32 %v7914, %v8541
        %v8858 = vadd.f32 %v7916, %v8543
        %v8859 = vadd.f32 %v8015, %v8642
        %v8860 = vadd.f32 %v8017, %v8644
        %v8861 = vadd.f32 %v8116, %v8743
        %v8862 = vadd.f32 %v8118, %v8745
        %v8863 = vadd.f32 %v7615, %v8242
        %v8864 = vadd.f32 %v7617, %v8244
        %v8865 = vadd.f32 %v7716, %v8343
        %v8866 = vadd.f32 %v7718, %v8345
        %v8867 = vadd.f32 %v7817, %v8444
        %v8868 = vadd.f32 %v7819, %v8446
        %v8869 = vadd.f32 %v7918, %v8545
        %v8870 = vadd.f32 %v7920, %v8547
        %v8871 = vadd.f32 %v8019, %v8646
        %v8872 = vadd.f32 %v8021, %v8648
        %v8873 = vadd.f32 %v8120, %v8747
        %v8874 = vadd.f32 %v8122, %v8749
        %v8875 = vadd.f32 %v7621, %v8248
        %v8876 = vadd.f32 %v7623, %v8250
        %v8877 = vadd.f32 %v7722, %v8349
        %v8878 = vadd.f32 %v7724, %v8351
        %v8879 = vadd.f32 %v7823, %v8450
        %v8880 = vadd.f32 %v7825, %v8452
        %v8881 = vadd.f32 %v7924, %v8551
        %v8882 = vadd.f32 %v7926, %v8553
        %v8883 = vadd.f32 %v8025, %v8652
        %v8884 = vadd.f32 %v8027, %v8654
        %v8885 = vadd.f32 %v8126, %v8753
        %v8886 = vadd.f32 %v8128, %v8755
        %v8887 = vadd.f32 %v7625, %v8252
        %v8888 = vadd.f32 %v7627, %v8254
        %v8889 = vadd.f32 %v7726, %v8353
        %v8890 = vadd.f32 %v7728, %v8355
        %v8891 = vadd.f32 %v7827, %v8454
        %v8892 = vadd.f32 %v7829, %v8456
        %v8893 = vadd.f32 %v7928, %v8555
        %v8894 = vadd.f32 %v7930, %v8557
        %v8895 = vadd.f32 %v8029, %v8656
        %v8896 = vadd.f32 %v8031, %v8658
        %v8897 = vadd.f32 %v8130, %v8757
        %v8898 = vadd.f32 %v8132, %v8759
        %v8899 = vadd.f32 %v7631, %v8258
        %v8900 = vadd.f32 %v7633, %v8260
        %v8901 = vadd.f32 %v7732, %v8359
        %v8902 = vadd.f32 %v7734, %v8361
        %v8903 = vadd.f32 %v7833, %v8460
        %v8904 = vadd.f32 %v7835, %v8462
        %v8905 = vadd.f32 %v7934, %v8561
        %v8906 = vadd.f32 %v7936, %v8563
        %v8907 = vadd.f32 %v8035, %v8662
        %v8908 = vadd.f32 %v8037, %v8664
        %v8909 = vadd.f32 %v8136, %v8763
        %v8910 = vadd.f32 %v8138, %v8765
        %v8911 = vadd.f32 %v7635, %v8262
        %v8912 = vadd.f32 %v7637, %v8264
        %v8913 = vadd.f32 %v7736, %v8363
        %v8914 = vadd.f32 %v7738, %v8365
        %v8915 = vadd.f32 %v7837, %v8464
        %v8916 = vadd.f32 %v7839, %v8466
        %v8917 = vadd.f32 %v7938, %v8565
        %v8918 = vadd.f32 %v7940, %v8567
        %v8919 = vadd.f32 %v8039, %v8666
        %v8920 = vadd.f32 %v8041, %v8668
        %v8921 = vadd.f32 %v8140, %v8767
        %v8922 = vadd.f32 %v8142, %v8769
        %v8923 = vadd.f32 %v7641, %v8268
        %v8924 = vadd.f32 %v7643, %v8270
        %v8925 = vadd.f32 %v7742, %v8369
        %v8926 = vadd.f32 %v7744, %v8371
        %v8927 = vadd.f32 %v7843, %v8470
        %v8928 = vadd.f32 %v7845, %v8472
        %v8929 = vadd.f32 %v7944, %v8571
        %v8930 = vadd.f32 %v7946, %v8573
        %v8931 = vadd.f32 %v8045, %v8672
        %v8932 = vadd.f32 %v8047, %v8674
        %v8933 = vadd.f32 %v8146, %v8773
        %v8934 = vadd.f32 %v8148, %v8775
        %v8935 = vmul.f32 %v3336, %v8779
        %v8936 = vmul.f32 %v3337, %v8780
        %v8937 = vmul.f32 %v3338, %v8781
        %v8938 = vmul.f32 %v3339, %v8782
        %v8939 = vmul.f32 %v3340, %v8783
        %v8940 = vmul.f32 %v3341, %v8784
        %v8941 = vmul.f32 %v3342, %v8785
        %v8942 = vmul.f32 %v3343, %v8786
        %v8943 = vmul.f32 %v3344, %v8787
        %v8944 = vmul.f32 %v3345, %v8788
        %v8945 = vmul.f32 %v3346, %v8789
        %v8946 = vmul.f32 %v3347, %v8790
        %v8947 = vmul.f32 %v3348, %v8791
        %v8948 = vmul.f32 %v3349, %v8792
        %v8949 = vmul.f32 %v3350, %v8793
        %v8950 = vmul.f32 %v3351, %v8794
        %v8951 = vmul.f32 %v3352, %v8795
        %v8952 = vmul.f32 %v3353, %v8796
        %v8953 = vmul.f32 %v3354, %v8797
        %v8954 = vmul.f32 %v3355, %v8798
        %v8955 = vmul.f32 %v3356, %v8799
        %v8956 = vmul.f32 %v3357, %v8800
        %v8957 = vmul.f32 %v3358, %v8801
        %v8958 = vmul.f32 %v3359, %v8802
        %v8959 = vmul.f32 %v3360, %v8803
        %v8960 = vmul.f32 %v3361, %v8804
        %v8961 = vmul.f32 %v3362, %v8805
        %v8962 = vmul.f32 %v3363, %v8806
        %v8963 = vmul.f32 %v3364, %v8807
        %v8964 = vmul.f32 %v3365, %v8808
        %v8965 = vmul.f32 %v3366, %v8809
        %v8966 = vmul.f32 %v3367, %v8810
        %v8967 = vmul.f32 %v3368, %v8811
        %v8968 = vmul.f32 %v3369, %v8812
        %v8969 = vmul.f32 %v3370, %v8813
        %v8970 = vmul.f32 %v3371, %v8814
        %v8971 = vmul.f32 %v3372, %v8815
        %v8972 = vmul.f32 %v3373, %v8816
        %v8973 = vmul.f32 %v3374, %v8817
        %v8974 = vmul.f32 %v3375, %v8818
        %v8975 = vmul.f32 %v3376, %v8819
        %v8976 = vmul.f32 %v3377, %v8820
        %v8977 = vmul.f32 %v3378, %v8821
        %v8978 = vmul.f32 %v3379, %v8822
        %v8979 = vmul.f32 %v3380, %v8823
        %v8980 = vmul.f32 %v3381, %v8824
        %v8981 = vmul.f32 %v3382, %v8825
        %v8982 = vmul.f32 %v3383, %v8826
        %v8983 = vmul.f32 %v3384, %v8827
        %v8984 = vmul.f32 %v3385, %v8828
        %v8985 = vmul.f32 %v3386, %v8829
        %v8986 = vmul.f32 %v3387, %v8830
        %v8987 = vmul.f32 %v3388, %v8831
        %v8988 = vmul.f32 %v3389, %v8832
        %v8989 = vmul.f32 %v3390, %v8833
        %v8990 = vmul.f32 %v3391, %v8834
        %v8991 = vmul.f32 %v3392, %v8835
        %v8992 = vmul.f32 %v3393, %v8836
        %v8993 = vmul.f32 %v3394, %v8837
        %v8994 = vmul.f32 %v3395, %v8838
        %v8995 = vmul.f32 %v3396, %v8839
        %v8996 = vmul.f32 %v3397, %v8840
        %v8997 = vmul.f32 %v3398, %v8841
        %v8998 = vmul.f32 %v3399, %v8842
        %v8999 = vmul.f32 %v3400, %v8843
        %v9000 = vmul.f32 %v3401, %v8844
        %v9001 = vmul.f32 %v3402, %v8845
        %v9002 = vmul.f32 %v3403, %v8846
        %v9003 = vmul.f32 %v3404, %v8847
        %v9004 = vmul.f32 %v3405, %v8848
        %v9005 = vmul.f32 %v3406, %v8849
        %v9006 = vmul.f32 %v3407, %v8850
        %v9007 = vmul.f32 %v3408, %v8851
        %v9008 = vmul.f32 %v3409, %v8852
        %v9009 = vmul.f32 %v3410, %v8853
        %v9010 = vmul.f32 %v3411, %v8854
        %v9011 = vmul.f32 %v3412, %v8855
        %v9012 = vmul.f32 %v3413, %v8856
        %v9013 = vmul.f32 %v3414, %v8857
        %v9014 = vmul.f32 %v3415, %v8858
        %v9015 = vmul.f32 %v3416, %v8859
        %v9016 = vmul.f32 %v3417, %v8860
        %v9017 = vmul.f32 %v3418, %v8861
        %v9018 = vmul.f32 %v3419, %v8862
        %v9019 = vmul.f32 %v3420, %v8863
        %v9020 = vmul.f32 %v3421, %v8864
        %v9021 = vmul.f32 %v3422, %v8865
        %v9022 = vmul.f32 %v3423, %v8866
        %v9023 = vmul.f32 %v3424, %v8867
        %v9024 = vmul.f32 %v3425, %v8868
        %v9025 = vmul.f32 %v3426, %v8869
        %v9026 = vmul.f32 %v3427, %v8870
        %v9027 = vmul.f32 %v3428, %v8871
        %v9028 = vmul.f32 %v3429, %v8872
        %v9029 = vmul.f32 %v3430, %v8873
        %v9030 = vmul.f32 %v3431, %v8874
        %v9031 = vmul.f32 %v3432, %v8875
        %v9032 = vmul.f32 %v3433, %v8876
        %v9033 = vmul.f32 %v3434, %v8877
        %v9034 = vmul.f32 %v3435, %v8878
        %v9035 = vmul.f32 %v3436, %v8879
        %v9036 = vmul.f32 %v3437, %v8880
        %v9037 = vmul.f32 %v3438, %v8881
        %v9038 = vmul.f32 %v3439, %v8882
        %v9039 = vmul.f32 %v3440, %v8883
        %v9040 = vmul.f32 %v3441, %v8884
        %v9041 = vmul.f32 %v3442, %v8885
        %v9042 = vmul.f32 %v3443, %v8886
        %v9043 = vmul.f32 %v3444, %v8887
        %v9044 = vmul.f32 %v3445, %v8888
        %v9045 = vmul.f32 %v3446, %v8889
        %v9046 = vmul.f32 %v3447, %v8890
        %v9047 = vmul.f32 %v3448, %v8891
        %v9048 = vmul.f32 %v3449, %v8892
        %v9049 = vmul.f32 %v3450, %v8893
        %v9050 = vmul.f32 %v3451, %v8894
        %v9051 = vmul.f32 %v3452, %v8895
        %v9052 = vmul.f32 %v3453, %v8896
        %v9053 = vmul.f32 %v3454, %v8897
        %v9054 = vmul.f32 %v3455, %v8898
        %v9055 = vmul.f32 %v3456, %v8899
        %v9056 = vmul.f32 %v3457, %v8900
        %v9057 = vmul.f32 %v3458, %v8901
        %v9058 = vmul.f32 %v3459, %v8902
        %v9059 = vmul.f32 %v3460, %v8903
        %v9060 = vmul.f32 %v3461, %v8904
        %v9061 = vmul.f32 %v3462, %v8905
        %v9062 = vmul.f32 %v3463, %v8906
        %v9063 = vmul.f32 %v3464, %v8907
        %v9064 = vmul.f32 %v3465, %v8908
        %v9065 = vmul.f32 %v3466, %v8909
        %v9066 = vmul.f32 %v3467, %v8910
        %v9067 = vmul.f32 %v3468, %v8911
        %v9068 = vmul.f32 %v3469, %v8912
        %v9069 = vmul.f32 %v3470, %v8913
        %v9070 = vmul.f32 %v3471, %v8914
        %v9071 = vmul.f32 %v3472, %v8915
        %v9072 = vmul.f32 %v3473, %v8916
        %v9073 = vmul.f32 %v3474, %v8917
        %v9074 = vmul.f32 %v3475, %v8918
        %v9075 = vmul.f32 %v3476, %v8919
        %v9076 = vmul.f32 %v3477, %v8920
        %v9077 = vmul.f32 %v3478, %v8921
        %v9078 = vmul.f32 %v3479, %v8922
        %v9079 = vmul.f32 %v3480, %v8923
        %v9080 = vmul.f32 %v3481, %v8924
        %v9081 = vmul.f32 %v3482, %v8925
        %v9082 = vmul.f32 %v3483, %v8926
        %v9083 = vmul.f32 %v3484, %v8927
        %v9084 = vmul.f32 %v3485, %v8928
        %v9085 = vmul.f32 %v3486, %v8929
        %v9086 = vmul.f32 %v3487, %v8930
        %v9087 = vmul.f32 %v3488, %v8931
        %v9088 = vmul.f32 %v3489, %v8932
        %v9089 = vmul.f32 %v3490, %v8933
        %v9090 = vmul.f32 %v3491, %v8934
        %v9091 = vsub.f32 %v986, %v8935
        %v9092 = vsub.f32 %v987, %v8936
        %v9093 = vsub.f32 %v988, %v8937
        %v9094 = vsub.f32 %v989, %v8938
        %v9095 = vsub.f32 %v990, %v8939
        %v9096 = vsub.f32 %v991, %v8940
        %v9097 = vsub.f32 %v992, %v8941
        %v9098 = vsub.f32 %v993, %v8942
        %v9099 = vsub.f32 %v994, %v8943
        %v9100 = vsub.f32 %v995, %v8944
        %v9101 = vsub.f32 %v996, %v8945
        %v9102 = vsub.f32 %v997, %v8946
        %v9103 = vsub.f32 %v998, %v8947
        %v9104 = vsub.f32 %v999, %v8948
        %v9105 = vsub.f32 %v1000, %v8949
        %v9106 = vsub.f32 %v1001, %v8950
        %v9107 = vsub.f32 %v1002, %v8951
        %v9108 = vsub.f32 %v1003, %v8952
        %v9109 = vsub.f32 %v1004, %v8953
        %v9110 = vsub.f32 %v1005, %v8954
        %v9111 = vsub.f32 %v1006, %v8955
        %v9112 = vsub.f32 %v1007, %v8956
        %v9113 = vsub.f32 %v1008, %v8957
        %v9114 = vsub.f32 %v1009, %v8958
        %v9115 = vsub.f32 %v1010, %v8959
        %v9116 = vsub.f32 %v1011, %v8960
        %v9117 = vsub.f32 %v1012, %v8961
        %v9118 = vsub.f32 %v1013, %v8962
        %v9119 = vsub.f32 %v1014, %v8963
        %v9120 = vsub.f32 %v1015, %v8964
        %v9121 = vsub.f32 %v1016, %v8965
        %v9122 = vsub.f32 %v1017, %v8966
        %v9123 = vsub.f32 %v1018, %v8967
        %v9124 = vsub.f32 %v1019, %v8968
        %v9125 = vsub.f32 %v1020, %v8969
        %v9126 = vsub.f32 %v1021, %v8970
        %v9127 = vsub.f32 %v1022, %v8971
        %v9128 = vsub.f32 %v1023, %v8972
        %v9129 = vsub.f32 %v1024, %v8973
        %v9130 = vsub.f32 %v1025, %v8974
        %v9131 = vsub.f32 %v1026, %v8975
        %v9132 = vsub.f32 %v1027, %v8976
        %v9133 = vsub.f32 %v1028, %v8977
        %v9134 = vsub.f32 %v1029, %v8978
        %v9135 = vsub.f32 %v1030, %v8979
        %v9136 = vsub.f32 %v1031, %v8980
        %v9137 = vsub.f32 %v1032, %v8981
        %v9138 = vsub.f32 %v1033, %v8982
        %v9139 = vsub.f32 %v1034, %v8983
        %v9140 = vsub.f32 %v1035, %v8984
        %v9141 = vsub.f32 %v1036, %v8985
        %v9142 = vsub.f32 %v1037, %v8986
        %v9143 = vsub.f32 %v1038, %v8987
        %v9144 = vsub.f32 %v1039, %v8988
        %v9145 = vsub.f32 %v1040, %v8989
        %v9146 = vsub.f32 %v1041, %v8990
        %v9147 = vsub.f32 %v1042, %v8991
        %v9148 = vsub.f32 %v1043, %v8992
        %v9149 = vsub.f32 %v1044, %v8993
        %v9150 = vsub.f32 %v1045, %v8994
        %v9151 = vsub.f32 %v1046, %v8995
        %v9152 = vsub.f32 %v1047, %v8996
        %v9153 = vsub.f32 %v1048, %v8997
        %v9154 = vsub.f32 %v1049, %v8998
        %v9155 = vsub.f32 %v1050, %v8999
        %v9156 = vsub.f32 %v1051, %v9000
        %v9157 = vsub.f32 %v1052, %v9001
        %v9158 = vsub.f32 %v1053, %v9002
        %v9159 = vsub.f32 %v1054, %v9003
        %v9160 = vsub.f32 %v1055, %v9004
        %v9161 = vsub.f32 %v1056, %v9005
        %v9162 = vsub.f32 %v1057, %v9006
        %v9163 = vsub.f32 %v1058, %v9007
        %v9164 = vsub.f32 %v1059, %v9008
        %v9165 = vsub.f32 %v1060, %v9009
        %v9166 = vsub.f32 %v1061, %v9010
        %v9167 = vsub.f32 %v1062, %v9011
        %v9168 = vsub.f32 %v1063, %v9012
        %v9169 = vsub.f32 %v1064, %v9013
        %v9170 = vsub.f32 %v1065, %v9014
        %v9171 = vsub.f32 %v1066, %v9015
        %v9172 = vsub.f32 %v1067, %v9016
        %v9173 = vsub.f32 %v1068, %v9017
        %v9174 = vsub.f32 %v1069, %v9018
        %v9175 = vsub.f32 %v1070, %v9019
        %v9176 = vsub.f32 %v1071, %v9020
        %v9177 = vsub.f32 %v1072, %v9021
        %v9178 = vsub.f32 %v1073, %v9022
        %v9179 = vsub.f32 %v1074, %v9023
        %v9180 = vsub.f32 %v1075, %v9024
        %v9181 = vsub.f32 %v1076, %v9025
        %v9182 = vsub.f32 %v1077, %v9026
        %v9183 = vsub.f32 %v1078, %v9027
        %v9184 = vsub.f32 %v1079, %v9028
        %v9185 = vsub.f32 %v1080, %v9029
        %v9186 = vsub.f32 %v1081, %v9030
        %v9187 = vsub.f32 %v1082, %v9031
        %v9188 = vsub.f32 %v1083, %v9032
        %v9189 = vsub.f32 %v1084, %v9033
        %v9190 = vsub.f32 %v1085, %v9034
        %v9191 = vsub.f32 %v1086, %v9035
        %v9192 = vsub.f32 %v1087, %v9036
        %v9193 = vsub.f32 %v1088, %v9037
        %v9194 = vsub.f32 %v1089, %v9038
        %v9195 = vsub.f32 %v1090, %v9039
        %v9196 = vsub.f32 %v1091, %v9040
        %v9197 = vsub.f32 %v1092, %v9041
        %v9198 = vsub.f32 %v1093, %v9042
        %v9199 = vsub.f32 %v1094, %v9043
        %v9200 = vsub.f32 %v1095, %v9044
        %v9201 = vsub.f32 %v1096, %v9045
        %v9202 = vsub.f32 %v1097, %v9046
        %v9203 = vsub.f32 %v1098, %v9047
        %v9204 = vsub.f32 %v1099, %v9048
        %v9205 = vsub.f32 %v1100, %v9049
        %v9206 = vsub.f32 %v1101, %v9050
        %v9207 = vsub.f32 %v1102, %v9051
        %v9208 = vsub.f32 %v1103, %v9052
        %v9209 = vsub.f32 %v1104, %v9053
        %v9210 = vsub.f32 %v1105, %v9054
        %v9211 = vsub.f32 %v1106, %v9055
        %v9212 = vsub.f32 %v1107, %v9056
        %v9213 = vsub.f32 %v1108, %v9057
        %v9214 = vsub.f32 %v1109, %v9058
        %v9215 = vsub.f32 %v1110, %v9059
        %v9216 = vsub.f32 %v1111, %v9060
        %v9217 = vsub.f32 %v1112, %v9061
        %v9218 = vsub.f32 %v1113, %v9062
        %v9219 = vsub.f32 %v1114, %v9063
        %v9220 = vsub.f32 %v1115, %v9064
        %v9221 = vsub.f32 %v1116, %v9065
        %v9222 = vsub.f32 %v1117, %v9066
        %v9223 = vsub.f32 %v1118, %v9067
        %v9224 = vsub.f32 %v1119, %v9068
        %v9225 = vsub.f32 %v1120, %v9069
        %v9226 = vsub.f32 %v1121, %v9070
        %v9227 = vsub.f32 %v1122, %v9071
        %v9228 = vsub.f32 %v1123, %v9072
        %v9229 = vsub.f32 %v1124, %v9073
        %v9230 = vsub.f32 %v1125, %v9074
        %v9231 = vsub.f32 %v1126, %v9075
        %v9232 = vsub.f32 %v1127, %v9076
        %v9233 = vsub.f32 %v1128, %v9077
        %v9234 = vsub.f32 %v1129, %v9078
        %v9235 = vsub.f32 %v1130, %v9079
        %v9236 = vsub.f32 %v1131, %v9080
        %v9237 = vsub.f32 %v1132, %v9081
        %v9238 = vsub.f32 %v1133, %v9082
        %v9239 = vsub.f32 %v1134, %v9083
        %v9240 = vsub.f32 %v1135, %v9084
        %v9241 = vsub.f32 %v1136, %v9085
        %v9242 = vsub.f32 %v1137, %v9086
        %v9243 = vsub.f32 %v1138, %v9087
        %v9244 = vsub.f32 %v1139, %v9088
        %v9245 = vsub.f32 %v1140, %v9089
        %v9246 = vsub.f32 %v1141, %v9090
        %v9247 = vsel %vm908, 1, 0
        %v9248 = vsel %vm909, 1, 0
        %v9249 = vsel %vm910, 1, 0
        %v9250 = vsel %vm911, 1, 0
        %v9251 = vsel %vm912, 1, 0
        %v9252 = vsel %vm913, 1, 0
        %v9253 = vsel %vm914, 1, 0
        %v9254 = vsel %vm915, 1, 0
        %v9255 = vsel %vm916, 1, 0
        %v9256 = vsel %vm917, 1, 0
        %v9257 = vsel %vm918, 1, 0
        %v9258 = vsel %vm919, 1, 0
        %v9259 = vsel %vm920, 1, 0
        %vm9260 = vcmp.eq.s32.totalorder %v9247, 1
        %vm9261 = vcmp.eq.s32.totalorder %v9248, 1
        %vm9262 = vcmp.eq.s32.totalorder %v9249, 1
        %vm9263 = vcmp.eq.s32.totalorder %v9250, 1
        %vm9264 = vcmp.eq.s32.totalorder %v9251, 1
        %vm9265 = vcmp.eq.s32.totalorder %v9252, 1
        %vm9266 = vcmp.eq.s32.totalorder %v9253, 1
        %vm9267 = vcmp.eq.s32.totalorder %v9254, 1
        %vm9268 = vcmp.eq.s32.totalorder %v9255, 1
        %vm9269 = vcmp.eq.s32.totalorder %v9256, 1
        %vm9270 = vcmp.eq.s32.totalorder %v9257, 1
        %vm9271 = vcmp.eq.s32.totalorder %v9258, 1
        %vm9272 = vcmp.eq.s32.totalorder %v9259, 1
        %v9273 = vsel %vm9260, %v973, %v337
        %v9274 = vsel %vm9261, %v974, %v338
        %v9275 = vsel %vm9262, %v975, %v339
        %v9276 = vsel %vm9263, %v976, %v340
        %v9277 = vsel %vm9264, %v977, %v341
        %v9278 = vsel %vm9265, %v978, %v342
        %v9279 = vsel %vm9266, %v979, %v343
        %v9280 = vsel %vm9267, %v980, %v344
        %v9281 = vsel %vm9268, %v981, %v345
        %v9282 = vsel %vm9269, %v982, %v346
        %v9283 = vsel %vm9270, %v983, %v347
        %v9284 = vsel %vm9271, %v984, %v348
        %v9285 = vsel %vm9272, %v985, %v349
        %9286 = vst.msk [vmem:[%s287] sm:$0xff] %vm777, %v9273
        %9287 = vst.msk [vmem:[%s287 + $0x8] sm:$0xff] %vm777, %v9274
        %9288 = vst.msk [vmem:[%s287 + $0x10] sm:$0xff] %vm777, %v9275
        %9289 = vst.msk [vmem:[%s287 + $0x18] sm:$0xff] %vm777, %v9276
        %9290 = vst.msk [vmem:[%s287 + $0x20] sm:$0xff] %vm777, %v9277
        %9291 = vst.msk [vmem:[%s287 + $0x28] sm:$0xff] %vm777, %v9278
        %9292 = vst.msk [vmem:[%s287 + $0x30] sm:$0xff] %vm777, %v9279
        %9293 = vst.msk [vmem:[%s287 + $0x38] sm:$0xff] %vm777, %v9280
        %9294 = vst.msk [vmem:[%s287 + $0x40] sm:$0xff] %vm777, %v9281
        %9295 = vst.msk [vmem:[%s287 + $0x48] sm:$0xff] %vm777, %v9282
        %9296 = vst.msk [vmem:[%s287 + $0x50] sm:$0xff] %vm777, %v9283
        %9297 = vst.msk [vmem:[%s287 + $0x58] sm:$0xff] %vm777, %v9284
        %9298 = vst.msk [vmem:[%s287 + $0x60] sm:$0xff] %vm777, %v9285
        %v9299 = vsel %vm9260, %v9091, %v350
        %v9300 = vsel %vm9260, %v9092, %v351
        %v9301 = vsel %vm9260, %v9093, %v352
        %v9302 = vsel %vm9260, %v9094, %v353
        %v9303 = vsel %vm9260, %v9095, %v354
        %v9304 = vsel %vm9260, %v9096, %v355
        %v9305 = vsel %vm9260, %v9097, %v356
        %v9306 = vsel %vm9260, %v9098, %v357
        %v9307 = vsel %vm9260, %v9099, %v358
        %v9308 = vsel %vm9260, %v9100, %v359
        %v9309 = vsel %vm9260, %v9101, %v360
        %v9310 = vsel %vm9260, %v9102, %v361
        %v9311 = vsel %vm9261, %v9103, %v362
        %v9312 = vsel %vm9261, %v9104, %v363
        %v9313 = vsel %vm9261, %v9105, %v364
        %v9314 = vsel %vm9261, %v9106, %v365
        %v9315 = vsel %vm9261, %v9107, %v366
        %v9316 = vsel %vm9261, %v9108, %v367
        %v9317 = vsel %vm9261, %v9109, %v368
        %v9318 = vsel %vm9261, %v9110, %v369
        %v9319 = vsel %vm9261, %v9111, %v370
        %v9320 = vsel %vm9261, %v9112, %v371
        %v9321 = vsel %vm9261, %v9113, %v372
        %v9322 = vsel %vm9261, %v9114, %v373
        %v9323 = vsel %vm9262, %v9115, %v374
        %v9324 = vsel %vm9262, %v9116, %v375
        %v9325 = vsel %vm9262, %v9117, %v376
        %v9326 = vsel %vm9262, %v9118, %v377
        %v9327 = vsel %vm9262, %v9119, %v378
        %v9328 = vsel %vm9262, %v9120, %v379
        %v9329 = vsel %vm9262, %v9121, %v380
        %v9330 = vsel %vm9262, %v9122, %v381
        %v9331 = vsel %vm9262, %v9123, %v382
        %v9332 = vsel %vm9262, %v9124, %v383
        %v9333 = vsel %vm9262, %v9125, %v384
        %v9334 = vsel %vm9262, %v9126, %v385
        %v9335 = vsel %vm9263, %v9127, %v386
        %v9336 = vsel %vm9263, %v9128, %v387
        %v9337 = vsel %vm9263, %v9129, %v388
        %v9338 = vsel %vm9263, %v9130, %v389
        %v9339 = vsel %vm9263, %v9131, %v390
        %v9340 = vsel %vm9263, %v9132, %v391
        %v9341 = vsel %vm9263, %v9133, %v392
        %v9342 = vsel %vm9263, %v9134, %v393
        %v9343 = vsel %vm9263, %v9135, %v394
        %v9344 = vsel %vm9263, %v9136, %v395
        %v9345 = vsel %vm9263, %v9137, %v396
        %v9346 = vsel %vm9263, %v9138, %v397
        %v9347 = vsel %vm9264, %v9139, %v398
        %v9348 = vsel %vm9264, %v9140, %v399
        %v9349 = vsel %vm9264, %v9141, %v400
        %v9350 = vsel %vm9264, %v9142, %v401
        %v9351 = vsel %vm9264, %v9143, %v402
        %v9352 = vsel %vm9264, %v9144, %v403
        %v9353 = vsel %vm9264, %v9145, %v404
        %v9354 = vsel %vm9264, %v9146, %v405
        %v9355 = vsel %vm9264, %v9147, %v406
        %v9356 = vsel %vm9264, %v9148, %v407
        %v9357 = vsel %vm9264, %v9149, %v408
        %v9358 = vsel %vm9264, %v9150, %v409
        %v9359 = vsel %vm9265, %v9151, %v410
        %v9360 = vsel %vm9265, %v9152, %v411
        %v9361 = vsel %vm9265, %v9153, %v412
        %v9362 = vsel %vm9265, %v9154, %v413
        %v9363 = vsel %vm9265, %v9155, %v414
        %v9364 = vsel %vm9265, %v9156, %v415
        %v9365 = vsel %vm9265, %v9157, %v416
        %v9366 = vsel %vm9265, %v9158, %v417
        %v9367 = vsel %vm9265, %v9159, %v418
        %v9368 = vsel %vm9265, %v9160, %v419
        %v9369 = vsel %vm9265, %v9161, %v420
        %v9370 = vsel %vm9265, %v9162, %v421
        %v9371 = vsel %vm9266, %v9163, %v422
        %v9372 = vsel %vm9266, %v9164, %v423
        %v9373 = vsel %vm9266, %v9165, %v424
        %v9374 = vsel %vm9266, %v9166, %v425
        %v9375 = vsel %vm9266, %v9167, %v426
        %v9376 = vsel %vm9266, %v9168, %v427
        %v9377 = vsel %vm9266, %v9169, %v428
        %v9378 = vsel %vm9266, %v9170, %v429
        %v9379 = vsel %vm9266, %v9171, %v430
        %v9380 = vsel %vm9266, %v9172, %v431
        %v9381 = vsel %vm9266, %v9173, %v432
        %v9382 = vsel %vm9266, %v9174, %v433
        %v9383 = vsel %vm9267, %v9175, %v434
        %v9384 = vsel %vm9267, %v9176, %v435
        %v9385 = vsel %vm9267, %v9177, %v436
        %v9386 = vsel %vm9267, %v9178, %v437
        %v9387 = vsel %vm9267, %v9179, %v438
        %v9388 = vsel %vm9267, %v9180, %v439
        %v9389 = vsel %vm9267, %v9181, %v440
        %v9390 = vsel %vm9267, %v9182, %v441
        %v9391 = vsel %vm9267, %v9183, %v442
        %v9392 = vsel %vm9267, %v9184, %v443
        %v9393 = vsel %vm9267, %v9185, %v444
        %v9394 = vsel %vm9267, %v9186, %v445
        %v9395 = vsel %vm9268, %v9187, %v446
        %v9396 = vsel %vm9268, %v9188, %v447
        %v9397 = vsel %vm9268, %v9189, %v448
        %v9398 = vsel %vm9268, %v9190, %v449
        %v9399 = vsel %vm9268, %v9191, %v450
        %v9400 = vsel %vm9268, %v9192, %v451
        %v9401 = vsel %vm9268, %v9193, %v452
        %v9402 = vsel %vm9268, %v9194, %v453
        %v9403 = vsel %vm9268, %v9195, %v454
        %v9404 = vsel %vm9268, %v9196, %v455
        %v9405 = vsel %vm9268, %v9197, %v456
        %v9406 = vsel %vm9268, %v9198, %v457
        %v9407 = vsel %vm9269, %v9199, %v458
        %v9408 = vsel %vm9269, %v9200, %v459
        %v9409 = vsel %vm9269, %v9201, %v460
        %v9410 = vsel %vm9269, %v9202, %v461
        %v9411 = vsel %vm9269, %v9203, %v462
        %v9412 = vsel %vm9269, %v9204, %v463
        %v9413 = vsel %vm9269, %v9205, %v464
        %v9414 = vsel %vm9269, %v9206, %v465
        %v9415 = vsel %vm9269, %v9207, %v466
        %v9416 = vsel %vm9269, %v9208, %v467
        %v9417 = vsel %vm9269, %v9209, %v468
        %v9418 = vsel %vm9269, %v9210, %v469
        %v9419 = vsel %vm9270, %v9211, %v470
        %v9420 = vsel %vm9270, %v9212, %v471
        %v9421 = vsel %vm9270, %v9213, %v472
        %v9422 = vsel %vm9270, %v9214, %v473
        %v9423 = vsel %vm9270, %v9215, %v474
        %v9424 = vsel %vm9270, %v9216, %v475
        %v9425 = vsel %vm9270, %v9217, %v476
        %v9426 = vsel %vm9270, %v9218, %v477
        %v9427 = vsel %vm9270, %v9219, %v478
        %v9428 = vsel %vm9270, %v9220, %v479
        %v9429 = vsel %vm9270, %v9221, %v480
        %v9430 = vsel %vm9270, %v9222, %v481
        %v9431 = vsel %vm9271, %v9223, %v482
        %v9432 = vsel %vm9271, %v9224, %v483
        %v9433 = vsel %vm9271, %v9225, %v484
        %v9434 = vsel %vm9271, %v9226, %v485
        %v9435 = vsel %vm9271, %v9227, %v486
        %v9436 = vsel %vm9271, %v9228, %v487
        %v9437 = vsel %vm9271, %v9229, %v488
        %v9438 = vsel %vm9271, %v9230, %v489
        %v9439 = vsel %vm9271, %v9231, %v490
        %v9440 = vsel %vm9271, %v9232, %v491
        %v9441 = vsel %vm9271, %v9233, %v492
        %v9442 = vsel %vm9271, %v9234, %v493
        %v9443 = vsel %vm9272, %v9235, %v494
        %v9444 = vsel %vm9272, %v9236, %v495
        %v9445 = vsel %vm9272, %v9237, %v496
        %v9446 = vsel %vm9272, %v9238, %v497
        %v9447 = vsel %vm9272, %v9239, %v498
        %v9448 = vsel %vm9272, %v9240, %v499
        %v9449 = vsel %vm9272, %v9241, %v500
        %v9450 = vsel %vm9272, %v9242, %v501
        %v9451 = vsel %vm9272, %v9243, %v502
        %v9452 = vsel %vm9272, %v9244, %v503
        %v9453 = vsel %vm9272, %v9245, %v504
        %v9454 = vsel %vm9272, %v9246, %v505
        %9455 = vst [vmem:[%s293] sm:$0xff] %v9299
        %9456 = vst [vmem:[%s293 + $0x8] sm:$0xff] %v9300
        %9457 = vst [vmem:[%s293 + $0x10] sm:$0xff] %v9301
        %9458 = vst [vmem:[%s293 + $0x18] sm:$0xff] %v9302
        %9459 = vst [vmem:[%s293 + $0x20] sm:$0xff] %v9303
        %9460 = vst [vmem:[%s293 + $0x28] sm:$0xff] %v9304
        %9461 = vst [vmem:[%s293 + $0x30] sm:$0xff] %v9305
        %9462 = vst [vmem:[%s293 + $0x38] sm:$0xff] %v9306
        %9463 = vst [vmem:[%s293 + $0x40] sm:$0xff] %v9307
        %9464 = vst [vmem:[%s293 + $0x48] sm:$0xff] %v9308
        %9465 = vst [vmem:[%s293 + $0x50] sm:$0xff] %v9309
        %9466 = vst [vmem:[%s293 + $0x58] sm:$0xff] %v9310
        %9467 = vst [vmem:[%s293 + $0x60] sm:$0xff] %v9311
        %9468 = vst [vmem:[%s293 + $0x68] sm:$0xff] %v9312
        %9469 = vst [vmem:[%s293 + $0x70] sm:$0xff] %v9313
        %9470 = vst [vmem:[%s293 + $0x78] sm:$0xff] %v9314
        %9471 = vst [vmem:[%s293 + $0x80] sm:$0xff] %v9315
        %9472 = vst [vmem:[%s293 + $0x88] sm:$0xff] %v9316
        %9473 = vst [vmem:[%s293 + $0x90] sm:$0xff] %v9317
        %9474 = vst [vmem:[%s293 + $0x98] sm:$0xff] %v9318
        %9475 = vst [vmem:[%s293 + $0xa0] sm:$0xff] %v9319
        %9476 = vst [vmem:[%s293 + $0xa8] sm:$0xff] %v9320
        %9477 = vst [vmem:[%s293 + $0xb0] sm:$0xff] %v9321
        %9478 = vst [vmem:[%s293 + $0xb8] sm:$0xff] %v9322
        %9479 = vst [vmem:[%s293 + $0xc0] sm:$0xff] %v9323
        %9480 = vst [vmem:[%s293 + $0xc8] sm:$0xff] %v9324
        %9481 = vst [vmem:[%s293 + $0xd0] sm:$0xff] %v9325
        %9482 = vst [vmem:[%s293 + $0xd8] sm:$0xff] %v9326
        %9483 = vst [vmem:[%s293 + $0xe0] sm:$0xff] %v9327
        %9484 = vst [vmem:[%s293 + $0xe8] sm:$0xff] %v9328
        %9485 = vst [vmem:[%s293 + $0xf0] sm:$0xff] %v9329
        %9486 = vst [vmem:[%s293 + $0xf8] sm:$0xff] %v9330
        %9487 = vst [vmem:[%s293 + $0x100] sm:$0xff] %v9331
        %9488 = vst [vmem:[%s293 + $0x108] sm:$0xff] %v9332
        %9489 = vst [vmem:[%s293 + $0x110] sm:$0xff] %v9333
        %9490 = vst [vmem:[%s293 + $0x118] sm:$0xff] %v9334
        %9491 = vst [vmem:[%s293 + $0x120] sm:$0xff] %v9335
        %9492 = vst [vmem:[%s293 + $0x128] sm:$0xff] %v9336
        %9493 = vst [vmem:[%s293 + $0x130] sm:$0xff] %v9337
        %9494 = vst [vmem:[%s293 + $0x138] sm:$0xff] %v9338
        %9495 = vst [vmem:[%s293 + $0x140] sm:$0xff] %v9339
        %9496 = vst [vmem:[%s293 + $0x148] sm:$0xff] %v9340
        %9497 = vst [vmem:[%s293 + $0x150] sm:$0xff] %v9341
        %9498 = vst [vmem:[%s293 + $0x158] sm:$0xff] %v9342
        %9499 = vst [vmem:[%s293 + $0x160] sm:$0xff] %v9343
        %9500 = vst [vmem:[%s293 + $0x168] sm:$0xff] %v9344
        %9501 = vst [vmem:[%s293 + $0x170] sm:$0xff] %v9345
        %9502 = vst [vmem:[%s293 + $0x178] sm:$0xff] %v9346
        %9503 = vst [vmem:[%s293 + $0x180] sm:$0xff] %v9347
        %9504 = vst [vmem:[%s293 + $0x188] sm:$0xff] %v9348
        %9505 = vst [vmem:[%s293 + $0x190] sm:$0xff] %v9349
        %9506 = vst [vmem:[%s293 + $0x198] sm:$0xff] %v9350
        %9507 = vst [vmem:[%s293 + $0x1a0] sm:$0xff] %v9351
        %9508 = vst [vmem:[%s293 + $0x1a8] sm:$0xff] %v9352
        %9509 = vst [vmem:[%s293 + $0x1b0] sm:$0xff] %v9353
        %9510 = vst [vmem:[%s293 + $0x1b8] sm:$0xff] %v9354
        %9511 = vst [vmem:[%s293 + $0x1c0] sm:$0xff] %v9355
        %9512 = vst [vmem:[%s293 + $0x1c8] sm:$0xff] %v9356
        %9513 = vst [vmem:[%s293 + $0x1d0] sm:$0xff] %v9357
        %9514 = vst [vmem:[%s293 + $0x1d8] sm:$0xff] %v9358
        %9515 = vst [vmem:[%s293 + $0x1e0] sm:$0xff] %v9359
        %9516 = vst [vmem:[%s293 + $0x1e8] sm:$0xff] %v9360
        %9517 = vst [vmem:[%s293 + $0x1f0] sm:$0xff] %v9361
        %9518 = vst [vmem:[%s293 + $0x1f8] sm:$0xff] %v9362
        %9519 = vst [vmem:[%s293 + $0x200] sm:$0xff] %v9363
        %9520 = vst [vmem:[%s293 + $0x208] sm:$0xff] %v9364
        %9521 = vst [vmem:[%s293 + $0x210] sm:$0xff] %v9365
        %9522 = vst [vmem:[%s293 + $0x218] sm:$0xff] %v9366
        %9523 = vst [vmem:[%s293 + $0x220] sm:$0xff] %v9367
        %9524 = vst [vmem:[%s293 + $0x228] sm:$0xff] %v9368
        %9525 = vst [vmem:[%s293 + $0x230] sm:$0xff] %v9369
        %9526 = vst [vmem:[%s293 + $0x238] sm:$0xff] %v9370
        %9527 = vst [vmem:[%s293 + $0x240] sm:$0xff] %v9371
        %9528 = vst [vmem:[%s293 + $0x248] sm:$0xff] %v9372
        %9529 = vst [vmem:[%s293 + $0x250] sm:$0xff] %v9373
        %9530 = vst [vmem:[%s293 + $0x258] sm:$0xff] %v9374
        %9531 = vst [vmem:[%s293 + $0x260] sm:$0xff] %v9375
        %9532 = vst [vmem:[%s293 + $0x268] sm:$0xff] %v9376
        %9533 = vst [vmem:[%s293 + $0x270] sm:$0xff] %v9377
        %9534 = vst [vmem:[%s293 + $0x278] sm:$0xff] %v9378
        %9535 = vst [vmem:[%s293 + $0x280] sm:$0xff] %v9379
        %9536 = vst [vmem:[%s293 + $0x288] sm:$0xff] %v9380
        %9537 = vst [vmem:[%s293 + $0x290] sm:$0xff] %v9381
        %9538 = vst [vmem:[%s293 + $0x298] sm:$0xff] %v9382
        %9539 = vst [vmem:[%s293 + $0x2a0] sm:$0xff] %v9383
        %9540 = vst [vmem:[%s293 + $0x2a8] sm:$0xff] %v9384
        %9541 = vst [vmem:[%s293 + $0x2b0] sm:$0xff] %v9385
        %9542 = vst [vmem:[%s293 + $0x2b8] sm:$0xff] %v9386
        %9543 = vst [vmem:[%s293 + $0x2c0] sm:$0xff] %v9387
        %9544 = vst [vmem:[%s293 + $0x2c8] sm:$0xff] %v9388
        %9545 = vst [vmem:[%s293 + $0x2d0] sm:$0xff] %v9389
        %9546 = vst [vmem:[%s293 + $0x2d8] sm:$0xff] %v9390
        %9547 = vst [vmem:[%s293 + $0x2e0] sm:$0xff] %v9391
        %9548 = vst [vmem:[%s293 + $0x2e8] sm:$0xff] %v9392
        %9549 = vst [vmem:[%s293 + $0x2f0] sm:$0xff] %v9393
        %9550 = vst [vmem:[%s293 + $0x2f8] sm:$0xff] %v9394
        %9551 = vst [vmem:[%s293 + $0x300] sm:$0xff] %v9395
        %9552 = vst [vmem:[%s293 + $0x308] sm:$0xff] %v9396
        %9553 = vst [vmem:[%s293 + $0x310] sm:$0xff] %v9397
        %9554 = vst [vmem:[%s293 + $0x318] sm:$0xff] %v9398
        %9555 = vst [vmem:[%s293 + $0x320] sm:$0xff] %v9399
        %9556 = vst [vmem:[%s293 + $0x328] sm:$0xff] %v9400
        %9557 = vst [vmem:[%s293 + $0x330] sm:$0xff] %v9401
        %9558 = vst [vmem:[%s293 + $0x338] sm:$0xff] %v9402
        %9559 = vst [vmem:[%s293 + $0x340] sm:$0xff] %v9403
        %9560 = vst [vmem:[%s293 + $0x348] sm:$0xff] %v9404
        %9561 = vst [vmem:[%s293 + $0x350] sm:$0xff] %v9405
        %9562 = vst [vmem:[%s293 + $0x358] sm:$0xff] %v9406
        %9563 = vst [vmem:[%s293 + $0x360] sm:$0xff] %v9407
        %9564 = vst [vmem:[%s293 + $0x368] sm:$0xff] %v9408
        %9565 = vst [vmem:[%s293 + $0x370] sm:$0xff] %v9409
        %9566 = vst [vmem:[%s293 + $0x378] sm:$0xff] %v9410
        %9567 = vst [vmem:[%s293 + $0x380] sm:$0xff] %v9411
        %9568 = vst [vmem:[%s293 + $0x388] sm:$0xff] %v9412
        %9569 = vst [vmem:[%s293 + $0x390] sm:$0xff] %v9413
        %9570 = vst [vmem:[%s293 + $0x398] sm:$0xff] %v9414
        %9571 = vst [vmem:[%s293 + $0x3a0] sm:$0xff] %v9415
        %9572 = vst [vmem:[%s293 + $0x3a8] sm:$0xff] %v9416
        %9573 = vst [vmem:[%s293 + $0x3b0] sm:$0xff] %v9417
        %9574 = vst [vmem:[%s293 + $0x3b8] sm:$0xff] %v9418
        %9575 = vst [vmem:[%s293 + $0x3c0] sm:$0xff] %v9419
        %9576 = vst [vmem:[%s293 + $0x3c8] sm:$0xff] %v9420
        %9577 = vst [vmem:[%s293 + $0x3d0] sm:$0xff] %v9421
        %9578 = vst [vmem:[%s293 + $0x3d8] sm:$0xff] %v9422
        %9579 = vst [vmem:[%s293 + $0x3e0] sm:$0xff] %v9423
        %9580 = vst [vmem:[%s293 + $0x3e8] sm:$0xff] %v9424
        %9581 = vst [vmem:[%s293 + $0x3f0] sm:$0xff] %v9425
        %9582 = vst [vmem:[%s293 + $0x3f8] sm:$0xff] %v9426
        %9583 = vst [vmem:[%s293 + $0x400] sm:$0xff] %v9427
        %9584 = vst [vmem:[%s293 + $0x408] sm:$0xff] %v9428
        %9585 = vst [vmem:[%s293 + $0x410] sm:$0xff] %v9429
        %9586 = vst [vmem:[%s293 + $0x418] sm:$0xff] %v9430
        %9587 = vst [vmem:[%s293 + $0x420] sm:$0xff] %v9431
        %9588 = vst [vmem:[%s293 + $0x428] sm:$0xff] %v9432
        %9589 = vst [vmem:[%s293 + $0x430] sm:$0xff] %v9433
        %9590 = vst [vmem:[%s293 + $0x438] sm:$0xff] %v9434
        %9591 = vst [vmem:[%s293 + $0x440] sm:$0xff] %v9435
        %9592 = vst [vmem:[%s293 + $0x448] sm:$0xff] %v9436
        %9593 = vst [vmem:[%s293 + $0x450] sm:$0xff] %v9437
        %9594 = vst [vmem:[%s293 + $0x458] sm:$0xff] %v9438
        %9595 = vst [vmem:[%s293 + $0x460] sm:$0xff] %v9439
        %9596 = vst [vmem:[%s293 + $0x468] sm:$0xff] %v9440
        %9597 = vst [vmem:[%s293 + $0x470] sm:$0xff] %v9441
        %9598 = vst [vmem:[%s293 + $0x478] sm:$0xff] %v9442
        %9599 = vst [vmem:[%s293 + $0x480] sm:$0xff] %v9443
        %9600 = vst [vmem:[%s293 + $0x488] sm:$0xff] %v9444
        %9601 = vst [vmem:[%s293 + $0x490] sm:$0xff] %v9445
        %9602 = vst [vmem:[%s293 + $0x498] sm:$0xff] %v9446
        %9603 = vst [vmem:[%s293 + $0x4a0] sm:$0xff] %v9447
        %9604 = vst [vmem:[%s293 + $0x4a8] sm:$0xff] %v9448
        %9605 = vst [vmem:[%s293 + $0x4b0] sm:$0xff] %v9449
        %9606 = vst [vmem:[%s293 + $0x4b8] sm:$0xff] %v9450
        %9607 = vst [vmem:[%s293 + $0x4c0] sm:$0xff] %v9451
        %9608 = vst [vmem:[%s293 + $0x4c8] sm:$0xff] %v9452
        %9609 = vst [vmem:[%s293 + $0x4d0] sm:$0xff] %v9453
        %9610 = vst [vmem:[%s293 + $0x4d8] sm:$0xff] %v9454
        %s9611 = sand.u32 %s141, 1
        %s9612 = sand.u32 %s141, 1
        %s9613 = smul.addr %s9612, 104
        %s9614 = scalar_lea.vmem [#allocation2], %s9613
        %s9615 = sand.u32 %s167, 1
        %s9616 = sand.u32 %s167, 1
        %s9617 = smul.addr %s9616, 1248
        %s9618 = scalar_lea.vmem [#allocation3], %s9617
        // Predicated region
        $region41: #{_normalized_soap_grad_batched.1} parent=39 // pred_check
          %p9619 = pneg %p151
        $region42: #{_normalized_soap_grad_batched.1} parent=39 // pred_check_branch
          %9621 = sbr.rel (%p9619) target = $region44
        $region43: #{_normalized_soap_grad_batched.1} parent=39 // pred_region
          %s9622 = smul.u32 13, %s18
          %s9623 = ssub.s32 25, %s9622
          %p9624 = scmp.lt.s32.totalorder %s9623, 13
          %s9625 = scalar_select %p9624, %s9623, 13
          %s9626 = smul.u32 128, %s9625
          %p9627 = scmp.ne.s32.totalorder 0, %s9626
          %s9628 = smul.addr %s9622, 8
          %s9629 = scalar_lea.vmem %s5, %s9628
          // Predicated region
          $region45: #{_normalized_soap_grad_batched.1} parent=43 // pred_check
            %p9630 = pneg %p9627
          $region46: #{_normalized_soap_grad_batched.1} parent=43 // pred_check_branch
            %9632 = sbr.rel (%p9630) target = $region48
          $region47: #{_normalized_soap_grad_batched.1} parent=43 // pred_region
            // Predicated region
            $region49: #{_normalized_soap_grad_batched.1} parent=47 // pred_check
              _
            $region50: #{_normalized_soap_grad_batched.1} parent=47 // pred_check_branch
              %9634 = sbr.rel (0) target = $region52
            $region51: #{_normalized_soap_grad_batched.1} parent=47 // pred_region
              // Predicated region
              $region71: #{_normalized_soap_grad_batched.1} parent=51 // pred_check
                _
              $region72: #{_normalized_soap_grad_batched.1} parent=51 // pred_check_branch
                %9709 = sbr.rel (0) target = $region74
              $region73: #{_normalized_soap_grad_batched.1} parent=51 // pred_region
                %s9710 = sdiv.u32.pop %s9625, 13
                %s9711 = srem.u32.pop %s9625, 13
                // While loop
                $region75: #{_normalized_soap_grad_batched.1} parent=73 // loop_pre_header
                  _
                $region76: #{_normalized_soap_grad_batched.1} parent=73 // loop_header
                  %s9713 = sphi 0, %s9715
                  %p9714 = scmp.ge.s32.totalorder %s9713, %s9710
                  %s9718 = sphi 0, %s9749
                  %s9719 = sphi %s9614, %s9752
                  %s9720 = sphi %s9629, %s9753
                $region77: #{_normalized_soap_grad_batched.1} parent=73 // loop_header_branch
                  %9717 = sbr.rel (%p9714) target = $region81
                $region78: #{_normalized_soap_grad_batched.1} parent=73 // loop_body
                  %v9721 = vld [vmem:[%s9719] sm:$0xff]
                  %9722 = vst [vmem:[%s9720] sm:$0xff] %v9721
                  %v9723 = vld [vmem:[%s9719 + $0x8] sm:$0xff]
                  %9724 = vst [vmem:[%s9720 + $0x8] sm:$0xff] %v9723
                  %v9725 = vld [vmem:[%s9719 + $0x10] sm:$0xff]
                  %9726 = vst [vmem:[%s9720 + $0x10] sm:$0xff] %v9725
                  %v9727 = vld [vmem:[%s9719 + $0x18] sm:$0xff]
                  %9728 = vst [vmem:[%s9720 + $0x18] sm:$0xff] %v9727
                  %v9729 = vld [vmem:[%s9719 + $0x20] sm:$0xff]
                  %9730 = vst [vmem:[%s9720 + $0x20] sm:$0xff] %v9729
                  %v9731 = vld [vmem:[%s9719 + $0x28] sm:$0xff]
                  %9732 = vst [vmem:[%s9720 + $0x28] sm:$0xff] %v9731
                  %v9733 = vld [vmem:[%s9719 + $0x30] sm:$0xff]
                  %9734 = vst [vmem:[%s9720 + $0x30] sm:$0xff] %v9733
                  %v9735 = vld [vmem:[%s9719 + $0x38] sm:$0xff]
                  %9736 = vst [vmem:[%s9720 + $0x38] sm:$0xff] %v9735
                  %v9737 = vld [vmem:[%s9719 + $0x40] sm:$0xff]
                  %9738 = vst [vmem:[%s9720 + $0x40] sm:$0xff] %v9737
                  %v9739 = vld [vmem:[%s9719 + $0x48] sm:$0xff]
                  %9740 = vst [vmem:[%s9720 + $0x48] sm:$0xff] %v9739
                  %v9741 = vld [vmem:[%s9719 + $0x50] sm:$0xff]
                  %9742 = vst [vmem:[%s9720 + $0x50] sm:$0xff] %v9741
                  %v9743 = vld [vmem:[%s9719 + $0x58] sm:$0xff]
                  %9744 = vst [vmem:[%s9720 + $0x58] sm:$0xff] %v9743
                  %v9745 = vld [vmem:[%s9719 + $0x60] sm:$0xff]
                  %9746 = vst [vmem:[%s9720 + $0x60] sm:$0xff] %v9745
                  %s9747 = sadd.s32 1, %s9718
                  %p9748 = scmp.ge.s32.totalorder %s9747, %s9710
                  %s9749 = scalar_select %p9748, 0, %s9747
                  %s9750 = smul.u32 %s9749, 104
                  %s9751 = smul.u32 %s9749, 104
                  %s9752 = scalar_lea.vmem %s9614, %s9750 [#allocation2]
                  %s9753 = scalar_lea.vmem %s9629, %s9751
                $region79: #{_normalized_soap_grad_batched.1} parent=73 // loop_footer
                  %s9715 = sadd.s32 %s9713, 1
                $region80: #{_normalized_soap_grad_batched.1} parent=73 // loop_footer_branch
                  %9712 = sbr.rel target = $region76
                $region81: #{_normalized_soap_grad_batched.1} parent=73 // loop_exit
                  _
                %s9754 = sdiv.u32.pop %s9625, 13
                %s9755 = srem.u32.pop %s9625, 13
                %s9756 = smul.u32 %s9754, 13
                %s9757 = smul.u32 8, %s9756
                %s9758 = scalar_lea.vmem %s9614, %s9757 [#allocation2]
                %s9759 = smul.u32 8, %s9756
                %s9760 = scalar_lea.vmem %s9629, %s9759
                // While loop
                $region82: #{_normalized_soap_grad_batched.1} parent=73 // loop_pre_header
                  _
                $region83: #{_normalized_soap_grad_batched.1} parent=73 // loop_header
                  %s9762 = sphi 0, %s9764
                  %p9763 = scmp.ge.s32.totalorder %s9762, %s9755
                  %s9767 = sphi 0, %s9774
                  %s9768 = sphi %s9758, %s9777
                  %s9769 = sphi %s9760, %s9778
                $region84: #{_normalized_soap_grad_batched.1} parent=73 // loop_header_branch
                  %9766 = sbr.rel (%p9763) target = $region88
                $region85: #{_normalized_soap_grad_batched.1} parent=73 // loop_body
                  %v9770 = vld [vmem:[%s9768] sm:$0xff]
                  %9771 = vst [vmem:[%s9769] sm:$0xff] %v9770
                  %s9772 = sadd.s32 1, %s9767
                  %p9773 = scmp.ge.s32.totalorder %s9772, %s9755
                  %s9774 = scalar_select %p9773, 0, %s9772
                  %s9775 = smul.u32 %s9774, 8
                  %s9776 = smul.u32 %s9774, 8
                  %s9777 = scalar_lea.vmem %s9758, %s9775 [#allocation2]
                  %s9778 = scalar_lea.vmem %s9760, %s9776
                $region86: #{_normalized_soap_grad_batched.1} parent=73 // loop_footer
                  %s9764 = sadd.s32 %s9762, 1
                $region87: #{_normalized_soap_grad_batched.1} parent=73 // loop_footer_branch
                  %9761 = sbr.rel target = $region83
                $region88: #{_normalized_soap_grad_batched.1} parent=73 // loop_exit
                  _
              $region74: #{_normalized_soap_grad_batched.1} parent=51 // pred_fallthru
                _
              // Predicated region
              $region89: #{_normalized_soap_grad_batched.1} parent=51 // pred_check
                _
              $region90: #{_normalized_soap_grad_batched.1} parent=51 // pred_check_branch
                %9780 = sbr.rel target = $region92
              $region91: #{_normalized_soap_grad_batched.1} parent=51 // pred_region
                _
              $region92: #{_normalized_soap_grad_batched.1} parent=51 // pred_fallthru
                _
            $region52: #{_normalized_soap_grad_batched.1} parent=47 // pred_fallthru
              _
            // Predicated region
            $region53: #{_normalized_soap_grad_batched.1} parent=47 // pred_check
              _
            $region54: #{_normalized_soap_grad_batched.1} parent=47 // pred_check_branch
              %9636 = sbr.rel target = $region56
            $region55: #{_normalized_soap_grad_batched.1} parent=47 // pred_region
              %s9638 = ssub.s32 256, 1
              %s9639 = sdiv.u32.pop %s9625, 13
              %s9640 = srem.u32.pop %s9625, 13
              // While loop
              $region57: #{_normalized_soap_grad_batched.1} parent=55 // loop_pre_header
                _
              $region58: #{_normalized_soap_grad_batched.1} parent=55 // loop_header
                %s9642 = sphi 0, %s9644
                %p9643 = scmp.ge.s32.totalorder %s9642, %s9639
                %s9647 = sphi 0, %s9678
                %s9648 = sphi %s9614, %s9681
                %s9649 = sphi %s9629, %s9682
              $region59: #{_normalized_soap_grad_batched.1} parent=55 // loop_header_branch
                %9646 = sbr.rel (%p9643) target = $region63
              $region60: #{_normalized_soap_grad_batched.1} parent=55 // loop_body
                %v9650 = vld [vmem:[%s9648] sm:%s9638]
                %9651 = vst [vmem:[%s9649] sm:%s9638] %v9650
                %v9652 = vld [vmem:[%s9648 + $0x8] sm:%s9638]
                %9653 = vst [vmem:[%s9649 + $0x8] sm:%s9638] %v9652
                %v9654 = vld [vmem:[%s9648 + $0x10] sm:%s9638]
                %9655 = vst [vmem:[%s9649 + $0x10] sm:%s9638] %v9654
                %v9656 = vld [vmem:[%s9648 + $0x18] sm:%s9638]
                %9657 = vst [vmem:[%s9649 + $0x18] sm:%s9638] %v9656
                %v9658 = vld [vmem:[%s9648 + $0x20] sm:%s9638]
                %9659 = vst [vmem:[%s9649 + $0x20] sm:%s9638] %v9658
                %v9660 = vld [vmem:[%s9648 + $0x28] sm:%s9638]
                %9661 = vst [vmem:[%s9649 + $0x28] sm:%s9638] %v9660
                %v9662 = vld [vmem:[%s9648 + $0x30] sm:%s9638]
                %9663 = vst [vmem:[%s9649 + $0x30] sm:%s9638] %v9662
                %v9664 = vld [vmem:[%s9648 + $0x38] sm:%s9638]
                %9665 = vst [vmem:[%s9649 + $0x38] sm:%s9638] %v9664
                %v9666 = vld [vmem:[%s9648 + $0x40] sm:%s9638]
                %9667 = vst [vmem:[%s9649 + $0x40] sm:%s9638] %v9666
                %v9668 = vld [vmem:[%s9648 + $0x48] sm:%s9638]
                %9669 = vst [vmem:[%s9649 + $0x48] sm:%s9638] %v9668
                %v9670 = vld [vmem:[%s9648 + $0x50] sm:%s9638]
                %9671 = vst [vmem:[%s9649 + $0x50] sm:%s9638] %v9670
                %v9672 = vld [vmem:[%s9648 + $0x58] sm:%s9638]
                %9673 = vst [vmem:[%s9649 + $0x58] sm:%s9638] %v9672
                %v9674 = vld [vmem:[%s9648 + $0x60] sm:%s9638]
                %9675 = vst [vmem:[%s9649 + $0x60] sm:%s9638] %v9674
                %s9676 = sadd.s32 1, %s9647
                %p9677 = scmp.ge.s32.totalorder %s9676, %s9639
                %s9678 = scalar_select %p9677, 0, %s9676
                %s9679 = smul.u32 %s9678, 104
                %s9680 = smul.u32 %s9678, 104
                %s9681 = scalar_lea.vmem %s9614, %s9679 [#allocation2]
                %s9682 = scalar_lea.vmem %s9629, %s9680
              $region61: #{_normalized_soap_grad_batched.1} parent=55 // loop_footer
                %s9644 = sadd.s32 %s9642, 1
              $region62: #{_normalized_soap_grad_batched.1} parent=55 // loop_footer_branch
                %9641 = sbr.rel target = $region58
              $region63: #{_normalized_soap_grad_batched.1} parent=55 // loop_exit
                _
              %s9683 = sdiv.u32.pop %s9625, 13
              %s9684 = srem.u32.pop %s9625, 13
              %s9685 = smul.u32 %s9683, 13
              %s9686 = smul.u32 8, %s9685
              %s9687 = scalar_lea.vmem %s9614, %s9686 [#allocation2]
              %s9688 = smul.u32 8, %s9685
              %s9689 = scalar_lea.vmem %s9629, %s9688
              // While loop
              $region64: #{_normalized_soap_grad_batched.1} parent=55 // loop_pre_header
                _
              $region65: #{_normalized_soap_grad_batched.1} parent=55 // loop_header
                %s9691 = sphi 0, %s9693
                %p9692 = scmp.ge.s32.totalorder %s9691, %s9684
                %s9696 = sphi 0, %s9703
                %s9697 = sphi %s9687, %s9706
                %s9698 = sphi %s9689, %s9707
              $region66: #{_normalized_soap_grad_batched.1} parent=55 // loop_header_branch
                %9695 = sbr.rel (%p9692) target = $region70
              $region67: #{_normalized_soap_grad_batched.1} parent=55 // loop_body
                %v9699 = vld [vmem:[%s9697] sm:%s9638]
                %9700 = vst [vmem:[%s9698] sm:%s9638] %v9699
                %s9701 = sadd.s32 1, %s9696
                %p9702 = scmp.ge.s32.totalorder %s9701, %s9684
                %s9703 = scalar_select %p9702, 0, %s9701
                %s9704 = smul.u32 %s9703, 8
                %s9705 = smul.u32 %s9703, 8
                %s9706 = scalar_lea.vmem %s9687, %s9704 [#allocation2]
                %s9707 = scalar_lea.vmem %s9689, %s9705
              $region68: #{_normalized_soap_grad_batched.1} parent=55 // loop_footer
                %s9693 = sadd.s32 %s9691, 1
              $region69: #{_normalized_soap_grad_batched.1} parent=55 // loop_footer_branch
                %9690 = sbr.rel target = $region65
              $region70: #{_normalized_soap_grad_batched.1} parent=55 // loop_exit
                _
            $region56: #{_normalized_soap_grad_batched.1} parent=47 // pred_fallthru
              _
          $region48: #{_normalized_soap_grad_batched.1} parent=43 // pred_fallthru
            _
          %9781 = vnop
        $region44: #{_normalized_soap_grad_batched.1} parent=39 // pred_fallthru
          _
        // Predicated region
        $region93: #{_normalized_soap_grad_batched.1} parent=39 // pred_check
          %p9782 = pneg %p177
        $region94: #{_normalized_soap_grad_batched.1} parent=39 // pred_check_branch
          %9784 = sbr.rel (%p9782) target = $region96
        $region95: #{_normalized_soap_grad_batched.1} parent=39 // pred_region
          %s9785 = smul.u32 13, %s18
          %s9786 = ssub.s32 25, %s9785
          %p9787 = scmp.lt.s32.totalorder %s9786, 13
          %s9788 = scalar_select %p9787, %s9786, 13
          %s9789 = smul.u32 128, %s9788
          %s9790 = smul.u32 %s9789, 12
          %p9791 = scmp.ne.s32.totalorder 0, %s9790
          %s9792 = smul.addr %s9785, 12
          %s9793 = smul.addr %s9792, 8
          %s9794 = scalar_lea.vmem %s6, %s9793
          // Predicated region
          $region97: #{_normalized_soap_grad_batched.1} parent=95 // pred_check
            %p9795 = pneg %p9791
          $region98: #{_normalized_soap_grad_batched.1} parent=95 // pred_check_branch
            %9797 = sbr.rel (%p9795) target = $region100
          $region99: #{_normalized_soap_grad_batched.1} parent=95 // pred_region
            // Predicated region
            $region101: #{_normalized_soap_grad_batched.1} parent=99 // pred_check
              _
            $region102: #{_normalized_soap_grad_batched.1} parent=99 // pred_check_branch
              %9799 = sbr.rel (0) target = $region104
            $region103: #{_normalized_soap_grad_batched.1} parent=99 // pred_region
              %s9800 = sdiv.u32.pop %s9788, 6
              %s9801 = srem.u32.pop %s9788, 6
              // While loop
              $region105: #{_normalized_soap_grad_batched.1} parent=103 // loop_pre_header
                _
              $region106: #{_normalized_soap_grad_batched.1} parent=103 // loop_header
                %s9803 = sphi 0, %s9805
                %p9804 = scmp.ge.s32.totalorder %s9803, %s9800
                %s9808 = sphi 0, %s9957
                %s9809 = sphi %s9618, %s9960
                %s9810 = sphi %s9794, %s9961
              $region107: #{_normalized_soap_grad_batched.1} parent=103 // loop_header_branch
                %9807 = sbr.rel (%p9804) target = $region111
              $region108: #{_normalized_soap_grad_batched.1} parent=103 // loop_body
                %v9811 = vld [vmem:[%s9809] sm:$0xff]
                %9812 = vst [vmem:[%s9810] sm:$0xff] %v9811
                %v9813 = vld [vmem:[%s9809 + $0x60] sm:$0xff]
                %9814 = vst [vmem:[%s9810 + $0x60] sm:$0xff] %v9813
                %v9815 = vld [vmem:[%s9809 + $0xc0] sm:$0xff]
                %9816 = vst [vmem:[%s9810 + $0xc0] sm:$0xff] %v9815
                %v9817 = vld [vmem:[%s9809 + $0x120] sm:$0xff]
                %9818 = vst [vmem:[%s9810 + $0x120] sm:$0xff] %v9817
                %v9819 = vld [vmem:[%s9809 + $0x180] sm:$0xff]
                %9820 = vst [vmem:[%s9810 + $0x180] sm:$0xff] %v9819
                %v9821 = vld [vmem:[%s9809 + $0x1e0] sm:$0xff]
                %9822 = vst [vmem:[%s9810 + $0x1e0] sm:$0xff] %v9821
                %v9823 = vld [vmem:[%s9809 + $0x8] sm:$0xff]
                %9824 = vst [vmem:[%s9810 + $0x8] sm:$0xff] %v9823
                %v9825 = vld [vmem:[%s9809 + $0x68] sm:$0xff]
                %9826 = vst [vmem:[%s9810 + $0x68] sm:$0xff] %v9825
                %v9827 = vld [vmem:[%s9809 + $0xc8] sm:$0xff]
                %9828 = vst [vmem:[%s9810 + $0xc8] sm:$0xff] %v9827
                %v9829 = vld [vmem:[%s9809 + $0x128] sm:$0xff]
                %9830 = vst [vmem:[%s9810 + $0x128] sm:$0xff] %v9829
                %v9831 = vld [vmem:[%s9809 + $0x188] sm:$0xff]
                %9832 = vst [vmem:[%s9810 + $0x188] sm:$0xff] %v9831
                %v9833 = vld [vmem:[%s9809 + $0x1e8] sm:$0xff]
                %9834 = vst [vmem:[%s9810 + $0x1e8] sm:$0xff] %v9833
                %v9835 = vld [vmem:[%s9809 + $0x10] sm:$0xff]
                %9836 = vst [vmem:[%s9810 + $0x10] sm:$0xff] %v9835
                %v9837 = vld [vmem:[%s9809 + $0x70] sm:$0xff]
                %9838 = vst [vmem:[%s9810 + $0x70] sm:$0xff] %v9837
                %v9839 = vld [vmem:[%s9809 + $0xd0] sm:$0xff]
                %9840 = vst [vmem:[%s9810 + $0xd0] sm:$0xff] %v9839
                %v9841 = vld [vmem:[%s9809 + $0x130] sm:$0xff]
                %9842 = vst [vmem:[%s9810 + $0x130] sm:$0xff] %v9841
                %v9843 = vld [vmem:[%s9809 + $0x190] sm:$0xff]
                %9844 = vst [vmem:[%s9810 + $0x190] sm:$0xff] %v9843
                %v9845 = vld [vmem:[%s9809 + $0x1f0] sm:$0xff]
                %9846 = vst [vmem:[%s9810 + $0x1f0] sm:$0xff] %v9845
                %v9847 = vld [vmem:[%s9809 + $0x18] sm:$0xff]
                %9848 = vst [vmem:[%s9810 + $0x18] sm:$0xff] %v9847
                %v9849 = vld [vmem:[%s9809 + $0x78] sm:$0xff]
                %9850 = vst [vmem:[%s9810 + $0x78] sm:$0xff] %v9849
                %v9851 = vld [vmem:[%s9809 + $0xd8] sm:$0xff]
                %9852 = vst [vmem:[%s9810 + $0xd8] sm:$0xff] %v9851
                %v9853 = vld [vmem:[%s9809 + $0x138] sm:$0xff]
                %9854 = vst [vmem:[%s9810 + $0x138] sm:$0xff] %v9853
                %v9855 = vld [vmem:[%s9809 + $0x198] sm:$0xff]
                %9856 = vst [vmem:[%s9810 + $0x198] sm:$0xff] %v9855
                %v9857 = vld [vmem:[%s9809 + $0x1f8] sm:$0xff]
                %9858 = vst [vmem:[%s9810 + $0x1f8] sm:$0xff] %v9857
                %v9859 = vld [vmem:[%s9809 + $0x20] sm:$0xff]
                %9860 = vst [vmem:[%s9810 + $0x20] sm:$0xff] %v9859
                %v9861 = vld [vmem:[%s9809 + $0x80] sm:$0xff]
                %9862 = vst [vmem:[%s9810 + $0x80] sm:$0xff] %v9861
                %v9863 = vld [vmem:[%s9809 + $0xe0] sm:$0xff]
                %9864 = vst [vmem:[%s9810 + $0xe0] sm:$0xff] %v9863
                %v9865 = vld [vmem:[%s9809 + $0x140] sm:$0xff]
                %9866 = vst [vmem:[%s9810 + $0x140] sm:$0xff] %v9865
                %v9867 = vld [vmem:[%s9809 + $0x1a0] sm:$0xff]
                %9868 = vst [vmem:[%s9810 + $0x1a0] sm:$0xff] %v9867
                %v9869 = vld [vmem:[%s9809 + $0x200] sm:$0xff]
                %9870 = vst [vmem:[%s9810 + $0x200] sm:$0xff] %v9869
                %v9871 = vld [vmem:[%s9809 + $0x28] sm:$0xff]
                %9872 = vst [vmem:[%s9810 + $0x28] sm:$0xff] %v9871
                %v9873 = vld [vmem:[%s9809 + $0x88] sm:$0xff]
                %9874 = vst [vmem:[%s9810 + $0x88] sm:$0xff] %v9873
                %v9875 = vld [vmem:[%s9809 + $0xe8] sm:$0xff]
                %9876 = vst [vmem:[%s9810 + $0xe8] sm:$0xff] %v9875
                %v9877 = vld [vmem:[%s9809 + $0x148] sm:$0xff]
                %9878 = vst [vmem:[%s9810 + $0x148] sm:$0xff] %v9877
                %v9879 = vld [vmem:[%s9809 + $0x1a8] sm:$0xff]
                %9880 = vst [vmem:[%s9810 + $0x1a8] sm:$0xff] %v9879
                %v9881 = vld [vmem:[%s9809 + $0x208] sm:$0xff]
                %9882 = vst [vmem:[%s9810 + $0x208] sm:$0xff] %v9881
                %v9883 = vld [vmem:[%s9809 + $0x30] sm:$0xff]
                %9884 = vst [vmem:[%s9810 + $0x30] sm:$0xff] %v9883
                %v9885 = vld [vmem:[%s9809 + $0x90] sm:$0xff]
                %9886 = vst [vmem:[%s9810 + $0x90] sm:$0xff] %v9885
                %v9887 = vld [vmem:[%s9809 + $0xf0] sm:$0xff]
                %9888 = vst [vmem:[%s9810 + $0xf0] sm:$0xff] %v9887
                %v9889 = vld [vmem:[%s9809 + $0x150] sm:$0xff]
                %9890 = vst [vmem:[%s9810 + $0x150] sm:$0xff] %v9889
                %v9891 = vld [vmem:[%s9809 + $0x1b0] sm:$0xff]
                %9892 = vst [vmem:[%s9810 + $0x1b0] sm:$0xff] %v9891
                %v9893 = vld [vmem:[%s9809 + $0x210] sm:$0xff]
                %9894 = vst [vmem:[%s9810 + $0x210] sm:$0xff] %v9893
                %v9895 = vld [vmem:[%s9809 + $0x38] sm:$0xff]
                %9896 = vst [vmem:[%s9810 + $0x38] sm:$0xff] %v9895
                %v9897 = vld [vmem:[%s9809 + $0x98] sm:$0xff]
                %9898 = vst [vmem:[%s9810 + $0x98] sm:$0xff] %v9897
                %v9899 = vld [vmem:[%s9809 + $0xf8] sm:$0xff]
                %9900 = vst [vmem:[%s9810 + $0xf8] sm:$0xff] %v9899
                %v9901 = vld [vmem:[%s9809 + $0x158] sm:$0xff]
                %9902 = vst [vmem:[%s9810 + $0x158] sm:$0xff] %v9901
                %v9903 = vld [vmem:[%s9809 + $0x1b8] sm:$0xff]
                %9904 = vst [vmem:[%s9810 + $0x1b8] sm:$0xff] %v9903
                %v9905 = vld [vmem:[%s9809 + $0x218] sm:$0xff]
                %9906 = vst [vmem:[%s9810 + $0x218] sm:$0xff] %v9905
                %v9907 = vld [vmem:[%s9809 + $0x40] sm:$0xff]
                %9908 = vst [vmem:[%s9810 + $0x40] sm:$0xff] %v9907
                %v9909 = vld [vmem:[%s9809 + $0xa0] sm:$0xff]
                %9910 = vst [vmem:[%s9810 + $0xa0] sm:$0xff] %v9909
                %v9911 = vld [vmem:[%s9809 + $0x100] sm:$0xff]
                %9912 = vst [vmem:[%s9810 + $0x100] sm:$0xff] %v9911
                %v9913 = vld [vmem:[%s9809 + $0x160] sm:$0xff]
                %9914 = vst [vmem:[%s9810 + $0x160] sm:$0xff] %v9913
                %v9915 = vld [vmem:[%s9809 + $0x1c0] sm:$0xff]
                %9916 = vst [vmem:[%s9810 + $0x1c0] sm:$0xff] %v9915
                %v9917 = vld [vmem:[%s9809 + $0x220] sm:$0xff]
                %9918 = vst [vmem:[%s9810 + $0x220] sm:$0xff] %v9917
                %v9919 = vld [vmem:[%s9809 + $0x48] sm:$0xff]
                %9920 = vst [vmem:[%s9810 + $0x48] sm:$0xff] %v9919
                %v9921 = vld [vmem:[%s9809 + $0xa8] sm:$0xff]
                %9922 = vst [vmem:[%s9810 + $0xa8] sm:$0xff] %v9921
                %v9923 = vld [vmem:[%s9809 + $0x108] sm:$0xff]
                %9924 = vst [vmem:[%s9810 + $0x108] sm:$0xff] %v9923
                %v9925 = vld [vmem:[%s9809 + $0x168] sm:$0xff]
                %9926 = vst [vmem:[%s9810 + $0x168] sm:$0xff] %v9925
                %v9927 = vld [vmem:[%s9809 + $0x1c8] sm:$0xff]
                %9928 = vst [vmem:[%s9810 + $0x1c8] sm:$0xff] %v9927
                %v9929 = vld [vmem:[%s9809 + $0x228] sm:$0xff]
                %9930 = vst [vmem:[%s9810 + $0x228] sm:$0xff] %v9929
                %v9931 = vld [vmem:[%s9809 + $0x50] sm:$0xff]
                %9932 = vst [vmem:[%s9810 + $0x50] sm:$0xff] %v9931
                %v9933 = vld [vmem:[%s9809 + $0xb0] sm:$0xff]
                %9934 = vst [vmem:[%s9810 + $0xb0] sm:$0xff] %v9933
                %v9935 = vld [vmem:[%s9809 + $0x110] sm:$0xff]
                %9936 = vst [vmem:[%s9810 + $0x110] sm:$0xff] %v9935
                %v9937 = vld [vmem:[%s9809 + $0x170] sm:$0xff]
                %9938 = vst [vmem:[%s9810 + $0x170] sm:$0xff] %v9937
                %v9939 = vld [vmem:[%s9809 + $0x1d0] sm:$0xff]
                %9940 = vst [vmem:[%s9810 + $0x1d0] sm:$0xff] %v9939
                %v9941 = vld [vmem:[%s9809 + $0x230] sm:$0xff]
                %9942 = vst [vmem:[%s9810 + $0x230] sm:$0xff] %v9941
                %v9943 = vld [vmem:[%s9809 + $0x58] sm:$0xff]
                %9944 = vst [vmem:[%s9810 + $0x58] sm:$0xff] %v9943
                %v9945 = vld [vmem:[%s9809 + $0xb8] sm:$0xff]
                %9946 = vst [vmem:[%s9810 + $0xb8] sm:$0xff] %v9945
                %v9947 = vld [vmem:[%s9809 + $0x118] sm:$0xff]
                %9948 = vst [vmem:[%s9810 + $0x118] sm:$0xff] %v9947
                %v9949 = vld [vmem:[%s9809 + $0x178] sm:$0xff]
                %9950 = vst [vmem:[%s9810 + $0x178] sm:$0xff] %v9949
                %v9951 = vld [vmem:[%s9809 + $0x1d8] sm:$0xff]
                %9952 = vst [vmem:[%s9810 + $0x1d8] sm:$0xff] %v9951
                %v9953 = vld [vmem:[%s9809 + $0x238] sm:$0xff]
                %9954 = vst [vmem:[%s9810 + $0x238] sm:$0xff] %v9953
                %s9955 = sadd.s32 1, %s9808
                %p9956 = scmp.ge.s32.totalorder %s9955, %s9800
                %s9957 = scalar_select %p9956, 0, %s9955
                %s9958 = smul.u32 %s9957, 576
                %s9959 = smul.u32 %s9957, 576
                %s9960 = scalar_lea.vmem %s9618, %s9958 [#allocation3]
                %s9961 = scalar_lea.vmem %s9794, %s9959
              $region109: #{_normalized_soap_grad_batched.1} parent=103 // loop_footer
                %s9805 = sadd.s32 %s9803, 1
              $region110: #{_normalized_soap_grad_batched.1} parent=103 // loop_footer_branch
                %9802 = sbr.rel target = $region106
              $region111: #{_normalized_soap_grad_batched.1} parent=103 // loop_exit
                _
              %s9962 = sdiv.u32.pop %s9788, 6
              %s9963 = srem.u32.pop %s9788, 6
              %s9964 = smul.u32 %s9962, 6
              %s9965 = smul.u32 96, %s9964
              %s9966 = scalar_lea.vmem %s9618, %s9965 [#allocation3]
              %s9967 = smul.u32 96, %s9964
              %s9968 = scalar_lea.vmem %s9794, %s9967
              // While loop
              $region112: #{_normalized_soap_grad_batched.1} parent=103 // loop_pre_header
                _
              $region113: #{_normalized_soap_grad_batched.1} parent=103 // loop_header
                %s9970 = sphi 0, %s9972
                %p9971 = scmp.ge.s32.totalorder %s9970, %s9963
                %s9975 = sphi 0, %s10004
                %s9976 = sphi %s9966, %s10007
                %s9977 = sphi %s9968, %s10008
              $region114: #{_normalized_soap_grad_batched.1} parent=103 // loop_header_branch
                %9974 = sbr.rel (%p9971) target = $region118
              $region115: #{_normalized_soap_grad_batched.1} parent=103 // loop_body
                %v9978 = vld [vmem:[%s9976] sm:$0xff]
                %9979 = vst [vmem:[%s9977] sm:$0xff] %v9978
                %v9980 = vld [vmem:[%s9976 + $0x8] sm:$0xff]
                %9981 = vst [vmem:[%s9977 + $0x8] sm:$0xff] %v9980
                %v9982 = vld [vmem:[%s9976 + $0x10] sm:$0xff]
                %9983 = vst [vmem:[%s9977 + $0x10] sm:$0xff] %v9982
                %v9984 = vld [vmem:[%s9976 + $0x18] sm:$0xff]
                %9985 = vst [vmem:[%s9977 + $0x18] sm:$0xff] %v9984
                %v9986 = vld [vmem:[%s9976 + $0x20] sm:$0xff]
                %9987 = vst [vmem:[%s9977 + $0x20] sm:$0xff] %v9986
                %v9988 = vld [vmem:[%s9976 + $0x28] sm:$0xff]
                %9989 = vst [vmem:[%s9977 + $0x28] sm:$0xff] %v9988
                %v9990 = vld [vmem:[%s9976 + $0x30] sm:$0xff]
                %9991 = vst [vmem:[%s9977 + $0x30] sm:$0xff] %v9990
                %v9992 = vld [vmem:[%s9976 + $0x38] sm:$0xff]
                %9993 = vst [vmem:[%s9977 + $0x38] sm:$0xff] %v9992
                %v9994 = vld [vmem:[%s9976 + $0x40] sm:$0xff]
                %9995 = vst [vmem:[%s9977 + $0x40] sm:$0xff] %v9994
                %v9996 = vld [vmem:[%s9976 + $0x48] sm:$0xff]
                %9997 = vst [vmem:[%s9977 + $0x48] sm:$0xff] %v9996
                %v9998 = vld [vmem:[%s9976 + $0x50] sm:$0xff]
                %9999 = vst [vmem:[%s9977 + $0x50] sm:$0xff] %v9998
                %v10000 = vld [vmem:[%s9976 + $0x58] sm:$0xff]
                %10001 = vst [vmem:[%s9977 + $0x58] sm:$0xff] %v10000
                %s10002 = sadd.s32 1, %s9975
                %p10003 = scmp.ge.s32.totalorder %s10002, %s9963
                %s10004 = scalar_select %p10003, 0, %s10002
                %s10005 = smul.u32 %s10004, 96
                %s10006 = smul.u32 %s10004, 96
                %s10007 = scalar_lea.vmem %s9966, %s10005 [#allocation3]
                %s10008 = scalar_lea.vmem %s9968, %s10006
              $region116: #{_normalized_soap_grad_batched.1} parent=103 // loop_footer
                %s9972 = sadd.s32 %s9970, 1
              $region117: #{_normalized_soap_grad_batched.1} parent=103 // loop_footer_branch
                %9969 = sbr.rel target = $region113
              $region118: #{_normalized_soap_grad_batched.1} parent=103 // loop_exit
                _
            $region104: #{_normalized_soap_grad_batched.1} parent=99 // pred_fallthru
              _
            // Predicated region
            $region119: #{_normalized_soap_grad_batched.1} parent=99 // pred_check
              _
            $region120: #{_normalized_soap_grad_batched.1} parent=99 // pred_check_branch
              %10010 = sbr.rel target = $region122
            $region121: #{_normalized_soap_grad_batched.1} parent=99 // pred_region
              _
            $region122: #{_normalized_soap_grad_batched.1} parent=99 // pred_fallthru
              _
          $region100: #{_normalized_soap_grad_batched.1} parent=95 // pred_fallthru
            _
          %10011 = vnop
        $region96: #{_normalized_soap_grad_batched.1} parent=39 // pred_fallthru
          _
      $region40: #{_normalized_soap_grad_batched.1} parent=5 // pred_fallthru
        _
      %p10012 = scmp.le.s32.totalorder 2, %s13
      // Predicated region
      $region123: #{_normalized_soap_grad_batched.1} parent=5 // pred_check
        %p10013 = pneg %p10012
      $region124: #{_normalized_soap_grad_batched.1} parent=5 // pred_check_branch
        %10015 = sbr.rel (%p10013) target = $region126
      $region125: #{_normalized_soap_grad_batched.1} parent=5 // pred_region
        %s10016 = ssub.s32 %s13, 2
        // Predicated region
        $region127: #{_normalized_soap_grad_batched.1} parent=125 // pred_check
          %p10017 = pneg %p157
        $region128: #{_normalized_soap_grad_batched.1} parent=125 // pred_check_branch
          %10019 = sbr.rel (%p10017) target = $region130
        $region129: #{_normalized_soap_grad_batched.1} parent=125 // pred_region
          %s10020 = sand.u32 %s142, 1
          %s10021 = sand.u32 %s142, 1
          %s10022 = smul.addr %s10021, 104
          %s10023 = scalar_lea.vmem [#allocation2], %s10022
        $region130: #{_normalized_soap_grad_batched.1} parent=125 // pred_fallthru
          _
        // Predicated region
        $region131: #{_normalized_soap_grad_batched.1} parent=125 // pred_check
          %p10024 = pneg %p183
        $region132: #{_normalized_soap_grad_batched.1} parent=125 // pred_check_branch
          %10026 = sbr.rel (%p10024) target = $region134
        $region133: #{_normalized_soap_grad_batched.1} parent=125 // pred_region
          %s10027 = sand.u32 %s168, 1
          %s10028 = sand.u32 %s168, 1
          %s10029 = smul.addr %s10028, 1248
          %s10030 = scalar_lea.vmem [#allocation3], %s10029
        $region134: #{_normalized_soap_grad_batched.1} parent=125 // pred_fallthru
          _
      $region126: #{_normalized_soap_grad_batched.1} parent=5 // pred_fallthru
        _
    $region6: #{_normalized_soap_grad_batched.1} parent=1 // loop_footer
      %s17 = sadd.s32 1, %s13
    $region7: #{_normalized_soap_grad_batched.1} parent=1 // loop_footer_branch
      %12 = sbr.rel target = $region3
    $region8: #{_normalized_soap_grad_batched.1} parent=1 // loop_exit
      _

</llo_original>
